<compile_context>
chip_gen: v6e
topology: v6e:2x2x1
jax: 0.10.0
libtpu: 0.0.40
codegen_flags: <defaults>
</compile_context>

<pallas_src>
import math
import functools

import jax
import jax.numpy as jnp
from jax.experimental import pallas as pl
from jax.experimental.pallas import tpu as pltpu


def _pad8(c):
    return ((c + 7) // 8) * 8


# ----------------------------------------------------------------------------
# Fused whole-network kernel
# ----------------------------------------------------------------------------
def _cheb_conv_block(h, lap, lap2, w_ref, aff_ref, *, K, bn_relu):
    """ConvCheb (+ bias) [+ BatchNorm1d(train stats) + ReLU] on (B*V, C) data."""
    # Chebyshev basis: T0 = h, T1 = L h, T_k = 2 L T_{k-1} - T_{k-2}.
    t0 = h.astype(jnp.bfloat16)
    ts = [t0]
    if K > 1:
        t1 = jnp.dot(lap, t0,
                     preferred_element_type=jnp.float32).astype(jnp.bfloat16)
        ts.append(t1)
        tm2, tm1 = t0, t1
        for _ in range(2, K):
            tk = (jnp.dot(lap2, tm1, preferred_element_type=jnp.float32)
                  - tm2.astype(jnp.float32)).astype(jnp.bfloat16)
            ts.append(tk)
            tm2, tm1 = tm1, tk

    # Single flattened weight matmul: (B*V, K*Fin) @ (K*Fin, Fout), f32 acc.
    z = jnp.concatenate(ts, axis=1) if len(ts) > 1 else ts[0]
    y = jnp.dot(z, w_ref[...], preferred_element_type=jnp.float32)
    y = y + aff_ref[0:1, :]                          # conv bias (f32)

    if bn_relu:
        # One-pass BatchNorm1d (training-mode biased batch stats, eps=1e-5)
        # fused with ReLU: accumulate sum / sum-of-squares, then one
        # scale+shift+max sweep.  All in f32.
        inv_n = 1.0 / float(y.shape[0])
        s1 = jnp.sum(y, axis=0, keepdims=True)
        s2 = jnp.sum(y * y, axis=0, keepdims=True)
        mean = s1 * inv_n
        var = jnp.maximum(s2 * inv_n - mean * mean, 0.0)
        inv = jax.lax.rsqrt(var + 1e-5)
        scale = aff_ref[1:2, :] * inv                # gamma / sqrt(var + eps)
        shift = aff_ref[2:3, :] - mean * scale       # beta  - mean * scale
        y = jnp.maximum(y * scale + shift, 0.0)
    return y


def _unet_kernel(*refs, K, block_cfg):
    n_blocks = len(block_cfg)
    (x_ref, l0_ref, l1_ref, l2_ref, d0_ref, d1_ref, d2_ref,
     p1_ref, p2_ref, u1_ref, u2_ref) = refs[:11]
    w_refs = refs[11:11 + n_blocks]
    a_refs = refs[11 + n_blocks:11 + 2 * n_blocks]
    o_ref = refs[-1]

    laps = (l0_ref[...], l1_ref[...], l2_ref[...])       # bf16 block-diag L
    laps2 = (d0_ref[...], d1_ref[...], d2_ref[...])      # bf16 block-diag 2*L
    p1, p2 = p1_ref[...], p2_ref[...]
    u1, u2 = u1_ref[...], u2_ref[...]

    def block(i, h):
        lap_idx, bn_relu = block_cfg[i]
        return _cheb_conv_block(h, laps[lap_idx], laps2[lap_idx],
                                w_refs[i], a_refs[i], K=K, bn_relu=bn_relu)

    def resample(mat, h):                                # pool / unpool matmul
        return jnp.dot(mat, h.astype(jnp.bfloat16),
                       preferred_element_type=jnp.float32)

    # ---------------- encoder ----------------
    h = x_ref[...]
    x_enc1 = block(0, h)
    x_enc1 = block(1, x_enc1)
    x_enc1 = block(2, x_enc1)

    x_enc2 = resample(p1, x_enc1)
    x_enc2 = block(3, x_enc2)
    x_enc2 = block(4, x_enc2)
    x_enc2 = block(5, x_enc2)

    x_enc3 = resample(p2, x_enc2)
    x_enc3 = block(6, x_enc3)
    x_enc3 = block(7, x_enc3)

    # ---------------- decoder ----------------
    h = resample(u2, x_enc3)
    h = jnp.concatenate([h, x_enc2], axis=1)             # skip connection
    h = block(8, h)
    h = block(9, h)

    h = resample(u1, h)
    h = jnp.concatenate([h, x_enc1], axis=1)             # skip connection
    h = block(10, h)
    h = block(11, h)
    h = block(12, h)                                     # plain ConvCheb

    o_ref[...] = h.astype(o_ref.dtype)


# ----------------------------------------------------------------------------
# Equiangular pooling / unpooling operators (precomputed matrices)
# ----------------------------------------------------------------------------
def _equiangular_dims(V, ratio):
    d1 = int(round(math.sqrt(V / ratio)))                # height
    d2 = V // d1                                         # width = ratio*height
    assert d1 * d2 == V
    return d1, d2


def make_pool_unpool(V, ratio, k=2):
    """2x2 average-pool and nearest-neighbor-unpool operators on the grid."""
    d1, d2 = _equiangular_dims(V, ratio)
    assert d1 % k == 0 and d2 % k == 0
    vs = (d1 // k) * (d2 // k)
    fine = jnp.arange(V)
    i1, i2 = fine // d2, fine % d2
    coarse = (i1 // k) * (d2 // k) + (i2 // k)           # parent of each node
    unpool = (coarse[:, None] == jnp.arange(vs)[None, :]).astype(jnp.float32)
    pool = unpool.T / float(k * k)
    return pool, unpool                                  # (vs,V), (V,vs)


# ----------------------------------------------------------------------------
# Deterministic parameter / laplacian construction
# ----------------------------------------------------------------------------
def make_laplacian(key, V):
    # TODO(synk): pygsp SphereEquiangular graph laplacian replaced by a
    # deterministic synthetic symmetric matrix with spectrum inside [-1, 1].
    a = jax.random.normal(key, (V, V), dtype=jnp.float32)
    s = 0.5 * (a + a.T)
    return s / jnp.float32(V)


def make_conv_block_params(key, k, fin, fout):
    kw, kb = jax.random.split(key)
    std = math.sqrt(2.0 / (fin * k))
    w = jax.random.normal(kw, (k, fin, fout), dtype=jnp.float32) * std
    bias = jax.random.normal(kb, (fout,), dtype=jnp.float32) * 0.01
    gamma = jnp.ones((fout,), dtype=jnp.float32)          # BN default init
    beta = jnp.zeros((fout,), dtype=jnp.float32)
    return dict(w=w, b=bias, gamma=gamma, beta=beta)


def unet_config(in_channels, out_channels):
    # (name, fin, fout, laplacian index, apply_bn_relu)
    return [
        ("conv11", in_channels, 6, 0, True), ("conv12", 6, 11, 0, True),
        ("conv13", 11, 16, 0, True),
        ("conv21", 16, 22, 1, True), ("conv22", 22, 27, 1, True),
        ("conv23", 27, 32, 1, True),
        ("conv31", 32, 64, 2, True), ("conv32", 64, 32, 2, True),
        ("uconv21", 64, 32, 1, True), ("uconv22", 32, 16, 1, True),
        ("uconv11", 32, 16, 0, True), ("uconv12", 16, out_channels, 0, True),
        ("uconv13", out_channels, out_channels, 0, False),
    ]


def build_unet_params(key, in_channels, out_channels, kernel_size, node_counts):
    cfg = unet_config(in_channels, out_channels)
    keys = jax.random.split(key, 3 + len(cfg))
    laps = [make_laplacian(keys[i], node_counts[i]) for i in range(3)]
    params = {}
    for i, (name, fin, fout, _, _) in enumerate(cfg):
        params[name] = make_conv_block_params(keys[3 + i], kernel_size,
                                              fin, fout)
    return params, laps


# ----------------------------------------------------------------------------
# UNetSphericalTest forward (single fused pallas_call)
# ----------------------------------------------------------------------------
def unet_spherical_forward(params, laps, x, *, ratio, kernel_size,
                           in_channels, out_channels):
    cfg = unet_config(in_channels, out_channels)
    B, V0, _ = x.shape

    eye_b = jnp.eye(B, dtype=jnp.float32)

    def bd(m):          # block-diagonal over the batch, bf16 for the MXU
        return jnp.kron(eye_b, m).astype(jnp.bfloat16)

    l_bd = [bd(l) for l in laps]
    l2_bd = [bd(2.0 * l) for l in laps]                  # 2*L precomputed

    node_counts = [int(l.shape[0]) for l in laps]
    p1, u1 = make_pool_unpool(node_counts[0], ratio)     # level 1 <-> 2
    p2, u2 = make_pool_unpool(node_counts[1], ratio)     # level 2 <-> 3
    p1_bd, u1_bd = bd(p1), bd(u1)
    p2_bd, u2_bd = bd(p2), bd(u2)

    # Pack weights (zero-padded channels -> multiple of 8, flattened to
    # (K*Fin_pad, Fout_pad) in [k][fin] row order, bf16) and affine params
    # (rows: bias / gamma / beta, f32).
    w_ops, a_ops, block_cfg = [], [], []
    for name, fin, fout, lap_idx, bn_relu in cfg:
        p = params[name]
        fin_p, fout_p = _pad8(fin), _pad8(fout)
        w = jnp.zeros((kernel_size, fin_p, fout_p), jnp.float32)
        w = w.at[:, :fin, :fout].set(p["w"])
        w_ops.append(w.reshape(kernel_size * fin_p, fout_p).astype(jnp.bfloat16))
        aff = jnp.zeros((3, fout_p), jnp.float32)
        aff = aff.at[0, :fout].set(p["b"])
        aff = aff.at[1, :fout].set(p["gamma"])
        aff = aff.at[2, :fout].set(p["beta"])
        a_ops.append(aff)
        block_cfg.append((lap_idx, bn_relu))

    cin_p = _pad8(in_channels)
    cout_p = _pad8(out_channels)
    x_flat = jnp.zeros((B * V0, cin_p), jnp.float32)
    x_flat = x_flat.at[:, :in_channels].set(
        x.reshape(B * V0, in_channels).astype(jnp.float32))

    operands = ([x_flat, l_bd[0], l_bd[1], l_bd[2],
                 l2_bd[0], l2_bd[1], l2_bd[2],
                 p1_bd, p2_bd, u1_bd, u2_bd] + w_ops + a_ops)

    kern = functools.partial(_unet_kernel, K=kernel_size,
                             block_cfg=tuple(block_cfg))
    vmem = pl.BlockSpec(memory_space=pltpu.MemorySpace.VMEM)

    # TODO(synk): for realistic resolutions (V >= 2048) the dense (V,V)
    # Laplacian should be streamed via a tiled BlockSpec grid (row blocks
    # "parallel", contraction blocks "arbitrary") and row-blocks sharded over
    # the two v7x TensorCores; at these toy shapes everything fits in VMEM.
    out_flat = pl.pallas_call(
        kern,
        out_shape=jax.ShapeDtypeStruct((B * V0, cout_p), jnp.float32),
        in_specs=[vmem] * len(operands),
        out_specs=vmem,
    )(*operands)

    return out_flat[:, :out_channels].reshape(B, V0, out_channels)


# ----------------------------------------------------------------------------
if __name__ == "__main__":
    # Small shapes consistent with the module: equiangular grid, ratio=2,
    # node counts 128 -> 32 -> 8 across the three UNet levels.
    B = 2
    N = 128
    RATIO = 2.0
    IN_CH = 4
    OUT_CH = 4
    K = 3
    NODE_COUNTS = [128, 32, 8]   # real module uses [2048, 512, 128]

    root = jax.random.PRNGKey(0)
    k_params, k_x = jax.random.split(root)
    params, laps = build_unet_params(k_params, IN_CH, OUT_CH, K, NODE_COUNTS)
    x = jax.random.normal(k_x, (B, N, IN_CH), dtype=jnp.float32)

    fwd = jax.jit(functools.partial(
        unet_spherical_forward, ratio=RATIO, kernel_size=K,
        in_channels=IN_CH, out_channels=OUT_CH))
    out = jax.block_until_ready(fwd(params, laps, x))

    assert out.shape == (B, N, OUT_CH), out.shape
    assert out.dtype == jnp.float32
    assert bool(jnp.all(jnp.isfinite(out)))
    print("KERNEL_OK")
</pallas_src>

<mosaic_0001>
module attributes {stable_mosaic.version = 11 : i64} {
  func.func @_unet_kernel(%arg0: memref<256x8xf32, #tpu.memory_space<vmem>>, %arg1: memref<256x256xbf16, #tpu.memory_space<vmem>>, %arg2: memref<64x64xbf16, #tpu.memory_space<vmem>>, %arg3: memref<16x16xbf16, #tpu.memory_space<vmem>>, %arg4: memref<256x256xbf16, #tpu.memory_space<vmem>>, %arg5: memref<64x64xbf16, #tpu.memory_space<vmem>>, %arg6: memref<16x16xbf16, #tpu.memory_space<vmem>>, %arg7: memref<64x256xbf16, #tpu.memory_space<vmem>>, %arg8: memref<16x64xbf16, #tpu.memory_space<vmem>>, %arg9: memref<256x64xbf16, #tpu.memory_space<vmem>>, %arg10: memref<64x16xbf16, #tpu.memory_space<vmem>>, %arg11: memref<24x8xbf16, #tpu.memory_space<vmem>>, %arg12: memref<24x16xbf16, #tpu.memory_space<vmem>>, %arg13: memref<48x16xbf16, #tpu.memory_space<vmem>>, %arg14: memref<48x24xbf16, #tpu.memory_space<vmem>>, %arg15: memref<72x32xbf16, #tpu.memory_space<vmem>>, %arg16: memref<96x32xbf16, #tpu.memory_space<vmem>>, %arg17: memref<96x64xbf16, #tpu.memory_space<vmem>>, %arg18: memref<192x32xbf16, #tpu.memory_space<vmem>>, %arg19: memref<192x32xbf16, #tpu.memory_space<vmem>>, %arg20: memref<96x16xbf16, #tpu.memory_space<vmem>>, %arg21: memref<96x16xbf16, #tpu.memory_space<vmem>>, %arg22: memref<48x8xbf16, #tpu.memory_space<vmem>>, %arg23: memref<24x8xbf16, #tpu.memory_space<vmem>>, %arg24: memref<3x8xf32, #tpu.memory_space<vmem>>, %arg25: memref<3x16xf32, #tpu.memory_space<vmem>>, %arg26: memref<3x16xf32, #tpu.memory_space<vmem>>, %arg27: memref<3x24xf32, #tpu.memory_space<vmem>>, %arg28: memref<3x32xf32, #tpu.memory_space<vmem>>, %arg29: memref<3x32xf32, #tpu.memory_space<vmem>>, %arg30: memref<3x64xf32, #tpu.memory_space<vmem>>, %arg31: memref<3x32xf32, #tpu.memory_space<vmem>>, %arg32: memref<3x32xf32, #tpu.memory_space<vmem>>, %arg33: memref<3x16xf32, #tpu.memory_space<vmem>>, %arg34: memref<3x16xf32, #tpu.memory_space<vmem>>, %arg35: memref<3x8xf32, #tpu.memory_space<vmem>>, %arg36: memref<3x8xf32, #tpu.memory_space<vmem>>, %arg37: memref<256x8xf32, #tpu.memory_space<vmem>>) attributes {dimension_semantics = [], scalar_prefetch = 0 : i64, scratch_operands = 0 : i64, tpu.core_type = #tpu.core_type<tc>} {
    %c0 = arith.constant 0 : index
    %c0_0 = arith.constant 0 : index
    %0 = vector.load %arg1[%c0, %c0_0] : memref<256x256xbf16, #tpu.memory_space<vmem>>, vector<256x256xbf16>
    %c0_1 = arith.constant 0 : index
    %c0_2 = arith.constant 0 : index
    %1 = vector.load %arg2[%c0_1, %c0_2] : memref<64x64xbf16, #tpu.memory_space<vmem>>, vector<64x64xbf16>
    %c0_3 = arith.constant 0 : index
    %c0_4 = arith.constant 0 : index
    %2 = vector.load %arg3[%c0_3, %c0_4] : memref<16x16xbf16, #tpu.memory_space<vmem>>, vector<16x16xbf16>
    %c0_5 = arith.constant 0 : index
    %c0_6 = arith.constant 0 : index
    %3 = vector.load %arg4[%c0_5, %c0_6] : memref<256x256xbf16, #tpu.memory_space<vmem>>, vector<256x256xbf16>
    %c0_7 = arith.constant 0 : index
    %c0_8 = arith.constant 0 : index
    %4 = vector.load %arg5[%c0_7, %c0_8] : memref<64x64xbf16, #tpu.memory_space<vmem>>, vector<64x64xbf16>
    %c0_9 = arith.constant 0 : index
    %c0_10 = arith.constant 0 : index
    %5 = vector.load %arg6[%c0_9, %c0_10] : memref<16x16xbf16, #tpu.memory_space<vmem>>, vector<16x16xbf16>
    %c0_11 = arith.constant 0 : index
    %c0_12 = arith.constant 0 : index
    %6 = vector.load %arg7[%c0_11, %c0_12] : memref<64x256xbf16, #tpu.memory_space<vmem>>, vector<64x256xbf16>
    %c0_13 = arith.constant 0 : index
    %c0_14 = arith.constant 0 : index
    %7 = vector.load %arg8[%c0_13, %c0_14] : memref<16x64xbf16, #tpu.memory_space<vmem>>, vector<16x64xbf16>
    %c0_15 = arith.constant 0 : index
    %c0_16 = arith.constant 0 : index
    %8 = vector.load %arg9[%c0_15, %c0_16] : memref<256x64xbf16, #tpu.memory_space<vmem>>, vector<256x64xbf16>
    %c0_17 = arith.constant 0 : index
    %c0_18 = arith.constant 0 : index
    %9 = vector.load %arg10[%c0_17, %c0_18] : memref<64x16xbf16, #tpu.memory_space<vmem>>, vector<64x16xbf16>
    %c0_19 = arith.constant 0 : index
    %c0_20 = arith.constant 0 : index
    %10 = vector.load %arg0[%c0_19, %c0_20] : memref<256x8xf32, #tpu.memory_space<vmem>>, vector<256x8xf32>
    %11 = arith.truncf %10 : vector<256x8xf32> to vector<256x8xbf16>
    %cst = arith.constant dense<0.000000e+00> : vector<256x8xf32>
    %12 = tpu.matmul %0, %11, %cst {dimension_numbers = #tpu.dot_dimension_numbers<[1], [0], [0], [1], [0, 0, 1, 1], [], []>} : vector<256x256xbf16>, vector<256x8xbf16>, vector<256x8xf32> -> vector<256x8xf32>
    %13 = arith.truncf %12 : vector<256x8xf32> to vector<256x8xbf16>
    %cst_21 = arith.constant dense<0.000000e+00> : vector<256x8xf32>
    %14 = tpu.matmul %3, %13, %cst_21 {dimension_numbers = #tpu.dot_dimension_numbers<[1], [0], [0], [1], [0, 0, 1, 1], [], []>} : vector<256x256xbf16>, vector<256x8xbf16>, vector<256x8xf32> -> vector<256x8xf32>
    %15 = arith.extf %11 : vector<256x8xbf16> to vector<256x8xf32>
    %16 = arith.subf %14, %15 : vector<256x8xf32>
    %17 = arith.truncf %16 : vector<256x8xf32> to vector<256x8xbf16>
    %18 = tpu.concatenate %11, %13, %17 in 1 : vector<256x8xbf16>, vector<256x8xbf16>, vector<256x8xbf16> -> vector<256x24xbf16>
    %c0_22 = arith.constant 0 : index
    %c0_23 = arith.constant 0 : index
    %19 = vector.load %arg11[%c0_22, %c0_23] : memref<24x8xbf16, #tpu.memory_space<vmem>>, vector<24x8xbf16>
    %cst_24 = arith.constant dense<0.000000e+00> : vector<256x8xf32>
    %20 = tpu.matmul %18, %19, %cst_24 {dimension_numbers = #tpu.dot_dimension_numbers<[1], [0], [0], [1], [0, 0, 1, 1], [], []>} : vector<256x24xbf16>, vector<24x8xbf16>, vector<256x8xf32> -> vector<256x8xf32>
    %c0_25 = arith.constant 0 : index
    %c0_26 = arith.constant 0 : index
    %21 = vector.load %arg24[%c0_25, %c0_26] : memref<3x8xf32, #tpu.memory_space<vmem>>, vector<1x8xf32>
    %22 = vector.broadcast %21 : vector<1x8xf32> to vector<256x8xf32>
    %23 = arith.addf %20, %22 : vector<256x8xf32>
    %cst_27 = arith.constant dense<0.000000e+00> : vector<8xf32>
    %24 = vector.multi_reduction <add>, %23, %cst_27 [0] : vector<256x8xf32> to vector<8xf32>
    %25 = vector.shape_cast %24 : vector<8xf32> to vector<1x8xf32>
    %26 = arith.mulf %23, %23 : vector<256x8xf32>
    %cst_28 = arith.constant dense<0.000000e+00> : vector<8xf32>
    %27 = vector.multi_reduction <add>, %26, %cst_28 [0] : vector<256x8xf32> to vector<8xf32>
    %28 = vector.shape_cast %27 : vector<8xf32> to vector<1x8xf32>
    %cst_29 = arith.constant 3.906250e-03 : f32
    %29 = vector.broadcast %cst_29 : f32 to vector<1x8xf32>
    %30 = arith.mulf %25, %29 : vector<1x8xf32>
    %cst_30 = arith.constant 3.906250e-03 : f32
    %31 = vector.broadcast %cst_30 : f32 to vector<1x8xf32>
    %32 = arith.mulf %28, %31 : vector<1x8xf32>
    %33 = arith.mulf %30, %30 : vector<1x8xf32>
    %34 = arith.subf %32, %33 : vector<1x8xf32>
    %cst_31 = arith.constant 0.000000e+00 : f32
    %35 = vector.broadcast %cst_31 : f32 to vector<1x8xf32>
    %36 = arith.maximumf %34, %35 : vector<1x8xf32>
    %cst_32 = arith.constant 9.99999974E-6 : f32
    %37 = vector.broadcast %cst_32 : f32 to vector<1x8xf32>
    %38 = arith.addf %36, %37 : vector<1x8xf32>
    %39 = math.rsqrt %38 : vector<1x8xf32>
    %c1 = arith.constant 1 : index
    %c0_33 = arith.constant 0 : index
    %40 = vector.load %arg24[%c1, %c0_33] : memref<3x8xf32, #tpu.memory_space<vmem>>, vector<1x8xf32>
    %41 = arith.mulf %40, %39 : vector<1x8xf32>
    %c2 = arith.constant 2 : index
    %c0_34 = arith.constant 0 : index
    %42 = vector.load %arg24[%c2, %c0_34] : memref<3x8xf32, #tpu.memory_space<vmem>>, vector<1x8xf32>
    %43 = arith.mulf %30, %41 : vector<1x8xf32>
    %44 = arith.subf %42, %43 : vector<1x8xf32>
    %45 = vector.broadcast %41 : vector<1x8xf32> to vector<256x8xf32>
    %46 = arith.mulf %23, %45 : vector<256x8xf32>
    %47 = vector.broadcast %44 : vector<1x8xf32> to vector<256x8xf32>
    %48 = arith.addf %46, %47 : vector<256x8xf32>
    %cst_35 = arith.constant 0.000000e+00 : f32
    %49 = vector.broadcast %cst_35 : f32 to vector<256x8xf32>
    %50 = arith.maximumf %48, %49 : vector<256x8xf32>
    %51 = arith.truncf %50 : vector<256x8xf32> to vector<256x8xbf16>
    %cst_36 = arith.constant dense<0.000000e+00> : vector<256x8xf32>
    %52 = tpu.matmul %0, %51, %cst_36 {dimension_numbers = #tpu.dot_dimension_numbers<[1], [0], [0], [1], [0, 0, 1, 1], [], []>} : vector<256x256xbf16>, vector<256x8xbf16>, vector<256x8xf32> -> vector<256x8xf32>
    %53 = arith.truncf %52 : vector<256x8xf32> to vector<256x8xbf16>
    %cst_37 = arith.constant dense<0.000000e+00> : vector<256x8xf32>
    %54 = tpu.matmul %3, %53, %cst_37 {dimension_numbers = #tpu.dot_dimension_numbers<[1], [0], [0], [1], [0, 0, 1, 1], [], []>} : vector<256x256xbf16>, vector<256x8xbf16>, vector<256x8xf32> -> vector<256x8xf32>
    %55 = arith.extf %51 : vector<256x8xbf16> to vector<256x8xf32>
    %56 = arith.subf %54, %55 : vector<256x8xf32>
    %57 = arith.truncf %56 : vector<256x8xf32> to vector<256x8xbf16>
    %58 = tpu.concatenate %51, %53, %57 in 1 : vector<256x8xbf16>, vector<256x8xbf16>, vector<256x8xbf16> -> vector<256x24xbf16>
    %c0_38 = arith.constant 0 : index
    %c0_39 = arith.constant 0 : index
    %59 = vector.load %arg12[%c0_38, %c0_39] : memref<24x16xbf16, #tpu.memory_space<vmem>>, vector<24x16xbf16>
    %cst_40 = arith.constant dense<0.000000e+00> : vector<256x16xf32>
    %60 = tpu.matmul %58, %59, %cst_40 {dimension_numbers = #tpu.dot_dimension_numbers<[1], [0], [0], [1], [0, 0, 1, 1], [], []>} : vector<256x24xbf16>, vector<24x16xbf16>, vector<256x16xf32> -> vector<256x16xf32>
    %c0_41 = arith.constant 0 : index
    %c0_42 = arith.constant 0 : index
    %61 = vector.load %arg25[%c0_41, %c0_42] : memref<3x16xf32, #tpu.memory_space<vmem>>, vector<1x16xf32>
    %62 = vector.broadcast %61 : vector<1x16xf32> to vector<256x16xf32>
    %63 = arith.addf %60, %62 : vector<256x16xf32>
    %cst_43 = arith.constant dense<0.000000e+00> : vector<16xf32>
    %64 = vector.multi_reduction <add>, %63, %cst_43 [0] : vector<256x16xf32> to vector<16xf32>
    %65 = vector.shape_cast %64 : vector<16xf32> to vector<1x16xf32>
    %66 = arith.mulf %63, %63 : vector<256x16xf32>
    %cst_44 = arith.constant dense<0.000000e+00> : vector<16xf32>
    %67 = vector.multi_reduction <add>, %66, %cst_44 [0] : vector<256x16xf32> to vector<16xf32>
    %68 = vector.shape_cast %67 : vector<16xf32> to vector<1x16xf32>
    %cst_45 = arith.constant 3.906250e-03 : f32
    %69 = vector.broadcast %cst_45 : f32 to vector<1x16xf32>
    %70 = arith.mulf %65, %69 : vector<1x16xf32>
    %cst_46 = arith.constant 3.906250e-03 : f32
    %71 = vector.broadcast %cst_46 : f32 to vector<1x16xf32>
    %72 = arith.mulf %68, %71 : vector<1x16xf32>
    %73 = arith.mulf %70, %70 : vector<1x16xf32>
    %74 = arith.subf %72, %73 : vector<1x16xf32>
    %cst_47 = arith.constant 0.000000e+00 : f32
    %75 = vector.broadcast %cst_47 : f32 to vector<1x16xf32>
    %76 = arith.maximumf %74, %75 : vector<1x16xf32>
    %cst_48 = arith.constant 9.99999974E-6 : f32
    %77 = vector.broadcast %cst_48 : f32 to vector<1x16xf32>
    %78 = arith.addf %76, %77 : vector<1x16xf32>
    %79 = math.rsqrt %78 : vector<1x16xf32>
    %c1_49 = arith.constant 1 : index
    %c0_50 = arith.constant 0 : index
    %80 = vector.load %arg25[%c1_49, %c0_50] : memref<3x16xf32, #tpu.memory_space<vmem>>, vector<1x16xf32>
    %81 = arith.mulf %80, %79 : vector<1x16xf32>
    %c2_51 = arith.constant 2 : index
    %c0_52 = arith.constant 0 : index
    %82 = vector.load %arg25[%c2_51, %c0_52] : memref<3x16xf32, #tpu.memory_space<vmem>>, vector<1x16xf32>
    %83 = arith.mulf %70, %81 : vector<1x16xf32>
    %84 = arith.subf %82, %83 : vector<1x16xf32>
    %85 = vector.broadcast %81 : vector<1x16xf32> to vector<256x16xf32>
    %86 = arith.mulf %63, %85 : vector<256x16xf32>
    %87 = vector.broadcast %84 : vector<1x16xf32> to vector<256x16xf32>
    %88 = arith.addf %86, %87 : vector<256x16xf32>
    %cst_53 = arith.constant 0.000000e+00 : f32
    %89 = vector.broadcast %cst_53 : f32 to vector<256x16xf32>
    %90 = arith.maximumf %88, %89 : vector<256x16xf32>
    %91 = arith.truncf %90 : vector<256x16xf32> to vector<256x16xbf16>
    %cst_54 = arith.constant dense<0.000000e+00> : vector<256x16xf32>
    %92 = tpu.matmul %0, %91, %cst_54 {dimension_numbers = #tpu.dot_dimension_numbers<[1], [0], [0], [1], [0, 0, 1, 1], [], []>} : vector<256x256xbf16>, vector<256x16xbf16>, vector<256x16xf32> -> vector<256x16xf32>
    %93 = arith.truncf %92 : vector<256x16xf32> to vector<256x16xbf16>
    %cst_55 = arith.constant dense<0.000000e+00> : vector<256x16xf32>
    %94 = tpu.matmul %3, %93, %cst_55 {dimension_numbers = #tpu.dot_dimension_numbers<[1], [0], [0], [1], [0, 0, 1, 1], [], []>} : vector<256x256xbf16>, vector<256x16xbf16>, vector<256x16xf32> -> vector<256x16xf32>
    %95 = arith.extf %91 : vector<256x16xbf16> to vector<256x16xf32>
    %96 = arith.subf %94, %95 : vector<256x16xf32>
    %97 = arith.truncf %96 : vector<256x16xf32> to vector<256x16xbf16>
    %98 = tpu.concatenate %91, %93, %97 in 1 : vector<256x16xbf16>, vector<256x16xbf16>, vector<256x16xbf16> -> vector<256x48xbf16>
    %c0_56 = arith.constant 0 : index
    %c0_57 = arith.constant 0 : index
    %99 = vector.load %arg13[%c0_56, %c0_57] : memref<48x16xbf16, #tpu.memory_space<vmem>>, vector<48x16xbf16>
    %cst_58 = arith.constant dense<0.000000e+00> : vector<256x16xf32>
    %100 = tpu.matmul %98, %99, %cst_58 {dimension_numbers = #tpu.dot_dimension_numbers<[1], [0], [0], [1], [0, 0, 1, 1], [], []>} : vector<256x48xbf16>, vector<48x16xbf16>, vector<256x16xf32> -> vector<256x16xf32>
    %c0_59 = arith.constant 0 : index
    %c0_60 = arith.constant 0 : index
    %101 = vector.load %arg26[%c0_59, %c0_60] : memref<3x16xf32, #tpu.memory_space<vmem>>, vector<1x16xf32>
    %102 = vector.broadcast %101 : vector<1x16xf32> to vector<256x16xf32>
    %103 = arith.addf %100, %102 : vector<256x16xf32>
    %cst_61 = arith.constant dense<0.000000e+00> : vector<16xf32>
    %104 = vector.multi_reduction <add>, %103, %cst_61 [0] : vector<256x16xf32> to vector<16xf32>
    %105 = vector.shape_cast %104 : vector<16xf32> to vector<1x16xf32>
    %106 = arith.mulf %103, %103 : vector<256x16xf32>
    %cst_62 = arith.constant dense<0.000000e+00> : vector<16xf32>
    %107 = vector.multi_reduction <add>, %106, %cst_62 [0] : vector<256x16xf32> to vector<16xf32>
    %108 = vector.shape_cast %107 : vector<16xf32> to vector<1x16xf32>
    %cst_63 = arith.constant 3.906250e-03 : f32
    %109 = vector.broadcast %cst_63 : f32 to vector<1x16xf32>
    %110 = arith.mulf %105, %109 : vector<1x16xf32>
    %cst_64 = arith.constant 3.906250e-03 : f32
    %111 = vector.broadcast %cst_64 : f32 to vector<1x16xf32>
    %112 = arith.mulf %108, %111 : vector<1x16xf32>
    %113 = arith.mulf %110, %110 : vector<1x16xf32>
    %114 = arith.subf %112, %113 : vector<1x16xf32>
    %cst_65 = arith.constant 0.000000e+00 : f32
    %115 = vector.broadcast %cst_65 : f32 to vector<1x16xf32>
    %116 = arith.maximumf %114, %115 : vector<1x16xf32>
    %cst_66 = arith.constant 9.99999974E-6 : f32
    %117 = vector.broadcast %cst_66 : f32 to vector<1x16xf32>
    %118 = arith.addf %116, %117 : vector<1x16xf32>
    %119 = math.rsqrt %118 : vector<1x16xf32>
    %c1_67 = arith.constant 1 : index
    %c0_68 = arith.constant 0 : index
    %120 = vector.load %arg26[%c1_67, %c0_68] : memref<3x16xf32, #tpu.memory_space<vmem>>, vector<1x16xf32>
    %121 = arith.mulf %120, %119 : vector<1x16xf32>
    %c2_69 = arith.constant 2 : index
    %c0_70 = arith.constant 0 : index
    %122 = vector.load %arg26[%c2_69, %c0_70] : memref<3x16xf32, #tpu.memory_space<vmem>>, vector<1x16xf32>
    %123 = arith.mulf %110, %121 : vector<1x16xf32>
    %124 = arith.subf %122, %123 : vector<1x16xf32>
    %125 = vector.broadcast %121 : vector<1x16xf32> to vector<256x16xf32>
    %126 = arith.mulf %103, %125 : vector<256x16xf32>
    %127 = vector.broadcast %124 : vector<1x16xf32> to vector<256x16xf32>
    %128 = arith.addf %126, %127 : vector<256x16xf32>
    %cst_71 = arith.constant 0.000000e+00 : f32
    %129 = vector.broadcast %cst_71 : f32 to vector<256x16xf32>
    %130 = arith.maximumf %128, %129 : vector<256x16xf32>
    %131 = arith.truncf %130 : vector<256x16xf32> to vector<256x16xbf16>
    %cst_72 = arith.constant dense<0.000000e+00> : vector<64x16xf32>
    %132 = tpu.matmul %6, %131, %cst_72 {dimension_numbers = #tpu.dot_dimension_numbers<[1], [0], [0], [1], [0, 0, 1, 1], [], []>} : vector<64x256xbf16>, vector<256x16xbf16>, vector<64x16xf32> -> vector<64x16xf32>
    %133 = arith.truncf %132 : vector<64x16xf32> to vector<64x16xbf16>
    %cst_73 = arith.constant dense<0.000000e+00> : vector<64x16xf32>
    %134 = tpu.matmul %1, %133, %cst_73 {dimension_numbers = #tpu.dot_dimension_numbers<[1], [0], [0], [1], [0, 0, 1, 1], [], []>} : vector<64x64xbf16>, vector<64x16xbf16>, vector<64x16xf32> -> vector<64x16xf32>
    %135 = arith.truncf %134 : vector<64x16xf32> to vector<64x16xbf16>
    %cst_74 = arith.constant dense<0.000000e+00> : vector<64x16xf32>
    %136 = tpu.matmul %4, %135, %cst_74 {dimension_numbers = #tpu.dot_dimension_numbers<[1], [0], [0], [1], [0, 0, 1, 1], [], []>} : vector<64x64xbf16>, vector<64x16xbf16>, vector<64x16xf32> -> vector<64x16xf32>
    %137 = arith.extf %133 : vector<64x16xbf16> to vector<64x16xf32>
    %138 = arith.subf %136, %137 : vector<64x16xf32>
    %139 = arith.truncf %138 : vector<64x16xf32> to vector<64x16xbf16>
    %140 = tpu.concatenate %133, %135, %139 in 1 : vector<64x16xbf16>, vector<64x16xbf16>, vector<64x16xbf16> -> vector<64x48xbf16>
    %c0_75 = arith.constant 0 : index
    %c0_76 = arith.constant 0 : index
    %141 = vector.load %arg14[%c0_75, %c0_76] : memref<48x24xbf16, #tpu.memory_space<vmem>>, vector<48x24xbf16>
    %cst_77 = arith.constant dense<0.000000e+00> : vector<64x24xf32>
    %142 = tpu.matmul %140, %141, %cst_77 {dimension_numbers = #tpu.dot_dimension_numbers<[1], [0], [0], [1], [0, 0, 1, 1], [], []>} : vector<64x48xbf16>, vector<48x24xbf16>, vector<64x24xf32> -> vector<64x24xf32>
    %c0_78 = arith.constant 0 : index
    %c0_79 = arith.constant 0 : index
    %143 = vector.load %arg27[%c0_78, %c0_79] : memref<3x24xf32, #tpu.memory_space<vmem>>, vector<1x24xf32>
    %144 = vector.broadcast %143 : vector<1x24xf32> to vector<64x24xf32>
    %145 = arith.addf %142, %144 : vector<64x24xf32>
    %cst_80 = arith.constant dense<0.000000e+00> : vector<24xf32>
    %146 = vector.multi_reduction <add>, %145, %cst_80 [0] : vector<64x24xf32> to vector<24xf32>
    %147 = vector.shape_cast %146 : vector<24xf32> to vector<1x24xf32>
    %148 = arith.mulf %145, %145 : vector<64x24xf32>
    %cst_81 = arith.constant dense<0.000000e+00> : vector<24xf32>
    %149 = vector.multi_reduction <add>, %148, %cst_81 [0] : vector<64x24xf32> to vector<24xf32>
    %150 = vector.shape_cast %149 : vector<24xf32> to vector<1x24xf32>
    %cst_82 = arith.constant 1.562500e-02 : f32
    %151 = vector.broadcast %cst_82 : f32 to vector<1x24xf32>
    %152 = arith.mulf %147, %151 : vector<1x24xf32>
    %cst_83 = arith.constant 1.562500e-02 : f32
    %153 = vector.broadcast %cst_83 : f32 to vector<1x24xf32>
    %154 = arith.mulf %150, %153 : vector<1x24xf32>
    %155 = arith.mulf %152, %152 : vector<1x24xf32>
    %156 = arith.subf %154, %155 : vector<1x24xf32>
    %cst_84 = arith.constant 0.000000e+00 : f32
    %157 = vector.broadcast %cst_84 : f32 to vector<1x24xf32>
    %158 = arith.maximumf %156, %157 : vector<1x24xf32>
    %cst_85 = arith.constant 9.99999974E-6 : f32
    %159 = vector.broadcast %cst_85 : f32 to vector<1x24xf32>
    %160 = arith.addf %158, %159 : vector<1x24xf32>
    %161 = math.rsqrt %160 : vector<1x24xf32>
    %c1_86 = arith.constant 1 : index
    %c0_87 = arith.constant 0 : index
    %162 = vector.load %arg27[%c1_86, %c0_87] : memref<3x24xf32, #tpu.memory_space<vmem>>, vector<1x24xf32>
    %163 = arith.mulf %162, %161 : vector<1x24xf32>
    %c2_88 = arith.constant 2 : index
    %c0_89 = arith.constant 0 : index
    %164 = vector.load %arg27[%c2_88, %c0_89] : memref<3x24xf32, #tpu.memory_space<vmem>>, vector<1x24xf32>
    %165 = arith.mulf %152, %163 : vector<1x24xf32>
    %166 = arith.subf %164, %165 : vector<1x24xf32>
    %167 = vector.broadcast %163 : vector<1x24xf32> to vector<64x24xf32>
    %168 = arith.mulf %145, %167 : vector<64x24xf32>
    %169 = vector.broadcast %166 : vector<1x24xf32> to vector<64x24xf32>
    %170 = arith.addf %168, %169 : vector<64x24xf32>
    %cst_90 = arith.constant 0.000000e+00 : f32
    %171 = vector.broadcast %cst_90 : f32 to vector<64x24xf32>
    %172 = arith.maximumf %170, %171 : vector<64x24xf32>
    %173 = arith.truncf %172 : vector<64x24xf32> to vector<64x24xbf16>
    %cst_91 = arith.constant dense<0.000000e+00> : vector<64x24xf32>
    %174 = tpu.matmul %1, %173, %cst_91 {dimension_numbers = #tpu.dot_dimension_numbers<[1], [0], [0], [1], [0, 0, 1, 1], [], []>} : vector<64x64xbf16>, vector<64x24xbf16>, vector<64x24xf32> -> vector<64x24xf32>
    %175 = arith.truncf %174 : vector<64x24xf32> to vector<64x24xbf16>
    %cst_92 = arith.constant dense<0.000000e+00> : vector<64x24xf32>
    %176 = tpu.matmul %4, %175, %cst_92 {dimension_numbers = #tpu.dot_dimension_numbers<[1], [0], [0], [1], [0, 0, 1, 1], [], []>} : vector<64x64xbf16>, vector<64x24xbf16>, vector<64x24xf32> -> vector<64x24xf32>
    %177 = arith.extf %173 : vector<64x24xbf16> to vector<64x24xf32>
    %178 = arith.subf %176, %177 : vector<64x24xf32>
    %179 = arith.truncf %178 : vector<64x24xf32> to vector<64x24xbf16>
    %180 = tpu.concatenate %173, %175, %179 in 1 : vector<64x24xbf16>, vector<64x24xbf16>, vector<64x24xbf16> -> vector<64x72xbf16>
    %c0_93 = arith.constant 0 : index
    %c0_94 = arith.constant 0 : index
    %181 = vector.load %arg15[%c0_93, %c0_94] : memref<72x32xbf16, #tpu.memory_space<vmem>>, vector<72x32xbf16>
    %cst_95 = arith.constant dense<0.000000e+00> : vector<64x32xf32>
    %182 = tpu.matmul %180, %181, %cst_95 {dimension_numbers = #tpu.dot_dimension_numbers<[1], [0], [0], [1], [0, 0, 1, 1], [], []>} : vector<64x72xbf16>, vector<72x32xbf16>, vector<64x32xf32> -> vector<64x32xf32>
    %c0_96 = arith.constant 0 : index
    %c0_97 = arith.constant 0 : index
    %183 = vector.load %arg28[%c0_96, %c0_97] : memref<3x32xf32, #tpu.memory_space<vmem>>, vector<1x32xf32>
    %184 = vector.broadcast %183 : vector<1x32xf32> to vector<64x32xf32>
    %185 = arith.addf %182, %184 : vector<64x32xf32>
    %cst_98 = arith.constant dense<0.000000e+00> : vector<32xf32>
    %186 = vector.multi_reduction <add>, %185, %cst_98 [0] : vector<64x32xf32> to vector<32xf32>
    %187 = vector.shape_cast %186 : vector<32xf32> to vector<1x32xf32>
    %188 = arith.mulf %185, %185 : vector<64x32xf32>
    %cst_99 = arith.constant dense<0.000000e+00> : vector<32xf32>
    %189 = vector.multi_reduction <add>, %188, %cst_99 [0] : vector<64x32xf32> to vector<32xf32>
    %190 = vector.shape_cast %189 : vector<32xf32> to vector<1x32xf32>
    %cst_100 = arith.constant 1.562500e-02 : f32
    %191 = vector.broadcast %cst_100 : f32 to vector<1x32xf32>
    %192 = arith.mulf %187, %191 : vector<1x32xf32>
    %cst_101 = arith.constant 1.562500e-02 : f32
    %193 = vector.broadcast %cst_101 : f32 to vector<1x32xf32>
    %194 = arith.mulf %190, %193 : vector<1x32xf32>
    %195 = arith.mulf %192, %192 : vector<1x32xf32>
    %196 = arith.subf %194, %195 : vector<1x32xf32>
    %cst_102 = arith.constant 0.000000e+00 : f32
    %197 = vector.broadcast %cst_102 : f32 to vector<1x32xf32>
    %198 = arith.maximumf %196, %197 : vector<1x32xf32>
    %cst_103 = arith.constant 9.99999974E-6 : f32
    %199 = vector.broadcast %cst_103 : f32 to vector<1x32xf32>
    %200 = arith.addf %198, %199 : vector<1x32xf32>
    %201 = math.rsqrt %200 : vector<1x32xf32>
    %c1_104 = arith.constant 1 : index
    %c0_105 = arith.constant 0 : index
    %202 = vector.load %arg28[%c1_104, %c0_105] : memref<3x32xf32, #tpu.memory_space<vmem>>, vector<1x32xf32>
    %203 = arith.mulf %202, %201 : vector<1x32xf32>
    %c2_106 = arith.constant 2 : index
    %c0_107 = arith.constant 0 : index
    %204 = vector.load %arg28[%c2_106, %c0_107] : memref<3x32xf32, #tpu.memory_space<vmem>>, vector<1x32xf32>
    %205 = arith.mulf %192, %203 : vector<1x32xf32>
    %206 = arith.subf %204, %205 : vector<1x32xf32>
    %207 = vector.broadcast %203 : vector<1x32xf32> to vector<64x32xf32>
    %208 = arith.mulf %185, %207 : vector<64x32xf32>
    %209 = vector.broadcast %206 : vector<1x32xf32> to vector<64x32xf32>
    %210 = arith.addf %208, %209 : vector<64x32xf32>
    %cst_108 = arith.constant 0.000000e+00 : f32
    %211 = vector.broadcast %cst_108 : f32 to vector<64x32xf32>
    %212 = arith.maximumf %210, %211 : vector<64x32xf32>
    %213 = arith.truncf %212 : vector<64x32xf32> to vector<64x32xbf16>
    %cst_109 = arith.constant dense<0.000000e+00> : vector<64x32xf32>
    %214 = tpu.matmul %1, %213, %cst_109 {dimension_numbers = #tpu.dot_dimension_numbers<[1], [0], [0], [1], [0, 0, 1, 1], [], []>} : vector<64x64xbf16>, vector<64x32xbf16>, vector<64x32xf32> -> vector<64x32xf32>
    %215 = arith.truncf %214 : vector<64x32xf32> to vector<64x32xbf16>
    %cst_110 = arith.constant dense<0.000000e+00> : vector<64x32xf32>
    %216 = tpu.matmul %4, %215, %cst_110 {dimension_numbers = #tpu.dot_dimension_numbers<[1], [0], [0], [1], [0, 0, 1, 1], [], []>} : vector<64x64xbf16>, vector<64x32xbf16>, vector<64x32xf32> -> vector<64x32xf32>
    %217 = arith.extf %213 : vector<64x32xbf16> to vector<64x32xf32>
    %218 = arith.subf %216, %217 : vector<64x32xf32>
    %219 = arith.truncf %218 : vector<64x32xf32> to vector<64x32xbf16>
    %220 = tpu.concatenate %213, %215, %219 in 1 : vector<64x32xbf16>, vector<64x32xbf16>, vector<64x32xbf16> -> vector<64x96xbf16>
    %c0_111 = arith.constant 0 : index
    %c0_112 = arith.constant 0 : index
    %221 = vector.load %arg16[%c0_111, %c0_112] : memref<96x32xbf16, #tpu.memory_space<vmem>>, vector<96x32xbf16>
    %cst_113 = arith.constant dense<0.000000e+00> : vector<64x32xf32>
    %222 = tpu.matmul %220, %221, %cst_113 {dimension_numbers = #tpu.dot_dimension_numbers<[1], [0], [0], [1], [0, 0, 1, 1], [], []>} : vector<64x96xbf16>, vector<96x32xbf16>, vector<64x32xf32> -> vector<64x32xf32>
    %c0_114 = arith.constant 0 : index
    %c0_115 = arith.constant 0 : index
    %223 = vector.load %arg29[%c0_114, %c0_115] : memref<3x32xf32, #tpu.memory_space<vmem>>, vector<1x32xf32>
    %224 = vector.broadcast %223 : vector<1x32xf32> to vector<64x32xf32>
    %225 = arith.addf %222, %224 : vector<64x32xf32>
    %cst_116 = arith.constant dense<0.000000e+00> : vector<32xf32>
    %226 = vector.multi_reduction <add>, %225, %cst_116 [0] : vector<64x32xf32> to vector<32xf32>
    %227 = vector.shape_cast %226 : vector<32xf32> to vector<1x32xf32>
    %228 = arith.mulf %225, %225 : vector<64x32xf32>
    %cst_117 = arith.constant dense<0.000000e+00> : vector<32xf32>
    %229 = vector.multi_reduction <add>, %228, %cst_117 [0] : vector<64x32xf32> to vector<32xf32>
    %230 = vector.shape_cast %229 : vector<32xf32> to vector<1x32xf32>
    %cst_118 = arith.constant 1.562500e-02 : f32
    %231 = vector.broadcast %cst_118 : f32 to vector<1x32xf32>
    %232 = arith.mulf %227, %231 : vector<1x32xf32>
    %cst_119 = arith.constant 1.562500e-02 : f32
    %233 = vector.broadcast %cst_119 : f32 to vector<1x32xf32>
    %234 = arith.mulf %230, %233 : vector<1x32xf32>
    %235 = arith.mulf %232, %232 : vector<1x32xf32>
    %236 = arith.subf %234, %235 : vector<1x32xf32>
    %cst_120 = arith.constant 0.000000e+00 : f32
    %237 = vector.broadcast %cst_120 : f32 to vector<1x32xf32>
    %238 = arith.maximumf %236, %237 : vector<1x32xf32>
    %cst_121 = arith.constant 9.99999974E-6 : f32
    %239 = vector.broadcast %cst_121 : f32 to vector<1x32xf32>
    %240 = arith.addf %238, %239 : vector<1x32xf32>
    %241 = math.rsqrt %240 : vector<1x32xf32>
    %c1_122 = arith.constant 1 : index
    %c0_123 = arith.constant 0 : index
    %242 = vector.load %arg29[%c1_122, %c0_123] : memref<3x32xf32, #tpu.memory_space<vmem>>, vector<1x32xf32>
    %243 = arith.mulf %242, %241 : vector<1x32xf32>
    %c2_124 = arith.constant 2 : index
    %c0_125 = arith.constant 0 : index
    %244 = vector.load %arg29[%c2_124, %c0_125] : memref<3x32xf32, #tpu.memory_space<vmem>>, vector<1x32xf32>
    %245 = arith.mulf %232, %243 : vector<1x32xf32>
    %246 = arith.subf %244, %245 : vector<1x32xf32>
    %247 = vector.broadcast %243 : vector<1x32xf32> to vector<64x32xf32>
    %248 = arith.mulf %225, %247 : vector<64x32xf32>
    %249 = vector.broadcast %246 : vector<1x32xf32> to vector<64x32xf32>
    %250 = arith.addf %248, %249 : vector<64x32xf32>
    %cst_126 = arith.constant 0.000000e+00 : f32
    %251 = vector.broadcast %cst_126 : f32 to vector<64x32xf32>
    %252 = arith.maximumf %250, %251 : vector<64x32xf32>
    %253 = arith.truncf %252 : vector<64x32xf32> to vector<64x32xbf16>
    %cst_127 = arith.constant dense<0.000000e+00> : vector<16x32xf32>
    %254 = tpu.matmul %7, %253, %cst_127 {dimension_numbers = #tpu.dot_dimension_numbers<[1], [0], [0], [1], [0, 0, 1, 1], [], []>} : vector<16x64xbf16>, vector<64x32xbf16>, vector<16x32xf32> -> vector<16x32xf32>
    %255 = arith.truncf %254 : vector<16x32xf32> to vector<16x32xbf16>
    %cst_128 = arith.constant dense<0.000000e+00> : vector<16x32xf32>
    %256 = tpu.matmul %2, %255, %cst_128 {dimension_numbers = #tpu.dot_dimension_numbers<[1], [0], [0], [1], [0, 0, 1, 1], [], []>} : vector<16x16xbf16>, vector<16x32xbf16>, vector<16x32xf32> -> vector<16x32xf32>
    %257 = arith.truncf %256 : vector<16x32xf32> to vector<16x32xbf16>
    %cst_129 = arith.constant dense<0.000000e+00> : vector<16x32xf32>
    %258 = tpu.matmul %5, %257, %cst_129 {dimension_numbers = #tpu.dot_dimension_numbers<[1], [0], [0], [1], [0, 0, 1, 1], [], []>} : vector<16x16xbf16>, vector<16x32xbf16>, vector<16x32xf32> -> vector<16x32xf32>
    %259 = arith.extf %255 : vector<16x32xbf16> to vector<16x32xf32>
    %260 = arith.subf %258, %259 : vector<16x32xf32>
    %261 = arith.truncf %260 : vector<16x32xf32> to vector<16x32xbf16>
    %262 = tpu.concatenate %255, %257, %261 in 1 : vector<16x32xbf16>, vector<16x32xbf16>, vector<16x32xbf16> -> vector<16x96xbf16>
    %c0_130 = arith.constant 0 : index
    %c0_131 = arith.constant 0 : index
    %263 = vector.load %arg17[%c0_130, %c0_131] : memref<96x64xbf16, #tpu.memory_space<vmem>>, vector<96x64xbf16>
    %cst_132 = arith.constant dense<0.000000e+00> : vector<16x64xf32>
    %264 = tpu.matmul %262, %263, %cst_132 {dimension_numbers = #tpu.dot_dimension_numbers<[1], [0], [0], [1], [0, 0, 1, 1], [], []>} : vector<16x96xbf16>, vector<96x64xbf16>, vector<16x64xf32> -> vector<16x64xf32>
    %c0_133 = arith.constant 0 : index
    %c0_134 = arith.constant 0 : index
    %265 = vector.load %arg30[%c0_133, %c0_134] : memref<3x64xf32, #tpu.memory_space<vmem>>, vector<1x64xf32>
    %266 = vector.broadcast %265 : vector<1x64xf32> to vector<16x64xf32>
    %267 = arith.addf %264, %266 : vector<16x64xf32>
    %cst_135 = arith.constant dense<0.000000e+00> : vector<64xf32>
    %268 = vector.multi_reduction <add>, %267, %cst_135 [0] : vector<16x64xf32> to vector<64xf32>
    %269 = vector.shape_cast %268 : vector<64xf32> to vector<1x64xf32>
    %270 = arith.mulf %267, %267 : vector<16x64xf32>
    %cst_136 = arith.constant dense<0.000000e+00> : vector<64xf32>
    %271 = vector.multi_reduction <add>, %270, %cst_136 [0] : vector<16x64xf32> to vector<64xf32>
    %272 = vector.shape_cast %271 : vector<64xf32> to vector<1x64xf32>
    %cst_137 = arith.constant 6.250000e-02 : f32
    %273 = vector.broadcast %cst_137 : f32 to vector<1x64xf32>
    %274 = arith.mulf %269, %273 : vector<1x64xf32>
    %cst_138 = arith.constant 6.250000e-02 : f32
    %275 = vector.broadcast %cst_138 : f32 to vector<1x64xf32>
    %276 = arith.mulf %272, %275 : vector<1x64xf32>
    %277 = arith.mulf %274, %274 : vector<1x64xf32>
    %278 = arith.subf %276, %277 : vector<1x64xf32>
    %cst_139 = arith.constant 0.000000e+00 : f32
    %279 = vector.broadcast %cst_139 : f32 to vector<1x64xf32>
    %280 = arith.maximumf %278, %279 : vector<1x64xf32>
    %cst_140 = arith.constant 9.99999974E-6 : f32
    %281 = vector.broadcast %cst_140 : f32 to vector<1x64xf32>
    %282 = arith.addf %280, %281 : vector<1x64xf32>
    %283 = math.rsqrt %282 : vector<1x64xf32>
    %c1_141 = arith.constant 1 : index
    %c0_142 = arith.constant 0 : index
    %284 = vector.load %arg30[%c1_141, %c0_142] : memref<3x64xf32, #tpu.memory_space<vmem>>, vector<1x64xf32>
    %285 = arith.mulf %284, %283 : vector<1x64xf32>
    %c2_143 = arith.constant 2 : index
    %c0_144 = arith.constant 0 : index
    %286 = vector.load %arg30[%c2_143, %c0_144] : memref<3x64xf32, #tpu.memory_space<vmem>>, vector<1x64xf32>
    %287 = arith.mulf %274, %285 : vector<1x64xf32>
    %288 = arith.subf %286, %287 : vector<1x64xf32>
    %289 = vector.broadcast %285 : vector<1x64xf32> to vector<16x64xf32>
    %290 = arith.mulf %267, %289 : vector<16x64xf32>
    %291 = vector.broadcast %288 : vector<1x64xf32> to vector<16x64xf32>
    %292 = arith.addf %290, %291 : vector<16x64xf32>
    %cst_145 = arith.constant 0.000000e+00 : f32
    %293 = vector.broadcast %cst_145 : f32 to vector<16x64xf32>
    %294 = arith.maximumf %292, %293 : vector<16x64xf32>
    %295 = arith.truncf %294 : vector<16x64xf32> to vector<16x64xbf16>
    %cst_146 = arith.constant dense<0.000000e+00> : vector<16x64xf32>
    %296 = tpu.matmul %2, %295, %cst_146 {dimension_numbers = #tpu.dot_dimension_numbers<[1], [0], [0], [1], [0, 0, 1, 1], [], []>} : vector<16x16xbf16>, vector<16x64xbf16>, vector<16x64xf32> -> vector<16x64xf32>
    %297 = arith.truncf %296 : vector<16x64xf32> to vector<16x64xbf16>
    %cst_147 = arith.constant dense<0.000000e+00> : vector<16x64xf32>
    %298 = tpu.matmul %5, %297, %cst_147 {dimension_numbers = #tpu.dot_dimension_numbers<[1], [0], [0], [1], [0, 0, 1, 1], [], []>} : vector<16x16xbf16>, vector<16x64xbf16>, vector<16x64xf32> -> vector<16x64xf32>
    %299 = arith.extf %295 : vector<16x64xbf16> to vector<16x64xf32>
    %300 = arith.subf %298, %299 : vector<16x64xf32>
    %301 = arith.truncf %300 : vector<16x64xf32> to vector<16x64xbf16>
    %302 = tpu.concatenate %295, %297, %301 in 1 : vector<16x64xbf16>, vector<16x64xbf16>, vector<16x64xbf16> -> vector<16x192xbf16>
    %c0_148 = arith.constant 0 : index
    %c0_149 = arith.constant 0 : index
    %303 = vector.load %arg18[%c0_148, %c0_149] : memref<192x32xbf16, #tpu.memory_space<vmem>>, vector<192x32xbf16>
    %cst_150 = arith.constant dense<0.000000e+00> : vector<16x32xf32>
    %304 = tpu.matmul %302, %303, %cst_150 {dimension_numbers = #tpu.dot_dimension_numbers<[1], [0], [0], [1], [0, 0, 1, 1], [], []>} : vector<16x192xbf16>, vector<192x32xbf16>, vector<16x32xf32> -> vector<16x32xf32>
    %c0_151 = arith.constant 0 : index
    %c0_152 = arith.constant 0 : index
    %305 = vector.load %arg31[%c0_151, %c0_152] : memref<3x32xf32, #tpu.memory_space<vmem>>, vector<1x32xf32>
    %306 = vector.broadcast %305 : vector<1x32xf32> to vector<16x32xf32>
    %307 = arith.addf %304, %306 : vector<16x32xf32>
    %cst_153 = arith.constant dense<0.000000e+00> : vector<32xf32>
    %308 = vector.multi_reduction <add>, %307, %cst_153 [0] : vector<16x32xf32> to vector<32xf32>
    %309 = vector.shape_cast %308 : vector<32xf32> to vector<1x32xf32>
    %310 = arith.mulf %307, %307 : vector<16x32xf32>
    %cst_154 = arith.constant dense<0.000000e+00> : vector<32xf32>
    %311 = vector.multi_reduction <add>, %310, %cst_154 [0] : vector<16x32xf32> to vector<32xf32>
    %312 = vector.shape_cast %311 : vector<32xf32> to vector<1x32xf32>
    %cst_155 = arith.constant 6.250000e-02 : f32
    %313 = vector.broadcast %cst_155 : f32 to vector<1x32xf32>
    %314 = arith.mulf %309, %313 : vector<1x32xf32>
    %cst_156 = arith.constant 6.250000e-02 : f32
    %315 = vector.broadcast %cst_156 : f32 to vector<1x32xf32>
    %316 = arith.mulf %312, %315 : vector<1x32xf32>
    %317 = arith.mulf %314, %314 : vector<1x32xf32>
    %318 = arith.subf %316, %317 : vector<1x32xf32>
    %cst_157 = arith.constant 0.000000e+00 : f32
    %319 = vector.broadcast %cst_157 : f32 to vector<1x32xf32>
    %320 = arith.maximumf %318, %319 : vector<1x32xf32>
    %cst_158 = arith.constant 9.99999974E-6 : f32
    %321 = vector.broadcast %cst_158 : f32 to vector<1x32xf32>
    %322 = arith.addf %320, %321 : vector<1x32xf32>
    %323 = math.rsqrt %322 : vector<1x32xf32>
    %c1_159 = arith.constant 1 : index
    %c0_160 = arith.constant 0 : index
    %324 = vector.load %arg31[%c1_159, %c0_160] : memref<3x32xf32, #tpu.memory_space<vmem>>, vector<1x32xf32>
    %325 = arith.mulf %324, %323 : vector<1x32xf32>
    %c2_161 = arith.constant 2 : index
    %c0_162 = arith.constant 0 : index
    %326 = vector.load %arg31[%c2_161, %c0_162] : memref<3x32xf32, #tpu.memory_space<vmem>>, vector<1x32xf32>
    %327 = arith.mulf %314, %325 : vector<1x32xf32>
    %328 = arith.subf %326, %327 : vector<1x32xf32>
    %329 = vector.broadcast %325 : vector<1x32xf32> to vector<16x32xf32>
    %330 = arith.mulf %307, %329 : vector<16x32xf32>
    %331 = vector.broadcast %328 : vector<1x32xf32> to vector<16x32xf32>
    %332 = arith.addf %330, %331 : vector<16x32xf32>
    %cst_163 = arith.constant 0.000000e+00 : f32
    %333 = vector.broadcast %cst_163 : f32 to vector<16x32xf32>
    %334 = arith.maximumf %332, %333 : vector<16x32xf32>
    %335 = arith.truncf %334 : vector<16x32xf32> to vector<16x32xbf16>
    %cst_164 = arith.constant dense<0.000000e+00> : vector<64x32xf32>
    %336 = tpu.matmul %9, %335, %cst_164 {dimension_numbers = #tpu.dot_dimension_numbers<[1], [0], [0], [1], [0, 0, 1, 1], [], []>} : vector<64x16xbf16>, vector<16x32xbf16>, vector<64x32xf32> -> vector<64x32xf32>
    %337 = tpu.concatenate %336, %252 in 1 : vector<64x32xf32>, vector<64x32xf32> -> vector<64x64xf32>
    %338 = arith.truncf %337 : vector<64x64xf32> to vector<64x64xbf16>
    %cst_165 = arith.constant dense<0.000000e+00> : vector<64x64xf32>
    %339 = tpu.matmul %1, %338, %cst_165 {dimension_numbers = #tpu.dot_dimension_numbers<[1], [0], [0], [1], [0, 0, 1, 1], [], []>} : vector<64x64xbf16>, vector<64x64xbf16>, vector<64x64xf32> -> vector<64x64xf32>
    %340 = arith.truncf %339 : vector<64x64xf32> to vector<64x64xbf16>
    %cst_166 = arith.constant dense<0.000000e+00> : vector<64x64xf32>
    %341 = tpu.matmul %4, %340, %cst_166 {dimension_numbers = #tpu.dot_dimension_numbers<[1], [0], [0], [1], [0, 0, 1, 1], [], []>} : vector<64x64xbf16>, vector<64x64xbf16>, vector<64x64xf32> -> vector<64x64xf32>
    %342 = arith.extf %338 : vector<64x64xbf16> to vector<64x64xf32>
    %343 = arith.subf %341, %342 : vector<64x64xf32>
    %344 = arith.truncf %343 : vector<64x64xf32> to vector<64x64xbf16>
    %345 = tpu.concatenate %338, %340, %344 in 1 : vector<64x64xbf16>, vector<64x64xbf16>, vector<64x64xbf16> -> vector<64x192xbf16>
    %c0_167 = arith.constant 0 : index
    %c0_168 = arith.constant 0 : index
    %346 = vector.load %arg19[%c0_167, %c0_168] : memref<192x32xbf16, #tpu.memory_space<vmem>>, vector<192x32xbf16>
    %cst_169 = arith.constant dense<0.000000e+00> : vector<64x32xf32>
    %347 = tpu.matmul %345, %346, %cst_169 {dimension_numbers = #tpu.dot_dimension_numbers<[1], [0], [0], [1], [0, 0, 1, 1], [], []>} : vector<64x192xbf16>, vector<192x32xbf16>, vector<64x32xf32> -> vector<64x32xf32>
    %c0_170 = arith.constant 0 : index
    %c0_171 = arith.constant 0 : index
    %348 = vector.load %arg32[%c0_170, %c0_171] : memref<3x32xf32, #tpu.memory_space<vmem>>, vector<1x32xf32>
    %349 = vector.broadcast %348 : vector<1x32xf32> to vector<64x32xf32>
    %350 = arith.addf %347, %349 : vector<64x32xf32>
    %cst_172 = arith.constant dense<0.000000e+00> : vector<32xf32>
    %351 = vector.multi_reduction <add>, %350, %cst_172 [0] : vector<64x32xf32> to vector<32xf32>
    %352 = vector.shape_cast %351 : vector<32xf32> to vector<1x32xf32>
    %353 = arith.mulf %350, %350 : vector<64x32xf32>
    %cst_173 = arith.constant dense<0.000000e+00> : vector<32xf32>
    %354 = vector.multi_reduction <add>, %353, %cst_173 [0] : vector<64x32xf32> to vector<32xf32>
    %355 = vector.shape_cast %354 : vector<32xf32> to vector<1x32xf32>
    %cst_174 = arith.constant 1.562500e-02 : f32
    %356 = vector.broadcast %cst_174 : f32 to vector<1x32xf32>
    %357 = arith.mulf %352, %356 : vector<1x32xf32>
    %cst_175 = arith.constant 1.562500e-02 : f32
    %358 = vector.broadcast %cst_175 : f32 to vector<1x32xf32>
    %359 = arith.mulf %355, %358 : vector<1x32xf32>
    %360 = arith.mulf %357, %357 : vector<1x32xf32>
    %361 = arith.subf %359, %360 : vector<1x32xf32>
    %cst_176 = arith.constant 0.000000e+00 : f32
    %362 = vector.broadcast %cst_176 : f32 to vector<1x32xf32>
    %363 = arith.maximumf %361, %362 : vector<1x32xf32>
    %cst_177 = arith.constant 9.99999974E-6 : f32
    %364 = vector.broadcast %cst_177 : f32 to vector<1x32xf32>
    %365 = arith.addf %363, %364 : vector<1x32xf32>
    %366 = math.rsqrt %365 : vector<1x32xf32>
    %c1_178 = arith.constant 1 : index
    %c0_179 = arith.constant 0 : index
    %367 = vector.load %arg32[%c1_178, %c0_179] : memref<3x32xf32, #tpu.memory_space<vmem>>, vector<1x32xf32>
    %368 = arith.mulf %367, %366 : vector<1x32xf32>
    %c2_180 = arith.constant 2 : index
    %c0_181 = arith.constant 0 : index
    %369 = vector.load %arg32[%c2_180, %c0_181] : memref<3x32xf32, #tpu.memory_space<vmem>>, vector<1x32xf32>
    %370 = arith.mulf %357, %368 : vector<1x32xf32>
    %371 = arith.subf %369, %370 : vector<1x32xf32>
    %372 = vector.broadcast %368 : vector<1x32xf32> to vector<64x32xf32>
    %373 = arith.mulf %350, %372 : vector<64x32xf32>
    %374 = vector.broadcast %371 : vector<1x32xf32> to vector<64x32xf32>
    %375 = arith.addf %373, %374 : vector<64x32xf32>
    %cst_182 = arith.constant 0.000000e+00 : f32
    %376 = vector.broadcast %cst_182 : f32 to vector<64x32xf32>
    %377 = arith.maximumf %375, %376 : vector<64x32xf32>
    %378 = arith.truncf %377 : vector<64x32xf32> to vector<64x32xbf16>
    %cst_183 = arith.constant dense<0.000000e+00> : vector<64x32xf32>
    %379 = tpu.matmul %1, %378, %cst_183 {dimension_numbers = #tpu.dot_dimension_numbers<[1], [0], [0], [1], [0, 0, 1, 1], [], []>} : vector<64x64xbf16>, vector<64x32xbf16>, vector<64x32xf32> -> vector<64x32xf32>
    %380 = arith.truncf %379 : vector<64x32xf32> to vector<64x32xbf16>
    %cst_184 = arith.constant dense<0.000000e+00> : vector<64x32xf32>
    %381 = tpu.matmul %4, %380, %cst_184 {dimension_numbers = #tpu.dot_dimension_numbers<[1], [0], [0], [1], [0, 0, 1, 1], [], []>} : vector<64x64xbf16>, vector<64x32xbf16>, vector<64x32xf32> -> vector<64x32xf32>
    %382 = arith.extf %378 : vector<64x32xbf16> to vector<64x32xf32>
    %383 = arith.subf %381, %382 : vector<64x32xf32>
    %384 = arith.truncf %383 : vector<64x32xf32> to vector<64x32xbf16>
    %385 = tpu.concatenate %378, %380, %384 in 1 : vector<64x32xbf16>, vector<64x32xbf16>, vector<64x32xbf16> -> vector<64x96xbf16>
    %c0_185 = arith.constant 0 : index
    %c0_186 = arith.constant 0 : index
    %386 = vector.load %arg20[%c0_185, %c0_186] : memref<96x16xbf16, #tpu.memory_space<vmem>>, vector<96x16xbf16>
    %cst_187 = arith.constant dense<0.000000e+00> : vector<64x16xf32>
    %387 = tpu.matmul %385, %386, %cst_187 {dimension_numbers = #tpu.dot_dimension_numbers<[1], [0], [0], [1], [0, 0, 1, 1], [], []>} : vector<64x96xbf16>, vector<96x16xbf16>, vector<64x16xf32> -> vector<64x16xf32>
    %c0_188 = arith.constant 0 : index
    %c0_189 = arith.constant 0 : index
    %388 = vector.load %arg33[%c0_188, %c0_189] : memref<3x16xf32, #tpu.memory_space<vmem>>, vector<1x16xf32>
    %389 = vector.broadcast %388 : vector<1x16xf32> to vector<64x16xf32>
    %390 = arith.addf %387, %389 : vector<64x16xf32>
    %cst_190 = arith.constant dense<0.000000e+00> : vector<16xf32>
    %391 = vector.multi_reduction <add>, %390, %cst_190 [0] : vector<64x16xf32> to vector<16xf32>
    %392 = vector.shape_cast %391 : vector<16xf32> to vector<1x16xf32>
    %393 = arith.mulf %390, %390 : vector<64x16xf32>
    %cst_191 = arith.constant dense<0.000000e+00> : vector<16xf32>
    %394 = vector.multi_reduction <add>, %393, %cst_191 [0] : vector<64x16xf32> to vector<16xf32>
    %395 = vector.shape_cast %394 : vector<16xf32> to vector<1x16xf32>
    %cst_192 = arith.constant 1.562500e-02 : f32
    %396 = vector.broadcast %cst_192 : f32 to vector<1x16xf32>
    %397 = arith.mulf %392, %396 : vector<1x16xf32>
    %cst_193 = arith.constant 1.562500e-02 : f32
    %398 = vector.broadcast %cst_193 : f32 to vector<1x16xf32>
    %399 = arith.mulf %395, %398 : vector<1x16xf32>
    %400 = arith.mulf %397, %397 : vector<1x16xf32>
    %401 = arith.subf %399, %400 : vector<1x16xf32>
    %cst_194 = arith.constant 0.000000e+00 : f32
    %402 = vector.broadcast %cst_194 : f32 to vector<1x16xf32>
    %403 = arith.maximumf %401, %402 : vector<1x16xf32>
    %cst_195 = arith.constant 9.99999974E-6 : f32
    %404 = vector.broadcast %cst_195 : f32 to vector<1x16xf32>
    %405 = arith.addf %403, %404 : vector<1x16xf32>
    %406 = math.rsqrt %405 : vector<1x16xf32>
    %c1_196 = arith.constant 1 : index
    %c0_197 = arith.constant 0 : index
    %407 = vector.load %arg33[%c1_196, %c0_197] : memref<3x16xf32, #tpu.memory_space<vmem>>, vector<1x16xf32>
    %408 = arith.mulf %407, %406 : vector<1x16xf32>
    %c2_198 = arith.constant 2 : index
    %c0_199 = arith.constant 0 : index
    %409 = vector.load %arg33[%c2_198, %c0_199] : memref<3x16xf32, #tpu.memory_space<vmem>>, vector<1x16xf32>
    %410 = arith.mulf %397, %408 : vector<1x16xf32>
    %411 = arith.subf %409, %410 : vector<1x16xf32>
    %412 = vector.broadcast %408 : vector<1x16xf32> to vector<64x16xf32>
    %413 = arith.mulf %390, %412 : vector<64x16xf32>
    %414 = vector.broadcast %411 : vector<1x16xf32> to vector<64x16xf32>
    %415 = arith.addf %413, %414 : vector<64x16xf32>
    %cst_200 = arith.constant 0.000000e+00 : f32
    %416 = vector.broadcast %cst_200 : f32 to vector<64x16xf32>
    %417 = arith.maximumf %415, %416 : vector<64x16xf32>
    %418 = arith.truncf %417 : vector<64x16xf32> to vector<64x16xbf16>
    %cst_201 = arith.constant dense<0.000000e+00> : vector<256x16xf32>
    %419 = tpu.matmul %8, %418, %cst_201 {dimension_numbers = #tpu.dot_dimension_numbers<[1], [0], [0], [1], [0, 0, 1, 1], [], []>} : vector<256x64xbf16>, vector<64x16xbf16>, vector<256x16xf32> -> vector<256x16xf32>
    %420 = tpu.concatenate %419, %130 in 1 : vector<256x16xf32>, vector<256x16xf32> -> vector<256x32xf32>
    %421 = arith.truncf %420 : vector<256x32xf32> to vector<256x32xbf16>
    %cst_202 = arith.constant dense<0.000000e+00> : vector<256x32xf32>
    %422 = tpu.matmul %0, %421, %cst_202 {dimension_numbers = #tpu.dot_dimension_numbers<[1], [0], [0], [1], [0, 0, 1, 1], [], []>} : vector<256x256xbf16>, vector<256x32xbf16>, vector<256x32xf32> -> vector<256x32xf32>
    %423 = arith.truncf %422 : vector<256x32xf32> to vector<256x32xbf16>
    %cst_203 = arith.constant dense<0.000000e+00> : vector<256x32xf32>
    %424 = tpu.matmul %3, %423, %cst_203 {dimension_numbers = #tpu.dot_dimension_numbers<[1], [0], [0], [1], [0, 0, 1, 1], [], []>} : vector<256x256xbf16>, vector<256x32xbf16>, vector<256x32xf32> -> vector<256x32xf32>
    %425 = arith.extf %421 : vector<256x32xbf16> to vector<256x32xf32>
    %426 = arith.subf %424, %425 : vector<256x32xf32>
    %427 = arith.truncf %426 : vector<256x32xf32> to vector<256x32xbf16>
    %428 = tpu.concatenate %421, %423, %427 in 1 : vector<256x32xbf16>, vector<256x32xbf16>, vector<256x32xbf16> -> vector<256x96xbf16>
    %c0_204 = arith.constant 0 : index
    %c0_205 = arith.constant 0 : index
    %429 = vector.load %arg21[%c0_204, %c0_205] : memref<96x16xbf16, #tpu.memory_space<vmem>>, vector<96x16xbf16>
    %cst_206 = arith.constant dense<0.000000e+00> : vector<256x16xf32>
    %430 = tpu.matmul %428, %429, %cst_206 {dimension_numbers = #tpu.dot_dimension_numbers<[1], [0], [0], [1], [0, 0, 1, 1], [], []>} : vector<256x96xbf16>, vector<96x16xbf16>, vector<256x16xf32> -> vector<256x16xf32>
    %c0_207 = arith.constant 0 : index
    %c0_208 = arith.constant 0 : index
    %431 = vector.load %arg34[%c0_207, %c0_208] : memref<3x16xf32, #tpu.memory_space<vmem>>, vector<1x16xf32>
    %432 = vector.broadcast %431 : vector<1x16xf32> to vector<256x16xf32>
    %433 = arith.addf %430, %432 : vector<256x16xf32>
    %cst_209 = arith.constant dense<0.000000e+00> : vector<16xf32>
    %434 = vector.multi_reduction <add>, %433, %cst_209 [0] : vector<256x16xf32> to vector<16xf32>
    %435 = vector.shape_cast %434 : vector<16xf32> to vector<1x16xf32>
    %436 = arith.mulf %433, %433 : vector<256x16xf32>
    %cst_210 = arith.constant dense<0.000000e+00> : vector<16xf32>
    %437 = vector.multi_reduction <add>, %436, %cst_210 [0] : vector<256x16xf32> to vector<16xf32>
    %438 = vector.shape_cast %437 : vector<16xf32> to vector<1x16xf32>
    %cst_211 = arith.constant 3.906250e-03 : f32
    %439 = vector.broadcast %cst_211 : f32 to vector<1x16xf32>
    %440 = arith.mulf %435, %439 : vector<1x16xf32>
    %cst_212 = arith.constant 3.906250e-03 : f32
    %441 = vector.broadcast %cst_212 : f32 to vector<1x16xf32>
    %442 = arith.mulf %438, %441 : vector<1x16xf32>
    %443 = arith.mulf %440, %440 : vector<1x16xf32>
    %444 = arith.subf %442, %443 : vector<1x16xf32>
    %cst_213 = arith.constant 0.000000e+00 : f32
    %445 = vector.broadcast %cst_213 : f32 to vector<1x16xf32>
    %446 = arith.maximumf %444, %445 : vector<1x16xf32>
    %cst_214 = arith.constant 9.99999974E-6 : f32
    %447 = vector.broadcast %cst_214 : f32 to vector<1x16xf32>
    %448 = arith.addf %446, %447 : vector<1x16xf32>
    %449 = math.rsqrt %448 : vector<1x16xf32>
    %c1_215 = arith.constant 1 : index
    %c0_216 = arith.constant 0 : index
    %450 = vector.load %arg34[%c1_215, %c0_216] : memref<3x16xf32, #tpu.memory_space<vmem>>, vector<1x16xf32>
    %451 = arith.mulf %450, %449 : vector<1x16xf32>
    %c2_217 = arith.constant 2 : index
    %c0_218 = arith.constant 0 : index
    %452 = vector.load %arg34[%c2_217, %c0_218] : memref<3x16xf32, #tpu.memory_space<vmem>>, vector<1x16xf32>
    %453 = arith.mulf %440, %451 : vector<1x16xf32>
    %454 = arith.subf %452, %453 : vector<1x16xf32>
    %455 = vector.broadcast %451 : vector<1x16xf32> to vector<256x16xf32>
    %456 = arith.mulf %433, %455 : vector<256x16xf32>
    %457 = vector.broadcast %454 : vector<1x16xf32> to vector<256x16xf32>
    %458 = arith.addf %456, %457 : vector<256x16xf32>
    %cst_219 = arith.constant 0.000000e+00 : f32
    %459 = vector.broadcast %cst_219 : f32 to vector<256x16xf32>
    %460 = arith.maximumf %458, %459 : vector<256x16xf32>
    %461 = arith.truncf %460 : vector<256x16xf32> to vector<256x16xbf16>
    %cst_220 = arith.constant dense<0.000000e+00> : vector<256x16xf32>
    %462 = tpu.matmul %0, %461, %cst_220 {dimension_numbers = #tpu.dot_dimension_numbers<[1], [0], [0], [1], [0, 0, 1, 1], [], []>} : vector<256x256xbf16>, vector<256x16xbf16>, vector<256x16xf32> -> vector<256x16xf32>
    %463 = arith.truncf %462 : vector<256x16xf32> to vector<256x16xbf16>
    %cst_221 = arith.constant dense<0.000000e+00> : vector<256x16xf32>
    %464 = tpu.matmul %3, %463, %cst_221 {dimension_numbers = #tpu.dot_dimension_numbers<[1], [0], [0], [1], [0, 0, 1, 1], [], []>} : vector<256x256xbf16>, vector<256x16xbf16>, vector<256x16xf32> -> vector<256x16xf32>
    %465 = arith.extf %461 : vector<256x16xbf16> to vector<256x16xf32>
    %466 = arith.subf %464, %465 : vector<256x16xf32>
    %467 = arith.truncf %466 : vector<256x16xf32> to vector<256x16xbf16>
    %468 = tpu.concatenate %461, %463, %467 in 1 : vector<256x16xbf16>, vector<256x16xbf16>, vector<256x16xbf16> -> vector<256x48xbf16>
    %c0_222 = arith.constant 0 : index
    %c0_223 = arith.constant 0 : index
    %469 = vector.load %arg22[%c0_222, %c0_223] : memref<48x8xbf16, #tpu.memory_space<vmem>>, vector<48x8xbf16>
    %cst_224 = arith.constant dense<0.000000e+00> : vector<256x8xf32>
    %470 = tpu.matmul %468, %469, %cst_224 {dimension_numbers = #tpu.dot_dimension_numbers<[1], [0], [0], [1], [0, 0, 1, 1], [], []>} : vector<256x48xbf16>, vector<48x8xbf16>, vector<256x8xf32> -> vector<256x8xf32>
    %c0_225 = arith.constant 0 : index
    %c0_226 = arith.constant 0 : index
    %471 = vector.load %arg35[%c0_225, %c0_226] : memref<3x8xf32, #tpu.memory_space<vmem>>, vector<1x8xf32>
    %472 = vector.broadcast %471 : vector<1x8xf32> to vector<256x8xf32>
    %473 = arith.addf %470, %472 : vector<256x8xf32>
    %cst_227 = arith.constant dense<0.000000e+00> : vector<8xf32>
    %474 = vector.multi_reduction <add>, %473, %cst_227 [0] : vector<256x8xf32> to vector<8xf32>
    %475 = vector.shape_cast %474 : vector<8xf32> to vector<1x8xf32>
    %476 = arith.mulf %473, %473 : vector<256x8xf32>
    %cst_228 = arith.constant dense<0.000000e+00> : vector<8xf32>
    %477 = vector.multi_reduction <add>, %476, %cst_228 [0] : vector<256x8xf32> to vector<8xf32>
    %478 = vector.shape_cast %477 : vector<8xf32> to vector<1x8xf32>
    %cst_229 = arith.constant 3.906250e-03 : f32
    %479 = vector.broadcast %cst_229 : f32 to vector<1x8xf32>
    %480 = arith.mulf %475, %479 : vector<1x8xf32>
    %cst_230 = arith.constant 3.906250e-03 : f32
    %481 = vector.broadcast %cst_230 : f32 to vector<1x8xf32>
    %482 = arith.mulf %478, %481 : vector<1x8xf32>
    %483 = arith.mulf %480, %480 : vector<1x8xf32>
    %484 = arith.subf %482, %483 : vector<1x8xf32>
    %cst_231 = arith.constant 0.000000e+00 : f32
    %485 = vector.broadcast %cst_231 : f32 to vector<1x8xf32>
    %486 = arith.maximumf %484, %485 : vector<1x8xf32>
    %cst_232 = arith.constant 9.99999974E-6 : f32
    %487 = vector.broadcast %cst_232 : f32 to vector<1x8xf32>
    %488 = arith.addf %486, %487 : vector<1x8xf32>
    %489 = math.rsqrt %488 : vector<1x8xf32>
    %c1_233 = arith.constant 1 : index
    %c0_234 = arith.constant 0 : index
    %490 = vector.load %arg35[%c1_233, %c0_234] : memref<3x8xf32, #tpu.memory_space<vmem>>, vector<1x8xf32>
    %491 = arith.mulf %490, %489 : vector<1x8xf32>
    %c2_235 = arith.constant 2 : index
    %c0_236 = arith.constant 0 : index
    %492 = vector.load %arg35[%c2_235, %c0_236] : memref<3x8xf32, #tpu.memory_space<vmem>>, vector<1x8xf32>
    %493 = arith.mulf %480, %491 : vector<1x8xf32>
    %494 = arith.subf %492, %493 : vector<1x8xf32>
    %495 = vector.broadcast %491 : vector<1x8xf32> to vector<256x8xf32>
    %496 = arith.mulf %473, %495 : vector<256x8xf32>
    %497 = vector.broadcast %494 : vector<1x8xf32> to vector<256x8xf32>
    %498 = arith.addf %496, %497 : vector<256x8xf32>
    %cst_237 = arith.constant 0.000000e+00 : f32
    %499 = vector.broadcast %cst_237 : f32 to vector<256x8xf32>
    %500 = arith.maximumf %498, %499 : vector<256x8xf32>
    %501 = arith.truncf %500 : vector<256x8xf32> to vector<256x8xbf16>
    %cst_238 = arith.constant dense<0.000000e+00> : vector<256x8xf32>
    %502 = tpu.matmul %0, %501, %cst_238 {dimension_numbers = #tpu.dot_dimension_numbers<[1], [0], [0], [1], [0, 0, 1, 1], [], []>} : vector<256x256xbf16>, vector<256x8xbf16>, vector<256x8xf32> -> vector<256x8xf32>
    %503 = arith.truncf %502 : vector<256x8xf32> to vector<256x8xbf16>
    %cst_239 = arith.constant dense<0.000000e+00> : vector<256x8xf32>
    %504 = tpu.matmul %3, %503, %cst_239 {dimension_numbers = #tpu.dot_dimension_numbers<[1], [0], [0], [1], [0, 0, 1, 1], [], []>} : vector<256x256xbf16>, vector<256x8xbf16>, vector<256x8xf32> -> vector<256x8xf32>
    %505 = arith.extf %501 : vector<256x8xbf16> to vector<256x8xf32>
    %506 = arith.subf %504, %505 : vector<256x8xf32>
    %507 = arith.truncf %506 : vector<256x8xf32> to vector<256x8xbf16>
    %508 = tpu.concatenate %501, %503, %507 in 1 : vector<256x8xbf16>, vector<256x8xbf16>, vector<256x8xbf16> -> vector<256x24xbf16>
    %c0_240 = arith.constant 0 : index
    %c0_241 = arith.constant 0 : index
    %509 = vector.load %arg23[%c0_240, %c0_241] : memref<24x8xbf16, #tpu.memory_space<vmem>>, vector<24x8xbf16>
    %cst_242 = arith.constant dense<0.000000e+00> : vector<256x8xf32>
    %510 = tpu.matmul %508, %509, %cst_242 {dimension_numbers = #tpu.dot_dimension_numbers<[1], [0], [0], [1], [0, 0, 1, 1], [], []>} : vector<256x24xbf16>, vector<24x8xbf16>, vector<256x8xf32> -> vector<256x8xf32>
    %c0_243 = arith.constant 0 : index
    %c0_244 = arith.constant 0 : index
    %511 = vector.load %arg36[%c0_243, %c0_244] : memref<3x8xf32, #tpu.memory_space<vmem>>, vector<1x8xf32>
    %512 = vector.broadcast %511 : vector<1x8xf32> to vector<256x8xf32>
    %513 = arith.addf %510, %512 : vector<256x8xf32>
    %c0_245 = arith.constant 0 : index
    %c0_246 = arith.constant 0 : index
    %514 = vector.load %arg37[%c0_245, %c0_246] : memref<256x8xf32, #tpu.memory_space<vmem>>, vector<256x8xf32>
    tpu.vector_store %arg37[%c0_245, %c0_246], %513 {strides = array<i32>} : memref<256x8xf32, #tpu.memory_space<vmem>>, vector<256x8xf32>,
    return
  }
}

</mosaic_0001>

<llo_original>
// kernel: unet_spherical_forward.1
$region0: #{unet_spherical_forward.1}
  #allocation0 [shape = 'u32[]', space=smem, size = 0x4, offset = 0x4, fixed_abs, tag = 'smem constant byte address 0x4 - core index']
  #allocation1 [shape = 'u32[144,128]{1,0:T(1,128)}', space=vmem, size = 0x12000, scoped, tag = 'internal scratch']
  %s0 = inlined_call_operand.smem [shape: u32[38], index: -1, kind: input, shape index: {}]
  %s1 = sld [smem:[%s0]]
  %s2 = scalar_lea.smem %s0, 1
  %s3 = sld [smem:[%s2]]
  %s4 = scalar_lea.smem %s0, 2
  %s5 = sld [smem:[%s4]]
  %s6 = scalar_lea.smem %s0, 3
  %s7 = sld [smem:[%s6]]
  %s8 = scalar_lea.smem %s0, 4
  %s9 = sld [smem:[%s8]]
  %s10 = scalar_lea.smem %s0, 5
  %s11 = sld [smem:[%s10]]
  %s12 = scalar_lea.smem %s0, 6
  %s13 = sld [smem:[%s12]]
  %s14 = scalar_lea.smem %s0, 7
  %s15 = sld [smem:[%s14]]
  %s16 = scalar_lea.smem %s0, 8
  %s17 = sld [smem:[%s16]]
  %s18 = scalar_lea.smem %s0, 9
  %s19 = sld [smem:[%s18]]
  %s20 = scalar_lea.smem %s0, 10
  %s21 = sld [smem:[%s20]]
  %s22 = scalar_lea.smem %s0, 11
  %s23 = sld [smem:[%s22]]
  %s24 = scalar_lea.smem %s0, 12
  %s25 = sld [smem:[%s24]]
  %s26 = scalar_lea.smem %s0, 13
  %s27 = sld [smem:[%s26]]
  %s28 = scalar_lea.smem %s0, 14
  %s29 = sld [smem:[%s28]]
  %s30 = scalar_lea.smem %s0, 15
  %s31 = sld [smem:[%s30]]
  %s32 = scalar_lea.smem %s0, 16
  %s33 = sld [smem:[%s32]]
  %s34 = scalar_lea.smem %s0, 17
  %s35 = sld [smem:[%s34]]
  %s36 = scalar_lea.smem %s0, 18
  %s37 = sld [smem:[%s36]]
  %s38 = scalar_lea.smem %s0, 19
  %s39 = sld [smem:[%s38]]
  %s40 = scalar_lea.smem %s0, 20
  %s41 = sld [smem:[%s40]]
  %s42 = scalar_lea.smem %s0, 21
  %s43 = sld [smem:[%s42]]
  %s44 = scalar_lea.smem %s0, 22
  %s45 = sld [smem:[%s44]]
  %s46 = scalar_lea.smem %s0, 23
  %s47 = sld [smem:[%s46]]
  %s48 = scalar_lea.smem %s0, 24
  %s49 = sld [smem:[%s48]]
  %s50 = scalar_lea.smem %s0, 25
  %s51 = sld [smem:[%s50]]
  %s52 = scalar_lea.smem %s0, 26
  %s53 = sld [smem:[%s52]]
  %s54 = scalar_lea.smem %s0, 27
  %s55 = sld [smem:[%s54]]
  %s56 = scalar_lea.smem %s0, 28
  %s57 = sld [smem:[%s56]]
  %s58 = scalar_lea.smem %s0, 29
  %s59 = sld [smem:[%s58]]
  %s60 = scalar_lea.smem %s0, 30
  %s61 = sld [smem:[%s60]]
  %s62 = scalar_lea.smem %s0, 31
  %s63 = sld [smem:[%s62]]
  %s64 = scalar_lea.smem %s0, 32
  %s65 = sld [smem:[%s64]]
  %s66 = scalar_lea.smem %s0, 33
  %s67 = sld [smem:[%s66]]
  %s68 = scalar_lea.smem %s0, 34
  %s69 = sld [smem:[%s68]]
  %s70 = scalar_lea.smem %s0, 35
  %s71 = sld [smem:[%s70]]
  %s72 = scalar_lea.smem %s0, 36
  %s73 = sld [smem:[%s72]]
  %s74 = scalar_lea.smem %s0, 37
  %s75 = sld [smem:[%s74]]
  %s76 = sld [smem:[#allocation0]]
  $region158: #{unet_spherical_forward.1} parent=0
    _
  %s78 = ssub.s32 1, %s76
  %s79 = scalar_select 0, %s78, %s76
  // Predicated region
  $region2: #{unet_spherical_forward.1} parent=0 // pred_check
    _
  $region3: #{unet_spherical_forward.1} parent=0 // pred_check_branch
    %81 = sbr.rel (0) target = $region5
  $region4: #{unet_spherical_forward.1} parent=0 // pred_region
    _
  $region5: #{unet_spherical_forward.1} parent=0 // pred_fallthru
    _
  // Predicated region
  $region6: #{unet_spherical_forward.1} parent=0 // pred_check
    _
  $region7: #{unet_spherical_forward.1} parent=0 // pred_check_branch
    %83 = sbr.rel (0) target = $region9
  $region8: #{unet_spherical_forward.1} parent=0 // pred_region
    _
  $region9: #{unet_spherical_forward.1} parent=0 // pred_fallthru
    _
  // Predicated region
  $region10: #{unet_spherical_forward.1} parent=0 // pred_check
    _
  $region11: #{unet_spherical_forward.1} parent=0 // pred_check_branch
    %85 = sbr.rel (0) target = $region13
  $region12: #{unet_spherical_forward.1} parent=0 // pred_region
    _
  $region13: #{unet_spherical_forward.1} parent=0 // pred_fallthru
    _
  // Predicated region
  $region14: #{unet_spherical_forward.1} parent=0 // pred_check
    _
  $region15: #{unet_spherical_forward.1} parent=0 // pred_check_branch
    %87 = sbr.rel (0) target = $region17
  $region16: #{unet_spherical_forward.1} parent=0 // pred_region
    _
  $region17: #{unet_spherical_forward.1} parent=0 // pred_fallthru
    _
  // Predicated region
  $region18: #{unet_spherical_forward.1} parent=0 // pred_check
    _
  $region19: #{unet_spherical_forward.1} parent=0 // pred_check_branch
    %89 = sbr.rel (0) target = $region21
  $region20: #{unet_spherical_forward.1} parent=0 // pred_region
    _
  $region21: #{unet_spherical_forward.1} parent=0 // pred_fallthru
    _
  // Predicated region
  $region22: #{unet_spherical_forward.1} parent=0 // pred_check
    _
  $region23: #{unet_spherical_forward.1} parent=0 // pred_check_branch
    %91 = sbr.rel (0) target = $region25
  $region24: #{unet_spherical_forward.1} parent=0 // pred_region
    _
  $region25: #{unet_spherical_forward.1} parent=0 // pred_fallthru
    _
  // Predicated region
  $region26: #{unet_spherical_forward.1} parent=0 // pred_check
    _
  $region27: #{unet_spherical_forward.1} parent=0 // pred_check_branch
    %93 = sbr.rel (0) target = $region29
  $region28: #{unet_spherical_forward.1} parent=0 // pred_region
    _
  $region29: #{unet_spherical_forward.1} parent=0 // pred_fallthru
    _
  // Predicated region
  $region30: #{unet_spherical_forward.1} parent=0 // pred_check
    _
  $region31: #{unet_spherical_forward.1} parent=0 // pred_check_branch
    %95 = sbr.rel (0) target = $region33
  $region32: #{unet_spherical_forward.1} parent=0 // pred_region
    _
  $region33: #{unet_spherical_forward.1} parent=0 // pred_fallthru
    _
  // Predicated region
  $region34: #{unet_spherical_forward.1} parent=0 // pred_check
    _
  $region35: #{unet_spherical_forward.1} parent=0 // pred_check_branch
    %97 = sbr.rel (0) target = $region37
  $region36: #{unet_spherical_forward.1} parent=0 // pred_region
    _
  $region37: #{unet_spherical_forward.1} parent=0 // pred_fallthru
    _
  // Predicated region
  $region38: #{unet_spherical_forward.1} parent=0 // pred_check
    _
  $region39: #{unet_spherical_forward.1} parent=0 // pred_check_branch
    %99 = sbr.rel (0) target = $region41
  $region40: #{unet_spherical_forward.1} parent=0 // pred_region
    _
  $region41: #{unet_spherical_forward.1} parent=0 // pred_fallthru
    _
  // Predicated region
  $region42: #{unet_spherical_forward.1} parent=0 // pred_check
    _
  $region43: #{unet_spherical_forward.1} parent=0 // pred_check_branch
    %101 = sbr.rel (0) target = $region45
  $region44: #{unet_spherical_forward.1} parent=0 // pred_region
    _
  $region45: #{unet_spherical_forward.1} parent=0 // pred_fallthru
    _
  // Predicated region
  $region46: #{unet_spherical_forward.1} parent=0 // pred_check
    _
  $region47: #{unet_spherical_forward.1} parent=0 // pred_check_branch
    %103 = sbr.rel (0) target = $region49
  $region48: #{unet_spherical_forward.1} parent=0 // pred_region
    _
  $region49: #{unet_spherical_forward.1} parent=0 // pred_fallthru
    _
  // Predicated region
  $region50: #{unet_spherical_forward.1} parent=0 // pred_check
    _
  $region51: #{unet_spherical_forward.1} parent=0 // pred_check_branch
    %105 = sbr.rel (0) target = $region53
  $region52: #{unet_spherical_forward.1} parent=0 // pred_region
    _
  $region53: #{unet_spherical_forward.1} parent=0 // pred_fallthru
    _
  // Predicated region
  $region54: #{unet_spherical_forward.1} parent=0 // pred_check
    _
  $region55: #{unet_spherical_forward.1} parent=0 // pred_check_branch
    %107 = sbr.rel (0) target = $region57
  $region56: #{unet_spherical_forward.1} parent=0 // pred_region
    _
  $region57: #{unet_spherical_forward.1} parent=0 // pred_fallthru
    _
  // Predicated region
  $region58: #{unet_spherical_forward.1} parent=0 // pred_check
    _
  $region59: #{unet_spherical_forward.1} parent=0 // pred_check_branch
    %109 = sbr.rel (0) target = $region61
  $region60: #{unet_spherical_forward.1} parent=0 // pred_region
    _
  $region61: #{unet_spherical_forward.1} parent=0 // pred_fallthru
    _
  // Predicated region
  $region62: #{unet_spherical_forward.1} parent=0 // pred_check
    _
  $region63: #{unet_spherical_forward.1} parent=0 // pred_check_branch
    %111 = sbr.rel (0) target = $region65
  $region64: #{unet_spherical_forward.1} parent=0 // pred_region
    _
  $region65: #{unet_spherical_forward.1} parent=0 // pred_fallthru
    _
  // Predicated region
  $region66: #{unet_spherical_forward.1} parent=0 // pred_check
    _
  $region67: #{unet_spherical_forward.1} parent=0 // pred_check_branch
    %113 = sbr.rel (0) target = $region69
  $region68: #{unet_spherical_forward.1} parent=0 // pred_region
    _
  $region69: #{unet_spherical_forward.1} parent=0 // pred_fallthru
    _
  // Predicated region
  $region70: #{unet_spherical_forward.1} parent=0 // pred_check
    _
  $region71: #{unet_spherical_forward.1} parent=0 // pred_check_branch
    %115 = sbr.rel (0) target = $region73
  $region72: #{unet_spherical_forward.1} parent=0 // pred_region
    _
  $region73: #{unet_spherical_forward.1} parent=0 // pred_fallthru
    _
  // Predicated region
  $region74: #{unet_spherical_forward.1} parent=0 // pred_check
    _
  $region75: #{unet_spherical_forward.1} parent=0 // pred_check_branch
    %117 = sbr.rel (0) target = $region77
  $region76: #{unet_spherical_forward.1} parent=0 // pred_region
    _
  $region77: #{unet_spherical_forward.1} parent=0 // pred_fallthru
    _
  // Predicated region
  $region78: #{unet_spherical_forward.1} parent=0 // pred_check
    _
  $region79: #{unet_spherical_forward.1} parent=0 // pred_check_branch
    %119 = sbr.rel (0) target = $region81
  $region80: #{unet_spherical_forward.1} parent=0 // pred_region
    _
  $region81: #{unet_spherical_forward.1} parent=0 // pred_fallthru
    _
  // Predicated region
  $region82: #{unet_spherical_forward.1} parent=0 // pred_check
    _
  $region83: #{unet_spherical_forward.1} parent=0 // pred_check_branch
    %121 = sbr.rel (0) target = $region85
  $region84: #{unet_spherical_forward.1} parent=0 // pred_region
    _
  $region85: #{unet_spherical_forward.1} parent=0 // pred_fallthru
    _
  // Predicated region
  $region86: #{unet_spherical_forward.1} parent=0 // pred_check
    _
  $region87: #{unet_spherical_forward.1} parent=0 // pred_check_branch
    %123 = sbr.rel (0) target = $region89
  $region88: #{unet_spherical_forward.1} parent=0 // pred_region
    _
  $region89: #{unet_spherical_forward.1} parent=0 // pred_fallthru
    _
  // Predicated region
  $region90: #{unet_spherical_forward.1} parent=0 // pred_check
    _
  $region91: #{unet_spherical_forward.1} parent=0 // pred_check_branch
    %125 = sbr.rel (0) target = $region93
  $region92: #{unet_spherical_forward.1} parent=0 // pred_region
    _
  $region93: #{unet_spherical_forward.1} parent=0 // pred_fallthru
    _
  // Predicated region
  $region94: #{unet_spherical_forward.1} parent=0 // pred_check
    _
  $region95: #{unet_spherical_forward.1} parent=0 // pred_check_branch
    %127 = sbr.rel (0) target = $region97
  $region96: #{unet_spherical_forward.1} parent=0 // pred_region
    _
  $region97: #{unet_spherical_forward.1} parent=0 // pred_fallthru
    _
  // Predicated region
  $region98: #{unet_spherical_forward.1} parent=0 // pred_check
    _
  $region99: #{unet_spherical_forward.1} parent=0 // pred_check_branch
    %129 = sbr.rel (0) target = $region101
  $region100: #{unet_spherical_forward.1} parent=0 // pred_region
    _
  $region101: #{unet_spherical_forward.1} parent=0 // pred_fallthru
    _
  // Predicated region
  $region102: #{unet_spherical_forward.1} parent=0 // pred_check
    _
  $region103: #{unet_spherical_forward.1} parent=0 // pred_check_branch
    %131 = sbr.rel (0) target = $region105
  $region104: #{unet_spherical_forward.1} parent=0 // pred_region
    _
  $region105: #{unet_spherical_forward.1} parent=0 // pred_fallthru
    _
  // Predicated region
  $region106: #{unet_spherical_forward.1} parent=0 // pred_check
    _
  $region107: #{unet_spherical_forward.1} parent=0 // pred_check_branch
    %133 = sbr.rel (0) target = $region109
  $region108: #{unet_spherical_forward.1} parent=0 // pred_region
    _
  $region109: #{unet_spherical_forward.1} parent=0 // pred_fallthru
    _
  // Predicated region
  $region110: #{unet_spherical_forward.1} parent=0 // pred_check
    _
  $region111: #{unet_spherical_forward.1} parent=0 // pred_check_branch
    %135 = sbr.rel (0) target = $region113
  $region112: #{unet_spherical_forward.1} parent=0 // pred_region
    _
  $region113: #{unet_spherical_forward.1} parent=0 // pred_fallthru
    _
  // Predicated region
  $region114: #{unet_spherical_forward.1} parent=0 // pred_check
    _
  $region115: #{unet_spherical_forward.1} parent=0 // pred_check_branch
    %137 = sbr.rel (0) target = $region117
  $region116: #{unet_spherical_forward.1} parent=0 // pred_region
    _
  $region117: #{unet_spherical_forward.1} parent=0 // pred_fallthru
    _
  // Predicated region
  $region118: #{unet_spherical_forward.1} parent=0 // pred_check
    _
  $region119: #{unet_spherical_forward.1} parent=0 // pred_check_branch
    %139 = sbr.rel (0) target = $region121
  $region120: #{unet_spherical_forward.1} parent=0 // pred_region
    _
  $region121: #{unet_spherical_forward.1} parent=0 // pred_fallthru
    _
  // Predicated region
  $region122: #{unet_spherical_forward.1} parent=0 // pred_check
    _
  $region123: #{unet_spherical_forward.1} parent=0 // pred_check_branch
    %141 = sbr.rel (0) target = $region125
  $region124: #{unet_spherical_forward.1} parent=0 // pred_region
    _
  $region125: #{unet_spherical_forward.1} parent=0 // pred_fallthru
    _
  // Predicated region
  $region126: #{unet_spherical_forward.1} parent=0 // pred_check
    _
  $region127: #{unet_spherical_forward.1} parent=0 // pred_check_branch
    %143 = sbr.rel (0) target = $region129
  $region128: #{unet_spherical_forward.1} parent=0 // pred_region
    _
  $region129: #{unet_spherical_forward.1} parent=0 // pred_fallthru
    _
  // Predicated region
  $region130: #{unet_spherical_forward.1} parent=0 // pred_check
    _
  $region131: #{unet_spherical_forward.1} parent=0 // pred_check_branch
    %145 = sbr.rel (0) target = $region133
  $region132: #{unet_spherical_forward.1} parent=0 // pred_region
    _
  $region133: #{unet_spherical_forward.1} parent=0 // pred_fallthru
    _
  // Predicated region
  $region134: #{unet_spherical_forward.1} parent=0 // pred_check
    _
  $region135: #{unet_spherical_forward.1} parent=0 // pred_check_branch
    %147 = sbr.rel (0) target = $region137
  $region136: #{unet_spherical_forward.1} parent=0 // pred_region
    _
  $region137: #{unet_spherical_forward.1} parent=0 // pred_fallthru
    _
  // Predicated region
  $region138: #{unet_spherical_forward.1} parent=0 // pred_check
    _
  $region139: #{unet_spherical_forward.1} parent=0 // pred_check_branch
    %149 = sbr.rel (0) target = $region141
  $region140: #{unet_spherical_forward.1} parent=0 // pred_region
    _
  $region141: #{unet_spherical_forward.1} parent=0 // pred_fallthru
    _
  // Predicated region
  $region142: #{unet_spherical_forward.1} parent=0 // pred_check
    _
  $region143: #{unet_spherical_forward.1} parent=0 // pred_check_branch
    %151 = sbr.rel (0) target = $region145
  $region144: #{unet_spherical_forward.1} parent=0 // pred_region
    _
  $region145: #{unet_spherical_forward.1} parent=0 // pred_fallthru
    _
  // Predicated region
  $region146: #{unet_spherical_forward.1} parent=0 // pred_check
    _
  $region147: #{unet_spherical_forward.1} parent=0 // pred_check_branch
    %153 = sbr.rel (0) target = $region149
  $region148: #{unet_spherical_forward.1} parent=0 // pred_region
    _
  $region149: #{unet_spherical_forward.1} parent=0 // pred_fallthru
    _
  %v155 = vld [vmem:[%s3] sm:$0xff]
  %v156 = vld [vmem:[%s3 + $0x8] sm:$0xff]
  %v157 = vld [vmem:[%s3 + $0x10] sm:$0xff]
  %v158 = vld [vmem:[%s3 + $0x18] sm:$0xff]
  %v159 = vld [vmem:[%s3 + $0x20] sm:$0xff]
  %v160 = vld [vmem:[%s3 + $0x28] sm:$0xff]
  %v161 = vld [vmem:[%s3 + $0x30] sm:$0xff]
  %v162 = vld [vmem:[%s3 + $0x38] sm:$0xff]
  %v163 = vld [vmem:[%s3 + $0x40] sm:$0xff]
  %v164 = vld [vmem:[%s3 + $0x48] sm:$0xff]
  %v165 = vld [vmem:[%s3 + $0x50] sm:$0xff]
  %v166 = vld [vmem:[%s3 + $0x58] sm:$0xff]
  %v167 = vld [vmem:[%s3 + $0x60] sm:$0xff]
  %v168 = vld [vmem:[%s3 + $0x68] sm:$0xff]
  %v169 = vld [vmem:[%s3 + $0x70] sm:$0xff]
  %v170 = vld [vmem:[%s3 + $0x78] sm:$0xff]
  %v171 = vld [vmem:[%s3 + $0x80] sm:$0xff]
  %v172 = vld [vmem:[%s3 + $0x88] sm:$0xff]
  %v173 = vld [vmem:[%s3 + $0x90] sm:$0xff]
  %v174 = vld [vmem:[%s3 + $0x98] sm:$0xff]
  %v175 = vld [vmem:[%s3 + $0xa0] sm:$0xff]
  %v176 = vld [vmem:[%s3 + $0xa8] sm:$0xff]
  %v177 = vld [vmem:[%s3 + $0xb0] sm:$0xff]
  %v178 = vld [vmem:[%s3 + $0xb8] sm:$0xff]
  %v179 = vld [vmem:[%s3 + $0xc0] sm:$0xff]
  %v180 = vld [vmem:[%s3 + $0xc8] sm:$0xff]
  %v181 = vld [vmem:[%s3 + $0xd0] sm:$0xff]
  %v182 = vld [vmem:[%s3 + $0xd8] sm:$0xff]
  %v183 = vld [vmem:[%s3 + $0xe0] sm:$0xff]
  %v184 = vld [vmem:[%s3 + $0xe8] sm:$0xff]
  %v185 = vld [vmem:[%s3 + $0xf0] sm:$0xff]
  %v186 = vld [vmem:[%s3 + $0xf8] sm:$0xff]
  %v187 = vld [vmem:[%s5] sm:$0xf]
  %v188 = vld [vmem:[%s5 + $0x4] sm:$0xf]
  %v189 = vld [vmem:[%s5 + $0x8] sm:$0xf]
  %v190 = vld [vmem:[%s5 + $0xc] sm:$0xf]
  %v191 = vld [vmem:[%s5 + $0x10] sm:$0xf]
  %v192 = vld [vmem:[%s5 + $0x14] sm:$0xf]
  %v193 = vld [vmem:[%s5 + $0x18] sm:$0xf]
  %v194 = vld [vmem:[%s5 + $0x1c] sm:$0xf]
  %v195 = vld [vmem:[%s7] sm:$0xf]
  %v196 = vld [vmem:[%s7 + $0x4] sm:$0xf]
  %v197 = vld [vmem:[%s9] sm:$0xff]
  %v198 = vld [vmem:[%s9 + $0x8] sm:$0xff]
  %v199 = vld [vmem:[%s9 + $0x10] sm:$0xff]
  %v200 = vld [vmem:[%s9 + $0x18] sm:$0xff]
  %v201 = vld [vmem:[%s9 + $0x20] sm:$0xff]
  %v202 = vld [vmem:[%s9 + $0x28] sm:$0xff]
  %v203 = vld [vmem:[%s9 + $0x30] sm:$0xff]
  %v204 = vld [vmem:[%s9 + $0x38] sm:$0xff]
  %v205 = vld [vmem:[%s9 + $0x40] sm:$0xff]
  %v206 = vld [vmem:[%s9 + $0x48] sm:$0xff]
  %v207 = vld [vmem:[%s9 + $0x50] sm:$0xff]
  %v208 = vld [vmem:[%s9 + $0x58] sm:$0xff]
  %v209 = vld [vmem:[%s9 + $0x60] sm:$0xff]
  %v210 = vld [vmem:[%s9 + $0x68] sm:$0xff]
  %v211 = vld [vmem:[%s9 + $0x70] sm:$0xff]
  %v212 = vld [vmem:[%s9 + $0x78] sm:$0xff]
  %v213 = vld [vmem:[%s9 + $0x80] sm:$0xff]
  %v214 = vld [vmem:[%s9 + $0x88] sm:$0xff]
  %v215 = vld [vmem:[%s9 + $0x90] sm:$0xff]
  %v216 = vld [vmem:[%s9 + $0x98] sm:$0xff]
  %v217 = vld [vmem:[%s9 + $0xa0] sm:$0xff]
  %v218 = vld [vmem:[%s9 + $0xa8] sm:$0xff]
  %v219 = vld [vmem:[%s9 + $0xb0] sm:$0xff]
  %v220 = vld [vmem:[%s9 + $0xb8] sm:$0xff]
  %v221 = vld [vmem:[%s9 + $0xc0] sm:$0xff]
  %v222 = vld [vmem:[%s9 + $0xc8] sm:$0xff]
  %v223 = vld [vmem:[%s9 + $0xd0] sm:$0xff]
  %v224 = vld [vmem:[%s9 + $0xd8] sm:$0xff]
  %v225 = vld [vmem:[%s9 + $0xe0] sm:$0xff]
  %v226 = vld [vmem:[%s9 + $0xe8] sm:$0xff]
  %v227 = vld [vmem:[%s9 + $0xf0] sm:$0xff]
  %v228 = vld [vmem:[%s9 + $0xf8] sm:$0xff]
  %v229 = vld [vmem:[%s11] sm:$0xf]
  %v230 = vld [vmem:[%s11 + $0x4] sm:$0xf]
  %v231 = vld [vmem:[%s11 + $0x8] sm:$0xf]
  %v232 = vld [vmem:[%s11 + $0xc] sm:$0xf]
  %v233 = vld [vmem:[%s11 + $0x10] sm:$0xf]
  %v234 = vld [vmem:[%s11 + $0x14] sm:$0xf]
  %v235 = vld [vmem:[%s11 + $0x18] sm:$0xf]
  %v236 = vld [vmem:[%s11 + $0x1c] sm:$0xf]
  %v237 = vld [vmem:[%s13] sm:$0xf]
  %v238 = vld [vmem:[%s13 + $0x4] sm:$0xf]
  %v239 = vld [vmem:[%s15] sm:$0xff]
  %v240 = vld [vmem:[%s15 + $0x8] sm:$0xff]
  %v241 = vld [vmem:[%s15 + $0x10] sm:$0xff]
  %v242 = vld [vmem:[%s15 + $0x18] sm:$0xff]
  %v243 = vld [vmem:[%s15 + $0x20] sm:$0xff]
  %v244 = vld [vmem:[%s15 + $0x28] sm:$0xff]
  %v245 = vld [vmem:[%s15 + $0x30] sm:$0xff]
  %v246 = vld [vmem:[%s15 + $0x38] sm:$0xff]
  %v247 = vld [vmem:[%s17] sm:$0xf]
  %v248 = vld [vmem:[%s17 + $0x4] sm:$0xf]
  %v249 = vld [vmem:[%s19] sm:$0xf]
  %v250 = vld [vmem:[%s19 + $0x4] sm:$0xf]
  %v251 = vld [vmem:[%s19 + $0x8] sm:$0xf]
  %v252 = vld [vmem:[%s19 + $0xc] sm:$0xf]
  %v253 = vld [vmem:[%s19 + $0x10] sm:$0xf]
  %v254 = vld [vmem:[%s19 + $0x14] sm:$0xf]
  %v255 = vld [vmem:[%s19 + $0x18] sm:$0xf]
  %v256 = vld [vmem:[%s19 + $0x1c] sm:$0xf]
  %v257 = vld [vmem:[%s19 + $0x20] sm:$0xf]
  %v258 = vld [vmem:[%s19 + $0x24] sm:$0xf]
  %v259 = vld [vmem:[%s19 + $0x28] sm:$0xf]
  %v260 = vld [vmem:[%s19 + $0x2c] sm:$0xf]
  %v261 = vld [vmem:[%s19 + $0x30] sm:$0xf]
  %v262 = vld [vmem:[%s19 + $0x34] sm:$0xf]
  %v263 = vld [vmem:[%s19 + $0x38] sm:$0xf]
  %v264 = vld [vmem:[%s19 + $0x3c] sm:$0xf]
  %v265 = vld [vmem:[%s19 + $0x40] sm:$0xf]
  %v266 = vld [vmem:[%s19 + $0x44] sm:$0xf]
  %v267 = vld [vmem:[%s19 + $0x48] sm:$0xf]
  %v268 = vld [vmem:[%s19 + $0x4c] sm:$0xf]
  %v269 = vld [vmem:[%s19 + $0x50] sm:$0xf]
  %v270 = vld [vmem:[%s19 + $0x54] sm:$0xf]
  %v271 = vld [vmem:[%s19 + $0x58] sm:$0xf]
  %v272 = vld [vmem:[%s19 + $0x5c] sm:$0xf]
  %v273 = vld [vmem:[%s19 + $0x60] sm:$0xf]
  %v274 = vld [vmem:[%s19 + $0x64] sm:$0xf]
  %v275 = vld [vmem:[%s19 + $0x68] sm:$0xf]
  %v276 = vld [vmem:[%s19 + $0x6c] sm:$0xf]
  %v277 = vld [vmem:[%s19 + $0x70] sm:$0xf]
  %v278 = vld [vmem:[%s19 + $0x74] sm:$0xf]
  %v279 = vld [vmem:[%s19 + $0x78] sm:$0xf]
  %v280 = vld [vmem:[%s19 + $0x7c] sm:$0xf]
  %v281 = vld [vmem:[%s21] sm:$0xf]
  %v282 = vld [vmem:[%s21 + $0x4] sm:$0xf]
  %v283 = vld [vmem:[%s21 + $0x8] sm:$0xf]
  %v284 = vld [vmem:[%s21 + $0xc] sm:$0xf]
  %v285 = vld [vmem:[%s21 + $0x10] sm:$0xf]
  %v286 = vld [vmem:[%s21 + $0x14] sm:$0xf]
  %v287 = vld [vmem:[%s21 + $0x18] sm:$0xf]
  %v288 = vld [vmem:[%s21 + $0x1c] sm:$0xf]
  %v289 = vld [vmem:[%s1] sm:$0xff]
  %v290 = vld [vmem:[%s1 + $0x8] sm:$0xff]
  %v291 = vld [vmem:[%s1 + $0x10] sm:$0xff]
  %v292 = vld [vmem:[%s1 + $0x18] sm:$0xff]
  %v293 = vld [vmem:[%s1 + $0x20] sm:$0xff]
  %v294 = vld [vmem:[%s1 + $0x28] sm:$0xff]
  %v295 = vld [vmem:[%s1 + $0x30] sm:$0xff]
  %v296 = vld [vmem:[%s1 + $0x38] sm:$0xff]
  %v297 = vld [vmem:[%s1 + $0x40] sm:$0xff]
  %v298 = vld [vmem:[%s1 + $0x48] sm:$0xff]
  %v299 = vld [vmem:[%s1 + $0x50] sm:$0xff]
  %v300 = vld [vmem:[%s1 + $0x58] sm:$0xff]
  %v301 = vld [vmem:[%s1 + $0x60] sm:$0xff]
  %v302 = vld [vmem:[%s1 + $0x68] sm:$0xff]
  %v303 = vld [vmem:[%s1 + $0x70] sm:$0xff]
  %v304 = vld [vmem:[%s1 + $0x78] sm:$0xff]
  %v305 = vld [vmem:[%s1 + $0x80] sm:$0xff]
  %v306 = vld [vmem:[%s1 + $0x88] sm:$0xff]
  %v307 = vld [vmem:[%s1 + $0x90] sm:$0xff]
  %v308 = vld [vmem:[%s1 + $0x98] sm:$0xff]
  %v309 = vld [vmem:[%s1 + $0xa0] sm:$0xff]
  %v310 = vld [vmem:[%s1 + $0xa8] sm:$0xff]
  %v311 = vld [vmem:[%s1 + $0xb0] sm:$0xff]
  %v312 = vld [vmem:[%s1 + $0xb8] sm:$0xff]
  %v313 = vld [vmem:[%s1 + $0xc0] sm:$0xff]
  %v314 = vld [vmem:[%s1 + $0xc8] sm:$0xff]
  %v315 = vld [vmem:[%s1 + $0xd0] sm:$0xff]
  %v316 = vld [vmem:[%s1 + $0xd8] sm:$0xff]
  %v317 = vld [vmem:[%s1 + $0xe0] sm:$0xff]
  %v318 = vld [vmem:[%s1 + $0xe8] sm:$0xff]
  %v319 = vld [vmem:[%s1 + $0xf0] sm:$0xff]
  %v320 = vld [vmem:[%s1 + $0xf8] sm:$0xff]
  %v321 = vpack.c.bf16 %v290, %v289
  %v322 = vpack.c.bf16 %v292, %v291
  %v323 = vpack.c.bf16 %v294, %v293
  %v324 = vpack.c.bf16 %v296, %v295
  %v325 = vpack.c.bf16 %v298, %v297
  %v326 = vpack.c.bf16 %v300, %v299
  %v327 = vpack.c.bf16 %v302, %v301
  %v328 = vpack.c.bf16 %v304, %v303
  %v329 = vpack.c.bf16 %v306, %v305
  %v330 = vpack.c.bf16 %v308, %v307
  %v331 = vpack.c.bf16 %v310, %v309
  %v332 = vpack.c.bf16 %v312, %v311
  %v333 = vpack.c.bf16 %v314, %v313
  %v334 = vpack.c.bf16 %v316, %v315
  %v335 = vpack.c.bf16 %v318, %v317
  %v336 = vpack.c.bf16 %v320, %v319
  %v369 = vunpack.c.l.b16 %v155
  %v370 = vunpack.c.h.b16 %v155
  %v371 = vunpack.c.l.b16 %v156
  %v372 = vunpack.c.h.b16 %v156
  %v373 = vunpack.c.l.b16 %v157
  %v374 = vunpack.c.h.b16 %v157
  %v375 = vunpack.c.l.b16 %v158
  %v376 = vunpack.c.h.b16 %v158
  %v377 = vunpack.c.l.b16 %v159
  %v378 = vunpack.c.h.b16 %v159
  %v379 = vunpack.c.l.b16 %v160
  %v380 = vunpack.c.h.b16 %v160
  %v381 = vunpack.c.l.b16 %v161
  %v382 = vunpack.c.h.b16 %v161
  %v383 = vunpack.c.l.b16 %v162
  %v384 = vunpack.c.h.b16 %v162
  %v385 = vunpack.c.l.b16 %v163
  %v386 = vunpack.c.h.b16 %v163
  %v387 = vunpack.c.l.b16 %v164
  %v388 = vunpack.c.h.b16 %v164
  %v389 = vunpack.c.l.b16 %v165
  %v390 = vunpack.c.h.b16 %v165
  %v391 = vunpack.c.l.b16 %v166
  %v392 = vunpack.c.h.b16 %v166
  %v393 = vunpack.c.l.b16 %v167
  %v394 = vunpack.c.h.b16 %v167
  %v395 = vunpack.c.l.b16 %v168
  %v396 = vunpack.c.h.b16 %v168
  %v397 = vunpack.c.l.b16 %v169
  %v398 = vunpack.c.h.b16 %v169
  %v399 = vunpack.c.l.b16 %v170
  %v400 = vunpack.c.h.b16 %v170
  %v401 = vunpack.c.l.b16 %v171
  %v402 = vunpack.c.h.b16 %v171
  %v403 = vunpack.c.l.b16 %v172
  %v404 = vunpack.c.h.b16 %v172
  %v405 = vunpack.c.l.b16 %v173
  %v406 = vunpack.c.h.b16 %v173
  %v407 = vunpack.c.l.b16 %v174
  %v408 = vunpack.c.h.b16 %v174
  %v409 = vunpack.c.l.b16 %v175
  %v410 = vunpack.c.h.b16 %v175
  %v411 = vunpack.c.l.b16 %v176
  %v412 = vunpack.c.h.b16 %v176
  %v413 = vunpack.c.l.b16 %v177
  %v414 = vunpack.c.h.b16 %v177
  %v415 = vunpack.c.l.b16 %v178
  %v416 = vunpack.c.h.b16 %v178
  %v417 = vunpack.c.l.b16 %v179
  %v418 = vunpack.c.h.b16 %v179
  %v419 = vunpack.c.l.b16 %v180
  %v420 = vunpack.c.h.b16 %v180
  %v421 = vunpack.c.l.b16 %v181
  %v422 = vunpack.c.h.b16 %v181
  %v423 = vunpack.c.l.b16 %v182
  %v424 = vunpack.c.h.b16 %v182
  %v425 = vunpack.c.l.b16 %v183
  %v426 = vunpack.c.h.b16 %v183
  %v427 = vunpack.c.l.b16 %v184
  %v428 = vunpack.c.h.b16 %v184
  %v429 = vunpack.c.l.b16 %v185
  %v430 = vunpack.c.h.b16 %v185
  %v431 = vunpack.c.l.b16 %v186
  %v432 = vunpack.c.h.b16 %v186
  %v433 = vpack.c.b16 %v371, %v369
  %v434 = vpack.c.b16 %v372, %v370
  %v435 = vpack.c.b16 %v375, %v373
  %v436 = vpack.c.b16 %v376, %v374
  %v437 = vpack.c.b16 %v379, %v377
  %v438 = vpack.c.b16 %v380, %v378
  %v439 = vpack.c.b16 %v383, %v381
  %v440 = vpack.c.b16 %v384, %v382
  %v441 = vpack.c.b16 %v387, %v385
  %v442 = vpack.c.b16 %v388, %v386
  %v443 = vpack.c.b16 %v391, %v389
  %v444 = vpack.c.b16 %v392, %v390
  %v445 = vpack.c.b16 %v395, %v393
  %v446 = vpack.c.b16 %v396, %v394
  %v447 = vpack.c.b16 %v399, %v397
  %v448 = vpack.c.b16 %v400, %v398
  %v449 = vpack.c.b16 %v403, %v401
  %v450 = vpack.c.b16 %v404, %v402
  %v451 = vpack.c.b16 %v407, %v405
  %v452 = vpack.c.b16 %v408, %v406
  %v453 = vpack.c.b16 %v411, %v409
  %v454 = vpack.c.b16 %v412, %v410
  %v455 = vpack.c.b16 %v415, %v413
  %v456 = vpack.c.b16 %v416, %v414
  %v457 = vpack.c.b16 %v419, %v417
  %v458 = vpack.c.b16 %v420, %v418
  %v459 = vpack.c.b16 %v423, %v421
  %v460 = vpack.c.b16 %v424, %v422
  %v461 = vpack.c.b16 %v427, %v425
  %v462 = vpack.c.b16 %v428, %v426
  %v463 = vpack.c.b16 %v431, %v429
  %v464 = vpack.c.b16 %v432, %v430
  %497 = vmatprep.subr.bf16.mxu0 0
  %498 = vmatpush1.bf16.msra.mxu0 %v328
  %499 = vmatprep.subr.bf16.mxu0 0
  %500 = vmatpush1.bf16.msra.mxu0 %v327
  %501 = vmatprep.subr.bf16.mxu0 0
  %502 = vmatpush1.bf16.msra.mxu0 %v326
  %503 = vmatprep.subr.bf16.mxu0 0
  %504 = vmatpush1.bf16.msra.mxu0 %v325
  %505 = vmatprep.subr.bf16.mxu0 0
  %506 = vmatpush1.bf16.msra.mxu0 %v324
  %507 = vmatprep.subr.bf16.mxu0 0
  %508 = vmatpush1.bf16.msra.mxu0 %v323
  %509 = vmatprep.subr.bf16.mxu0 0
  %510 = vmatpush1.bf16.msra.mxu0 %v322
  %511 = vmatprep.subr.bf16.mxu0 0
  %512 = vmatpush1.bf16.msra.mxu0 %v321
  %513 = vmatprep.subr.bf16.mxu0 0
  %514 = vmatpush2.bf16.msra.mxu0 %v336
  %515 = vmatprep.subr.bf16.mxu0 0
  %516 = vmatpush2.bf16.msra.mxu0 %v335
  %517 = vmatprep.subr.bf16.mxu0 0
  %518 = vmatpush2.bf16.msra.mxu0 %v334
  %519 = vmatprep.subr.bf16.mxu0 0
  %520 = vmatpush2.bf16.msra.mxu0 %v333
  %521 = vmatprep.subr.bf16.mxu0 0
  %522 = vmatpush2.bf16.msra.mxu0 %v332
  %523 = vmatprep.subr.bf16.mxu0 0
  %524 = vmatpush2.bf16.msra.mxu0 %v331
  %525 = vmatprep.subr.bf16.mxu0 0
  %526 = vmatpush2.bf16.msra.mxu0 %v330
  %527 = vmatprep.subr.bf16.mxu0 0
  %528 = vmatpush2.bf16.msra.mxu0 %v329
  %529 = vmatprep.mubr.bf16.mxu0 %v434
  %530 = vmatmul.mubr.bf16.gmra.mxu0 %v433
  %v531 = vpop.f32.mrf.mxu0
  %v532 = vadd.f32 0.0, %v531
  %v533 = vpop.f32.mrf.mxu0
  %v534 = vpop.f32.mrf.mxu0
  %v535 = vadd.f32 0.0, %v534
  %v536 = vpop.f32.mrf.mxu0
  %537 = vmatprep.mubr.bf16.mxu0 %v436
  %538 = vmatmul.mubr.bf16.gmra.mxu0 %v435
  %v539 = vpop.f32.mrf.mxu0
  %v540 = vadd.f32 0.0, %v539
  %v541 = vpop.f32.mrf.mxu0
  %v542 = vpop.f32.mrf.mxu0
  %v543 = vadd.f32 0.0, %v542
  %v544 = vpop.f32.mrf.mxu0
  %545 = vmatprep.mubr.bf16.mxu0 %v438
  %546 = vmatmul.mubr.bf16.gmra.mxu0 %v437
  %v547 = vpop.f32.mrf.mxu0
  %v548 = vadd.f32 0.0, %v547
  %v549 = vpop.f32.mrf.mxu0
  %v550 = vpop.f32.mrf.mxu0
  %v551 = vadd.f32 0.0, %v550
  %v552 = vpop.f32.mrf.mxu0
  %553 = vmatprep.mubr.bf16.mxu0 %v440
  %554 = vmatmul.mubr.bf16.gmra.mxu0 %v439
  %v555 = vpop.f32.mrf.mxu0
  %v556 = vadd.f32 0.0, %v555
  %v557 = vpop.f32.mrf.mxu0
  %v558 = vpop.f32.mrf.mxu0
  %v559 = vadd.f32 0.0, %v558
  %v560 = vpop.f32.mrf.mxu0
  %561 = vmatprep.mubr.bf16.mxu0 %v442
  %562 = vmatmul.mubr.bf16.gmra.mxu0 %v441
  %v563 = vpop.f32.mrf.mxu0
  %v564 = vadd.f32 0.0, %v563
  %v565 = vpop.f32.mrf.mxu0
  %v566 = vpop.f32.mrf.mxu0
  %v567 = vadd.f32 0.0, %v566
  %v568 = vpop.f32.mrf.mxu0
  %569 = vmatprep.mubr.bf16.mxu0 %v444
  %570 = vmatmul.mubr.bf16.gmra.mxu0 %v443
  %v571 = vpop.f32.mrf.mxu0
  %v572 = vadd.f32 0.0, %v571
  %v573 = vpop.f32.mrf.mxu0
  %v574 = vpop.f32.mrf.mxu0
  %v575 = vadd.f32 0.0, %v574
  %v576 = vpop.f32.mrf.mxu0
  %577 = vmatprep.mubr.bf16.mxu0 %v446
  %578 = vmatmul.mubr.bf16.gmra.mxu0 %v445
  %v579 = vpop.f32.mrf.mxu0
  %v580 = vadd.f32 0.0, %v579
  %v581 = vpop.f32.mrf.mxu0
  %v582 = vpop.f32.mrf.mxu0
  %v583 = vadd.f32 0.0, %v582
  %v584 = vpop.f32.mrf.mxu0
  %585 = vmatprep.mubr.bf16.mxu0 %v448
  %586 = vmatmul.mubr.bf16.gmra.mxu0 %v447
  %v587 = vpop.f32.mrf.mxu0
  %v588 = vadd.f32 0.0, %v587
  %v589 = vpop.f32.mrf.mxu0
  %v590 = vpop.f32.mrf.mxu0
  %v591 = vadd.f32 0.0, %v590
  %v592 = vpop.f32.mrf.mxu0
  %593 = vmatprep.mubr.bf16.mxu0 %v450
  %594 = vmatmul.mubr.bf16.gmra.mxu0 %v449
  %v595 = vpop.f32.mrf.mxu0
  %v596 = vadd.f32 0.0, %v595
  %v597 = vpop.f32.mrf.mxu0
  %v598 = vpop.f32.mrf.mxu0
  %v599 = vadd.f32 0.0, %v598
  %v600 = vpop.f32.mrf.mxu0
  %601 = vmatprep.mubr.bf16.mxu0 %v452
  %602 = vmatmul.mubr.bf16.gmra.mxu0 %v451
  %v603 = vpop.f32.mrf.mxu0
  %v604 = vadd.f32 0.0, %v603
  %v605 = vpop.f32.mrf.mxu0
  %v606 = vpop.f32.mrf.mxu0
  %v607 = vadd.f32 0.0, %v606
  %v608 = vpop.f32.mrf.mxu0
  %609 = vmatprep.mubr.bf16.mxu0 %v454
  %610 = vmatmul.mubr.bf16.gmra.mxu0 %v453
  %v611 = vpop.f32.mrf.mxu0
  %v612 = vadd.f32 0.0, %v611
  %v613 = vpop.f32.mrf.mxu0
  %v614 = vpop.f32.mrf.mxu0
  %v615 = vadd.f32 0.0, %v614
  %v616 = vpop.f32.mrf.mxu0
  %617 = vmatprep.mubr.bf16.mxu0 %v456
  %618 = vmatmul.mubr.bf16.gmra.mxu0 %v455
  %v619 = vpop.f32.mrf.mxu0
  %v620 = vadd.f32 0.0, %v619
  %v621 = vpop.f32.mrf.mxu0
  %v622 = vpop.f32.mrf.mxu0
  %v623 = vadd.f32 0.0, %v622
  %v624 = vpop.f32.mrf.mxu0
  %625 = vmatprep.mubr.bf16.mxu0 %v458
  %626 = vmatmul.mubr.bf16.gmra.mxu0 %v457
  %v627 = vpop.f32.mrf.mxu0
  %v628 = vadd.f32 0.0, %v627
  %v629 = vpop.f32.mrf.mxu0
  %v630 = vpop.f32.mrf.mxu0
  %v631 = vadd.f32 0.0, %v630
  %v632 = vpop.f32.mrf.mxu0
  %633 = vmatprep.mubr.bf16.mxu0 %v460
  %634 = vmatmul.mubr.bf16.gmra.mxu0 %v459
  %v635 = vpop.f32.mrf.mxu0
  %v636 = vadd.f32 0.0, %v635
  %v637 = vpop.f32.mrf.mxu0
  %v638 = vpop.f32.mrf.mxu0
  %v639 = vadd.f32 0.0, %v638
  %v640 = vpop.f32.mrf.mxu0
  %641 = vmatprep.mubr.bf16.mxu0 %v462
  %642 = vmatmul.mubr.bf16.gmra.mxu0 %v461
  %v643 = vpop.f32.mrf.mxu0
  %v644 = vadd.f32 0.0, %v643
  %v645 = vpop.f32.mrf.mxu0
  %v646 = vpop.f32.mrf.mxu0
  %v647 = vadd.f32 0.0, %v646
  %v648 = vpop.f32.mrf.mxu0
  %649 = vmatprep.mubr.bf16.mxu0 %v464
  %650 = vmatmul.mubr.bf16.gmra.mxu0 %v463
  %v651 = vpop.f32.mrf.mxu0
  %v652 = vadd.f32 0.0, %v651
  %v653 = vpop.f32.mrf.mxu0
  %v654 = vpop.f32.mrf.mxu0
  %v655 = vadd.f32 0.0, %v654
  %v656 = vpop.f32.mrf.mxu0
  %657 = vdwg.mxu0
  %v658 = vpack.c.bf16 %v535, %v532
  %v659 = vpack.c.bf16 %v543, %v540
  %v660 = vpack.c.bf16 %v551, %v548
  %v661 = vpack.c.bf16 %v559, %v556
  %v662 = vpack.c.bf16 %v567, %v564
  %v663 = vpack.c.bf16 %v575, %v572
  %v664 = vpack.c.bf16 %v583, %v580
  %v665 = vpack.c.bf16 %v591, %v588
  %v666 = vpack.c.bf16 %v599, %v596
  %v667 = vpack.c.bf16 %v607, %v604
  %v668 = vpack.c.bf16 %v615, %v612
  %v669 = vpack.c.bf16 %v623, %v620
  %v670 = vpack.c.bf16 %v631, %v628
  %v671 = vpack.c.bf16 %v639, %v636
  %v672 = vpack.c.bf16 %v647, %v644
  %v673 = vpack.c.bf16 %v655, %v652
  %v706 = vunpack.c.l.b16 %v197
  %v707 = vunpack.c.h.b16 %v197
  %v708 = vunpack.c.l.b16 %v198
  %v709 = vunpack.c.h.b16 %v198
  %v710 = vunpack.c.l.b16 %v199
  %v711 = vunpack.c.h.b16 %v199
  %v712 = vunpack.c.l.b16 %v200
  %v713 = vunpack.c.h.b16 %v200
  %v714 = vunpack.c.l.b16 %v201
  %v715 = vunpack.c.h.b16 %v201
  %v716 = vunpack.c.l.b16 %v202
  %v717 = vunpack.c.h.b16 %v202
  %v718 = vunpack.c.l.b16 %v203
  %v719 = vunpack.c.h.b16 %v203
  %v720 = vunpack.c.l.b16 %v204
  %v721 = vunpack.c.h.b16 %v204
  %v722 = vunpack.c.l.b16 %v205
  %v723 = vunpack.c.h.b16 %v205
  %v724 = vunpack.c.l.b16 %v206
  %v725 = vunpack.c.h.b16 %v206
  %v726 = vunpack.c.l.b16 %v207
  %v727 = vunpack.c.h.b16 %v207
  %v728 = vunpack.c.l.b16 %v208
  %v729 = vunpack.c.h.b16 %v208
  %v730 = vunpack.c.l.b16 %v209
  %v731 = vunpack.c.h.b16 %v209
  %v732 = vunpack.c.l.b16 %v210
  %v733 = vunpack.c.h.b16 %v210
  %v734 = vunpack.c.l.b16 %v211
  %v735 = vunpack.c.h.b16 %v211
  %v736 = vunpack.c.l.b16 %v212
  %v737 = vunpack.c.h.b16 %v212
  %v738 = vunpack.c.l.b16 %v213
  %v739 = vunpack.c.h.b16 %v213
  %v740 = vunpack.c.l.b16 %v214
  %v741 = vunpack.c.h.b16 %v214
  %v742 = vunpack.c.l.b16 %v215
  %v743 = vunpack.c.h.b16 %v215
  %v744 = vunpack.c.l.b16 %v216
  %v745 = vunpack.c.h.b16 %v216
  %v746 = vunpack.c.l.b16 %v217
  %v747 = vunpack.c.h.b16 %v217
  %v748 = vunpack.c.l.b16 %v218
  %v749 = vunpack.c.h.b16 %v218
  %v750 = vunpack.c.l.b16 %v219
  %v751 = vunpack.c.h.b16 %v219
  %v752 = vunpack.c.l.b16 %v220
  %v753 = vunpack.c.h.b16 %v220
  %v754 = vunpack.c.l.b16 %v221
  %v755 = vunpack.c.h.b16 %v221
  %v756 = vunpack.c.l.b16 %v222
  %v757 = vunpack.c.h.b16 %v222
  %v758 = vunpack.c.l.b16 %v223
  %v759 = vunpack.c.h.b16 %v223
  %v760 = vunpack.c.l.b16 %v224
  %v761 = vunpack.c.h.b16 %v224
  %v762 = vunpack.c.l.b16 %v225
  %v763 = vunpack.c.h.b16 %v225
  %v764 = vunpack.c.l.b16 %v226
  %v765 = vunpack.c.h.b16 %v226
  %v766 = vunpack.c.l.b16 %v227
  %v767 = vunpack.c.h.b16 %v227
  %v768 = vunpack.c.l.b16 %v228
  %v769 = vunpack.c.h.b16 %v228
  %v770 = vpack.c.b16 %v708, %v706
  %v771 = vpack.c.b16 %v709, %v707
  %v772 = vpack.c.b16 %v712, %v710
  %v773 = vpack.c.b16 %v713, %v711
  %v774 = vpack.c.b16 %v716, %v714
  %v775 = vpack.c.b16 %v717, %v715
  %v776 = vpack.c.b16 %v720, %v718
  %v777 = vpack.c.b16 %v721, %v719
  %v778 = vpack.c.b16 %v724, %v722
  %v779 = vpack.c.b16 %v725, %v723
  %v780 = vpack.c.b16 %v728, %v726
  %v781 = vpack.c.b16 %v729, %v727
  %v782 = vpack.c.b16 %v732, %v730
  %v783 = vpack.c.b16 %v733, %v731
  %v784 = vpack.c.b16 %v736, %v734
  %v785 = vpack.c.b16 %v737, %v735
  %v786 = vpack.c.b16 %v740, %v738
  %v787 = vpack.c.b16 %v741, %v739
  %v788 = vpack.c.b16 %v744, %v742
  %v789 = vpack.c.b16 %v745, %v743
  %v790 = vpack.c.b16 %v748, %v746
  %v791 = vpack.c.b16 %v749, %v747
  %v792 = vpack.c.b16 %v752, %v750
  %v793 = vpack.c.b16 %v753, %v751
  %v794 = vpack.c.b16 %v756, %v754
  %v795 = vpack.c.b16 %v757, %v755
  %v796 = vpack.c.b16 %v760, %v758
  %v797 = vpack.c.b16 %v761, %v759
  %v798 = vpack.c.b16 %v764, %v762
  %v799 = vpack.c.b16 %v765, %v763
  %v800 = vpack.c.b16 %v768, %v766
  %v801 = vpack.c.b16 %v769, %v767
  %834 = vmatprep.subr.bf16.mxu0 0
  %835 = vmatpush1.bf16.msra.mxu0 %v665
  %836 = vmatprep.subr.bf16.mxu0 0
  %837 = vmatpush1.bf16.msra.mxu0 %v664
  %838 = vmatprep.subr.bf16.mxu0 0
  %839 = vmatpush1.bf16.msra.mxu0 %v663
  %840 = vmatprep.subr.bf16.mxu0 0
  %841 = vmatpush1.bf16.msra.mxu0 %v662
  %842 = vmatprep.subr.bf16.mxu0 0
  %843 = vmatpush1.bf16.msra.mxu0 %v661
  %844 = vmatprep.subr.bf16.mxu0 0
  %845 = vmatpush1.bf16.msra.mxu0 %v660
  %846 = vmatprep.subr.bf16.mxu0 0
  %847 = vmatpush1.bf16.msra.mxu0 %v659
  %848 = vmatprep.subr.bf16.mxu0 0
  %849 = vmatpush1.bf16.msra.mxu0 %v658
  %850 = vmatprep.subr.bf16.mxu0 0
  %851 = vmatpush2.bf16.msra.mxu0 %v673
  %852 = vmatprep.subr.bf16.mxu0 0
  %853 = vmatpush2.bf16.msra.mxu0 %v672
  %854 = vmatprep.subr.bf16.mxu0 0
  %855 = vmatpush2.bf16.msra.mxu0 %v671
  %856 = vmatprep.subr.bf16.mxu0 0
  %857 = vmatpush2.bf16.msra.mxu0 %v670
  %858 = vmatprep.subr.bf16.mxu0 0
  %859 = vmatpush2.bf16.msra.mxu0 %v669
  %860 = vmatprep.subr.bf16.mxu0 0
  %861 = vmatpush2.bf16.msra.mxu0 %v668
  %862 = vmatprep.subr.bf16.mxu0 0
  %863 = vmatpush2.bf16.msra.mxu0 %v667
  %864 = vmatprep.subr.bf16.mxu0 0
  %865 = vmatpush2.bf16.msra.mxu0 %v666
  %866 = vmatprep.mubr.bf16.mxu0 %v771
  %867 = vmatmul.mubr.bf16.gmra.mxu0 %v770
  %v868 = vpop.f32.mrf.mxu0
  %v869 = vadd.f32 0.0, %v868
  %v870 = vpop.f32.mrf.mxu0
  %v871 = vpop.f32.mrf.mxu0
  %v872 = vadd.f32 0.0, %v871
  %v873 = vpop.f32.mrf.mxu0
  %874 = vmatprep.mubr.bf16.mxu0 %v773
  %875 = vmatmul.mubr.bf16.gmra.mxu0 %v772
  %v876 = vpop.f32.mrf.mxu0
  %v877 = vadd.f32 0.0, %v876
  %v878 = vpop.f32.mrf.mxu0
  %v879 = vpop.f32.mrf.mxu0
  %v880 = vadd.f32 0.0, %v879
  %v881 = vpop.f32.mrf.mxu0
  %882 = vmatprep.mubr.bf16.mxu0 %v775
  %883 = vmatmul.mubr.bf16.gmra.mxu0 %v774
  %v884 = vpop.f32.mrf.mxu0
  %v885 = vadd.f32 0.0, %v884
  %v886 = vpop.f32.mrf.mxu0
  %v887 = vpop.f32.mrf.mxu0
  %v888 = vadd.f32 0.0, %v887
  %v889 = vpop.f32.mrf.mxu0
  %890 = vmatprep.mubr.bf16.mxu0 %v777
  %891 = vmatmul.mubr.bf16.gmra.mxu0 %v776
  %v892 = vpop.f32.mrf.mxu0
  %v893 = vadd.f32 0.0, %v892
  %v894 = vpop.f32.mrf.mxu0
  %v895 = vpop.f32.mrf.mxu0
  %v896 = vadd.f32 0.0, %v895
  %v897 = vpop.f32.mrf.mxu0
  %898 = vmatprep.mubr.bf16.mxu0 %v779
  %899 = vmatmul.mubr.bf16.gmra.mxu0 %v778
  %v900 = vpop.f32.mrf.mxu0
  %v901 = vadd.f32 0.0, %v900
  %v902 = vpop.f32.mrf.mxu0
  %v903 = vpop.f32.mrf.mxu0
  %v904 = vadd.f32 0.0, %v903
  %v905 = vpop.f32.mrf.mxu0
  %906 = vmatprep.mubr.bf16.mxu0 %v781
  %907 = vmatmul.mubr.bf16.gmra.mxu0 %v780
  %v908 = vpop.f32.mrf.mxu0
  %v909 = vadd.f32 0.0, %v908
  %v910 = vpop.f32.mrf.mxu0
  %v911 = vpop.f32.mrf.mxu0
  %v912 = vadd.f32 0.0, %v911
  %v913 = vpop.f32.mrf.mxu0
  %914 = vmatprep.mubr.bf16.mxu0 %v783
  %915 = vmatmul.mubr.bf16.gmra.mxu0 %v782
  %v916 = vpop.f32.mrf.mxu0
  %v917 = vadd.f32 0.0, %v916
  %v918 = vpop.f32.mrf.mxu0
  %v919 = vpop.f32.mrf.mxu0
  %v920 = vadd.f32 0.0, %v919
  %v921 = vpop.f32.mrf.mxu0
  %922 = vmatprep.mubr.bf16.mxu0 %v785
  %923 = vmatmul.mubr.bf16.gmra.mxu0 %v784
  %v924 = vpop.f32.mrf.mxu0
  %v925 = vadd.f32 0.0, %v924
  %v926 = vpop.f32.mrf.mxu0
  %v927 = vpop.f32.mrf.mxu0
  %v928 = vadd.f32 0.0, %v927
  %v929 = vpop.f32.mrf.mxu0
  %930 = vmatprep.mubr.bf16.mxu0 %v787
  %931 = vmatmul.mubr.bf16.gmra.mxu0 %v786
  %v932 = vpop.f32.mrf.mxu0
  %v933 = vadd.f32 0.0, %v932
  %v934 = vpop.f32.mrf.mxu0
  %v935 = vpop.f32.mrf.mxu0
  %v936 = vadd.f32 0.0, %v935
  %v937 = vpop.f32.mrf.mxu0
  %938 = vmatprep.mubr.bf16.mxu0 %v789
  %939 = vmatmul.mubr.bf16.gmra.mxu0 %v788
  %v940 = vpop.f32.mrf.mxu0
  %v941 = vadd.f32 0.0, %v940
  %v942 = vpop.f32.mrf.mxu0
  %v943 = vpop.f32.mrf.mxu0
  %v944 = vadd.f32 0.0, %v943
  %v945 = vpop.f32.mrf.mxu0
  %946 = vmatprep.mubr.bf16.mxu0 %v791
  %947 = vmatmul.mubr.bf16.gmra.mxu0 %v790
  %v948 = vpop.f32.mrf.mxu0
  %v949 = vadd.f32 0.0, %v948
  %v950 = vpop.f32.mrf.mxu0
  %v951 = vpop.f32.mrf.mxu0
  %v952 = vadd.f32 0.0, %v951
  %v953 = vpop.f32.mrf.mxu0
  %954 = vmatprep.mubr.bf16.mxu0 %v793
  %955 = vmatmul.mubr.bf16.gmra.mxu0 %v792
  %v956 = vpop.f32.mrf.mxu0
  %v957 = vadd.f32 0.0, %v956
  %v958 = vpop.f32.mrf.mxu0
  %v959 = vpop.f32.mrf.mxu0
  %v960 = vadd.f32 0.0, %v959
  %v961 = vpop.f32.mrf.mxu0
  %962 = vmatprep.mubr.bf16.mxu0 %v795
  %963 = vmatmul.mubr.bf16.gmra.mxu0 %v794
  %v964 = vpop.f32.mrf.mxu0
  %v965 = vadd.f32 0.0, %v964
  %v966 = vpop.f32.mrf.mxu0
  %v967 = vpop.f32.mrf.mxu0
  %v968 = vadd.f32 0.0, %v967
  %v969 = vpop.f32.mrf.mxu0
  %970 = vmatprep.mubr.bf16.mxu0 %v797
  %971 = vmatmul.mubr.bf16.gmra.mxu0 %v796
  %v972 = vpop.f32.mrf.mxu0
  %v973 = vadd.f32 0.0, %v972
  %v974 = vpop.f32.mrf.mxu0
  %v975 = vpop.f32.mrf.mxu0
  %v976 = vadd.f32 0.0, %v975
  %v977 = vpop.f32.mrf.mxu0
  %978 = vmatprep.mubr.bf16.mxu0 %v799
  %979 = vmatmul.mubr.bf16.gmra.mxu0 %v798
  %v980 = vpop.f32.mrf.mxu0
  %v981 = vadd.f32 0.0, %v980
  %v982 = vpop.f32.mrf.mxu0
  %v983 = vpop.f32.mrf.mxu0
  %v984 = vadd.f32 0.0, %v983
  %v985 = vpop.f32.mrf.mxu0
  %986 = vmatprep.mubr.bf16.mxu0 %v801
  %987 = vmatmul.mubr.bf16.gmra.mxu0 %v800
  %v988 = vpop.f32.mrf.mxu0
  %v989 = vadd.f32 0.0, %v988
  %v990 = vpop.f32.mrf.mxu0
  %v991 = vpop.f32.mrf.mxu0
  %v992 = vadd.f32 0.0, %v991
  %v993 = vpop.f32.mrf.mxu0
  %994 = vdwg.mxu0
  %v995 = vunpack.c.l.bf16 %v321
  %v996 = vunpack.c.h.bf16 %v321
  %v997 = vunpack.c.l.bf16 %v322
  %v998 = vunpack.c.h.bf16 %v322
  %v999 = vunpack.c.l.bf16 %v323
  %v1000 = vunpack.c.h.bf16 %v323
  %v1001 = vunpack.c.l.bf16 %v324
  %v1002 = vunpack.c.h.bf16 %v324
  %v1003 = vunpack.c.l.bf16 %v325
  %v1004 = vunpack.c.h.bf16 %v325
  %v1005 = vunpack.c.l.bf16 %v326
  %v1006 = vunpack.c.h.bf16 %v326
  %v1007 = vunpack.c.l.bf16 %v327
  %v1008 = vunpack.c.h.bf16 %v327
  %v1009 = vunpack.c.l.bf16 %v328
  %v1010 = vunpack.c.h.bf16 %v328
  %v1011 = vunpack.c.l.bf16 %v329
  %v1012 = vunpack.c.h.bf16 %v329
  %v1013 = vunpack.c.l.bf16 %v330
  %v1014 = vunpack.c.h.bf16 %v330
  %v1015 = vunpack.c.l.bf16 %v331
  %v1016 = vunpack.c.h.bf16 %v331
  %v1017 = vunpack.c.l.bf16 %v332
  %v1018 = vunpack.c.h.bf16 %v332
  %v1019 = vunpack.c.l.bf16 %v333
  %v1020 = vunpack.c.h.bf16 %v333
  %v1021 = vunpack.c.l.bf16 %v334
  %v1022 = vunpack.c.h.bf16 %v334
  %v1023 = vunpack.c.l.bf16 %v335
  %v1024 = vunpack.c.h.bf16 %v335
  %v1025 = vunpack.c.l.bf16 %v336
  %v1026 = vunpack.c.h.bf16 %v336
  %v1027 = vsub.f32 %v869, %v995
  %v1028 = vsub.f32 %v872, %v996
  %v1029 = vsub.f32 %v877, %v997
  %v1030 = vsub.f32 %v880, %v998
  %v1031 = vsub.f32 %v885, %v999
  %v1032 = vsub.f32 %v888, %v1000
  %v1033 = vsub.f32 %v893, %v1001
  %v1034 = vsub.f32 %v896, %v1002
  %v1035 = vsub.f32 %v901, %v1003
  %v1036 = vsub.f32 %v904, %v1004
  %v1037 = vsub.f32 %v909, %v1005
  %v1038 = vsub.f32 %v912, %v1006
  %v1039 = vsub.f32 %v917, %v1007
  %v1040 = vsub.f32 %v920, %v1008
  %v1041 = vsub.f32 %v925, %v1009
  %v1042 = vsub.f32 %v928, %v1010
  %v1043 = vsub.f32 %v933, %v1011
  %v1044 = vsub.f32 %v936, %v1012
  %v1045 = vsub.f32 %v941, %v1013
  %v1046 = vsub.f32 %v944, %v1014
  %v1047 = vsub.f32 %v949, %v1015
  %v1048 = vsub.f32 %v952, %v1016
  %v1049 = vsub.f32 %v957, %v1017
  %v1050 = vsub.f32 %v960, %v1018
  %v1051 = vsub.f32 %v965, %v1019
  %v1052 = vsub.f32 %v968, %v1020
  %v1053 = vsub.f32 %v973, %v1021
  %v1054 = vsub.f32 %v976, %v1022
  %v1055 = vsub.f32 %v981, %v1023
  %v1056 = vsub.f32 %v984, %v1024
  %v1057 = vsub.f32 %v989, %v1025
  %v1058 = vsub.f32 %v992, %v1026
  %v1059 = vpack.c.bf16 %v1028, %v1027
  %v1060 = vpack.c.bf16 %v1030, %v1029
  %v1061 = vpack.c.bf16 %v1032, %v1031
  %v1062 = vpack.c.bf16 %v1034, %v1033
  %v1063 = vpack.c.bf16 %v1036, %v1035
  %v1064 = vpack.c.bf16 %v1038, %v1037
  %v1065 = vpack.c.bf16 %v1040, %v1039
  %v1066 = vpack.c.bf16 %v1042, %v1041
  %v1067 = vpack.c.bf16 %v1044, %v1043
  %v1068 = vpack.c.bf16 %v1046, %v1045
  %v1069 = vpack.c.bf16 %v1048, %v1047
  %v1070 = vpack.c.bf16 %v1050, %v1049
  %v1071 = vpack.c.bf16 %v1052, %v1051
  %v1072 = vpack.c.bf16 %v1054, %v1053
  %v1073 = vpack.c.bf16 %v1056, %v1055
  %v1074 = vpack.c.bf16 %v1058, %v1057
  %1091 = vrot.lane.b32.xlu0 %v658, 8
  %v1092 = vpop.permute.xlu0 %1091
  %1093 = vrot.lane.b32.xlu0 %v659, 8
  %v1094 = vpop.permute.xlu0 %1093
  %1095 = vrot.lane.b32.xlu0 %v660, 8
  %v1096 = vpop.permute.xlu0 %1095
  %1097 = vrot.lane.b32.xlu0 %v661, 8
  %v1098 = vpop.permute.xlu0 %1097
  %1099 = vrot.lane.b32.xlu0 %v662, 8
  %v1100 = vpop.permute.xlu0 %1099
  %1101 = vrot.lane.b32.xlu0 %v663, 8
  %v1102 = vpop.permute.xlu0 %1101
  %1103 = vrot.lane.b32.xlu0 %v664, 8
  %v1104 = vpop.permute.xlu0 %1103
  %1105 = vrot.lane.b32.xlu0 %v665, 8
  %v1106 = vpop.permute.xlu0 %1105
  %1107 = vrot.lane.b32.xlu0 %v666, 8
  %v1108 = vpop.permute.xlu0 %1107
  %1109 = vrot.lane.b32.xlu0 %v667, 8
  %v1110 = vpop.permute.xlu0 %1109
  %1111 = vrot.lane.b32.xlu0 %v668, 8
  %v1112 = vpop.permute.xlu0 %1111
  %1113 = vrot.lane.b32.xlu0 %v669, 8
  %v1114 = vpop.permute.xlu0 %1113
  %1115 = vrot.lane.b32.xlu0 %v670, 8
  %v1116 = vpop.permute.xlu0 %1115
  %1117 = vrot.lane.b32.xlu0 %v671, 8
  %v1118 = vpop.permute.xlu0 %1117
  %1119 = vrot.lane.b32.xlu0 %v672, 8
  %v1120 = vpop.permute.xlu0 %1119
  %1121 = vrot.lane.b32.xlu0 %v673, 8
  %v1122 = vpop.permute.xlu0 %1121
  %1139 = vrot.lane.b32.xlu0 %v1059, 16
  %v1140 = vpop.permute.xlu0 %1139
  %1141 = vrot.lane.b32.xlu0 %v1060, 16
  %v1142 = vpop.permute.xlu0 %1141
  %1143 = vrot.lane.b32.xlu0 %v1061, 16
  %v1144 = vpop.permute.xlu0 %1143
  %1145 = vrot.lane.b32.xlu0 %v1062, 16
  %v1146 = vpop.permute.xlu0 %1145
  %1147 = vrot.lane.b32.xlu0 %v1063, 16
  %v1148 = vpop.permute.xlu0 %1147
  %1149 = vrot.lane.b32.xlu0 %v1064, 16
  %v1150 = vpop.permute.xlu0 %1149
  %1151 = vrot.lane.b32.xlu0 %v1065, 16
  %v1152 = vpop.permute.xlu0 %1151
  %1153 = vrot.lane.b32.xlu0 %v1066, 16
  %v1154 = vpop.permute.xlu0 %1153
  %1155 = vrot.lane.b32.xlu0 %v1067, 16
  %v1156 = vpop.permute.xlu0 %1155
  %1157 = vrot.lane.b32.xlu0 %v1068, 16
  %v1158 = vpop.permute.xlu0 %1157
  %1159 = vrot.lane.b32.xlu0 %v1069, 16
  %v1160 = vpop.permute.xlu0 %1159
  %1161 = vrot.lane.b32.xlu0 %v1070, 16
  %v1162 = vpop.permute.xlu0 %1161
  %1163 = vrot.lane.b32.xlu0 %v1071, 16
  %v1164 = vpop.permute.xlu0 %1163
  %1165 = vrot.lane.b32.xlu0 %v1072, 16
  %v1166 = vpop.permute.xlu0 %1165
  %1167 = vrot.lane.b32.xlu0 %v1073, 16
  %v1168 = vpop.permute.xlu0 %1167
  %1169 = vrot.lane.b32.xlu0 %v1074, 16
  %v1170 = vpop.permute.xlu0 %1169
  %vm1171 = vcmask 64512
  %v1174 = vsel %vm1171, %v321, %v1092
  %v1177 = vsel %vm1171, %v322, %v1094
  %v1180 = vsel %vm1171, %v323, %v1096
  %v1183 = vsel %vm1171, %v324, %v1098
  %v1186 = vsel %vm1171, %v325, %v1100
  %v1189 = vsel %vm1171, %v326, %v1102
  %v1192 = vsel %vm1171, %v327, %v1104
  %v1195 = vsel %vm1171, %v328, %v1106
  %v1198 = vsel %vm1171, %v329, %v1108
  %v1201 = vsel %vm1171, %v330, %v1110
  %v1204 = vsel %vm1171, %v331, %v1112
  %v1207 = vsel %vm1171, %v332, %v1114
  %v1210 = vsel %vm1171, %v333, %v1116
  %v1213 = vsel %vm1171, %v334, %v1118
  %v1216 = vsel %vm1171, %v335, %v1120
  %v1219 = vsel %vm1171, %v336, %v1122
  %vm1220 = vcmask 130048
  %v1222 = vsel %vm1220, %v1174, %v1140
  %v1224 = vsel %vm1220, %v1177, %v1142
  %v1226 = vsel %vm1220, %v1180, %v1144
  %v1228 = vsel %vm1220, %v1183, %v1146
  %v1230 = vsel %vm1220, %v1186, %v1148
  %v1232 = vsel %vm1220, %v1189, %v1150
  %v1234 = vsel %vm1220, %v1192, %v1152
  %v1236 = vsel %vm1220, %v1195, %v1154
  %v1238 = vsel %vm1220, %v1198, %v1156
  %v1240 = vsel %vm1220, %v1201, %v1158
  %v1242 = vsel %vm1220, %v1204, %v1160
  %v1244 = vsel %vm1220, %v1207, %v1162
  %v1246 = vsel %vm1220, %v1210, %v1164
  %v1248 = vsel %vm1220, %v1213, %v1166
  %v1250 = vsel %vm1220, %v1216, %v1168
  %v1252 = vsel %vm1220, %v1219, %v1170
  %v1253 = vld [vmem:[%s23] sm:$0xf]
  %v1254 = vld [vmem:[%s23 + $0x4] sm:$0xf]
  %v1255 = vld [vmem:[%s23 + $0x8] sm:$0xf]
  %v1256 = vld [vmem:[%s49] sm:$0x1]
  %v1257 = vlaneseq
  %v1258 = vshrl.u32 %v1257, 7
  %v1259 = vsub.s32 0, %v1258
  %v1260 = vrot.slane %v1256, %v1259
  %v1264 = vunpack.c.l.b16 %v1253
  %v1265 = vunpack.c.l.b16 %v1254
  %v1266 = vunpack.c.l.b16 %v1255
  %v1267 = vpack.c.b16 %v1265, %v1264
  %v1268 = vpack.c.b16 %v1266, %v1266
  %vm1270 = vcmask 195584
  %v1271 = vsel %vm1270, %v1222, 0
  %v1273 = vsel %vm1270, %v1224, 0
  %v1275 = vsel %vm1270, %v1226, 0
  %v1277 = vsel %vm1270, %v1228, 0
  %v1279 = vsel %vm1270, %v1230, 0
  %v1281 = vsel %vm1270, %v1232, 0
  %v1283 = vsel %vm1270, %v1234, 0
  %v1285 = vsel %vm1270, %v1236, 0
  %v1287 = vsel %vm1270, %v1238, 0
  %v1289 = vsel %vm1270, %v1240, 0
  %v1291 = vsel %vm1270, %v1242, 0
  %v1293 = vsel %vm1270, %v1244, 0
  %v1295 = vsel %vm1270, %v1246, 0
  %v1297 = vsel %vm1270, %v1248, 0
  %v1299 = vsel %vm1270, %v1250, 0
  %v1301 = vsel %vm1270, %v1252, 0
  %vm1303 = vcmask 1043456
  %v1305 = vsel %vm1303, %v1268, 0
  %1307 = vmatprep.subr.bf16.mxu0 0
  %1308 = vmatpush1.bf16.msra.mxu0 0
  %1309 = vmatprep.subr.bf16.mxu0 0
  %1310 = vmatpush1.bf16.msra.mxu0 0
  %1311 = vmatprep.subr.bf16.mxu0 0
  %1312 = vmatpush1.bf16.msra.mxu0 0
  %1313 = vmatprep.subr.bf16.mxu0 0
  %1314 = vmatpush1.bf16.msra.mxu0 0
  %1315 = vmatprep.subr.bf16.mxu0 0
  %1316 = vmatpush1.bf16.msra.mxu0 0
  %1317 = vmatprep.subr.bf16.mxu0 0
  %1318 = vmatpush1.bf16.msra.mxu0 0
  %1319 = vmatprep.subr.bf16.mxu0 0
  %1320 = vmatpush1.bf16.msra.mxu0 %v1305
  %1321 = vmatprep.subr.bf16.mxu0 0
  %1322 = vmatpush1.bf16.msra.mxu0 %v1267
  %1323 = vmatprep.subr.bf16.mxu0 0
  %1324 = vmatpush2.bf16.msra.mxu0 0
  %1325 = vmatprep.subr.bf16.mxu0 0
  %1326 = vmatpush2.bf16.msra.mxu0 0
  %1327 = vmatprep.subr.bf16.mxu0 0
  %1328 = vmatpush2.bf16.msra.mxu0 0
  %1329 = vmatprep.subr.bf16.mxu0 0
  %1330 = vmatpush2.bf16.msra.mxu0 0
  %1331 = vmatprep.subr.bf16.mxu0 0
  %1332 = vmatpush2.bf16.msra.mxu0 0
  %1333 = vmatprep.subr.bf16.mxu0 0
  %1334 = vmatpush2.bf16.msra.mxu0 0
  %1335 = vmatprep.subr.bf16.mxu0 0
  %1336 = vmatpush2.bf16.msra.mxu0 0
  %1337 = vmatprep.subr.bf16.mxu0 0
  %1338 = vmatpush2.bf16.msra.mxu0 0
  %1339 = vmatprep.mubr.bf16.mxu0 0
  %1340 = vmatmul.mubr.bf16.gmra.mxu0 %v1271
  %v1341 = vpop.f32.mrf.mxu0
  %v1342 = vadd.f32 %v1260, %v1341
  %v1343 = vpop.f32.mrf.mxu0
  %v1344 = vpop.f32.mrf.mxu0
  %v1345 = vadd.f32 %v1260, %v1344
  %v1346 = vpop.f32.mrf.mxu0
  %1347 = vmatprep.mubr.bf16.mxu0 0
  %1348 = vmatmul.mubr.bf16.gmra.mxu0 %v1273
  %v1349 = vpop.f32.mrf.mxu0
  %v1350 = vadd.f32 %v1260, %v1349
  %v1351 = vpop.f32.mrf.mxu0
  %v1352 = vpop.f32.mrf.mxu0
  %v1353 = vadd.f32 %v1260, %v1352
  %v1354 = vpop.f32.mrf.mxu0
  %1355 = vmatprep.mubr.bf16.mxu0 0
  %1356 = vmatmul.mubr.bf16.gmra.mxu0 %v1275
  %v1357 = vpop.f32.mrf.mxu0
  %v1358 = vadd.f32 %v1260, %v1357
  %v1359 = vpop.f32.mrf.mxu0
  %v1360 = vpop.f32.mrf.mxu0
  %v1361 = vadd.f32 %v1260, %v1360
  %v1362 = vpop.f32.mrf.mxu0
  %1363 = vmatprep.mubr.bf16.mxu0 0
  %1364 = vmatmul.mubr.bf16.gmra.mxu0 %v1277
  %v1365 = vpop.f32.mrf.mxu0
  %v1366 = vadd.f32 %v1260, %v1365
  %v1367 = vpop.f32.mrf.mxu0
  %v1368 = vpop.f32.mrf.mxu0
  %v1369 = vadd.f32 %v1260, %v1368
  %v1370 = vpop.f32.mrf.mxu0
  %1371 = vmatprep.mubr.bf16.mxu0 0
  %1372 = vmatmul.mubr.bf16.gmra.mxu0 %v1279
  %v1373 = vpop.f32.mrf.mxu0
  %v1374 = vadd.f32 %v1260, %v1373
  %v1375 = vpop.f32.mrf.mxu0
  %v1376 = vpop.f32.mrf.mxu0
  %v1377 = vadd.f32 %v1260, %v1376
  %v1378 = vpop.f32.mrf.mxu0
  %1379 = vmatprep.mubr.bf16.mxu0 0
  %1380 = vmatmul.mubr.bf16.gmra.mxu0 %v1281
  %v1381 = vpop.f32.mrf.mxu0
  %v1382 = vadd.f32 %v1260, %v1381
  %v1383 = vpop.f32.mrf.mxu0
  %v1384 = vpop.f32.mrf.mxu0
  %v1385 = vadd.f32 %v1260, %v1384
  %v1386 = vpop.f32.mrf.mxu0
  %1387 = vmatprep.mubr.bf16.mxu0 0
  %1388 = vmatmul.mubr.bf16.gmra.mxu0 %v1283
  %v1389 = vpop.f32.mrf.mxu0
  %v1390 = vadd.f32 %v1260, %v1389
  %v1391 = vpop.f32.mrf.mxu0
  %v1392 = vpop.f32.mrf.mxu0
  %v1393 = vadd.f32 %v1260, %v1392
  %v1394 = vpop.f32.mrf.mxu0
  %1395 = vmatprep.mubr.bf16.mxu0 0
  %1396 = vmatmul.mubr.bf16.gmra.mxu0 %v1285
  %v1397 = vpop.f32.mrf.mxu0
  %v1398 = vadd.f32 %v1260, %v1397
  %v1399 = vpop.f32.mrf.mxu0
  %v1400 = vpop.f32.mrf.mxu0
  %v1401 = vadd.f32 %v1260, %v1400
  %v1402 = vpop.f32.mrf.mxu0
  %1403 = vmatprep.mubr.bf16.mxu0 0
  %1404 = vmatmul.mubr.bf16.gmra.mxu0 %v1287
  %v1405 = vpop.f32.mrf.mxu0
  %v1406 = vadd.f32 %v1260, %v1405
  %v1407 = vpop.f32.mrf.mxu0
  %v1408 = vpop.f32.mrf.mxu0
  %v1409 = vadd.f32 %v1260, %v1408
  %v1410 = vpop.f32.mrf.mxu0
  %1411 = vmatprep.mubr.bf16.mxu0 0
  %1412 = vmatmul.mubr.bf16.gmra.mxu0 %v1289
  %v1413 = vpop.f32.mrf.mxu0
  %v1414 = vadd.f32 %v1260, %v1413
  %v1415 = vpop.f32.mrf.mxu0
  %v1416 = vpop.f32.mrf.mxu0
  %v1417 = vadd.f32 %v1260, %v1416
  %v1418 = vpop.f32.mrf.mxu0
  %1419 = vmatprep.mubr.bf16.mxu0 0
  %1420 = vmatmul.mubr.bf16.gmra.mxu0 %v1291
  %v1421 = vpop.f32.mrf.mxu0
  %v1422 = vadd.f32 %v1260, %v1421
  %v1423 = vpop.f32.mrf.mxu0
  %v1424 = vpop.f32.mrf.mxu0
  %v1425 = vadd.f32 %v1260, %v1424
  %v1426 = vpop.f32.mrf.mxu0
  %1427 = vmatprep.mubr.bf16.mxu0 0
  %1428 = vmatmul.mubr.bf16.gmra.mxu0 %v1293
  %v1429 = vpop.f32.mrf.mxu0
  %v1430 = vadd.f32 %v1260, %v1429
  %v1431 = vpop.f32.mrf.mxu0
  %v1432 = vpop.f32.mrf.mxu0
  %v1433 = vadd.f32 %v1260, %v1432
  %v1434 = vpop.f32.mrf.mxu0
  %1435 = vmatprep.mubr.bf16.mxu0 0
  %1436 = vmatmul.mubr.bf16.gmra.mxu0 %v1295
  %v1437 = vpop.f32.mrf.mxu0
  %v1438 = vadd.f32 %v1260, %v1437
  %v1439 = vpop.f32.mrf.mxu0
  %v1440 = vpop.f32.mrf.mxu0
  %v1441 = vadd.f32 %v1260, %v1440
  %v1442 = vpop.f32.mrf.mxu0
  %1443 = vmatprep.mubr.bf16.mxu0 0
  %1444 = vmatmul.mubr.bf16.gmra.mxu0 %v1297
  %v1445 = vpop.f32.mrf.mxu0
  %v1446 = vadd.f32 %v1260, %v1445
  %v1447 = vpop.f32.mrf.mxu0
  %v1448 = vpop.f32.mrf.mxu0
  %v1449 = vadd.f32 %v1260, %v1448
  %v1450 = vpop.f32.mrf.mxu0
  %1451 = vmatprep.mubr.bf16.mxu0 0
  %1452 = vmatmul.mubr.bf16.gmra.mxu0 %v1299
  %v1453 = vpop.f32.mrf.mxu0
  %v1454 = vadd.f32 %v1260, %v1453
  %v1455 = vpop.f32.mrf.mxu0
  %v1456 = vpop.f32.mrf.mxu0
  %v1457 = vadd.f32 %v1260, %v1456
  %v1458 = vpop.f32.mrf.mxu0
  %1459 = vmatprep.mubr.bf16.mxu0 0
  %1460 = vmatmul.mubr.bf16.gmra.mxu0 %v1301
  %v1461 = vpop.f32.mrf.mxu0
  %v1462 = vadd.f32 %v1260, %v1461
  %v1463 = vpop.f32.mrf.mxu0
  %v1464 = vpop.f32.mrf.mxu0
  %v1465 = vadd.f32 %v1260, %v1464
  %v1466 = vpop.f32.mrf.mxu0
  %1467 = vdwg.mxu0
  %v1468 = vsel %vm1171, %v1342, 0.0
  %v1469 = vsel %vm1171, %v1345, 0.0
  %v1470 = vadd.f32 %v1468, %v1469
  %v1471 = vsel %vm1171, %v1350, 0.0
  %v1472 = vadd.f32 %v1470, %v1471
  %v1473 = vsel %vm1171, %v1353, 0.0
  %v1474 = vadd.f32 %v1472, %v1473
  %v1475 = vsel %vm1171, %v1358, 0.0
  %v1476 = vadd.f32 %v1474, %v1475
  %v1477 = vsel %vm1171, %v1361, 0.0
  %v1478 = vadd.f32 %v1476, %v1477
  %v1479 = vsel %vm1171, %v1366, 0.0
  %v1480 = vadd.f32 %v1478, %v1479
  %v1481 = vsel %vm1171, %v1369, 0.0
  %v1482 = vadd.f32 %v1480, %v1481
  %v1483 = vsel %vm1171, %v1374, 0.0
  %v1484 = vadd.f32 %v1482, %v1483
  %v1485 = vsel %vm1171, %v1377, 0.0
  %v1486 = vadd.f32 %v1484, %v1485
  %v1487 = vsel %vm1171, %v1382, 0.0
  %v1488 = vadd.f32 %v1486, %v1487
  %v1489 = vsel %vm1171, %v1385, 0.0
  %v1490 = vadd.f32 %v1488, %v1489
  %v1491 = vsel %vm1171, %v1390, 0.0
  %v1492 = vadd.f32 %v1490, %v1491
  %v1493 = vsel %vm1171, %v1393, 0.0
  %v1494 = vadd.f32 %v1492, %v1493
  %v1495 = vsel %vm1171, %v1398, 0.0
  %v1496 = vadd.f32 %v1494, %v1495
  %v1497 = vsel %vm1171, %v1401, 0.0
  %v1498 = vadd.f32 %v1496, %v1497
  %v1499 = vsel %vm1171, %v1406, 0.0
  %v1500 = vadd.f32 %v1498, %v1499
  %v1501 = vsel %vm1171, %v1409, 0.0
  %v1502 = vadd.f32 %v1500, %v1501
  %v1503 = vsel %vm1171, %v1414, 0.0
  %v1504 = vadd.f32 %v1502, %v1503
  %v1505 = vsel %vm1171, %v1417, 0.0
  %v1506 = vadd.f32 %v1504, %v1505
  %v1507 = vsel %vm1171, %v1422, 0.0
  %v1508 = vadd.f32 %v1506, %v1507
  %v1509 = vsel %vm1171, %v1425, 0.0
  %v1510 = vadd.f32 %v1508, %v1509
  %v1511 = vsel %vm1171, %v1430, 0.0
  %v1512 = vadd.f32 %v1510, %v1511
  %v1513 = vsel %vm1171, %v1433, 0.0
  %v1514 = vadd.f32 %v1512, %v1513
  %v1515 = vsel %vm1171, %v1438, 0.0
  %v1516 = vadd.f32 %v1514, %v1515
  %v1517 = vsel %vm1171, %v1441, 0.0
  %v1518 = vadd.f32 %v1516, %v1517
  %v1519 = vsel %vm1171, %v1446, 0.0
  %v1520 = vadd.f32 %v1518, %v1519
  %v1521 = vsel %vm1171, %v1449, 0.0
  %v1522 = vadd.f32 %v1520, %v1521
  %v1523 = vsel %vm1171, %v1454, 0.0
  %v1524 = vadd.f32 %v1522, %v1523
  %v1525 = vsel %vm1171, %v1457, 0.0
  %v1526 = vadd.f32 %v1524, %v1525
  %v1527 = vsel %vm1171, %v1462, 0.0
  %v1528 = vadd.f32 %v1526, %v1527
  %v1529 = vsel %vm1171, %v1465, 0.0
  %v1530 = vadd.f32 %v1528, %v1529
  %v1531 = vrot.slane %v1530, 4
  %v1532 = vadd.f32 %v1530, %v1531
  %v1533 = vrot.slane %v1532, 2
  %v1534 = vadd.f32 %v1532, %v1533
  %v1535 = vrot.slane %v1534, 1
  %v1536 = vadd.f32 %v1534, %v1535
  %v1537 = vmul.f32 %v1342, %v1342
  %v1538 = vmul.f32 %v1345, %v1345
  %v1539 = vmul.f32 %v1350, %v1350
  %v1540 = vmul.f32 %v1353, %v1353
  %v1541 = vmul.f32 %v1358, %v1358
  %v1542 = vmul.f32 %v1361, %v1361
  %v1543 = vmul.f32 %v1366, %v1366
  %v1544 = vmul.f32 %v1369, %v1369
  %v1545 = vmul.f32 %v1374, %v1374
  %v1546 = vmul.f32 %v1377, %v1377
  %v1547 = vmul.f32 %v1382, %v1382
  %v1548 = vmul.f32 %v1385, %v1385
  %v1549 = vmul.f32 %v1390, %v1390
  %v1550 = vmul.f32 %v1393, %v1393
  %v1551 = vmul.f32 %v1398, %v1398
  %v1552 = vmul.f32 %v1401, %v1401
  %v1553 = vmul.f32 %v1406, %v1406
  %v1554 = vmul.f32 %v1409, %v1409
  %v1555 = vmul.f32 %v1414, %v1414
  %v1556 = vmul.f32 %v1417, %v1417
  %v1557 = vmul.f32 %v1422, %v1422
  %v1558 = vmul.f32 %v1425, %v1425
  %v1559 = vmul.f32 %v1430, %v1430
  %v1560 = vmul.f32 %v1433, %v1433
  %v1561 = vmul.f32 %v1438, %v1438
  %v1562 = vmul.f32 %v1441, %v1441
  %v1563 = vmul.f32 %v1446, %v1446
  %v1564 = vmul.f32 %v1449, %v1449
  %v1565 = vmul.f32 %v1454, %v1454
  %v1566 = vmul.f32 %v1457, %v1457
  %v1567 = vmul.f32 %v1462, %v1462
  %v1568 = vmul.f32 %v1465, %v1465
  %v1569 = vsel %vm1171, %v1537, 0.0
  %v1570 = vsel %vm1171, %v1538, 0.0
  %v1571 = vadd.f32 %v1569, %v1570
  %v1572 = vsel %vm1171, %v1539, 0.0
  %v1573 = vadd.f32 %v1571, %v1572
  %v1574 = vsel %vm1171, %v1540, 0.0
  %v1575 = vadd.f32 %v1573, %v1574
  %v1576 = vsel %vm1171, %v1541, 0.0
  %v1577 = vadd.f32 %v1575, %v1576
  %v1578 = vsel %vm1171, %v1542, 0.0
  %v1579 = vadd.f32 %v1577, %v1578
  %v1580 = vsel %vm1171, %v1543, 0.0
  %v1581 = vadd.f32 %v1579, %v1580
  %v1582 = vsel %vm1171, %v1544, 0.0
  %v1583 = vadd.f32 %v1581, %v1582
  %v1584 = vsel %vm1171, %v1545, 0.0
  %v1585 = vadd.f32 %v1583, %v1584
  %v1586 = vsel %vm1171, %v1546, 0.0
  %v1587 = vadd.f32 %v1585, %v1586
  %v1588 = vsel %vm1171, %v1547, 0.0
  %v1589 = vadd.f32 %v1587, %v1588
  %v1590 = vsel %vm1171, %v1548, 0.0
  %v1591 = vadd.f32 %v1589, %v1590
  %v1592 = vsel %vm1171, %v1549, 0.0
  %v1593 = vadd.f32 %v1591, %v1592
  %v1594 = vsel %vm1171, %v1550, 0.0
  %v1595 = vadd.f32 %v1593, %v1594
  %v1596 = vsel %vm1171, %v1551, 0.0
  %v1597 = vadd.f32 %v1595, %v1596
  %v1598 = vsel %vm1171, %v1552, 0.0
  %v1599 = vadd.f32 %v1597, %v1598
  %v1600 = vsel %vm1171, %v1553, 0.0
  %v1601 = vadd.f32 %v1599, %v1600
  %v1602 = vsel %vm1171, %v1554, 0.0
  %v1603 = vadd.f32 %v1601, %v1602
  %v1604 = vsel %vm1171, %v1555, 0.0
  %v1605 = vadd.f32 %v1603, %v1604
  %v1606 = vsel %vm1171, %v1556, 0.0
  %v1607 = vadd.f32 %v1605, %v1606
  %v1608 = vsel %vm1171, %v1557, 0.0
  %v1609 = vadd.f32 %v1607, %v1608
  %v1610 = vsel %vm1171, %v1558, 0.0
  %v1611 = vadd.f32 %v1609, %v1610
  %v1612 = vsel %vm1171, %v1559, 0.0
  %v1613 = vadd.f32 %v1611, %v1612
  %v1614 = vsel %vm1171, %v1560, 0.0
  %v1615 = vadd.f32 %v1613, %v1614
  %v1616 = vsel %vm1171, %v1561, 0.0
  %v1617 = vadd.f32 %v1615, %v1616
  %v1618 = vsel %vm1171, %v1562, 0.0
  %v1619 = vadd.f32 %v1617, %v1618
  %v1620 = vsel %vm1171, %v1563, 0.0
  %v1621 = vadd.f32 %v1619, %v1620
  %v1622 = vsel %vm1171, %v1564, 0.0
  %v1623 = vadd.f32 %v1621, %v1622
  %v1624 = vsel %vm1171, %v1565, 0.0
  %v1625 = vadd.f32 %v1623, %v1624
  %v1626 = vsel %vm1171, %v1566, 0.0
  %v1627 = vadd.f32 %v1625, %v1626
  %v1628 = vsel %vm1171, %v1567, 0.0
  %v1629 = vadd.f32 %v1627, %v1628
  %v1630 = vsel %vm1171, %v1568, 0.0
  %v1631 = vadd.f32 %v1629, %v1630
  %v1632 = vrot.slane %v1631, 4
  %v1633 = vadd.f32 %v1631, %v1632
  %v1634 = vrot.slane %v1633, 2
  %v1635 = vadd.f32 %v1633, %v1634
  %v1636 = vrot.slane %v1635, 1
  %v1637 = vadd.f32 %v1635, %v1636
  %v1638 = vmul.f32 %v1536, 0.00390625
  %v1639 = vmul.f32 %v1637, 0.00390625
  %v1640 = vmul.f32 %v1638, %v1638
  %v1641 = vsub.f32 %v1639, %v1640
  %v1642 = vmax.f32 %v1641, 0.0
  %v1643 = vadd.f32 %v1642, 1e-05
  %v1644 = vrsqrt.pop %v1643
  %v1645 = vld [vmem:[%s49 + $0x1] sm:$0x1]
  %v1646 = vmul.f32 %v1645, %v1644
  %v1647 = vld [vmem:[%s49 + $0x2] sm:$0x1]
  %v1648 = vmul.f32 %v1638, %v1646
  %v1649 = vsub.f32 %v1647, %v1648
  %v1650 = vlaneseq
  %v1651 = vshrl.u32 %v1650, 7
  %v1652 = vsub.s32 0, %v1651
  %v1653 = vrot.slane %v1646, %v1652
  %v1654 = vmul.f32 %v1342, %v1653
  %v1655 = vmul.f32 %v1345, %v1653
  %v1656 = vmul.f32 %v1350, %v1653
  %v1657 = vmul.f32 %v1353, %v1653
  %v1658 = vmul.f32 %v1358, %v1653
  %v1659 = vmul.f32 %v1361, %v1653
  %v1660 = vmul.f32 %v1366, %v1653
  %v1661 = vmul.f32 %v1369, %v1653
  %v1662 = vmul.f32 %v1374, %v1653
  %v1663 = vmul.f32 %v1377, %v1653
  %v1664 = vmul.f32 %v1382, %v1653
  %v1665 = vmul.f32 %v1385, %v1653
  %v1666 = vmul.f32 %v1390, %v1653
  %v1667 = vmul.f32 %v1393, %v1653
  %v1668 = vmul.f32 %v1398, %v1653
  %v1669 = vmul.f32 %v1401, %v1653
  %v1670 = vmul.f32 %v1406, %v1653
  %v1671 = vmul.f32 %v1409, %v1653
  %v1672 = vmul.f32 %v1414, %v1653
  %v1673 = vmul.f32 %v1417, %v1653
  %v1674 = vmul.f32 %v1422, %v1653
  %v1675 = vmul.f32 %v1425, %v1653
  %v1676 = vmul.f32 %v1430, %v1653
  %v1677 = vmul.f32 %v1433, %v1653
  %v1678 = vmul.f32 %v1438, %v1653
  %v1679 = vmul.f32 %v1441, %v1653
  %v1680 = vmul.f32 %v1446, %v1653
  %v1681 = vmul.f32 %v1449, %v1653
  %v1682 = vmul.f32 %v1454, %v1653
  %v1683 = vmul.f32 %v1457, %v1653
  %v1684 = vmul.f32 %v1462, %v1653
  %v1685 = vmul.f32 %v1465, %v1653
  %v1686 = vlaneseq
  %v1687 = vshrl.u32 %v1686, 7
  %v1688 = vsub.s32 0, %v1687
  %v1689 = vrot.slane %v1649, %v1688
  %v1690 = vadd.f32 %v1654, %v1689
  %v1691 = vadd.f32 %v1655, %v1689
  %v1692 = vadd.f32 %v1656, %v1689
  %v1693 = vadd.f32 %v1657, %v1689
  %v1694 = vadd.f32 %v1658, %v1689
  %v1695 = vadd.f32 %v1659, %v1689
  %v1696 = vadd.f32 %v1660, %v1689
  %v1697 = vadd.f32 %v1661, %v1689
  %v1698 = vadd.f32 %v1662, %v1689
  %v1699 = vadd.f32 %v1663, %v1689
  %v1700 = vadd.f32 %v1664, %v1689
  %v1701 = vadd.f32 %v1665, %v1689
  %v1702 = vadd.f32 %v1666, %v1689
  %v1703 = vadd.f32 %v1667, %v1689
  %v1704 = vadd.f32 %v1668, %v1689
  %v1705 = vadd.f32 %v1669, %v1689
  %v1706 = vadd.f32 %v1670, %v1689
  %v1707 = vadd.f32 %v1671, %v1689
  %v1708 = vadd.f32 %v1672, %v1689
  %v1709 = vadd.f32 %v1673, %v1689
  %v1710 = vadd.f32 %v1674, %v1689
  %v1711 = vadd.f32 %v1675, %v1689
  %v1712 = vadd.f32 %v1676, %v1689
  %v1713 = vadd.f32 %v1677, %v1689
  %v1714 = vadd.f32 %v1678, %v1689
  %v1715 = vadd.f32 %v1679, %v1689
  %v1716 = vadd.f32 %v1680, %v1689
  %v1717 = vadd.f32 %v1681, %v1689
  %v1718 = vadd.f32 %v1682, %v1689
  %v1719 = vadd.f32 %v1683, %v1689
  %v1720 = vadd.f32 %v1684, %v1689
  %v1721 = vadd.f32 %v1685, %v1689
  %v1722 = vmax.f32 %v1690, 0.0
  %v1723 = vmax.f32 %v1691, 0.0
  %v1724 = vmax.f32 %v1692, 0.0
  %v1725 = vmax.f32 %v1693, 0.0
  %v1726 = vmax.f32 %v1694, 0.0
  %v1727 = vmax.f32 %v1695, 0.0
  %v1728 = vmax.f32 %v1696, 0.0
  %v1729 = vmax.f32 %v1697, 0.0
  %v1730 = vmax.f32 %v1698, 0.0
  %v1731 = vmax.f32 %v1699, 0.0
  %v1732 = vmax.f32 %v1700, 0.0
  %v1733 = vmax.f32 %v1701, 0.0
  %v1734 = vmax.f32 %v1702, 0.0
  %v1735 = vmax.f32 %v1703, 0.0
  %v1736 = vmax.f32 %v1704, 0.0
  %v1737 = vmax.f32 %v1705, 0.0
  %v1738 = vmax.f32 %v1706, 0.0
  %v1739 = vmax.f32 %v1707, 0.0
  %v1740 = vmax.f32 %v1708, 0.0
  %v1741 = vmax.f32 %v1709, 0.0
  %v1742 = vmax.f32 %v1710, 0.0
  %v1743 = vmax.f32 %v1711, 0.0
  %v1744 = vmax.f32 %v1712, 0.0
  %v1745 = vmax.f32 %v1713, 0.0
  %v1746 = vmax.f32 %v1714, 0.0
  %v1747 = vmax.f32 %v1715, 0.0
  %v1748 = vmax.f32 %v1716, 0.0
  %v1749 = vmax.f32 %v1717, 0.0
  %v1750 = vmax.f32 %v1718, 0.0
  %v1751 = vmax.f32 %v1719, 0.0
  %v1752 = vmax.f32 %v1720, 0.0
  %v1753 = vmax.f32 %v1721, 0.0
  %v1754 = vpack.c.bf16 %v1723, %v1722
  %v1755 = vpack.c.bf16 %v1725, %v1724
  %v1756 = vpack.c.bf16 %v1727, %v1726
  %v1757 = vpack.c.bf16 %v1729, %v1728
  %v1758 = vpack.c.bf16 %v1731, %v1730
  %v1759 = vpack.c.bf16 %v1733, %v1732
  %v1760 = vpack.c.bf16 %v1735, %v1734
  %v1761 = vpack.c.bf16 %v1737, %v1736
  %v1762 = vpack.c.bf16 %v1739, %v1738
  %v1763 = vpack.c.bf16 %v1741, %v1740
  %v1764 = vpack.c.bf16 %v1743, %v1742
  %v1765 = vpack.c.bf16 %v1745, %v1744
  %v1766 = vpack.c.bf16 %v1747, %v1746
  %v1767 = vpack.c.bf16 %v1749, %v1748
  %v1768 = vpack.c.bf16 %v1751, %v1750
  %v1769 = vpack.c.bf16 %v1753, %v1752
  %1770 = vmatprep.subr.bf16.mxu0 0
  %1771 = vmatpush1.bf16.msra.mxu0 %v1761
  %1772 = vmatprep.subr.bf16.mxu0 0
  %1773 = vmatpush1.bf16.msra.mxu0 %v1760
  %1774 = vmatprep.subr.bf16.mxu0 0
  %1775 = vmatpush1.bf16.msra.mxu0 %v1759
  %1776 = vmatprep.subr.bf16.mxu0 0
  %1777 = vmatpush1.bf16.msra.mxu0 %v1758
  %1778 = vmatprep.subr.bf16.mxu0 0
  %1779 = vmatpush1.bf16.msra.mxu0 %v1757
  %1780 = vmatprep.subr.bf16.mxu0 0
  %1781 = vmatpush1.bf16.msra.mxu0 %v1756
  %1782 = vmatprep.subr.bf16.mxu0 0
  %1783 = vmatpush1.bf16.msra.mxu0 %v1755
  %1784 = vmatprep.subr.bf16.mxu0 0
  %1785 = vmatpush1.bf16.msra.mxu0 %v1754
  %1786 = vmatprep.subr.bf16.mxu0 0
  %1787 = vmatpush2.bf16.msra.mxu0 %v1769
  %1788 = vmatprep.subr.bf16.mxu0 0
  %1789 = vmatpush2.bf16.msra.mxu0 %v1768
  %1790 = vmatprep.subr.bf16.mxu0 0
  %1791 = vmatpush2.bf16.msra.mxu0 %v1767
  %1792 = vmatprep.subr.bf16.mxu0 0
  %1793 = vmatpush2.bf16.msra.mxu0 %v1766
  %1794 = vmatprep.subr.bf16.mxu0 0
  %1795 = vmatpush2.bf16.msra.mxu0 %v1765
  %1796 = vmatprep.subr.bf16.mxu0 0
  %1797 = vmatpush2.bf16.msra.mxu0 %v1764
  %1798 = vmatprep.subr.bf16.mxu0 0
  %1799 = vmatpush2.bf16.msra.mxu0 %v1763
  %1800 = vmatprep.subr.bf16.mxu0 0
  %1801 = vmatpush2.bf16.msra.mxu0 %v1762
  %1802 = vmatprep.mubr.bf16.mxu0 %v434
  %1803 = vmatmul.mubr.bf16.gmra.mxu0 %v433
  %v1804 = vpop.f32.mrf.mxu0
  %v1805 = vadd.f32 0.0, %v1804
  %v1806 = vpop.f32.mrf.mxu0
  %v1807 = vpop.f32.mrf.mxu0
  %v1808 = vadd.f32 0.0, %v1807
  %v1809 = vpop.f32.mrf.mxu0
  %1810 = vmatprep.mubr.bf16.mxu0 %v436
  %1811 = vmatmul.mubr.bf16.gmra.mxu0 %v435
  %v1812 = vpop.f32.mrf.mxu0
  %v1813 = vadd.f32 0.0, %v1812
  %v1814 = vpop.f32.mrf.mxu0
  %v1815 = vpop.f32.mrf.mxu0
  %v1816 = vadd.f32 0.0, %v1815
  %v1817 = vpop.f32.mrf.mxu0
  %1818 = vmatprep.mubr.bf16.mxu0 %v438
  %1819 = vmatmul.mubr.bf16.gmra.mxu0 %v437
  %v1820 = vpop.f32.mrf.mxu0
  %v1821 = vadd.f32 0.0, %v1820
  %v1822 = vpop.f32.mrf.mxu0
  %v1823 = vpop.f32.mrf.mxu0
  %v1824 = vadd.f32 0.0, %v1823
  %v1825 = vpop.f32.mrf.mxu0
  %1826 = vmatprep.mubr.bf16.mxu0 %v440
  %1827 = vmatmul.mubr.bf16.gmra.mxu0 %v439
  %v1828 = vpop.f32.mrf.mxu0
  %v1829 = vadd.f32 0.0, %v1828
  %v1830 = vpop.f32.mrf.mxu0
  %v1831 = vpop.f32.mrf.mxu0
  %v1832 = vadd.f32 0.0, %v1831
  %v1833 = vpop.f32.mrf.mxu0
  %1834 = vmatprep.mubr.bf16.mxu0 %v442
  %1835 = vmatmul.mubr.bf16.gmra.mxu0 %v441
  %v1836 = vpop.f32.mrf.mxu0
  %v1837 = vadd.f32 0.0, %v1836
  %v1838 = vpop.f32.mrf.mxu0
  %v1839 = vpop.f32.mrf.mxu0
  %v1840 = vadd.f32 0.0, %v1839
  %v1841 = vpop.f32.mrf.mxu0
  %1842 = vmatprep.mubr.bf16.mxu0 %v444
  %1843 = vmatmul.mubr.bf16.gmra.mxu0 %v443
  %v1844 = vpop.f32.mrf.mxu0
  %v1845 = vadd.f32 0.0, %v1844
  %v1846 = vpop.f32.mrf.mxu0
  %v1847 = vpop.f32.mrf.mxu0
  %v1848 = vadd.f32 0.0, %v1847
  %v1849 = vpop.f32.mrf.mxu0
  %1850 = vmatprep.mubr.bf16.mxu0 %v446
  %1851 = vmatmul.mubr.bf16.gmra.mxu0 %v445
  %v1852 = vpop.f32.mrf.mxu0
  %v1853 = vadd.f32 0.0, %v1852
  %v1854 = vpop.f32.mrf.mxu0
  %v1855 = vpop.f32.mrf.mxu0
  %v1856 = vadd.f32 0.0, %v1855
  %v1857 = vpop.f32.mrf.mxu0
  %1858 = vmatprep.mubr.bf16.mxu0 %v448
  %1859 = vmatmul.mubr.bf16.gmra.mxu0 %v447
  %v1860 = vpop.f32.mrf.mxu0
  %v1861 = vadd.f32 0.0, %v1860
  %v1862 = vpop.f32.mrf.mxu0
  %v1863 = vpop.f32.mrf.mxu0
  %v1864 = vadd.f32 0.0, %v1863
  %v1865 = vpop.f32.mrf.mxu0
  %1866 = vmatprep.mubr.bf16.mxu0 %v450
  %1867 = vmatmul.mubr.bf16.gmra.mxu0 %v449
  %v1868 = vpop.f32.mrf.mxu0
  %v1869 = vadd.f32 0.0, %v1868
  %v1870 = vpop.f32.mrf.mxu0
  %v1871 = vpop.f32.mrf.mxu0
  %v1872 = vadd.f32 0.0, %v1871
  %v1873 = vpop.f32.mrf.mxu0
  %1874 = vmatprep.mubr.bf16.mxu0 %v452
  %1875 = vmatmul.mubr.bf16.gmra.mxu0 %v451
  %v1876 = vpop.f32.mrf.mxu0
  %v1877 = vadd.f32 0.0, %v1876
  %v1878 = vpop.f32.mrf.mxu0
  %v1879 = vpop.f32.mrf.mxu0
  %v1880 = vadd.f32 0.0, %v1879
  %v1881 = vpop.f32.mrf.mxu0
  %1882 = vmatprep.mubr.bf16.mxu0 %v454
  %1883 = vmatmul.mubr.bf16.gmra.mxu0 %v453
  %v1884 = vpop.f32.mrf.mxu0
  %v1885 = vadd.f32 0.0, %v1884
  %v1886 = vpop.f32.mrf.mxu0
  %v1887 = vpop.f32.mrf.mxu0
  %v1888 = vadd.f32 0.0, %v1887
  %v1889 = vpop.f32.mrf.mxu0
  %1890 = vmatprep.mubr.bf16.mxu0 %v456
  %1891 = vmatmul.mubr.bf16.gmra.mxu0 %v455
  %v1892 = vpop.f32.mrf.mxu0
  %v1893 = vadd.f32 0.0, %v1892
  %v1894 = vpop.f32.mrf.mxu0
  %v1895 = vpop.f32.mrf.mxu0
  %v1896 = vadd.f32 0.0, %v1895
  %v1897 = vpop.f32.mrf.mxu0
  %1898 = vmatprep.mubr.bf16.mxu0 %v458
  %1899 = vmatmul.mubr.bf16.gmra.mxu0 %v457
  %v1900 = vpop.f32.mrf.mxu0
  %v1901 = vadd.f32 0.0, %v1900
  %v1902 = vpop.f32.mrf.mxu0
  %v1903 = vpop.f32.mrf.mxu0
  %v1904 = vadd.f32 0.0, %v1903
  %v1905 = vpop.f32.mrf.mxu0
  %1906 = vmatprep.mubr.bf16.mxu0 %v460
  %1907 = vmatmul.mubr.bf16.gmra.mxu0 %v459
  %v1908 = vpop.f32.mrf.mxu0
  %v1909 = vadd.f32 0.0, %v1908
  %v1910 = vpop.f32.mrf.mxu0
  %v1911 = vpop.f32.mrf.mxu0
  %v1912 = vadd.f32 0.0, %v1911
  %v1913 = vpop.f32.mrf.mxu0
  %1914 = vmatprep.mubr.bf16.mxu0 %v462
  %1915 = vmatmul.mubr.bf16.gmra.mxu0 %v461
  %v1916 = vpop.f32.mrf.mxu0
  %v1917 = vadd.f32 0.0, %v1916
  %v1918 = vpop.f32.mrf.mxu0
  %v1919 = vpop.f32.mrf.mxu0
  %v1920 = vadd.f32 0.0, %v1919
  %v1921 = vpop.f32.mrf.mxu0
  %1922 = vmatprep.mubr.bf16.mxu0 %v464
  %1923 = vmatmul.mubr.bf16.gmra.mxu0 %v463
  %v1924 = vpop.f32.mrf.mxu0
  %v1925 = vadd.f32 0.0, %v1924
  %v1926 = vpop.f32.mrf.mxu0
  %v1927 = vpop.f32.mrf.mxu0
  %v1928 = vadd.f32 0.0, %v1927
  %v1929 = vpop.f32.mrf.mxu0
  %1930 = vdwg.mxu0
  %v1931 = vpack.c.bf16 %v1808, %v1805
  %v1932 = vpack.c.bf16 %v1816, %v1813
  %v1933 = vpack.c.bf16 %v1824, %v1821
  %v1934 = vpack.c.bf16 %v1832, %v1829
  %v1935 = vpack.c.bf16 %v1840, %v1837
  %v1936 = vpack.c.bf16 %v1848, %v1845
  %v1937 = vpack.c.bf16 %v1856, %v1853
  %v1938 = vpack.c.bf16 %v1864, %v1861
  %v1939 = vpack.c.bf16 %v1872, %v1869
  %v1940 = vpack.c.bf16 %v1880, %v1877
  %v1941 = vpack.c.bf16 %v1888, %v1885
  %v1942 = vpack.c.bf16 %v1896, %v1893
  %v1943 = vpack.c.bf16 %v1904, %v1901
  %v1944 = vpack.c.bf16 %v1912, %v1909
  %v1945 = vpack.c.bf16 %v1920, %v1917
  %v1946 = vpack.c.bf16 %v1928, %v1925
  %1947 = vmatprep.subr.bf16.mxu0 0
  %1948 = vmatpush1.bf16.msra.mxu0 %v1938
  %1949 = vmatprep.subr.bf16.mxu0 0
  %1950 = vmatpush1.bf16.msra.mxu0 %v1937
  %1951 = vmatprep.subr.bf16.mxu0 0
  %1952 = vmatpush1.bf16.msra.mxu0 %v1936
  %1953 = vmatprep.subr.bf16.mxu0 0
  %1954 = vmatpush1.bf16.msra.mxu0 %v1935
  %1955 = vmatprep.subr.bf16.mxu0 0
  %1956 = vmatpush1.bf16.msra.mxu0 %v1934
  %1957 = vmatprep.subr.bf16.mxu0 0
  %1958 = vmatpush1.bf16.msra.mxu0 %v1933
  %1959 = vmatprep.subr.bf16.mxu0 0
  %1960 = vmatpush1.bf16.msra.mxu0 %v1932
  %1961 = vmatprep.subr.bf16.mxu0 0
  %1962 = vmatpush1.bf16.msra.mxu0 %v1931
  %1963 = vmatprep.subr.bf16.mxu0 0
  %1964 = vmatpush2.bf16.msra.mxu0 %v1946
  %1965 = vmatprep.subr.bf16.mxu0 0
  %1966 = vmatpush2.bf16.msra.mxu0 %v1945
  %1967 = vmatprep.subr.bf16.mxu0 0
  %1968 = vmatpush2.bf16.msra.mxu0 %v1944
  %1969 = vmatprep.subr.bf16.mxu0 0
  %1970 = vmatpush2.bf16.msra.mxu0 %v1943
  %1971 = vmatprep.subr.bf16.mxu0 0
  %1972 = vmatpush2.bf16.msra.mxu0 %v1942
  %1973 = vmatprep.subr.bf16.mxu0 0
  %1974 = vmatpush2.bf16.msra.mxu0 %v1941
  %1975 = vmatprep.subr.bf16.mxu0 0
  %1976 = vmatpush2.bf16.msra.mxu0 %v1940
  %1977 = vmatprep.subr.bf16.mxu0 0
  %1978 = vmatpush2.bf16.msra.mxu0 %v1939
  %1979 = vmatprep.mubr.bf16.mxu0 %v771
  %1980 = vmatmul.mubr.bf16.gmra.mxu0 %v770
  %v1981 = vpop.f32.mrf.mxu0
  %v1982 = vadd.f32 0.0, %v1981
  %v1983 = vpop.f32.mrf.mxu0
  %v1984 = vpop.f32.mrf.mxu0
  %v1985 = vadd.f32 0.0, %v1984
  %v1986 = vpop.f32.mrf.mxu0
  %1987 = vmatprep.mubr.bf16.mxu0 %v773
  %1988 = vmatmul.mubr.bf16.gmra.mxu0 %v772
  %v1989 = vpop.f32.mrf.mxu0
  %v1990 = vadd.f32 0.0, %v1989
  %v1991 = vpop.f32.mrf.mxu0
  %v1992 = vpop.f32.mrf.mxu0
  %v1993 = vadd.f32 0.0, %v1992
  %v1994 = vpop.f32.mrf.mxu0
  %1995 = vmatprep.mubr.bf16.mxu0 %v775
  %1996 = vmatmul.mubr.bf16.gmra.mxu0 %v774
  %v1997 = vpop.f32.mrf.mxu0
  %v1998 = vadd.f32 0.0, %v1997
  %v1999 = vpop.f32.mrf.mxu0
  %v2000 = vpop.f32.mrf.mxu0
  %v2001 = vadd.f32 0.0, %v2000
  %v2002 = vpop.f32.mrf.mxu0
  %2003 = vmatprep.mubr.bf16.mxu0 %v777
  %2004 = vmatmul.mubr.bf16.gmra.mxu0 %v776
  %v2005 = vpop.f32.mrf.mxu0
  %v2006 = vadd.f32 0.0, %v2005
  %v2007 = vpop.f32.mrf.mxu0
  %v2008 = vpop.f32.mrf.mxu0
  %v2009 = vadd.f32 0.0, %v2008
  %v2010 = vpop.f32.mrf.mxu0
  %2011 = vmatprep.mubr.bf16.mxu0 %v779
  %2012 = vmatmul.mubr.bf16.gmra.mxu0 %v778
  %v2013 = vpop.f32.mrf.mxu0
  %v2014 = vadd.f32 0.0, %v2013
  %v2015 = vpop.f32.mrf.mxu0
  %v2016 = vpop.f32.mrf.mxu0
  %v2017 = vadd.f32 0.0, %v2016
  %v2018 = vpop.f32.mrf.mxu0
  %2019 = vmatprep.mubr.bf16.mxu0 %v781
  %2020 = vmatmul.mubr.bf16.gmra.mxu0 %v780
  %v2021 = vpop.f32.mrf.mxu0
  %v2022 = vadd.f32 0.0, %v2021
  %v2023 = vpop.f32.mrf.mxu0
  %v2024 = vpop.f32.mrf.mxu0
  %v2025 = vadd.f32 0.0, %v2024
  %v2026 = vpop.f32.mrf.mxu0
  %2027 = vmatprep.mubr.bf16.mxu0 %v783
  %2028 = vmatmul.mubr.bf16.gmra.mxu0 %v782
  %v2029 = vpop.f32.mrf.mxu0
  %v2030 = vadd.f32 0.0, %v2029
  %v2031 = vpop.f32.mrf.mxu0
  %v2032 = vpop.f32.mrf.mxu0
  %v2033 = vadd.f32 0.0, %v2032
  %v2034 = vpop.f32.mrf.mxu0
  %2035 = vmatprep.mubr.bf16.mxu0 %v785
  %2036 = vmatmul.mubr.bf16.gmra.mxu0 %v784
  %v2037 = vpop.f32.mrf.mxu0
  %v2038 = vadd.f32 0.0, %v2037
  %v2039 = vpop.f32.mrf.mxu0
  %v2040 = vpop.f32.mrf.mxu0
  %v2041 = vadd.f32 0.0, %v2040
  %v2042 = vpop.f32.mrf.mxu0
  %2043 = vmatprep.mubr.bf16.mxu0 %v787
  %2044 = vmatmul.mubr.bf16.gmra.mxu0 %v786
  %v2045 = vpop.f32.mrf.mxu0
  %v2046 = vadd.f32 0.0, %v2045
  %v2047 = vpop.f32.mrf.mxu0
  %v2048 = vpop.f32.mrf.mxu0
  %v2049 = vadd.f32 0.0, %v2048
  %v2050 = vpop.f32.mrf.mxu0
  %2051 = vmatprep.mubr.bf16.mxu0 %v789
  %2052 = vmatmul.mubr.bf16.gmra.mxu0 %v788
  %v2053 = vpop.f32.mrf.mxu0
  %v2054 = vadd.f32 0.0, %v2053
  %v2055 = vpop.f32.mrf.mxu0
  %v2056 = vpop.f32.mrf.mxu0
  %v2057 = vadd.f32 0.0, %v2056
  %v2058 = vpop.f32.mrf.mxu0
  %2059 = vmatprep.mubr.bf16.mxu0 %v791
  %2060 = vmatmul.mubr.bf16.gmra.mxu0 %v790
  %v2061 = vpop.f32.mrf.mxu0
  %v2062 = vadd.f32 0.0, %v2061
  %v2063 = vpop.f32.mrf.mxu0
  %v2064 = vpop.f32.mrf.mxu0
  %v2065 = vadd.f32 0.0, %v2064
  %v2066 = vpop.f32.mrf.mxu0
  %2067 = vmatprep.mubr.bf16.mxu0 %v793
  %2068 = vmatmul.mubr.bf16.gmra.mxu0 %v792
  %v2069 = vpop.f32.mrf.mxu0
  %v2070 = vadd.f32 0.0, %v2069
  %v2071 = vpop.f32.mrf.mxu0
  %v2072 = vpop.f32.mrf.mxu0
  %v2073 = vadd.f32 0.0, %v2072
  %v2074 = vpop.f32.mrf.mxu0
  %2075 = vmatprep.mubr.bf16.mxu0 %v795
  %2076 = vmatmul.mubr.bf16.gmra.mxu0 %v794
  %v2077 = vpop.f32.mrf.mxu0
  %v2078 = vadd.f32 0.0, %v2077
  %v2079 = vpop.f32.mrf.mxu0
  %v2080 = vpop.f32.mrf.mxu0
  %v2081 = vadd.f32 0.0, %v2080
  %v2082 = vpop.f32.mrf.mxu0
  %2083 = vmatprep.mubr.bf16.mxu0 %v797
  %2084 = vmatmul.mubr.bf16.gmra.mxu0 %v796
  %v2085 = vpop.f32.mrf.mxu0
  %v2086 = vadd.f32 0.0, %v2085
  %v2087 = vpop.f32.mrf.mxu0
  %v2088 = vpop.f32.mrf.mxu0
  %v2089 = vadd.f32 0.0, %v2088
  %v2090 = vpop.f32.mrf.mxu0
  %2091 = vmatprep.mubr.bf16.mxu0 %v799
  %2092 = vmatmul.mubr.bf16.gmra.mxu0 %v798
  %v2093 = vpop.f32.mrf.mxu0
  %v2094 = vadd.f32 0.0, %v2093
  %v2095 = vpop.f32.mrf.mxu0
  %v2096 = vpop.f32.mrf.mxu0
  %v2097 = vadd.f32 0.0, %v2096
  %v2098 = vpop.f32.mrf.mxu0
  %2099 = vmatprep.mubr.bf16.mxu0 %v801
  %2100 = vmatmul.mubr.bf16.gmra.mxu0 %v800
  %v2101 = vpop.f32.mrf.mxu0
  %v2102 = vadd.f32 0.0, %v2101
  %v2103 = vpop.f32.mrf.mxu0
  %v2104 = vpop.f32.mrf.mxu0
  %v2105 = vadd.f32 0.0, %v2104
  %v2106 = vpop.f32.mrf.mxu0
  %2107 = vdwg.mxu0
  %v2108 = vunpack.c.l.bf16 %v1754
  %v2109 = vunpack.c.h.bf16 %v1754
  %v2110 = vunpack.c.l.bf16 %v1755
  %v2111 = vunpack.c.h.bf16 %v1755
  %v2112 = vunpack.c.l.bf16 %v1756
  %v2113 = vunpack.c.h.bf16 %v1756
  %v2114 = vunpack.c.l.bf16 %v1757
  %v2115 = vunpack.c.h.bf16 %v1757
  %v2116 = vunpack.c.l.bf16 %v1758
  %v2117 = vunpack.c.h.bf16 %v1758
  %v2118 = vunpack.c.l.bf16 %v1759
  %v2119 = vunpack.c.h.bf16 %v1759
  %v2120 = vunpack.c.l.bf16 %v1760
  %v2121 = vunpack.c.h.bf16 %v1760
  %v2122 = vunpack.c.l.bf16 %v1761
  %v2123 = vunpack.c.h.bf16 %v1761
  %v2124 = vunpack.c.l.bf16 %v1762
  %v2125 = vunpack.c.h.bf16 %v1762
  %v2126 = vunpack.c.l.bf16 %v1763
  %v2127 = vunpack.c.h.bf16 %v1763
  %v2128 = vunpack.c.l.bf16 %v1764
  %v2129 = vunpack.c.h.bf16 %v1764
  %v2130 = vunpack.c.l.bf16 %v1765
  %v2131 = vunpack.c.h.bf16 %v1765
  %v2132 = vunpack.c.l.bf16 %v1766
  %v2133 = vunpack.c.h.bf16 %v1766
  %v2134 = vunpack.c.l.bf16 %v1767
  %v2135 = vunpack.c.h.bf16 %v1767
  %v2136 = vunpack.c.l.bf16 %v1768
  %v2137 = vunpack.c.h.bf16 %v1768
  %v2138 = vunpack.c.l.bf16 %v1769
  %v2139 = vunpack.c.h.bf16 %v1769
  %v2140 = vsub.f32 %v1982, %v2108
  %v2141 = vsub.f32 %v1985, %v2109
  %v2142 = vsub.f32 %v1990, %v2110
  %v2143 = vsub.f32 %v1993, %v2111
  %v2144 = vsub.f32 %v1998, %v2112
  %v2145 = vsub.f32 %v2001, %v2113
  %v2146 = vsub.f32 %v2006, %v2114
  %v2147 = vsub.f32 %v2009, %v2115
  %v2148 = vsub.f32 %v2014, %v2116
  %v2149 = vsub.f32 %v2017, %v2117
  %v2150 = vsub.f32 %v2022, %v2118
  %v2151 = vsub.f32 %v2025, %v2119
  %v2152 = vsub.f32 %v2030, %v2120
  %v2153 = vsub.f32 %v2033, %v2121
  %v2154 = vsub.f32 %v2038, %v2122
  %v2155 = vsub.f32 %v2041, %v2123
  %v2156 = vsub.f32 %v2046, %v2124
  %v2157 = vsub.f32 %v2049, %v2125
  %v2158 = vsub.f32 %v2054, %v2126
  %v2159 = vsub.f32 %v2057, %v2127
  %v2160 = vsub.f32 %v2062, %v2128
  %v2161 = vsub.f32 %v2065, %v2129
  %v2162 = vsub.f32 %v2070, %v2130
  %v2163 = vsub.f32 %v2073, %v2131
  %v2164 = vsub.f32 %v2078, %v2132
  %v2165 = vsub.f32 %v2081, %v2133
  %v2166 = vsub.f32 %v2086, %v2134
  %v2167 = vsub.f32 %v2089, %v2135
  %v2168 = vsub.f32 %v2094, %v2136
  %v2169 = vsub.f32 %v2097, %v2137
  %v2170 = vsub.f32 %v2102, %v2138
  %v2171 = vsub.f32 %v2105, %v2139
  %v2172 = vpack.c.bf16 %v2141, %v2140
  %v2173 = vpack.c.bf16 %v2143, %v2142
  %v2174 = vpack.c.bf16 %v2145, %v2144
  %v2175 = vpack.c.bf16 %v2147, %v2146
  %v2176 = vpack.c.bf16 %v2149, %v2148
  %v2177 = vpack.c.bf16 %v2151, %v2150
  %v2178 = vpack.c.bf16 %v2153, %v2152
  %v2179 = vpack.c.bf16 %v2155, %v2154
  %v2180 = vpack.c.bf16 %v2157, %v2156
  %v2181 = vpack.c.bf16 %v2159, %v2158
  %v2182 = vpack.c.bf16 %v2161, %v2160
  %v2183 = vpack.c.bf16 %v2163, %v2162
  %v2184 = vpack.c.bf16 %v2165, %v2164
  %v2185 = vpack.c.bf16 %v2167, %v2166
  %v2186 = vpack.c.bf16 %v2169, %v2168
  %v2187 = vpack.c.bf16 %v2171, %v2170
  %2204 = vrot.lane.b32.xlu0 %v1931, 8
  %v2205 = vpop.permute.xlu0 %2204
  %2206 = vrot.lane.b32.xlu0 %v1932, 8
  %v2207 = vpop.permute.xlu0 %2206
  %2208 = vrot.lane.b32.xlu0 %v1933, 8
  %v2209 = vpop.permute.xlu0 %2208
  %2210 = vrot.lane.b32.xlu0 %v1934, 8
  %v2211 = vpop.permute.xlu0 %2210
  %2212 = vrot.lane.b32.xlu0 %v1935, 8
  %v2213 = vpop.permute.xlu0 %2212
  %2214 = vrot.lane.b32.xlu0 %v1936, 8
  %v2215 = vpop.permute.xlu0 %2214
  %2216 = vrot.lane.b32.xlu0 %v1937, 8
  %v2217 = vpop.permute.xlu0 %2216
  %2218 = vrot.lane.b32.xlu0 %v1938, 8
  %v2219 = vpop.permute.xlu0 %2218
  %2220 = vrot.lane.b32.xlu0 %v1939, 8
  %v2221 = vpop.permute.xlu0 %2220
  %2222 = vrot.lane.b32.xlu0 %v1940, 8
  %v2223 = vpop.permute.xlu0 %2222
  %2224 = vrot.lane.b32.xlu0 %v1941, 8
  %v2225 = vpop.permute.xlu0 %2224
  %2226 = vrot.lane.b32.xlu0 %v1942, 8
  %v2227 = vpop.permute.xlu0 %2226
  %2228 = vrot.lane.b32.xlu0 %v1943, 8
  %v2229 = vpop.permute.xlu0 %2228
  %2230 = vrot.lane.b32.xlu0 %v1944, 8
  %v2231 = vpop.permute.xlu0 %2230
  %2232 = vrot.lane.b32.xlu0 %v1945, 8
  %v2233 = vpop.permute.xlu0 %2232
  %2234 = vrot.lane.b32.xlu0 %v1946, 8
  %v2235 = vpop.permute.xlu0 %2234
  %2252 = vrot.lane.b32.xlu0 %v2172, 16
  %v2253 = vpop.permute.xlu0 %2252
  %2254 = vrot.lane.b32.xlu0 %v2173, 16
  %v2255 = vpop.permute.xlu0 %2254
  %2256 = vrot.lane.b32.xlu0 %v2174, 16
  %v2257 = vpop.permute.xlu0 %2256
  %2258 = vrot.lane.b32.xlu0 %v2175, 16
  %v2259 = vpop.permute.xlu0 %2258
  %2260 = vrot.lane.b32.xlu0 %v2176, 16
  %v2261 = vpop.permute.xlu0 %2260
  %2262 = vrot.lane.b32.xlu0 %v2177, 16
  %v2263 = vpop.permute.xlu0 %2262
  %2264 = vrot.lane.b32.xlu0 %v2178, 16
  %v2265 = vpop.permute.xlu0 %2264
  %2266 = vrot.lane.b32.xlu0 %v2179, 16
  %v2267 = vpop.permute.xlu0 %2266
  %2268 = vrot.lane.b32.xlu0 %v2180, 16
  %v2269 = vpop.permute.xlu0 %2268
  %2270 = vrot.lane.b32.xlu0 %v2181, 16
  %v2271 = vpop.permute.xlu0 %2270
  %2272 = vrot.lane.b32.xlu0 %v2182, 16
  %v2273 = vpop.permute.xlu0 %2272
  %2274 = vrot.lane.b32.xlu0 %v2183, 16
  %v2275 = vpop.permute.xlu0 %2274
  %2276 = vrot.lane.b32.xlu0 %v2184, 16
  %v2277 = vpop.permute.xlu0 %2276
  %2278 = vrot.lane.b32.xlu0 %v2185, 16
  %v2279 = vpop.permute.xlu0 %2278
  %2280 = vrot.lane.b32.xlu0 %v2186, 16
  %v2281 = vpop.permute.xlu0 %2280
  %2282 = vrot.lane.b32.xlu0 %v2187, 16
  %v2283 = vpop.permute.xlu0 %2282
  %v2286 = vsel %vm1171, %v1754, %v2205
  %v2289 = vsel %vm1171, %v1755, %v2207
  %v2292 = vsel %vm1171, %v1756, %v2209
  %v2295 = vsel %vm1171, %v1757, %v2211
  %v2298 = vsel %vm1171, %v1758, %v2213
  %v2301 = vsel %vm1171, %v1759, %v2215
  %v2304 = vsel %vm1171, %v1760, %v2217
  %v2307 = vsel %vm1171, %v1761, %v2219
  %v2310 = vsel %vm1171, %v1762, %v2221
  %v2313 = vsel %vm1171, %v1763, %v2223
  %v2316 = vsel %vm1171, %v1764, %v2225
  %v2319 = vsel %vm1171, %v1765, %v2227
  %v2322 = vsel %vm1171, %v1766, %v2229
  %v2325 = vsel %vm1171, %v1767, %v2231
  %v2328 = vsel %vm1171, %v1768, %v2233
  %v2331 = vsel %vm1171, %v1769, %v2235
  %v2333 = vsel %vm1220, %v2286, %v2253
  %v2335 = vsel %vm1220, %v2289, %v2255
  %v2337 = vsel %vm1220, %v2292, %v2257
  %v2339 = vsel %vm1220, %v2295, %v2259
  %v2341 = vsel %vm1220, %v2298, %v2261
  %v2343 = vsel %vm1220, %v2301, %v2263
  %v2345 = vsel %vm1220, %v2304, %v2265
  %v2347 = vsel %vm1220, %v2307, %v2267
  %v2349 = vsel %vm1220, %v2310, %v2269
  %v2351 = vsel %vm1220, %v2313, %v2271
  %v2353 = vsel %vm1220, %v2316, %v2273
  %v2355 = vsel %vm1220, %v2319, %v2275
  %v2357 = vsel %vm1220, %v2322, %v2277
  %v2359 = vsel %vm1220, %v2325, %v2279
  %v2361 = vsel %vm1220, %v2328, %v2281
  %v2363 = vsel %vm1220, %v2331, %v2283
  %v2364 = vld [vmem:[%s25] sm:$0xf]
  %v2365 = vld [vmem:[%s25 + $0x4] sm:$0xf]
  %v2366 = vld [vmem:[%s25 + $0x8] sm:$0xf]
  %v2367 = vld [vmem:[%s51] sm:$0x1]
  %v2368 = vlaneseq
  %v2369 = vshrl.u32 %v2368, 7
  %v2370 = vsub.s32 0, %v2369
  %v2371 = vrot.slane %v2367, %v2370
  %v2375 = vunpack.c.l.b16 %v2364
  %v2376 = vunpack.c.l.b16 %v2365
  %v2377 = vunpack.c.l.b16 %v2366
  %v2378 = vpack.c.b16 %v2376, %v2375
  %v2379 = vpack.c.b16 %v2377, %v2377
  %v2381 = vsel %vm1270, %v2333, 0
  %v2383 = vsel %vm1270, %v2335, 0
  %v2385 = vsel %vm1270, %v2337, 0
  %v2387 = vsel %vm1270, %v2339, 0
  %v2389 = vsel %vm1270, %v2341, 0
  %v2391 = vsel %vm1270, %v2343, 0
  %v2393 = vsel %vm1270, %v2345, 0
  %v2395 = vsel %vm1270, %v2347, 0
  %v2397 = vsel %vm1270, %v2349, 0
  %v2399 = vsel %vm1270, %v2351, 0
  %v2401 = vsel %vm1270, %v2353, 0
  %v2403 = vsel %vm1270, %v2355, 0
  %v2405 = vsel %vm1270, %v2357, 0
  %v2407 = vsel %vm1270, %v2359, 0
  %v2409 = vsel %vm1270, %v2361, 0
  %v2411 = vsel %vm1270, %v2363, 0
  %v2414 = vsel %vm1303, %v2379, 0
  %2416 = vmatprep.subr.bf16.mxu0 0
  %2417 = vmatpush1.bf16.msra.mxu0 0
  %2418 = vmatprep.subr.bf16.mxu0 0
  %2419 = vmatpush1.bf16.msra.mxu0 0
  %2420 = vmatprep.subr.bf16.mxu0 0
  %2421 = vmatpush1.bf16.msra.mxu0 0
  %2422 = vmatprep.subr.bf16.mxu0 0
  %2423 = vmatpush1.bf16.msra.mxu0 0
  %2424 = vmatprep.subr.bf16.mxu0 0
  %2425 = vmatpush1.bf16.msra.mxu0 0
  %2426 = vmatprep.subr.bf16.mxu0 0
  %2427 = vmatpush1.bf16.msra.mxu0 0
  %2428 = vmatprep.subr.bf16.mxu0 0
  %2429 = vmatpush1.bf16.msra.mxu0 %v2414
  %2430 = vmatprep.subr.bf16.mxu0 0
  %2431 = vmatpush1.bf16.msra.mxu0 %v2378
  %2432 = vmatprep.subr.bf16.mxu0 0
  %2433 = vmatpush2.bf16.msra.mxu0 0
  %2434 = vmatprep.subr.bf16.mxu0 0
  %2435 = vmatpush2.bf16.msra.mxu0 0
  %2436 = vmatprep.subr.bf16.mxu0 0
  %2437 = vmatpush2.bf16.msra.mxu0 0
  %2438 = vmatprep.subr.bf16.mxu0 0
  %2439 = vmatpush2.bf16.msra.mxu0 0
  %2440 = vmatprep.subr.bf16.mxu0 0
  %2441 = vmatpush2.bf16.msra.mxu0 0
  %2442 = vmatprep.subr.bf16.mxu0 0
  %2443 = vmatpush2.bf16.msra.mxu0 0
  %2444 = vmatprep.subr.bf16.mxu0 0
  %2445 = vmatpush2.bf16.msra.mxu0 0
  %2446 = vmatprep.subr.bf16.mxu0 0
  %2447 = vmatpush2.bf16.msra.mxu0 0
  %2448 = vmatprep.mubr.bf16.mxu0 0
  %2449 = vmatmul.mubr.bf16.gmra.mxu0 %v2381
  %v2450 = vpop.f32.mrf.mxu0
  %v2451 = vadd.f32 %v2371, %v2450
  %v2452 = vpop.f32.mrf.mxu0
  %v2453 = vpop.f32.mrf.mxu0
  %v2454 = vadd.f32 %v2371, %v2453
  %v2455 = vpop.f32.mrf.mxu0
  %2456 = vmatprep.mubr.bf16.mxu0 0
  %2457 = vmatmul.mubr.bf16.gmra.mxu0 %v2383
  %v2458 = vpop.f32.mrf.mxu0
  %v2459 = vadd.f32 %v2371, %v2458
  %v2460 = vpop.f32.mrf.mxu0
  %v2461 = vpop.f32.mrf.mxu0
  %v2462 = vadd.f32 %v2371, %v2461
  %v2463 = vpop.f32.mrf.mxu0
  %2464 = vmatprep.mubr.bf16.mxu0 0
  %2465 = vmatmul.mubr.bf16.gmra.mxu0 %v2385
  %v2466 = vpop.f32.mrf.mxu0
  %v2467 = vadd.f32 %v2371, %v2466
  %v2468 = vpop.f32.mrf.mxu0
  %v2469 = vpop.f32.mrf.mxu0
  %v2470 = vadd.f32 %v2371, %v2469
  %v2471 = vpop.f32.mrf.mxu0
  %2472 = vmatprep.mubr.bf16.mxu0 0
  %2473 = vmatmul.mubr.bf16.gmra.mxu0 %v2387
  %v2474 = vpop.f32.mrf.mxu0
  %v2475 = vadd.f32 %v2371, %v2474
  %v2476 = vpop.f32.mrf.mxu0
  %v2477 = vpop.f32.mrf.mxu0
  %v2478 = vadd.f32 %v2371, %v2477
  %v2479 = vpop.f32.mrf.mxu0
  %2480 = vmatprep.mubr.bf16.mxu0 0
  %2481 = vmatmul.mubr.bf16.gmra.mxu0 %v2389
  %v2482 = vpop.f32.mrf.mxu0
  %v2483 = vadd.f32 %v2371, %v2482
  %v2484 = vpop.f32.mrf.mxu0
  %v2485 = vpop.f32.mrf.mxu0
  %v2486 = vadd.f32 %v2371, %v2485
  %v2487 = vpop.f32.mrf.mxu0
  %2488 = vmatprep.mubr.bf16.mxu0 0
  %2489 = vmatmul.mubr.bf16.gmra.mxu0 %v2391
  %v2490 = vpop.f32.mrf.mxu0
  %v2491 = vadd.f32 %v2371, %v2490
  %v2492 = vpop.f32.mrf.mxu0
  %v2493 = vpop.f32.mrf.mxu0
  %v2494 = vadd.f32 %v2371, %v2493
  %v2495 = vpop.f32.mrf.mxu0
  %2496 = vmatprep.mubr.bf16.mxu0 0
  %2497 = vmatmul.mubr.bf16.gmra.mxu0 %v2393
  %v2498 = vpop.f32.mrf.mxu0
  %v2499 = vadd.f32 %v2371, %v2498
  %v2500 = vpop.f32.mrf.mxu0
  %v2501 = vpop.f32.mrf.mxu0
  %v2502 = vadd.f32 %v2371, %v2501
  %v2503 = vpop.f32.mrf.mxu0
  %2504 = vmatprep.mubr.bf16.mxu0 0
  %2505 = vmatmul.mubr.bf16.gmra.mxu0 %v2395
  %v2506 = vpop.f32.mrf.mxu0
  %v2507 = vadd.f32 %v2371, %v2506
  %v2508 = vpop.f32.mrf.mxu0
  %v2509 = vpop.f32.mrf.mxu0
  %v2510 = vadd.f32 %v2371, %v2509
  %v2511 = vpop.f32.mrf.mxu0
  %2512 = vmatprep.mubr.bf16.mxu0 0
  %2513 = vmatmul.mubr.bf16.gmra.mxu0 %v2397
  %v2514 = vpop.f32.mrf.mxu0
  %v2515 = vadd.f32 %v2371, %v2514
  %v2516 = vpop.f32.mrf.mxu0
  %v2517 = vpop.f32.mrf.mxu0
  %v2518 = vadd.f32 %v2371, %v2517
  %v2519 = vpop.f32.mrf.mxu0
  %2520 = vmatprep.mubr.bf16.mxu0 0
  %2521 = vmatmul.mubr.bf16.gmra.mxu0 %v2399
  %v2522 = vpop.f32.mrf.mxu0
  %v2523 = vadd.f32 %v2371, %v2522
  %v2524 = vpop.f32.mrf.mxu0
  %v2525 = vpop.f32.mrf.mxu0
  %v2526 = vadd.f32 %v2371, %v2525
  %v2527 = vpop.f32.mrf.mxu0
  %2528 = vmatprep.mubr.bf16.mxu0 0
  %2529 = vmatmul.mubr.bf16.gmra.mxu0 %v2401
  %v2530 = vpop.f32.mrf.mxu0
  %v2531 = vadd.f32 %v2371, %v2530
  %v2532 = vpop.f32.mrf.mxu0
  %v2533 = vpop.f32.mrf.mxu0
  %v2534 = vadd.f32 %v2371, %v2533
  %v2535 = vpop.f32.mrf.mxu0
  %2536 = vmatprep.mubr.bf16.mxu0 0
  %2537 = vmatmul.mubr.bf16.gmra.mxu0 %v2403
  %v2538 = vpop.f32.mrf.mxu0
  %v2539 = vadd.f32 %v2371, %v2538
  %v2540 = vpop.f32.mrf.mxu0
  %v2541 = vpop.f32.mrf.mxu0
  %v2542 = vadd.f32 %v2371, %v2541
  %v2543 = vpop.f32.mrf.mxu0
  %2544 = vmatprep.mubr.bf16.mxu0 0
  %2545 = vmatmul.mubr.bf16.gmra.mxu0 %v2405
  %v2546 = vpop.f32.mrf.mxu0
  %v2547 = vadd.f32 %v2371, %v2546
  %v2548 = vpop.f32.mrf.mxu0
  %v2549 = vpop.f32.mrf.mxu0
  %v2550 = vadd.f32 %v2371, %v2549
  %v2551 = vpop.f32.mrf.mxu0
  %2552 = vmatprep.mubr.bf16.mxu0 0
  %2553 = vmatmul.mubr.bf16.gmra.mxu0 %v2407
  %v2554 = vpop.f32.mrf.mxu0
  %v2555 = vadd.f32 %v2371, %v2554
  %v2556 = vpop.f32.mrf.mxu0
  %v2557 = vpop.f32.mrf.mxu0
  %v2558 = vadd.f32 %v2371, %v2557
  %v2559 = vpop.f32.mrf.mxu0
  %2560 = vmatprep.mubr.bf16.mxu0 0
  %2561 = vmatmul.mubr.bf16.gmra.mxu0 %v2409
  %v2562 = vpop.f32.mrf.mxu0
  %v2563 = vadd.f32 %v2371, %v2562
  %v2564 = vpop.f32.mrf.mxu0
  %v2565 = vpop.f32.mrf.mxu0
  %v2566 = vadd.f32 %v2371, %v2565
  %v2567 = vpop.f32.mrf.mxu0
  %2568 = vmatprep.mubr.bf16.mxu0 0
  %2569 = vmatmul.mubr.bf16.gmra.mxu0 %v2411
  %v2570 = vpop.f32.mrf.mxu0
  %v2571 = vadd.f32 %v2371, %v2570
  %v2572 = vpop.f32.mrf.mxu0
  %v2573 = vpop.f32.mrf.mxu0
  %v2574 = vadd.f32 %v2371, %v2573
  %v2575 = vpop.f32.mrf.mxu0
  %2576 = vdwg.mxu0
  %v2577 = vsel %vm1220, %v2451, 0.0
  %v2578 = vsel %vm1220, %v2454, 0.0
  %v2579 = vadd.f32 %v2577, %v2578
  %v2580 = vsel %vm1220, %v2459, 0.0
  %v2581 = vadd.f32 %v2579, %v2580
  %v2582 = vsel %vm1220, %v2462, 0.0
  %v2583 = vadd.f32 %v2581, %v2582
  %v2584 = vsel %vm1220, %v2467, 0.0
  %v2585 = vadd.f32 %v2583, %v2584
  %v2586 = vsel %vm1220, %v2470, 0.0
  %v2587 = vadd.f32 %v2585, %v2586
  %v2588 = vsel %vm1220, %v2475, 0.0
  %v2589 = vadd.f32 %v2587, %v2588
  %v2590 = vsel %vm1220, %v2478, 0.0
  %v2591 = vadd.f32 %v2589, %v2590
  %v2592 = vsel %vm1220, %v2483, 0.0
  %v2593 = vadd.f32 %v2591, %v2592
  %v2594 = vsel %vm1220, %v2486, 0.0
  %v2595 = vadd.f32 %v2593, %v2594
  %v2596 = vsel %vm1220, %v2491, 0.0
  %v2597 = vadd.f32 %v2595, %v2596
  %v2598 = vsel %vm1220, %v2494, 0.0
  %v2599 = vadd.f32 %v2597, %v2598
  %v2600 = vsel %vm1220, %v2499, 0.0
  %v2601 = vadd.f32 %v2599, %v2600
  %v2602 = vsel %vm1220, %v2502, 0.0
  %v2603 = vadd.f32 %v2601, %v2602
  %v2604 = vsel %vm1220, %v2507, 0.0
  %v2605 = vadd.f32 %v2603, %v2604
  %v2606 = vsel %vm1220, %v2510, 0.0
  %v2607 = vadd.f32 %v2605, %v2606
  %v2608 = vsel %vm1220, %v2515, 0.0
  %v2609 = vadd.f32 %v2607, %v2608
  %v2610 = vsel %vm1220, %v2518, 0.0
  %v2611 = vadd.f32 %v2609, %v2610
  %v2612 = vsel %vm1220, %v2523, 0.0
  %v2613 = vadd.f32 %v2611, %v2612
  %v2614 = vsel %vm1220, %v2526, 0.0
  %v2615 = vadd.f32 %v2613, %v2614
  %v2616 = vsel %vm1220, %v2531, 0.0
  %v2617 = vadd.f32 %v2615, %v2616
  %v2618 = vsel %vm1220, %v2534, 0.0
  %v2619 = vadd.f32 %v2617, %v2618
  %v2620 = vsel %vm1220, %v2539, 0.0
  %v2621 = vadd.f32 %v2619, %v2620
  %v2622 = vsel %vm1220, %v2542, 0.0
  %v2623 = vadd.f32 %v2621, %v2622
  %v2624 = vsel %vm1220, %v2547, 0.0
  %v2625 = vadd.f32 %v2623, %v2624
  %v2626 = vsel %vm1220, %v2550, 0.0
  %v2627 = vadd.f32 %v2625, %v2626
  %v2628 = vsel %vm1220, %v2555, 0.0
  %v2629 = vadd.f32 %v2627, %v2628
  %v2630 = vsel %vm1220, %v2558, 0.0
  %v2631 = vadd.f32 %v2629, %v2630
  %v2632 = vsel %vm1220, %v2563, 0.0
  %v2633 = vadd.f32 %v2631, %v2632
  %v2634 = vsel %vm1220, %v2566, 0.0
  %v2635 = vadd.f32 %v2633, %v2634
  %v2636 = vsel %vm1220, %v2571, 0.0
  %v2637 = vadd.f32 %v2635, %v2636
  %v2638 = vsel %vm1220, %v2574, 0.0
  %v2639 = vadd.f32 %v2637, %v2638
  %v2640 = vrot.slane %v2639, 4
  %v2641 = vadd.f32 %v2639, %v2640
  %v2642 = vrot.slane %v2641, 2
  %v2643 = vadd.f32 %v2641, %v2642
  %v2644 = vrot.slane %v2643, 1
  %v2645 = vadd.f32 %v2643, %v2644
  %v2646 = vmul.f32 %v2451, %v2451
  %v2647 = vmul.f32 %v2454, %v2454
  %v2648 = vmul.f32 %v2459, %v2459
  %v2649 = vmul.f32 %v2462, %v2462
  %v2650 = vmul.f32 %v2467, %v2467
  %v2651 = vmul.f32 %v2470, %v2470
  %v2652 = vmul.f32 %v2475, %v2475
  %v2653 = vmul.f32 %v2478, %v2478
  %v2654 = vmul.f32 %v2483, %v2483
  %v2655 = vmul.f32 %v2486, %v2486
  %v2656 = vmul.f32 %v2491, %v2491
  %v2657 = vmul.f32 %v2494, %v2494
  %v2658 = vmul.f32 %v2499, %v2499
  %v2659 = vmul.f32 %v2502, %v2502
  %v2660 = vmul.f32 %v2507, %v2507
  %v2661 = vmul.f32 %v2510, %v2510
  %v2662 = vmul.f32 %v2515, %v2515
  %v2663 = vmul.f32 %v2518, %v2518
  %v2664 = vmul.f32 %v2523, %v2523
  %v2665 = vmul.f32 %v2526, %v2526
  %v2666 = vmul.f32 %v2531, %v2531
  %v2667 = vmul.f32 %v2534, %v2534
  %v2668 = vmul.f32 %v2539, %v2539
  %v2669 = vmul.f32 %v2542, %v2542
  %v2670 = vmul.f32 %v2547, %v2547
  %v2671 = vmul.f32 %v2550, %v2550
  %v2672 = vmul.f32 %v2555, %v2555
  %v2673 = vmul.f32 %v2558, %v2558
  %v2674 = vmul.f32 %v2563, %v2563
  %v2675 = vmul.f32 %v2566, %v2566
  %v2676 = vmul.f32 %v2571, %v2571
  %v2677 = vmul.f32 %v2574, %v2574
  %v2678 = vsel %vm1220, %v2646, 0.0
  %v2679 = vsel %vm1220, %v2647, 0.0
  %v2680 = vadd.f32 %v2678, %v2679
  %v2681 = vsel %vm1220, %v2648, 0.0
  %v2682 = vadd.f32 %v2680, %v2681
  %v2683 = vsel %vm1220, %v2649, 0.0
  %v2684 = vadd.f32 %v2682, %v2683
  %v2685 = vsel %vm1220, %v2650, 0.0
  %v2686 = vadd.f32 %v2684, %v2685
  %v2687 = vsel %vm1220, %v2651, 0.0
  %v2688 = vadd.f32 %v2686, %v2687
  %v2689 = vsel %vm1220, %v2652, 0.0
  %v2690 = vadd.f32 %v2688, %v2689
  %v2691 = vsel %vm1220, %v2653, 0.0
  %v2692 = vadd.f32 %v2690, %v2691
  %v2693 = vsel %vm1220, %v2654, 0.0
  %v2694 = vadd.f32 %v2692, %v2693
  %v2695 = vsel %vm1220, %v2655, 0.0
  %v2696 = vadd.f32 %v2694, %v2695
  %v2697 = vsel %vm1220, %v2656, 0.0
  %v2698 = vadd.f32 %v2696, %v2697
  %v2699 = vsel %vm1220, %v2657, 0.0
  %v2700 = vadd.f32 %v2698, %v2699
  %v2701 = vsel %vm1220, %v2658, 0.0
  %v2702 = vadd.f32 %v2700, %v2701
  %v2703 = vsel %vm1220, %v2659, 0.0
  %v2704 = vadd.f32 %v2702, %v2703
  %v2705 = vsel %vm1220, %v2660, 0.0
  %v2706 = vadd.f32 %v2704, %v2705
  %v2707 = vsel %vm1220, %v2661, 0.0
  %v2708 = vadd.f32 %v2706, %v2707
  %v2709 = vsel %vm1220, %v2662, 0.0
  %v2710 = vadd.f32 %v2708, %v2709
  %v2711 = vsel %vm1220, %v2663, 0.0
  %v2712 = vadd.f32 %v2710, %v2711
  %v2713 = vsel %vm1220, %v2664, 0.0
  %v2714 = vadd.f32 %v2712, %v2713
  %v2715 = vsel %vm1220, %v2665, 0.0
  %v2716 = vadd.f32 %v2714, %v2715
  %v2717 = vsel %vm1220, %v2666, 0.0
  %v2718 = vadd.f32 %v2716, %v2717
  %v2719 = vsel %vm1220, %v2667, 0.0
  %v2720 = vadd.f32 %v2718, %v2719
  %v2721 = vsel %vm1220, %v2668, 0.0
  %v2722 = vadd.f32 %v2720, %v2721
  %v2723 = vsel %vm1220, %v2669, 0.0
  %v2724 = vadd.f32 %v2722, %v2723
  %v2725 = vsel %vm1220, %v2670, 0.0
  %v2726 = vadd.f32 %v2724, %v2725
  %v2727 = vsel %vm1220, %v2671, 0.0
  %v2728 = vadd.f32 %v2726, %v2727
  %v2729 = vsel %vm1220, %v2672, 0.0
  %v2730 = vadd.f32 %v2728, %v2729
  %v2731 = vsel %vm1220, %v2673, 0.0
  %v2732 = vadd.f32 %v2730, %v2731
  %v2733 = vsel %vm1220, %v2674, 0.0
  %v2734 = vadd.f32 %v2732, %v2733
  %v2735 = vsel %vm1220, %v2675, 0.0
  %v2736 = vadd.f32 %v2734, %v2735
  %v2737 = vsel %vm1220, %v2676, 0.0
  %v2738 = vadd.f32 %v2736, %v2737
  %v2739 = vsel %vm1220, %v2677, 0.0
  %v2740 = vadd.f32 %v2738, %v2739
  %v2741 = vrot.slane %v2740, 4
  %v2742 = vadd.f32 %v2740, %v2741
  %v2743 = vrot.slane %v2742, 2
  %v2744 = vadd.f32 %v2742, %v2743
  %v2745 = vrot.slane %v2744, 1
  %v2746 = vadd.f32 %v2744, %v2745
  %v2747 = vmul.f32 %v2645, 0.00390625
  %v2748 = vmul.f32 %v2746, 0.00390625
  %v2749 = vmul.f32 %v2747, %v2747
  %v2750 = vsub.f32 %v2748, %v2749
  %v2751 = vmax.f32 %v2750, 0.0
  %v2752 = vadd.f32 %v2751, 1e-05
  %v2753 = vrsqrt.pop %v2752
  %v2754 = vld [vmem:[%s51 + $0x1] sm:$0x1]
  %v2755 = vmul.f32 %v2754, %v2753
  %v2756 = vld [vmem:[%s51 + $0x2] sm:$0x1]
  %v2757 = vmul.f32 %v2747, %v2755
  %v2758 = vsub.f32 %v2756, %v2757
  %v2759 = vlaneseq
  %v2760 = vshrl.u32 %v2759, 7
  %v2761 = vsub.s32 0, %v2760
  %v2762 = vrot.slane %v2755, %v2761
  %v2763 = vmul.f32 %v2451, %v2762
  %v2764 = vmul.f32 %v2454, %v2762
  %v2765 = vmul.f32 %v2459, %v2762
  %v2766 = vmul.f32 %v2462, %v2762
  %v2767 = vmul.f32 %v2467, %v2762
  %v2768 = vmul.f32 %v2470, %v2762
  %v2769 = vmul.f32 %v2475, %v2762
  %v2770 = vmul.f32 %v2478, %v2762
  %v2771 = vmul.f32 %v2483, %v2762
  %v2772 = vmul.f32 %v2486, %v2762
  %v2773 = vmul.f32 %v2491, %v2762
  %v2774 = vmul.f32 %v2494, %v2762
  %v2775 = vmul.f32 %v2499, %v2762
  %v2776 = vmul.f32 %v2502, %v2762
  %v2777 = vmul.f32 %v2507, %v2762
  %v2778 = vmul.f32 %v2510, %v2762
  %v2779 = vmul.f32 %v2515, %v2762
  %v2780 = vmul.f32 %v2518, %v2762
  %v2781 = vmul.f32 %v2523, %v2762
  %v2782 = vmul.f32 %v2526, %v2762
  %v2783 = vmul.f32 %v2531, %v2762
  %v2784 = vmul.f32 %v2534, %v2762
  %v2785 = vmul.f32 %v2539, %v2762
  %v2786 = vmul.f32 %v2542, %v2762
  %v2787 = vmul.f32 %v2547, %v2762
  %v2788 = vmul.f32 %v2550, %v2762
  %v2789 = vmul.f32 %v2555, %v2762
  %v2790 = vmul.f32 %v2558, %v2762
  %v2791 = vmul.f32 %v2563, %v2762
  %v2792 = vmul.f32 %v2566, %v2762
  %v2793 = vmul.f32 %v2571, %v2762
  %v2794 = vmul.f32 %v2574, %v2762
  %v2795 = vlaneseq
  %v2796 = vshrl.u32 %v2795, 7
  %v2797 = vsub.s32 0, %v2796
  %v2798 = vrot.slane %v2758, %v2797
  %v2799 = vadd.f32 %v2763, %v2798
  %v2800 = vadd.f32 %v2764, %v2798
  %v2801 = vadd.f32 %v2765, %v2798
  %v2802 = vadd.f32 %v2766, %v2798
  %v2803 = vadd.f32 %v2767, %v2798
  %v2804 = vadd.f32 %v2768, %v2798
  %v2805 = vadd.f32 %v2769, %v2798
  %v2806 = vadd.f32 %v2770, %v2798
  %v2807 = vadd.f32 %v2771, %v2798
  %v2808 = vadd.f32 %v2772, %v2798
  %v2809 = vadd.f32 %v2773, %v2798
  %v2810 = vadd.f32 %v2774, %v2798
  %v2811 = vadd.f32 %v2775, %v2798
  %v2812 = vadd.f32 %v2776, %v2798
  %v2813 = vadd.f32 %v2777, %v2798
  %v2814 = vadd.f32 %v2778, %v2798
  %v2815 = vadd.f32 %v2779, %v2798
  %v2816 = vadd.f32 %v2780, %v2798
  %v2817 = vadd.f32 %v2781, %v2798
  %v2818 = vadd.f32 %v2782, %v2798
  %v2819 = vadd.f32 %v2783, %v2798
  %v2820 = vadd.f32 %v2784, %v2798
  %v2821 = vadd.f32 %v2785, %v2798
  %v2822 = vadd.f32 %v2786, %v2798
  %v2823 = vadd.f32 %v2787, %v2798
  %v2824 = vadd.f32 %v2788, %v2798
  %v2825 = vadd.f32 %v2789, %v2798
  %v2826 = vadd.f32 %v2790, %v2798
  %v2827 = vadd.f32 %v2791, %v2798
  %v2828 = vadd.f32 %v2792, %v2798
  %v2829 = vadd.f32 %v2793, %v2798
  %v2830 = vadd.f32 %v2794, %v2798
  %v2831 = vmax.f32 %v2799, 0.0
  %v2832 = vmax.f32 %v2800, 0.0
  %v2833 = vmax.f32 %v2801, 0.0
  %v2834 = vmax.f32 %v2802, 0.0
  %v2835 = vmax.f32 %v2803, 0.0
  %v2836 = vmax.f32 %v2804, 0.0
  %v2837 = vmax.f32 %v2805, 0.0
  %v2838 = vmax.f32 %v2806, 0.0
  %v2839 = vmax.f32 %v2807, 0.0
  %v2840 = vmax.f32 %v2808, 0.0
  %v2841 = vmax.f32 %v2809, 0.0
  %v2842 = vmax.f32 %v2810, 0.0
  %v2843 = vmax.f32 %v2811, 0.0
  %v2844 = vmax.f32 %v2812, 0.0
  %v2845 = vmax.f32 %v2813, 0.0
  %v2846 = vmax.f32 %v2814, 0.0
  %v2847 = vmax.f32 %v2815, 0.0
  %v2848 = vmax.f32 %v2816, 0.0
  %v2849 = vmax.f32 %v2817, 0.0
  %v2850 = vmax.f32 %v2818, 0.0
  %v2851 = vmax.f32 %v2819, 0.0
  %v2852 = vmax.f32 %v2820, 0.0
  %v2853 = vmax.f32 %v2821, 0.0
  %v2854 = vmax.f32 %v2822, 0.0
  %v2855 = vmax.f32 %v2823, 0.0
  %v2856 = vmax.f32 %v2824, 0.0
  %v2857 = vmax.f32 %v2825, 0.0
  %v2858 = vmax.f32 %v2826, 0.0
  %v2859 = vmax.f32 %v2827, 0.0
  %v2860 = vmax.f32 %v2828, 0.0
  %v2861 = vmax.f32 %v2829, 0.0
  %v2862 = vmax.f32 %v2830, 0.0
  %v2863 = vpack.c.bf16 %v2832, %v2831
  %v2864 = vpack.c.bf16 %v2834, %v2833
  %v2865 = vpack.c.bf16 %v2836, %v2835
  %v2866 = vpack.c.bf16 %v2838, %v2837
  %v2867 = vpack.c.bf16 %v2840, %v2839
  %v2868 = vpack.c.bf16 %v2842, %v2841
  %v2869 = vpack.c.bf16 %v2844, %v2843
  %v2870 = vpack.c.bf16 %v2846, %v2845
  %v2871 = vpack.c.bf16 %v2848, %v2847
  %v2872 = vpack.c.bf16 %v2850, %v2849
  %v2873 = vpack.c.bf16 %v2852, %v2851
  %v2874 = vpack.c.bf16 %v2854, %v2853
  %v2875 = vpack.c.bf16 %v2856, %v2855
  %v2876 = vpack.c.bf16 %v2858, %v2857
  %v2877 = vpack.c.bf16 %v2860, %v2859
  %v2878 = vpack.c.bf16 %v2862, %v2861
  %2879 = vmatprep.subr.bf16.mxu0 0
  %2880 = vmatpush1.bf16.msra.mxu0 %v2870
  %2881 = vmatprep.subr.bf16.mxu0 0
  %2882 = vmatpush1.bf16.msra.mxu0 %v2869
  %2883 = vmatprep.subr.bf16.mxu0 0
  %2884 = vmatpush1.bf16.msra.mxu0 %v2868
  %2885 = vmatprep.subr.bf16.mxu0 0
  %2886 = vmatpush1.bf16.msra.mxu0 %v2867
  %2887 = vmatprep.subr.bf16.mxu0 0
  %2888 = vmatpush1.bf16.msra.mxu0 %v2866
  %2889 = vmatprep.subr.bf16.mxu0 0
  %2890 = vmatpush1.bf16.msra.mxu0 %v2865
  %2891 = vmatprep.subr.bf16.mxu0 0
  %2892 = vmatpush1.bf16.msra.mxu0 %v2864
  %2893 = vmatprep.subr.bf16.mxu0 0
  %2894 = vmatpush1.bf16.msra.mxu0 %v2863
  %2895 = vmatprep.subr.bf16.mxu0 0
  %2896 = vmatpush2.bf16.msra.mxu0 %v2878
  %2897 = vmatprep.subr.bf16.mxu0 0
  %2898 = vmatpush2.bf16.msra.mxu0 %v2877
  %2899 = vmatprep.subr.bf16.mxu0 0
  %2900 = vmatpush2.bf16.msra.mxu0 %v2876
  %2901 = vmatprep.subr.bf16.mxu0 0
  %2902 = vmatpush2.bf16.msra.mxu0 %v2875
  %2903 = vmatprep.subr.bf16.mxu0 0
  %2904 = vmatpush2.bf16.msra.mxu0 %v2874
  %2905 = vmatprep.subr.bf16.mxu0 0
  %2906 = vmatpush2.bf16.msra.mxu0 %v2873
  %2907 = vmatprep.subr.bf16.mxu0 0
  %2908 = vmatpush2.bf16.msra.mxu0 %v2872
  %2909 = vmatprep.subr.bf16.mxu0 0
  %2910 = vmatpush2.bf16.msra.mxu0 %v2871
  %2911 = vmatprep.mubr.bf16.mxu0 %v434
  %2912 = vmatmul.mubr.bf16.gmra.mxu0 %v433
  %v2913 = vpop.f32.mrf.mxu0
  %v2914 = vadd.f32 0.0, %v2913
  %v2915 = vpop.f32.mrf.mxu0
  %v2916 = vpop.f32.mrf.mxu0
  %v2917 = vadd.f32 0.0, %v2916
  %v2918 = vpop.f32.mrf.mxu0
  %2919 = vmatprep.mubr.bf16.mxu0 %v436
  %2920 = vmatmul.mubr.bf16.gmra.mxu0 %v435
  %v2921 = vpop.f32.mrf.mxu0
  %v2922 = vadd.f32 0.0, %v2921
  %v2923 = vpop.f32.mrf.mxu0
  %v2924 = vpop.f32.mrf.mxu0
  %v2925 = vadd.f32 0.0, %v2924
  %v2926 = vpop.f32.mrf.mxu0
  %2927 = vmatprep.mubr.bf16.mxu0 %v438
  %2928 = vmatmul.mubr.bf16.gmra.mxu0 %v437
  %v2929 = vpop.f32.mrf.mxu0
  %v2930 = vadd.f32 0.0, %v2929
  %v2931 = vpop.f32.mrf.mxu0
  %v2932 = vpop.f32.mrf.mxu0
  %v2933 = vadd.f32 0.0, %v2932
  %v2934 = vpop.f32.mrf.mxu0
  %2935 = vmatprep.mubr.bf16.mxu0 %v440
  %2936 = vmatmul.mubr.bf16.gmra.mxu0 %v439
  %v2937 = vpop.f32.mrf.mxu0
  %v2938 = vadd.f32 0.0, %v2937
  %v2939 = vpop.f32.mrf.mxu0
  %v2940 = vpop.f32.mrf.mxu0
  %v2941 = vadd.f32 0.0, %v2940
  %v2942 = vpop.f32.mrf.mxu0
  %2943 = vmatprep.mubr.bf16.mxu0 %v442
  %2944 = vmatmul.mubr.bf16.gmra.mxu0 %v441
  %v2945 = vpop.f32.mrf.mxu0
  %v2946 = vadd.f32 0.0, %v2945
  %v2947 = vpop.f32.mrf.mxu0
  %v2948 = vpop.f32.mrf.mxu0
  %v2949 = vadd.f32 0.0, %v2948
  %v2950 = vpop.f32.mrf.mxu0
  %2951 = vmatprep.mubr.bf16.mxu0 %v444
  %2952 = vmatmul.mubr.bf16.gmra.mxu0 %v443
  %v2953 = vpop.f32.mrf.mxu0
  %v2954 = vadd.f32 0.0, %v2953
  %v2955 = vpop.f32.mrf.mxu0
  %v2956 = vpop.f32.mrf.mxu0
  %v2957 = vadd.f32 0.0, %v2956
  %v2958 = vpop.f32.mrf.mxu0
  %2959 = vmatprep.mubr.bf16.mxu0 %v446
  %2960 = vmatmul.mubr.bf16.gmra.mxu0 %v445
  %v2961 = vpop.f32.mrf.mxu0
  %v2962 = vadd.f32 0.0, %v2961
  %v2963 = vpop.f32.mrf.mxu0
  %v2964 = vpop.f32.mrf.mxu0
  %v2965 = vadd.f32 0.0, %v2964
  %v2966 = vpop.f32.mrf.mxu0
  %2967 = vmatprep.mubr.bf16.mxu0 %v448
  %2968 = vmatmul.mubr.bf16.gmra.mxu0 %v447
  %v2969 = vpop.f32.mrf.mxu0
  %v2970 = vadd.f32 0.0, %v2969
  %v2971 = vpop.f32.mrf.mxu0
  %v2972 = vpop.f32.mrf.mxu0
  %v2973 = vadd.f32 0.0, %v2972
  %v2974 = vpop.f32.mrf.mxu0
  %2975 = vmatprep.mubr.bf16.mxu0 %v450
  %2976 = vmatmul.mubr.bf16.gmra.mxu0 %v449
  %v2977 = vpop.f32.mrf.mxu0
  %v2978 = vadd.f32 0.0, %v2977
  %v2979 = vpop.f32.mrf.mxu0
  %v2980 = vpop.f32.mrf.mxu0
  %v2981 = vadd.f32 0.0, %v2980
  %v2982 = vpop.f32.mrf.mxu0
  %2983 = vmatprep.mubr.bf16.mxu0 %v452
  %2984 = vmatmul.mubr.bf16.gmra.mxu0 %v451
  %v2985 = vpop.f32.mrf.mxu0
  %v2986 = vadd.f32 0.0, %v2985
  %v2987 = vpop.f32.mrf.mxu0
  %v2988 = vpop.f32.mrf.mxu0
  %v2989 = vadd.f32 0.0, %v2988
  %v2990 = vpop.f32.mrf.mxu0
  %2991 = vmatprep.mubr.bf16.mxu0 %v454
  %2992 = vmatmul.mubr.bf16.gmra.mxu0 %v453
  %v2993 = vpop.f32.mrf.mxu0
  %v2994 = vadd.f32 0.0, %v2993
  %v2995 = vpop.f32.mrf.mxu0
  %v2996 = vpop.f32.mrf.mxu0
  %v2997 = vadd.f32 0.0, %v2996
  %v2998 = vpop.f32.mrf.mxu0
  %2999 = vmatprep.mubr.bf16.mxu0 %v456
  %3000 = vmatmul.mubr.bf16.gmra.mxu0 %v455
  %v3001 = vpop.f32.mrf.mxu0
  %v3002 = vadd.f32 0.0, %v3001
  %v3003 = vpop.f32.mrf.mxu0
  %v3004 = vpop.f32.mrf.mxu0
  %v3005 = vadd.f32 0.0, %v3004
  %v3006 = vpop.f32.mrf.mxu0
  %3007 = vmatprep.mubr.bf16.mxu0 %v458
  %3008 = vmatmul.mubr.bf16.gmra.mxu0 %v457
  %v3009 = vpop.f32.mrf.mxu0
  %v3010 = vadd.f32 0.0, %v3009
  %v3011 = vpop.f32.mrf.mxu0
  %v3012 = vpop.f32.mrf.mxu0
  %v3013 = vadd.f32 0.0, %v3012
  %v3014 = vpop.f32.mrf.mxu0
  %3015 = vmatprep.mubr.bf16.mxu0 %v460
  %3016 = vmatmul.mubr.bf16.gmra.mxu0 %v459
  %v3017 = vpop.f32.mrf.mxu0
  %v3018 = vadd.f32 0.0, %v3017
  %v3019 = vpop.f32.mrf.mxu0
  %v3020 = vpop.f32.mrf.mxu0
  %v3021 = vadd.f32 0.0, %v3020
  %v3022 = vpop.f32.mrf.mxu0
  %3023 = vmatprep.mubr.bf16.mxu0 %v462
  %3024 = vmatmul.mubr.bf16.gmra.mxu0 %v461
  %v3025 = vpop.f32.mrf.mxu0
  %v3026 = vadd.f32 0.0, %v3025
  %v3027 = vpop.f32.mrf.mxu0
  %v3028 = vpop.f32.mrf.mxu0
  %v3029 = vadd.f32 0.0, %v3028
  %v3030 = vpop.f32.mrf.mxu0
  %3031 = vmatprep.mubr.bf16.mxu0 %v464
  %3032 = vmatmul.mubr.bf16.gmra.mxu0 %v463
  %v3033 = vpop.f32.mrf.mxu0
  %v3034 = vadd.f32 0.0, %v3033
  %v3035 = vpop.f32.mrf.mxu0
  %v3036 = vpop.f32.mrf.mxu0
  %v3037 = vadd.f32 0.0, %v3036
  %v3038 = vpop.f32.mrf.mxu0
  %3039 = vdwg.mxu0
  %v3040 = vpack.c.bf16 %v2917, %v2914
  %v3041 = vpack.c.bf16 %v2925, %v2922
  %v3042 = vpack.c.bf16 %v2933, %v2930
  %v3043 = vpack.c.bf16 %v2941, %v2938
  %v3044 = vpack.c.bf16 %v2949, %v2946
  %v3045 = vpack.c.bf16 %v2957, %v2954
  %v3046 = vpack.c.bf16 %v2965, %v2962
  %v3047 = vpack.c.bf16 %v2973, %v2970
  %v3048 = vpack.c.bf16 %v2981, %v2978
  %v3049 = vpack.c.bf16 %v2989, %v2986
  %v3050 = vpack.c.bf16 %v2997, %v2994
  %v3051 = vpack.c.bf16 %v3005, %v3002
  %v3052 = vpack.c.bf16 %v3013, %v3010
  %v3053 = vpack.c.bf16 %v3021, %v3018
  %v3054 = vpack.c.bf16 %v3029, %v3026
  %v3055 = vpack.c.bf16 %v3037, %v3034
  %3056 = vmatprep.subr.bf16.mxu0 0
  %3057 = vmatpush1.bf16.msra.mxu0 %v3047
  %3058 = vmatprep.subr.bf16.mxu0 0
  %3059 = vmatpush1.bf16.msra.mxu0 %v3046
  %3060 = vmatprep.subr.bf16.mxu0 0
  %3061 = vmatpush1.bf16.msra.mxu0 %v3045
  %3062 = vmatprep.subr.bf16.mxu0 0
  %3063 = vmatpush1.bf16.msra.mxu0 %v3044
  %3064 = vmatprep.subr.bf16.mxu0 0
  %3065 = vmatpush1.bf16.msra.mxu0 %v3043
  %3066 = vmatprep.subr.bf16.mxu0 0
  %3067 = vmatpush1.bf16.msra.mxu0 %v3042
  %3068 = vmatprep.subr.bf16.mxu0 0
  %3069 = vmatpush1.bf16.msra.mxu0 %v3041
  %3070 = vmatprep.subr.bf16.mxu0 0
  %3071 = vmatpush1.bf16.msra.mxu0 %v3040
  %3072 = vmatprep.subr.bf16.mxu0 0
  %3073 = vmatpush2.bf16.msra.mxu0 %v3055
  %3074 = vmatprep.subr.bf16.mxu0 0
  %3075 = vmatpush2.bf16.msra.mxu0 %v3054
  %3076 = vmatprep.subr.bf16.mxu0 0
  %3077 = vmatpush2.bf16.msra.mxu0 %v3053
  %3078 = vmatprep.subr.bf16.mxu0 0
  %3079 = vmatpush2.bf16.msra.mxu0 %v3052
  %3080 = vmatprep.subr.bf16.mxu0 0
  %3081 = vmatpush2.bf16.msra.mxu0 %v3051
  %3082 = vmatprep.subr.bf16.mxu0 0
  %3083 = vmatpush2.bf16.msra.mxu0 %v3050
  %3084 = vmatprep.subr.bf16.mxu0 0
  %3085 = vmatpush2.bf16.msra.mxu0 %v3049
  %3086 = vmatprep.subr.bf16.mxu0 0
  %3087 = vmatpush2.bf16.msra.mxu0 %v3048
  %3088 = vmatprep.mubr.bf16.mxu0 %v771
  %3089 = vmatmul.mubr.bf16.gmra.mxu0 %v770
  %v3090 = vpop.f32.mrf.mxu0
  %v3091 = vadd.f32 0.0, %v3090
  %v3092 = vpop.f32.mrf.mxu0
  %v3093 = vpop.f32.mrf.mxu0
  %v3094 = vadd.f32 0.0, %v3093
  %v3095 = vpop.f32.mrf.mxu0
  %3096 = vmatprep.mubr.bf16.mxu0 %v773
  %3097 = vmatmul.mubr.bf16.gmra.mxu0 %v772
  %v3098 = vpop.f32.mrf.mxu0
  %v3099 = vadd.f32 0.0, %v3098
  %v3100 = vpop.f32.mrf.mxu0
  %v3101 = vpop.f32.mrf.mxu0
  %v3102 = vadd.f32 0.0, %v3101
  %v3103 = vpop.f32.mrf.mxu0
  %3104 = vmatprep.mubr.bf16.mxu0 %v775
  %3105 = vmatmul.mubr.bf16.gmra.mxu0 %v774
  %v3106 = vpop.f32.mrf.mxu0
  %v3107 = vadd.f32 0.0, %v3106
  %v3108 = vpop.f32.mrf.mxu0
  %v3109 = vpop.f32.mrf.mxu0
  %v3110 = vadd.f32 0.0, %v3109
  %v3111 = vpop.f32.mrf.mxu0
  %3112 = vmatprep.mubr.bf16.mxu0 %v777
  %3113 = vmatmul.mubr.bf16.gmra.mxu0 %v776
  %v3114 = vpop.f32.mrf.mxu0
  %v3115 = vadd.f32 0.0, %v3114
  %v3116 = vpop.f32.mrf.mxu0
  %v3117 = vpop.f32.mrf.mxu0
  %v3118 = vadd.f32 0.0, %v3117
  %v3119 = vpop.f32.mrf.mxu0
  %3120 = vmatprep.mubr.bf16.mxu0 %v779
  %3121 = vmatmul.mubr.bf16.gmra.mxu0 %v778
  %v3122 = vpop.f32.mrf.mxu0
  %v3123 = vadd.f32 0.0, %v3122
  %v3124 = vpop.f32.mrf.mxu0
  %v3125 = vpop.f32.mrf.mxu0
  %v3126 = vadd.f32 0.0, %v3125
  %v3127 = vpop.f32.mrf.mxu0
  %3128 = vmatprep.mubr.bf16.mxu0 %v781
  %3129 = vmatmul.mubr.bf16.gmra.mxu0 %v780
  %v3130 = vpop.f32.mrf.mxu0
  %v3131 = vadd.f32 0.0, %v3130
  %v3132 = vpop.f32.mrf.mxu0
  %v3133 = vpop.f32.mrf.mxu0
  %v3134 = vadd.f32 0.0, %v3133
  %v3135 = vpop.f32.mrf.mxu0
  %3136 = vmatprep.mubr.bf16.mxu0 %v783
  %3137 = vmatmul.mubr.bf16.gmra.mxu0 %v782
  %v3138 = vpop.f32.mrf.mxu0
  %v3139 = vadd.f32 0.0, %v3138
  %v3140 = vpop.f32.mrf.mxu0
  %v3141 = vpop.f32.mrf.mxu0
  %v3142 = vadd.f32 0.0, %v3141
  %v3143 = vpop.f32.mrf.mxu0
  %3144 = vmatprep.mubr.bf16.mxu0 %v785
  %3145 = vmatmul.mubr.bf16.gmra.mxu0 %v784
  %v3146 = vpop.f32.mrf.mxu0
  %v3147 = vadd.f32 0.0, %v3146
  %v3148 = vpop.f32.mrf.mxu0
  %v3149 = vpop.f32.mrf.mxu0
  %v3150 = vadd.f32 0.0, %v3149
  %v3151 = vpop.f32.mrf.mxu0
  %3152 = vmatprep.mubr.bf16.mxu0 %v787
  %3153 = vmatmul.mubr.bf16.gmra.mxu0 %v786
  %v3154 = vpop.f32.mrf.mxu0
  %v3155 = vadd.f32 0.0, %v3154
  %v3156 = vpop.f32.mrf.mxu0
  %v3157 = vpop.f32.mrf.mxu0
  %v3158 = vadd.f32 0.0, %v3157
  %v3159 = vpop.f32.mrf.mxu0
  %3160 = vmatprep.mubr.bf16.mxu0 %v789
  %3161 = vmatmul.mubr.bf16.gmra.mxu0 %v788
  %v3162 = vpop.f32.mrf.mxu0
  %v3163 = vadd.f32 0.0, %v3162
  %v3164 = vpop.f32.mrf.mxu0
  %v3165 = vpop.f32.mrf.mxu0
  %v3166 = vadd.f32 0.0, %v3165
  %v3167 = vpop.f32.mrf.mxu0
  %3168 = vmatprep.mubr.bf16.mxu0 %v791
  %3169 = vmatmul.mubr.bf16.gmra.mxu0 %v790
  %v3170 = vpop.f32.mrf.mxu0
  %v3171 = vadd.f32 0.0, %v3170
  %v3172 = vpop.f32.mrf.mxu0
  %v3173 = vpop.f32.mrf.mxu0
  %v3174 = vadd.f32 0.0, %v3173
  %v3175 = vpop.f32.mrf.mxu0
  %3176 = vmatprep.mubr.bf16.mxu0 %v793
  %3177 = vmatmul.mubr.bf16.gmra.mxu0 %v792
  %v3178 = vpop.f32.mrf.mxu0
  %v3179 = vadd.f32 0.0, %v3178
  %v3180 = vpop.f32.mrf.mxu0
  %v3181 = vpop.f32.mrf.mxu0
  %v3182 = vadd.f32 0.0, %v3181
  %v3183 = vpop.f32.mrf.mxu0
  %3184 = vmatprep.mubr.bf16.mxu0 %v795
  %3185 = vmatmul.mubr.bf16.gmra.mxu0 %v794
  %v3186 = vpop.f32.mrf.mxu0
  %v3187 = vadd.f32 0.0, %v3186
  %v3188 = vpop.f32.mrf.mxu0
  %v3189 = vpop.f32.mrf.mxu0
  %v3190 = vadd.f32 0.0, %v3189
  %v3191 = vpop.f32.mrf.mxu0
  %3192 = vmatprep.mubr.bf16.mxu0 %v797
  %3193 = vmatmul.mubr.bf16.gmra.mxu0 %v796
  %v3194 = vpop.f32.mrf.mxu0
  %v3195 = vadd.f32 0.0, %v3194
  %v3196 = vpop.f32.mrf.mxu0
  %v3197 = vpop.f32.mrf.mxu0
  %v3198 = vadd.f32 0.0, %v3197
  %v3199 = vpop.f32.mrf.mxu0
  %3200 = vmatprep.mubr.bf16.mxu0 %v799
  %3201 = vmatmul.mubr.bf16.gmra.mxu0 %v798
  %v3202 = vpop.f32.mrf.mxu0
  %v3203 = vadd.f32 0.0, %v3202
  %v3204 = vpop.f32.mrf.mxu0
  %v3205 = vpop.f32.mrf.mxu0
  %v3206 = vadd.f32 0.0, %v3205
  %v3207 = vpop.f32.mrf.mxu0
  %3208 = vmatprep.mubr.bf16.mxu0 %v801
  %3209 = vmatmul.mubr.bf16.gmra.mxu0 %v800
  %v3210 = vpop.f32.mrf.mxu0
  %v3211 = vadd.f32 0.0, %v3210
  %v3212 = vpop.f32.mrf.mxu0
  %v3213 = vpop.f32.mrf.mxu0
  %v3214 = vadd.f32 0.0, %v3213
  %v3215 = vpop.f32.mrf.mxu0
  %3216 = vdwg.mxu0
  %v3217 = vunpack.c.l.bf16 %v2863
  %v3218 = vunpack.c.h.bf16 %v2863
  %v3219 = vunpack.c.l.bf16 %v2864
  %v3220 = vunpack.c.h.bf16 %v2864
  %v3221 = vunpack.c.l.bf16 %v2865
  %v3222 = vunpack.c.h.bf16 %v2865
  %v3223 = vunpack.c.l.bf16 %v2866
  %v3224 = vunpack.c.h.bf16 %v2866
  %v3225 = vunpack.c.l.bf16 %v2867
  %v3226 = vunpack.c.h.bf16 %v2867
  %v3227 = vunpack.c.l.bf16 %v2868
  %v3228 = vunpack.c.h.bf16 %v2868
  %v3229 = vunpack.c.l.bf16 %v2869
  %v3230 = vunpack.c.h.bf16 %v2869
  %v3231 = vunpack.c.l.bf16 %v2870
  %v3232 = vunpack.c.h.bf16 %v2870
  %v3233 = vunpack.c.l.bf16 %v2871
  %v3234 = vunpack.c.h.bf16 %v2871
  %v3235 = vunpack.c.l.bf16 %v2872
  %v3236 = vunpack.c.h.bf16 %v2872
  %v3237 = vunpack.c.l.bf16 %v2873
  %v3238 = vunpack.c.h.bf16 %v2873
  %v3239 = vunpack.c.l.bf16 %v2874
  %v3240 = vunpack.c.h.bf16 %v2874
  %v3241 = vunpack.c.l.bf16 %v2875
  %v3242 = vunpack.c.h.bf16 %v2875
  %v3243 = vunpack.c.l.bf16 %v2876
  %v3244 = vunpack.c.h.bf16 %v2876
  %v3245 = vunpack.c.l.bf16 %v2877
  %v3246 = vunpack.c.h.bf16 %v2877
  %v3247 = vunpack.c.l.bf16 %v2878
  %v3248 = vunpack.c.h.bf16 %v2878
  %v3249 = vsub.f32 %v3091, %v3217
  %v3250 = vsub.f32 %v3094, %v3218
  %v3251 = vsub.f32 %v3099, %v3219
  %v3252 = vsub.f32 %v3102, %v3220
  %v3253 = vsub.f32 %v3107, %v3221
  %v3254 = vsub.f32 %v3110, %v3222
  %v3255 = vsub.f32 %v3115, %v3223
  %v3256 = vsub.f32 %v3118, %v3224
  %v3257 = vsub.f32 %v3123, %v3225
  %v3258 = vsub.f32 %v3126, %v3226
  %v3259 = vsub.f32 %v3131, %v3227
  %v3260 = vsub.f32 %v3134, %v3228
  %v3261 = vsub.f32 %v3139, %v3229
  %v3262 = vsub.f32 %v3142, %v3230
  %v3263 = vsub.f32 %v3147, %v3231
  %v3264 = vsub.f32 %v3150, %v3232
  %v3265 = vsub.f32 %v3155, %v3233
  %v3266 = vsub.f32 %v3158, %v3234
  %v3267 = vsub.f32 %v3163, %v3235
  %v3268 = vsub.f32 %v3166, %v3236
  %v3269 = vsub.f32 %v3171, %v3237
  %v3270 = vsub.f32 %v3174, %v3238
  %v3271 = vsub.f32 %v3179, %v3239
  %v3272 = vsub.f32 %v3182, %v3240
  %v3273 = vsub.f32 %v3187, %v3241
  %v3274 = vsub.f32 %v3190, %v3242
  %v3275 = vsub.f32 %v3195, %v3243
  %v3276 = vsub.f32 %v3198, %v3244
  %v3277 = vsub.f32 %v3203, %v3245
  %v3278 = vsub.f32 %v3206, %v3246
  %v3279 = vsub.f32 %v3211, %v3247
  %v3280 = vsub.f32 %v3214, %v3248
  %v3281 = vpack.c.bf16 %v3250, %v3249
  %v3282 = vpack.c.bf16 %v3252, %v3251
  %v3283 = vpack.c.bf16 %v3254, %v3253
  %v3284 = vpack.c.bf16 %v3256, %v3255
  %v3285 = vpack.c.bf16 %v3258, %v3257
  %v3286 = vpack.c.bf16 %v3260, %v3259
  %v3287 = vpack.c.bf16 %v3262, %v3261
  %v3288 = vpack.c.bf16 %v3264, %v3263
  %v3289 = vpack.c.bf16 %v3266, %v3265
  %v3290 = vpack.c.bf16 %v3268, %v3267
  %v3291 = vpack.c.bf16 %v3270, %v3269
  %v3292 = vpack.c.bf16 %v3272, %v3271
  %v3293 = vpack.c.bf16 %v3274, %v3273
  %v3294 = vpack.c.bf16 %v3276, %v3275
  %v3295 = vpack.c.bf16 %v3278, %v3277
  %v3296 = vpack.c.bf16 %v3280, %v3279
  %3313 = vrot.lane.b32.xlu0 %v3040, 16
  %v3314 = vpop.permute.xlu0 %3313
  %3315 = vrot.lane.b32.xlu0 %v3041, 16
  %v3316 = vpop.permute.xlu0 %3315
  %3317 = vrot.lane.b32.xlu0 %v3042, 16
  %v3318 = vpop.permute.xlu0 %3317
  %3319 = vrot.lane.b32.xlu0 %v3043, 16
  %v3320 = vpop.permute.xlu0 %3319
  %3321 = vrot.lane.b32.xlu0 %v3044, 16
  %v3322 = vpop.permute.xlu0 %3321
  %3323 = vrot.lane.b32.xlu0 %v3045, 16
  %v3324 = vpop.permute.xlu0 %3323
  %3325 = vrot.lane.b32.xlu0 %v3046, 16
  %v3326 = vpop.permute.xlu0 %3325
  %3327 = vrot.lane.b32.xlu0 %v3047, 16
  %v3328 = vpop.permute.xlu0 %3327
  %3329 = vrot.lane.b32.xlu0 %v3048, 16
  %v3330 = vpop.permute.xlu0 %3329
  %3331 = vrot.lane.b32.xlu0 %v3049, 16
  %v3332 = vpop.permute.xlu0 %3331
  %3333 = vrot.lane.b32.xlu0 %v3050, 16
  %v3334 = vpop.permute.xlu0 %3333
  %3335 = vrot.lane.b32.xlu0 %v3051, 16
  %v3336 = vpop.permute.xlu0 %3335
  %3337 = vrot.lane.b32.xlu0 %v3052, 16
  %v3338 = vpop.permute.xlu0 %3337
  %3339 = vrot.lane.b32.xlu0 %v3053, 16
  %v3340 = vpop.permute.xlu0 %3339
  %3341 = vrot.lane.b32.xlu0 %v3054, 16
  %v3342 = vpop.permute.xlu0 %3341
  %3343 = vrot.lane.b32.xlu0 %v3055, 16
  %v3344 = vpop.permute.xlu0 %3343
  %3361 = vrot.lane.b32.xlu0 %v3281, 32
  %v3362 = vpop.permute.xlu0 %3361
  %3363 = vrot.lane.b32.xlu0 %v3282, 32
  %v3364 = vpop.permute.xlu0 %3363
  %3365 = vrot.lane.b32.xlu0 %v3283, 32
  %v3366 = vpop.permute.xlu0 %3365
  %3367 = vrot.lane.b32.xlu0 %v3284, 32
  %v3368 = vpop.permute.xlu0 %3367
  %3369 = vrot.lane.b32.xlu0 %v3285, 32
  %v3370 = vpop.permute.xlu0 %3369
  %3371 = vrot.lane.b32.xlu0 %v3286, 32
  %v3372 = vpop.permute.xlu0 %3371
  %3373 = vrot.lane.b32.xlu0 %v3287, 32
  %v3374 = vpop.permute.xlu0 %3373
  %3375 = vrot.lane.b32.xlu0 %v3288, 32
  %v3376 = vpop.permute.xlu0 %3375
  %3377 = vrot.lane.b32.xlu0 %v3289, 32
  %v3378 = vpop.permute.xlu0 %3377
  %3379 = vrot.lane.b32.xlu0 %v3290, 32
  %v3380 = vpop.permute.xlu0 %3379
  %3381 = vrot.lane.b32.xlu0 %v3291, 32
  %v3382 = vpop.permute.xlu0 %3381
  %3383 = vrot.lane.b32.xlu0 %v3292, 32
  %v3384 = vpop.permute.xlu0 %3383
  %3385 = vrot.lane.b32.xlu0 %v3293, 32
  %v3386 = vpop.permute.xlu0 %3385
  %3387 = vrot.lane.b32.xlu0 %v3294, 32
  %v3388 = vpop.permute.xlu0 %3387
  %3389 = vrot.lane.b32.xlu0 %v3295, 32
  %v3390 = vpop.permute.xlu0 %3389
  %3391 = vrot.lane.b32.xlu0 %v3296, 32
  %v3392 = vpop.permute.xlu0 %3391
  %v3395 = vsel %vm1220, %v2863, %v3314
  %v3398 = vsel %vm1220, %v2864, %v3316
  %v3401 = vsel %vm1220, %v2865, %v3318
  %v3404 = vsel %vm1220, %v2866, %v3320
  %v3407 = vsel %vm1220, %v2867, %v3322
  %v3410 = vsel %vm1220, %v2868, %v3324
  %v3413 = vsel %vm1220, %v2869, %v3326
  %v3416 = vsel %vm1220, %v2870, %v3328
  %v3419 = vsel %vm1220, %v2871, %v3330
  %v3422 = vsel %vm1220, %v2872, %v3332
  %v3425 = vsel %vm1220, %v2873, %v3334
  %v3428 = vsel %vm1220, %v2874, %v3336
  %v3431 = vsel %vm1220, %v2875, %v3338
  %v3434 = vsel %vm1220, %v2876, %v3340
  %v3437 = vsel %vm1220, %v2877, %v3342
  %v3440 = vsel %vm1220, %v2878, %v3344
  %vm3441 = vcmask 261120
  %v3443 = vsel %vm3441, %v3395, %v3362
  %v3445 = vsel %vm3441, %v3398, %v3364
  %v3447 = vsel %vm3441, %v3401, %v3366
  %v3449 = vsel %vm3441, %v3404, %v3368
  %v3451 = vsel %vm3441, %v3407, %v3370
  %v3453 = vsel %vm3441, %v3410, %v3372
  %v3455 = vsel %vm3441, %v3413, %v3374
  %v3457 = vsel %vm3441, %v3416, %v3376
  %v3459 = vsel %vm3441, %v3419, %v3378
  %v3461 = vsel %vm3441, %v3422, %v3380
  %v3463 = vsel %vm3441, %v3425, %v3382
  %v3465 = vsel %vm3441, %v3428, %v3384
  %v3467 = vsel %vm3441, %v3431, %v3386
  %v3469 = vsel %vm3441, %v3434, %v3388
  %v3471 = vsel %vm3441, %v3437, %v3390
  %v3473 = vsel %vm3441, %v3440, %v3392
  %v3474 = vld [vmem:[%s27] sm:$0xf]
  %v3475 = vld [vmem:[%s27 + $0x4] sm:$0xf]
  %v3476 = vld [vmem:[%s27 + $0x8] sm:$0xf]
  %v3477 = vld [vmem:[%s27 + $0xc] sm:$0xf]
  %v3478 = vld [vmem:[%s27 + $0x10] sm:$0xf]
  %v3479 = vld [vmem:[%s27 + $0x14] sm:$0xf]
  %v3480 = vld [vmem:[%s53] sm:$0x1]
  %v3481 = vlaneseq
  %v3482 = vshrl.u32 %v3481, 7
  %v3483 = vsub.s32 0, %v3482
  %v3484 = vrot.slane %v3480, %v3483
  %v3491 = vunpack.c.l.b16 %v3474
  %v3492 = vunpack.c.l.b16 %v3475
  %v3493 = vunpack.c.l.b16 %v3476
  %v3494 = vunpack.c.l.b16 %v3477
  %v3495 = vunpack.c.l.b16 %v3478
  %v3496 = vunpack.c.l.b16 %v3479
  %v3497 = vpack.c.b16 %v3492, %v3491
  %v3498 = vpack.c.b16 %v3494, %v3493
  %v3499 = vpack.c.b16 %v3496, %v3495
  %vm3503 = vcmask 392192
  %v3504 = vsel %vm3503, %v3443, 0
  %v3506 = vsel %vm3503, %v3445, 0
  %v3508 = vsel %vm3503, %v3447, 0
  %v3510 = vsel %vm3503, %v3449, 0
  %v3512 = vsel %vm3503, %v3451, 0
  %v3514 = vsel %vm3503, %v3453, 0
  %v3516 = vsel %vm3503, %v3455, 0
  %v3518 = vsel %vm3503, %v3457, 0
  %v3520 = vsel %vm3503, %v3459, 0
  %v3522 = vsel %vm3503, %v3461, 0
  %v3524 = vsel %vm3503, %v3463, 0
  %v3526 = vsel %vm3503, %v3465, 0
  %v3528 = vsel %vm3503, %v3467, 0
  %v3530 = vsel %vm3503, %v3469, 0
  %v3532 = vsel %vm3503, %v3471, 0
  %v3534 = vsel %vm3503, %v3473, 0
  %3536 = vmatprep.subr.bf16.mxu0 0
  %3537 = vmatpush1.bf16.msra.mxu0 0
  %3538 = vmatprep.subr.bf16.mxu0 0
  %3539 = vmatpush1.bf16.msra.mxu0 0
  %3540 = vmatprep.subr.bf16.mxu0 0
  %3541 = vmatpush1.bf16.msra.mxu0 0
  %3542 = vmatprep.subr.bf16.mxu0 0
  %3543 = vmatpush1.bf16.msra.mxu0 0
  %3544 = vmatprep.subr.bf16.mxu0 0
  %3545 = vmatpush1.bf16.msra.mxu0 0
  %3546 = vmatprep.subr.bf16.mxu0 0
  %3547 = vmatpush1.bf16.msra.mxu0 %v3499
  %3548 = vmatprep.subr.bf16.mxu0 0
  %3549 = vmatpush1.bf16.msra.mxu0 %v3498
  %3550 = vmatprep.subr.bf16.mxu0 0
  %3551 = vmatpush1.bf16.msra.mxu0 %v3497
  %3552 = vmatprep.subr.bf16.mxu0 0
  %3553 = vmatpush2.bf16.msra.mxu0 0
  %3554 = vmatprep.subr.bf16.mxu0 0
  %3555 = vmatpush2.bf16.msra.mxu0 0
  %3556 = vmatprep.subr.bf16.mxu0 0
  %3557 = vmatpush2.bf16.msra.mxu0 0
  %3558 = vmatprep.subr.bf16.mxu0 0
  %3559 = vmatpush2.bf16.msra.mxu0 0
  %3560 = vmatprep.subr.bf16.mxu0 0
  %3561 = vmatpush2.bf16.msra.mxu0 0
  %3562 = vmatprep.subr.bf16.mxu0 0
  %3563 = vmatpush2.bf16.msra.mxu0 0
  %3564 = vmatprep.subr.bf16.mxu0 0
  %3565 = vmatpush2.bf16.msra.mxu0 0
  %3566 = vmatprep.subr.bf16.mxu0 0
  %3567 = vmatpush2.bf16.msra.mxu0 0
  %3568 = vmatprep.mubr.bf16.mxu0 0
  %3569 = vmatmul.mubr.bf16.gmra.mxu0 %v3504
  %v3570 = vpop.f32.mrf.mxu0
  %v3571 = vadd.f32 %v3484, %v3570
  %v3572 = vpop.f32.mrf.mxu0
  %v3573 = vpop.f32.mrf.mxu0
  %v3574 = vadd.f32 %v3484, %v3573
  %v3575 = vpop.f32.mrf.mxu0
  %3576 = vmatprep.mubr.bf16.mxu0 0
  %3577 = vmatmul.mubr.bf16.gmra.mxu0 %v3506
  %v3578 = vpop.f32.mrf.mxu0
  %v3579 = vadd.f32 %v3484, %v3578
  %v3580 = vpop.f32.mrf.mxu0
  %v3581 = vpop.f32.mrf.mxu0
  %v3582 = vadd.f32 %v3484, %v3581
  %v3583 = vpop.f32.mrf.mxu0
  %3584 = vmatprep.mubr.bf16.mxu0 0
  %3585 = vmatmul.mubr.bf16.gmra.mxu0 %v3508
  %v3586 = vpop.f32.mrf.mxu0
  %v3587 = vadd.f32 %v3484, %v3586
  %v3588 = vpop.f32.mrf.mxu0
  %v3589 = vpop.f32.mrf.mxu0
  %v3590 = vadd.f32 %v3484, %v3589
  %v3591 = vpop.f32.mrf.mxu0
  %3592 = vmatprep.mubr.bf16.mxu0 0
  %3593 = vmatmul.mubr.bf16.gmra.mxu0 %v3510
  %v3594 = vpop.f32.mrf.mxu0
  %v3595 = vadd.f32 %v3484, %v3594
  %v3596 = vpop.f32.mrf.mxu0
  %v3597 = vpop.f32.mrf.mxu0
  %v3598 = vadd.f32 %v3484, %v3597
  %v3599 = vpop.f32.mrf.mxu0
  %3600 = vmatprep.mubr.bf16.mxu0 0
  %3601 = vmatmul.mubr.bf16.gmra.mxu0 %v3512
  %v3602 = vpop.f32.mrf.mxu0
  %v3603 = vadd.f32 %v3484, %v3602
  %v3604 = vpop.f32.mrf.mxu0
  %v3605 = vpop.f32.mrf.mxu0
  %v3606 = vadd.f32 %v3484, %v3605
  %v3607 = vpop.f32.mrf.mxu0
  %3608 = vmatprep.mubr.bf16.mxu0 0
  %3609 = vmatmul.mubr.bf16.gmra.mxu0 %v3514
  %v3610 = vpop.f32.mrf.mxu0
  %v3611 = vadd.f32 %v3484, %v3610
  %v3612 = vpop.f32.mrf.mxu0
  %v3613 = vpop.f32.mrf.mxu0
  %v3614 = vadd.f32 %v3484, %v3613
  %v3615 = vpop.f32.mrf.mxu0
  %3616 = vmatprep.mubr.bf16.mxu0 0
  %3617 = vmatmul.mubr.bf16.gmra.mxu0 %v3516
  %v3618 = vpop.f32.mrf.mxu0
  %v3619 = vadd.f32 %v3484, %v3618
  %v3620 = vpop.f32.mrf.mxu0
  %v3621 = vpop.f32.mrf.mxu0
  %v3622 = vadd.f32 %v3484, %v3621
  %v3623 = vpop.f32.mrf.mxu0
  %3624 = vmatprep.mubr.bf16.mxu0 0
  %3625 = vmatmul.mubr.bf16.gmra.mxu0 %v3518
  %v3626 = vpop.f32.mrf.mxu0
  %v3627 = vadd.f32 %v3484, %v3626
  %v3628 = vpop.f32.mrf.mxu0
  %v3629 = vpop.f32.mrf.mxu0
  %v3630 = vadd.f32 %v3484, %v3629
  %v3631 = vpop.f32.mrf.mxu0
  %3632 = vmatprep.mubr.bf16.mxu0 0
  %3633 = vmatmul.mubr.bf16.gmra.mxu0 %v3520
  %v3634 = vpop.f32.mrf.mxu0
  %v3635 = vadd.f32 %v3484, %v3634
  %v3636 = vpop.f32.mrf.mxu0
  %v3637 = vpop.f32.mrf.mxu0
  %v3638 = vadd.f32 %v3484, %v3637
  %v3639 = vpop.f32.mrf.mxu0
  %3640 = vmatprep.mubr.bf16.mxu0 0
  %3641 = vmatmul.mubr.bf16.gmra.mxu0 %v3522
  %v3642 = vpop.f32.mrf.mxu0
  %v3643 = vadd.f32 %v3484, %v3642
  %v3644 = vpop.f32.mrf.mxu0
  %v3645 = vpop.f32.mrf.mxu0
  %v3646 = vadd.f32 %v3484, %v3645
  %v3647 = vpop.f32.mrf.mxu0
  %3648 = vmatprep.mubr.bf16.mxu0 0
  %3649 = vmatmul.mubr.bf16.gmra.mxu0 %v3524
  %v3650 = vpop.f32.mrf.mxu0
  %v3651 = vadd.f32 %v3484, %v3650
  %v3652 = vpop.f32.mrf.mxu0
  %v3653 = vpop.f32.mrf.mxu0
  %v3654 = vadd.f32 %v3484, %v3653
  %v3655 = vpop.f32.mrf.mxu0
  %3656 = vmatprep.mubr.bf16.mxu0 0
  %3657 = vmatmul.mubr.bf16.gmra.mxu0 %v3526
  %v3658 = vpop.f32.mrf.mxu0
  %v3659 = vadd.f32 %v3484, %v3658
  %v3660 = vpop.f32.mrf.mxu0
  %v3661 = vpop.f32.mrf.mxu0
  %v3662 = vadd.f32 %v3484, %v3661
  %v3663 = vpop.f32.mrf.mxu0
  %3664 = vmatprep.mubr.bf16.mxu0 0
  %3665 = vmatmul.mubr.bf16.gmra.mxu0 %v3528
  %v3666 = vpop.f32.mrf.mxu0
  %v3667 = vadd.f32 %v3484, %v3666
  %v3668 = vpop.f32.mrf.mxu0
  %v3669 = vpop.f32.mrf.mxu0
  %v3670 = vadd.f32 %v3484, %v3669
  %v3671 = vpop.f32.mrf.mxu0
  %3672 = vmatprep.mubr.bf16.mxu0 0
  %3673 = vmatmul.mubr.bf16.gmra.mxu0 %v3530
  %v3674 = vpop.f32.mrf.mxu0
  %v3675 = vadd.f32 %v3484, %v3674
  %v3676 = vpop.f32.mrf.mxu0
  %v3677 = vpop.f32.mrf.mxu0
  %v3678 = vadd.f32 %v3484, %v3677
  %v3679 = vpop.f32.mrf.mxu0
  %3680 = vmatprep.mubr.bf16.mxu0 0
  %3681 = vmatmul.mubr.bf16.gmra.mxu0 %v3532
  %v3682 = vpop.f32.mrf.mxu0
  %v3683 = vadd.f32 %v3484, %v3682
  %v3684 = vpop.f32.mrf.mxu0
  %v3685 = vpop.f32.mrf.mxu0
  %v3686 = vadd.f32 %v3484, %v3685
  %v3687 = vpop.f32.mrf.mxu0
  %3688 = vmatprep.mubr.bf16.mxu0 0
  %3689 = vmatmul.mubr.bf16.gmra.mxu0 %v3534
  %v3690 = vpop.f32.mrf.mxu0
  %v3691 = vadd.f32 %v3484, %v3690
  %v3692 = vpop.f32.mrf.mxu0
  %v3693 = vpop.f32.mrf.mxu0
  %v3694 = vadd.f32 %v3484, %v3693
  %v3695 = vpop.f32.mrf.mxu0
  %3696 = vdwg.mxu0
  %v3697 = vsel %vm1220, %v3571, 0.0
  %v3698 = vsel %vm1220, %v3574, 0.0
  %v3699 = vadd.f32 %v3697, %v3698
  %v3700 = vsel %vm1220, %v3579, 0.0
  %v3701 = vadd.f32 %v3699, %v3700
  %v3702 = vsel %vm1220, %v3582, 0.0
  %v3703 = vadd.f32 %v3701, %v3702
  %v3704 = vsel %vm1220, %v3587, 0.0
  %v3705 = vadd.f32 %v3703, %v3704
  %v3706 = vsel %vm1220, %v3590, 0.0
  %v3707 = vadd.f32 %v3705, %v3706
  %v3708 = vsel %vm1220, %v3595, 0.0
  %v3709 = vadd.f32 %v3707, %v3708
  %v3710 = vsel %vm1220, %v3598, 0.0
  %v3711 = vadd.f32 %v3709, %v3710
  %v3712 = vsel %vm1220, %v3603, 0.0
  %v3713 = vadd.f32 %v3711, %v3712
  %v3714 = vsel %vm1220, %v3606, 0.0
  %v3715 = vadd.f32 %v3713, %v3714
  %v3716 = vsel %vm1220, %v3611, 0.0
  %v3717 = vadd.f32 %v3715, %v3716
  %v3718 = vsel %vm1220, %v3614, 0.0
  %v3719 = vadd.f32 %v3717, %v3718
  %v3720 = vsel %vm1220, %v3619, 0.0
  %v3721 = vadd.f32 %v3719, %v3720
  %v3722 = vsel %vm1220, %v3622, 0.0
  %v3723 = vadd.f32 %v3721, %v3722
  %v3724 = vsel %vm1220, %v3627, 0.0
  %v3725 = vadd.f32 %v3723, %v3724
  %v3726 = vsel %vm1220, %v3630, 0.0
  %v3727 = vadd.f32 %v3725, %v3726
  %v3728 = vsel %vm1220, %v3635, 0.0
  %v3729 = vadd.f32 %v3727, %v3728
  %v3730 = vsel %vm1220, %v3638, 0.0
  %v3731 = vadd.f32 %v3729, %v3730
  %v3732 = vsel %vm1220, %v3643, 0.0
  %v3733 = vadd.f32 %v3731, %v3732
  %v3734 = vsel %vm1220, %v3646, 0.0
  %v3735 = vadd.f32 %v3733, %v3734
  %v3736 = vsel %vm1220, %v3651, 0.0
  %v3737 = vadd.f32 %v3735, %v3736
  %v3738 = vsel %vm1220, %v3654, 0.0
  %v3739 = vadd.f32 %v3737, %v3738
  %v3740 = vsel %vm1220, %v3659, 0.0
  %v3741 = vadd.f32 %v3739, %v3740
  %v3742 = vsel %vm1220, %v3662, 0.0
  %v3743 = vadd.f32 %v3741, %v3742
  %v3744 = vsel %vm1220, %v3667, 0.0
  %v3745 = vadd.f32 %v3743, %v3744
  %v3746 = vsel %vm1220, %v3670, 0.0
  %v3747 = vadd.f32 %v3745, %v3746
  %v3748 = vsel %vm1220, %v3675, 0.0
  %v3749 = vadd.f32 %v3747, %v3748
  %v3750 = vsel %vm1220, %v3678, 0.0
  %v3751 = vadd.f32 %v3749, %v3750
  %v3752 = vsel %vm1220, %v3683, 0.0
  %v3753 = vadd.f32 %v3751, %v3752
  %v3754 = vsel %vm1220, %v3686, 0.0
  %v3755 = vadd.f32 %v3753, %v3754
  %v3756 = vsel %vm1220, %v3691, 0.0
  %v3757 = vadd.f32 %v3755, %v3756
  %v3758 = vsel %vm1220, %v3694, 0.0
  %v3759 = vadd.f32 %v3757, %v3758
  %v3760 = vrot.slane %v3759, 4
  %v3761 = vadd.f32 %v3759, %v3760
  %v3762 = vrot.slane %v3761, 2
  %v3763 = vadd.f32 %v3761, %v3762
  %v3764 = vrot.slane %v3763, 1
  %v3765 = vadd.f32 %v3763, %v3764
  %v3766 = vmul.f32 %v3571, %v3571
  %v3767 = vmul.f32 %v3574, %v3574
  %v3768 = vmul.f32 %v3579, %v3579
  %v3769 = vmul.f32 %v3582, %v3582
  %v3770 = vmul.f32 %v3587, %v3587
  %v3771 = vmul.f32 %v3590, %v3590
  %v3772 = vmul.f32 %v3595, %v3595
  %v3773 = vmul.f32 %v3598, %v3598
  %v3774 = vmul.f32 %v3603, %v3603
  %v3775 = vmul.f32 %v3606, %v3606
  %v3776 = vmul.f32 %v3611, %v3611
  %v3777 = vmul.f32 %v3614, %v3614
  %v3778 = vmul.f32 %v3619, %v3619
  %v3779 = vmul.f32 %v3622, %v3622
  %v3780 = vmul.f32 %v3627, %v3627
  %v3781 = vmul.f32 %v3630, %v3630
  %v3782 = vmul.f32 %v3635, %v3635
  %v3783 = vmul.f32 %v3638, %v3638
  %v3784 = vmul.f32 %v3643, %v3643
  %v3785 = vmul.f32 %v3646, %v3646
  %v3786 = vmul.f32 %v3651, %v3651
  %v3787 = vmul.f32 %v3654, %v3654
  %v3788 = vmul.f32 %v3659, %v3659
  %v3789 = vmul.f32 %v3662, %v3662
  %v3790 = vmul.f32 %v3667, %v3667
  %v3791 = vmul.f32 %v3670, %v3670
  %v3792 = vmul.f32 %v3675, %v3675
  %v3793 = vmul.f32 %v3678, %v3678
  %v3794 = vmul.f32 %v3683, %v3683
  %v3795 = vmul.f32 %v3686, %v3686
  %v3796 = vmul.f32 %v3691, %v3691
  %v3797 = vmul.f32 %v3694, %v3694
  %v3798 = vsel %vm1220, %v3766, 0.0
  %v3799 = vsel %vm1220, %v3767, 0.0
  %v3800 = vadd.f32 %v3798, %v3799
  %v3801 = vsel %vm1220, %v3768, 0.0
  %v3802 = vadd.f32 %v3800, %v3801
  %v3803 = vsel %vm1220, %v3769, 0.0
  %v3804 = vadd.f32 %v3802, %v3803
  %v3805 = vsel %vm1220, %v3770, 0.0
  %v3806 = vadd.f32 %v3804, %v3805
  %v3807 = vsel %vm1220, %v3771, 0.0
  %v3808 = vadd.f32 %v3806, %v3807
  %v3809 = vsel %vm1220, %v3772, 0.0
  %v3810 = vadd.f32 %v3808, %v3809
  %v3811 = vsel %vm1220, %v3773, 0.0
  %v3812 = vadd.f32 %v3810, %v3811
  %v3813 = vsel %vm1220, %v3774, 0.0
  %v3814 = vadd.f32 %v3812, %v3813
  %v3815 = vsel %vm1220, %v3775, 0.0
  %v3816 = vadd.f32 %v3814, %v3815
  %v3817 = vsel %vm1220, %v3776, 0.0
  %v3818 = vadd.f32 %v3816, %v3817
  %v3819 = vsel %vm1220, %v3777, 0.0
  %v3820 = vadd.f32 %v3818, %v3819
  %v3821 = vsel %vm1220, %v3778, 0.0
  %v3822 = vadd.f32 %v3820, %v3821
  %v3823 = vsel %vm1220, %v3779, 0.0
  %v3824 = vadd.f32 %v3822, %v3823
  %v3825 = vsel %vm1220, %v3780, 0.0
  %v3826 = vadd.f32 %v3824, %v3825
  %v3827 = vsel %vm1220, %v3781, 0.0
  %v3828 = vadd.f32 %v3826, %v3827
  %v3829 = vsel %vm1220, %v3782, 0.0
  %v3830 = vadd.f32 %v3828, %v3829
  %v3831 = vsel %vm1220, %v3783, 0.0
  %v3832 = vadd.f32 %v3830, %v3831
  %v3833 = vsel %vm1220, %v3784, 0.0
  %v3834 = vadd.f32 %v3832, %v3833
  %v3835 = vsel %vm1220, %v3785, 0.0
  %v3836 = vadd.f32 %v3834, %v3835
  %v3837 = vsel %vm1220, %v3786, 0.0
  %v3838 = vadd.f32 %v3836, %v3837
  %v3839 = vsel %vm1220, %v3787, 0.0
  %v3840 = vadd.f32 %v3838, %v3839
  %v3841 = vsel %vm1220, %v3788, 0.0
  %v3842 = vadd.f32 %v3840, %v3841
  %v3843 = vsel %vm1220, %v3789, 0.0
  %v3844 = vadd.f32 %v3842, %v3843
  %v3845 = vsel %vm1220, %v3790, 0.0
  %v3846 = vadd.f32 %v3844, %v3845
  %v3847 = vsel %vm1220, %v3791, 0.0
  %v3848 = vadd.f32 %v3846, %v3847
  %v3849 = vsel %vm1220, %v3792, 0.0
  %v3850 = vadd.f32 %v3848, %v3849
  %v3851 = vsel %vm1220, %v3793, 0.0
  %v3852 = vadd.f32 %v3850, %v3851
  %v3853 = vsel %vm1220, %v3794, 0.0
  %v3854 = vadd.f32 %v3852, %v3853
  %v3855 = vsel %vm1220, %v3795, 0.0
  %v3856 = vadd.f32 %v3854, %v3855
  %v3857 = vsel %vm1220, %v3796, 0.0
  %v3858 = vadd.f32 %v3856, %v3857
  %v3859 = vsel %vm1220, %v3797, 0.0
  %v3860 = vadd.f32 %v3858, %v3859
  %v3861 = vrot.slane %v3860, 4
  %v3862 = vadd.f32 %v3860, %v3861
  %v3863 = vrot.slane %v3862, 2
  %v3864 = vadd.f32 %v3862, %v3863
  %v3865 = vrot.slane %v3864, 1
  %v3866 = vadd.f32 %v3864, %v3865
  %v3867 = vmul.f32 %v3765, 0.00390625
  %v3868 = vmul.f32 %v3866, 0.00390625
  %v3869 = vmul.f32 %v3867, %v3867
  %v3870 = vsub.f32 %v3868, %v3869
  %v3871 = vmax.f32 %v3870, 0.0
  %v3872 = vadd.f32 %v3871, 1e-05
  %v3873 = vrsqrt.pop %v3872
  %v3874 = vld [vmem:[%s53 + $0x1] sm:$0x1]
  %v3875 = vmul.f32 %v3874, %v3873
  %v3876 = vld [vmem:[%s53 + $0x2] sm:$0x1]
  %v3877 = vmul.f32 %v3867, %v3875
  %v3878 = vsub.f32 %v3876, %v3877
  %v3879 = vlaneseq
  %v3880 = vshrl.u32 %v3879, 7
  %v3881 = vsub.s32 0, %v3880
  %v3882 = vrot.slane %v3875, %v3881
  %v3883 = vmul.f32 %v3571, %v3882
  %v3884 = vmul.f32 %v3574, %v3882
  %v3885 = vmul.f32 %v3579, %v3882
  %v3886 = vmul.f32 %v3582, %v3882
  %v3887 = vmul.f32 %v3587, %v3882
  %v3888 = vmul.f32 %v3590, %v3882
  %v3889 = vmul.f32 %v3595, %v3882
  %v3890 = vmul.f32 %v3598, %v3882
  %v3891 = vmul.f32 %v3603, %v3882
  %v3892 = vmul.f32 %v3606, %v3882
  %v3893 = vmul.f32 %v3611, %v3882
  %v3894 = vmul.f32 %v3614, %v3882
  %v3895 = vmul.f32 %v3619, %v3882
  %v3896 = vmul.f32 %v3622, %v3882
  %v3897 = vmul.f32 %v3627, %v3882
  %v3898 = vmul.f32 %v3630, %v3882
  %v3899 = vmul.f32 %v3635, %v3882
  %v3900 = vmul.f32 %v3638, %v3882
  %v3901 = vmul.f32 %v3643, %v3882
  %v3902 = vmul.f32 %v3646, %v3882
  %v3903 = vmul.f32 %v3651, %v3882
  %v3904 = vmul.f32 %v3654, %v3882
  %v3905 = vmul.f32 %v3659, %v3882
  %v3906 = vmul.f32 %v3662, %v3882
  %v3907 = vmul.f32 %v3667, %v3882
  %v3908 = vmul.f32 %v3670, %v3882
  %v3909 = vmul.f32 %v3675, %v3882
  %v3910 = vmul.f32 %v3678, %v3882
  %v3911 = vmul.f32 %v3683, %v3882
  %v3912 = vmul.f32 %v3686, %v3882
  %v3913 = vmul.f32 %v3691, %v3882
  %v3914 = vmul.f32 %v3694, %v3882
  %v3915 = vlaneseq
  %v3916 = vshrl.u32 %v3915, 7
  %v3917 = vsub.s32 0, %v3916
  %v3918 = vrot.slane %v3878, %v3917
  %v3919 = vadd.f32 %v3883, %v3918
  %v3920 = vadd.f32 %v3884, %v3918
  %v3921 = vadd.f32 %v3885, %v3918
  %v3922 = vadd.f32 %v3886, %v3918
  %v3923 = vadd.f32 %v3887, %v3918
  %v3924 = vadd.f32 %v3888, %v3918
  %v3925 = vadd.f32 %v3889, %v3918
  %v3926 = vadd.f32 %v3890, %v3918
  %v3927 = vadd.f32 %v3891, %v3918
  %v3928 = vadd.f32 %v3892, %v3918
  %v3929 = vadd.f32 %v3893, %v3918
  %v3930 = vadd.f32 %v3894, %v3918
  %v3931 = vadd.f32 %v3895, %v3918
  %v3932 = vadd.f32 %v3896, %v3918
  %v3933 = vadd.f32 %v3897, %v3918
  %v3934 = vadd.f32 %v3898, %v3918
  %v3935 = vadd.f32 %v3899, %v3918
  %v3936 = vadd.f32 %v3900, %v3918
  %v3937 = vadd.f32 %v3901, %v3918
  %v3938 = vadd.f32 %v3902, %v3918
  %v3939 = vadd.f32 %v3903, %v3918
  %v3940 = vadd.f32 %v3904, %v3918
  %v3941 = vadd.f32 %v3905, %v3918
  %v3942 = vadd.f32 %v3906, %v3918
  %v3943 = vadd.f32 %v3907, %v3918
  %v3944 = vadd.f32 %v3908, %v3918
  %v3945 = vadd.f32 %v3909, %v3918
  %v3946 = vadd.f32 %v3910, %v3918
  %v3947 = vadd.f32 %v3911, %v3918
  %v3948 = vadd.f32 %v3912, %v3918
  %v3949 = vadd.f32 %v3913, %v3918
  %v3950 = vadd.f32 %v3914, %v3918
  %v3951 = vmax.f32 %v3919, 0.0
  %v3952 = vmax.f32 %v3920, 0.0
  %v3953 = vmax.f32 %v3921, 0.0
  %v3954 = vmax.f32 %v3922, 0.0
  %v3955 = vmax.f32 %v3923, 0.0
  %v3956 = vmax.f32 %v3924, 0.0
  %v3957 = vmax.f32 %v3925, 0.0
  %v3958 = vmax.f32 %v3926, 0.0
  %v3959 = vmax.f32 %v3927, 0.0
  %v3960 = vmax.f32 %v3928, 0.0
  %v3961 = vmax.f32 %v3929, 0.0
  %v3962 = vmax.f32 %v3930, 0.0
  %v3963 = vmax.f32 %v3931, 0.0
  %v3964 = vmax.f32 %v3932, 0.0
  %v3965 = vmax.f32 %v3933, 0.0
  %v3966 = vmax.f32 %v3934, 0.0
  %v3967 = vmax.f32 %v3935, 0.0
  %v3968 = vmax.f32 %v3936, 0.0
  %v3969 = vmax.f32 %v3937, 0.0
  %v3970 = vmax.f32 %v3938, 0.0
  %v3971 = vmax.f32 %v3939, 0.0
  %v3972 = vmax.f32 %v3940, 0.0
  %v3973 = vmax.f32 %v3941, 0.0
  %v3974 = vmax.f32 %v3942, 0.0
  %v3975 = vmax.f32 %v3943, 0.0
  %v3976 = vmax.f32 %v3944, 0.0
  %v3977 = vmax.f32 %v3945, 0.0
  %v3978 = vmax.f32 %v3946, 0.0
  %v3979 = vmax.f32 %v3947, 0.0
  %v3980 = vmax.f32 %v3948, 0.0
  %v3981 = vmax.f32 %v3949, 0.0
  %v3982 = vmax.f32 %v3950, 0.0
  %v3983 = vpack.c.bf16 %v3952, %v3951
  %v3984 = vpack.c.bf16 %v3954, %v3953
  %v3985 = vpack.c.bf16 %v3956, %v3955
  %v3986 = vpack.c.bf16 %v3958, %v3957
  %v3987 = vpack.c.bf16 %v3960, %v3959
  %v3988 = vpack.c.bf16 %v3962, %v3961
  %v3989 = vpack.c.bf16 %v3964, %v3963
  %v3990 = vpack.c.bf16 %v3966, %v3965
  %v3991 = vpack.c.bf16 %v3968, %v3967
  %v3992 = vpack.c.bf16 %v3970, %v3969
  %v3993 = vpack.c.bf16 %v3972, %v3971
  %v3994 = vpack.c.bf16 %v3974, %v3973
  %v3995 = vpack.c.bf16 %v3976, %v3975
  %v3996 = vpack.c.bf16 %v3978, %v3977
  %v3997 = vpack.c.bf16 %v3980, %v3979
  %v3998 = vpack.c.bf16 %v3982, %v3981
  %v4007 = vunpack.c.l.b16 %v239
  %v4008 = vunpack.c.h.b16 %v239
  %v4009 = vunpack.c.l.b16 %v240
  %v4010 = vunpack.c.h.b16 %v240
  %v4011 = vunpack.c.l.b16 %v241
  %v4012 = vunpack.c.h.b16 %v241
  %v4013 = vunpack.c.l.b16 %v242
  %v4014 = vunpack.c.h.b16 %v242
  %v4015 = vunpack.c.l.b16 %v243
  %v4016 = vunpack.c.h.b16 %v243
  %v4017 = vunpack.c.l.b16 %v244
  %v4018 = vunpack.c.h.b16 %v244
  %v4019 = vunpack.c.l.b16 %v245
  %v4020 = vunpack.c.h.b16 %v245
  %v4021 = vunpack.c.l.b16 %v246
  %v4022 = vunpack.c.h.b16 %v246
  %v4023 = vpack.c.b16 %v4009, %v4007
  %v4024 = vpack.c.b16 %v4010, %v4008
  %v4025 = vpack.c.b16 %v4013, %v4011
  %v4026 = vpack.c.b16 %v4014, %v4012
  %v4027 = vpack.c.b16 %v4017, %v4015
  %v4028 = vpack.c.b16 %v4018, %v4016
  %v4029 = vpack.c.b16 %v4021, %v4019
  %v4030 = vpack.c.b16 %v4022, %v4020
  %4039 = vmatprep.subr.bf16.mxu0 0
  %4040 = vmatpush1.bf16.msra.mxu0 %v3990
  %4041 = vmatprep.subr.bf16.mxu0 0
  %4042 = vmatpush1.bf16.msra.mxu0 %v3989
  %4043 = vmatprep.subr.bf16.mxu0 0
  %4044 = vmatpush1.bf16.msra.mxu0 %v3988
  %4045 = vmatprep.subr.bf16.mxu0 0
  %4046 = vmatpush1.bf16.msra.mxu0 %v3987
  %4047 = vmatprep.subr.bf16.mxu0 0
  %4048 = vmatpush1.bf16.msra.mxu0 %v3986
  %4049 = vmatprep.subr.bf16.mxu0 0
  %4050 = vmatpush1.bf16.msra.mxu0 %v3985
  %4051 = vmatprep.subr.bf16.mxu0 0
  %4052 = vmatpush1.bf16.msra.mxu0 %v3984
  %4053 = vmatprep.subr.bf16.mxu0 0
  %4054 = vmatpush1.bf16.msra.mxu0 %v3983
  %4055 = vmatprep.subr.bf16.mxu0 0
  %4056 = vmatpush2.bf16.msra.mxu0 %v3998
  %4057 = vmatprep.subr.bf16.mxu0 0
  %4058 = vmatpush2.bf16.msra.mxu0 %v3997
  %4059 = vmatprep.subr.bf16.mxu0 0
  %4060 = vmatpush2.bf16.msra.mxu0 %v3996
  %4061 = vmatprep.subr.bf16.mxu0 0
  %4062 = vmatpush2.bf16.msra.mxu0 %v3995
  %4063 = vmatprep.subr.bf16.mxu0 0
  %4064 = vmatpush2.bf16.msra.mxu0 %v3994
  %4065 = vmatprep.subr.bf16.mxu0 0
  %4066 = vmatpush2.bf16.msra.mxu0 %v3993
  %4067 = vmatprep.subr.bf16.mxu0 0
  %4068 = vmatpush2.bf16.msra.mxu0 %v3992
  %4069 = vmatprep.subr.bf16.mxu0 0
  %4070 = vmatpush2.bf16.msra.mxu0 %v3991
  %4071 = vmatprep.mubr.bf16.mxu0 %v4024
  %4072 = vmatmul.mubr.bf16.gmra.mxu0 %v4023
  %v4073 = vpop.f32.mrf.mxu0
  %v4074 = vadd.f32 0.0, %v4073
  %v4075 = vpop.f32.mrf.mxu0
  %v4076 = vpop.f32.mrf.mxu0
  %v4077 = vadd.f32 0.0, %v4076
  %v4078 = vpop.f32.mrf.mxu0
  %4079 = vmatprep.mubr.bf16.mxu0 %v4026
  %4080 = vmatmul.mubr.bf16.gmra.mxu0 %v4025
  %v4081 = vpop.f32.mrf.mxu0
  %v4082 = vadd.f32 0.0, %v4081
  %v4083 = vpop.f32.mrf.mxu0
  %v4084 = vpop.f32.mrf.mxu0
  %v4085 = vadd.f32 0.0, %v4084
  %v4086 = vpop.f32.mrf.mxu0
  %4087 = vmatprep.mubr.bf16.mxu0 %v4028
  %4088 = vmatmul.mubr.bf16.gmra.mxu0 %v4027
  %v4089 = vpop.f32.mrf.mxu0
  %v4090 = vadd.f32 0.0, %v4089
  %v4091 = vpop.f32.mrf.mxu0
  %v4092 = vpop.f32.mrf.mxu0
  %v4093 = vadd.f32 0.0, %v4092
  %v4094 = vpop.f32.mrf.mxu0
  %4095 = vmatprep.mubr.bf16.mxu0 %v4030
  %4096 = vmatmul.mubr.bf16.gmra.mxu0 %v4029
  %v4097 = vpop.f32.mrf.mxu0
  %v4098 = vadd.f32 0.0, %v4097
  %v4099 = vpop.f32.mrf.mxu0
  %v4100 = vpop.f32.mrf.mxu0
  %v4101 = vadd.f32 0.0, %v4100
  %v4102 = vpop.f32.mrf.mxu0
  %4103 = vdwg.mxu0
  %v4104 = vpack.c.bf16 %v4077, %v4074
  %v4105 = vpack.c.bf16 %v4085, %v4082
  %v4106 = vpack.c.bf16 %v4093, %v4090
  %v4107 = vpack.c.bf16 %v4101, %v4098
  %v4116 = vunpack.c.l.b16 %v187
  %v4117 = vunpack.c.l.b16 %v188
  %v4118 = vunpack.c.l.b16 %v189
  %v4119 = vunpack.c.l.b16 %v190
  %v4120 = vunpack.c.l.b16 %v191
  %v4121 = vunpack.c.l.b16 %v192
  %v4122 = vunpack.c.l.b16 %v193
  %v4123 = vunpack.c.l.b16 %v194
  %v4124 = vpack.c.b16 %v4117, %v4116
  %v4125 = vpack.c.b16 %v4119, %v4118
  %v4126 = vpack.c.b16 %v4121, %v4120
  %v4127 = vpack.c.b16 %v4123, %v4122
  %vm4128 = vcmask 523264
  %v4130 = vsel %vm4128, %v4124, 0
  %v4133 = vsel %vm4128, %v4125, 0
  %v4136 = vsel %vm4128, %v4126, 0
  %v4139 = vsel %vm4128, %v4127, 0
  %4141 = vmatprep.subr.bf16.mxu0 0
  %4142 = vmatpush1.bf16.msra.mxu0 0
  %4143 = vmatprep.subr.bf16.mxu0 0
  %4144 = vmatpush1.bf16.msra.mxu0 0
  %4145 = vmatprep.subr.bf16.mxu0 0
  %4146 = vmatpush1.bf16.msra.mxu0 0
  %4147 = vmatprep.subr.bf16.mxu0 0
  %4148 = vmatpush1.bf16.msra.mxu0 0
  %4149 = vmatprep.subr.bf16.mxu0 0
  %4150 = vmatpush1.bf16.msra.mxu0 %v4107
  %4151 = vmatprep.subr.bf16.mxu0 0
  %4152 = vmatpush1.bf16.msra.mxu0 %v4106
  %4153 = vmatprep.subr.bf16.mxu0 0
  %4154 = vmatpush1.bf16.msra.mxu0 %v4105
  %4155 = vmatprep.subr.bf16.mxu0 0
  %4156 = vmatpush1.bf16.msra.mxu0 %v4104
  %4157 = vmatprep.subr.bf16.mxu0 0
  %4158 = vmatpush2.bf16.msra.mxu0 0
  %4159 = vmatprep.subr.bf16.mxu0 0
  %4160 = vmatpush2.bf16.msra.mxu0 0
  %4161 = vmatprep.subr.bf16.mxu0 0
  %4162 = vmatpush2.bf16.msra.mxu0 0
  %4163 = vmatprep.subr.bf16.mxu0 0
  %4164 = vmatpush2.bf16.msra.mxu0 0
  %4165 = vmatprep.subr.bf16.mxu0 0
  %4166 = vmatpush2.bf16.msra.mxu0 0
  %4167 = vmatprep.subr.bf16.mxu0 0
  %4168 = vmatpush2.bf16.msra.mxu0 0
  %4169 = vmatprep.subr.bf16.mxu0 0
  %4170 = vmatpush2.bf16.msra.mxu0 0
  %4171 = vmatprep.subr.bf16.mxu0 0
  %4172 = vmatpush2.bf16.msra.mxu0 0
  %4173 = vmatprep.mubr.bf16.mxu0 0
  %4174 = vmatmul.mubr.bf16.gmra.mxu0 %v4130
  %v4175 = vpop.f32.mrf.mxu0
  %v4176 = vadd.f32 0.0, %v4175
  %v4177 = vpop.f32.mrf.mxu0
  %v4178 = vpop.f32.mrf.mxu0
  %v4179 = vadd.f32 0.0, %v4178
  %v4180 = vpop.f32.mrf.mxu0
  %4181 = vmatprep.mubr.bf16.mxu0 0
  %4182 = vmatmul.mubr.bf16.gmra.mxu0 %v4133
  %v4183 = vpop.f32.mrf.mxu0
  %v4184 = vadd.f32 0.0, %v4183
  %v4185 = vpop.f32.mrf.mxu0
  %v4186 = vpop.f32.mrf.mxu0
  %v4187 = vadd.f32 0.0, %v4186
  %v4188 = vpop.f32.mrf.mxu0
  %4189 = vmatprep.mubr.bf16.mxu0 0
  %4190 = vmatmul.mubr.bf16.gmra.mxu0 %v4136
  %v4191 = vpop.f32.mrf.mxu0
  %v4192 = vadd.f32 0.0, %v4191
  %v4193 = vpop.f32.mrf.mxu0
  %v4194 = vpop.f32.mrf.mxu0
  %v4195 = vadd.f32 0.0, %v4194
  %v4196 = vpop.f32.mrf.mxu0
  %4197 = vmatprep.mubr.bf16.mxu0 0
  %4198 = vmatmul.mubr.bf16.gmra.mxu0 %v4139
  %v4199 = vpop.f32.mrf.mxu0
  %v4200 = vadd.f32 0.0, %v4199
  %v4201 = vpop.f32.mrf.mxu0
  %v4202 = vpop.f32.mrf.mxu0
  %v4203 = vadd.f32 0.0, %v4202
  %v4204 = vpop.f32.mrf.mxu0
  %4205 = vdwg.mxu0
  %v4206 = vpack.c.bf16 %v4179, %v4176
  %v4207 = vpack.c.bf16 %v4187, %v4184
  %v4208 = vpack.c.bf16 %v4195, %v4192
  %v4209 = vpack.c.bf16 %v4203, %v4200
  %v4218 = vunpack.c.l.b16 %v229
  %v4219 = vunpack.c.l.b16 %v230
  %v4220 = vunpack.c.l.b16 %v231
  %v4221 = vunpack.c.l.b16 %v232
  %v4222 = vunpack.c.l.b16 %v233
  %v4223 = vunpack.c.l.b16 %v234
  %v4224 = vunpack.c.l.b16 %v235
  %v4225 = vunpack.c.l.b16 %v236
  %v4226 = vpack.c.b16 %v4219, %v4218
  %v4227 = vpack.c.b16 %v4221, %v4220
  %v4228 = vpack.c.b16 %v4223, %v4222
  %v4229 = vpack.c.b16 %v4225, %v4224
  %v4231 = vsel %vm4128, %v4226, 0
  %v4234 = vsel %vm4128, %v4227, 0
  %v4237 = vsel %vm4128, %v4228, 0
  %v4240 = vsel %vm4128, %v4229, 0
  %4242 = vmatprep.subr.bf16.mxu0 0
  %4243 = vmatpush1.bf16.msra.mxu0 0
  %4244 = vmatprep.subr.bf16.mxu0 0
  %4245 = vmatpush1.bf16.msra.mxu0 0
  %4246 = vmatprep.subr.bf16.mxu0 0
  %4247 = vmatpush1.bf16.msra.mxu0 0
  %4248 = vmatprep.subr.bf16.mxu0 0
  %4249 = vmatpush1.bf16.msra.mxu0 0
  %4250 = vmatprep.subr.bf16.mxu0 0
  %4251 = vmatpush1.bf16.msra.mxu0 %v4209
  %4252 = vmatprep.subr.bf16.mxu0 0
  %4253 = vmatpush1.bf16.msra.mxu0 %v4208
  %4254 = vmatprep.subr.bf16.mxu0 0
  %4255 = vmatpush1.bf16.msra.mxu0 %v4207
  %4256 = vmatprep.subr.bf16.mxu0 0
  %4257 = vmatpush1.bf16.msra.mxu0 %v4206
  %4258 = vmatprep.subr.bf16.mxu0 0
  %4259 = vmatpush2.bf16.msra.mxu0 0
  %4260 = vmatprep.subr.bf16.mxu0 0
  %4261 = vmatpush2.bf16.msra.mxu0 0
  %4262 = vmatprep.subr.bf16.mxu0 0
  %4263 = vmatpush2.bf16.msra.mxu0 0
  %4264 = vmatprep.subr.bf16.mxu0 0
  %4265 = vmatpush2.bf16.msra.mxu0 0
  %4266 = vmatprep.subr.bf16.mxu0 0
  %4267 = vmatpush2.bf16.msra.mxu0 0
  %4268 = vmatprep.subr.bf16.mxu0 0
  %4269 = vmatpush2.bf16.msra.mxu0 0
  %4270 = vmatprep.subr.bf16.mxu0 0
  %4271 = vmatpush2.bf16.msra.mxu0 0
  %4272 = vmatprep.subr.bf16.mxu0 0
  %4273 = vmatpush2.bf16.msra.mxu0 0
  %4274 = vmatprep.mubr.bf16.mxu0 0
  %4275 = vmatmul.mubr.bf16.gmra.mxu0 %v4231
  %v4276 = vpop.f32.mrf.mxu0
  %v4277 = vadd.f32 0.0, %v4276
  %v4278 = vpop.f32.mrf.mxu0
  %v4279 = vpop.f32.mrf.mxu0
  %v4280 = vadd.f32 0.0, %v4279
  %v4281 = vpop.f32.mrf.mxu0
  %4282 = vmatprep.mubr.bf16.mxu0 0
  %4283 = vmatmul.mubr.bf16.gmra.mxu0 %v4234
  %v4284 = vpop.f32.mrf.mxu0
  %v4285 = vadd.f32 0.0, %v4284
  %v4286 = vpop.f32.mrf.mxu0
  %v4287 = vpop.f32.mrf.mxu0
  %v4288 = vadd.f32 0.0, %v4287
  %v4289 = vpop.f32.mrf.mxu0
  %4290 = vmatprep.mubr.bf16.mxu0 0
  %4291 = vmatmul.mubr.bf16.gmra.mxu0 %v4237
  %v4292 = vpop.f32.mrf.mxu0
  %v4293 = vadd.f32 0.0, %v4292
  %v4294 = vpop.f32.mrf.mxu0
  %v4295 = vpop.f32.mrf.mxu0
  %v4296 = vadd.f32 0.0, %v4295
  %v4297 = vpop.f32.mrf.mxu0
  %4298 = vmatprep.mubr.bf16.mxu0 0
  %4299 = vmatmul.mubr.bf16.gmra.mxu0 %v4240
  %v4300 = vpop.f32.mrf.mxu0
  %v4301 = vadd.f32 0.0, %v4300
  %v4302 = vpop.f32.mrf.mxu0
  %v4303 = vpop.f32.mrf.mxu0
  %v4304 = vadd.f32 0.0, %v4303
  %v4305 = vpop.f32.mrf.mxu0
  %4306 = vdwg.mxu0
  %v4307 = vunpack.c.l.bf16 %v4104
  %v4308 = vunpack.c.h.bf16 %v4104
  %v4309 = vunpack.c.l.bf16 %v4105
  %v4310 = vunpack.c.h.bf16 %v4105
  %v4311 = vunpack.c.l.bf16 %v4106
  %v4312 = vunpack.c.h.bf16 %v4106
  %v4313 = vunpack.c.l.bf16 %v4107
  %v4314 = vunpack.c.h.bf16 %v4107
  %v4315 = vsub.f32 %v4277, %v4307
  %v4316 = vsub.f32 %v4280, %v4308
  %v4317 = vsub.f32 %v4285, %v4309
  %v4318 = vsub.f32 %v4288, %v4310
  %v4319 = vsub.f32 %v4293, %v4311
  %v4320 = vsub.f32 %v4296, %v4312
  %v4321 = vsub.f32 %v4301, %v4313
  %v4322 = vsub.f32 %v4304, %v4314
  %v4323 = vpack.c.bf16 %v4316, %v4315
  %v4324 = vpack.c.bf16 %v4318, %v4317
  %v4325 = vpack.c.bf16 %v4320, %v4319
  %v4326 = vpack.c.bf16 %v4322, %v4321
  %4331 = vrot.lane.b32.xlu0 %v4206, 16
  %v4332 = vpop.permute.xlu0 %4331
  %4333 = vrot.lane.b32.xlu0 %v4207, 16
  %v4334 = vpop.permute.xlu0 %4333
  %4335 = vrot.lane.b32.xlu0 %v4208, 16
  %v4336 = vpop.permute.xlu0 %4335
  %4337 = vrot.lane.b32.xlu0 %v4209, 16
  %v4338 = vpop.permute.xlu0 %4337
  %4343 = vrot.lane.b32.xlu0 %v4323, 32
  %v4344 = vpop.permute.xlu0 %4343
  %4345 = vrot.lane.b32.xlu0 %v4324, 32
  %v4346 = vpop.permute.xlu0 %4345
  %4347 = vrot.lane.b32.xlu0 %v4325, 32
  %v4348 = vpop.permute.xlu0 %4347
  %4349 = vrot.lane.b32.xlu0 %v4326, 32
  %v4350 = vpop.permute.xlu0 %4349
  %v4353 = vsel %vm1220, %v4104, %v4332
  %v4356 = vsel %vm1220, %v4105, %v4334
  %v4359 = vsel %vm1220, %v4106, %v4336
  %v4362 = vsel %vm1220, %v4107, %v4338
  %v4364 = vsel %vm3441, %v4353, %v4344
  %v4366 = vsel %vm3441, %v4356, %v4346
  %v4368 = vsel %vm3441, %v4359, %v4348
  %v4370 = vsel %vm3441, %v4362, %v4350
  %v4371 = vld [vmem:[%s29] sm:$0xf]
  %v4372 = vld [vmem:[%s29 + $0x4] sm:$0xf]
  %v4373 = vld [vmem:[%s29 + $0x8] sm:$0xf]
  %v4374 = vld [vmem:[%s29 + $0xc] sm:$0xf]
  %v4375 = vld [vmem:[%s29 + $0x10] sm:$0xf]
  %v4376 = vld [vmem:[%s29 + $0x14] sm:$0xf]
  %v4377 = vld [vmem:[%s55] sm:$0x1]
  %v4378 = vlaneseq
  %v4379 = vshrl.u32 %v4378, 7
  %v4380 = vsub.s32 0, %v4379
  %v4381 = vrot.slane %v4377, %v4380
  %v4388 = vunpack.c.l.b16 %v4371
  %v4389 = vunpack.c.l.b16 %v4372
  %v4390 = vunpack.c.l.b16 %v4373
  %v4391 = vunpack.c.l.b16 %v4374
  %v4392 = vunpack.c.l.b16 %v4375
  %v4393 = vunpack.c.l.b16 %v4376
  %v4394 = vpack.c.b16 %v4389, %v4388
  %v4395 = vpack.c.b16 %v4391, %v4390
  %v4396 = vpack.c.b16 %v4393, %v4392
  %v4400 = vsel %vm3503, %v4364, 0
  %v4402 = vsel %vm3503, %v4366, 0
  %v4404 = vsel %vm3503, %v4368, 0
  %v4406 = vsel %vm3503, %v4370, 0
  %4408 = vmatprep.subr.bf16.mxu0 0
  %4409 = vmatpush1.bf16.msra.mxu0 0
  %4410 = vmatprep.subr.bf16.mxu0 0
  %4411 = vmatpush1.bf16.msra.mxu0 0
  %4412 = vmatprep.subr.bf16.mxu0 0
  %4413 = vmatpush1.bf16.msra.mxu0 0
  %4414 = vmatprep.subr.bf16.mxu0 0
  %4415 = vmatpush1.bf16.msra.mxu0 0
  %4416 = vmatprep.subr.bf16.mxu0 0
  %4417 = vmatpush1.bf16.msra.mxu0 0
  %4418 = vmatprep.subr.bf16.mxu0 0
  %4419 = vmatpush1.bf16.msra.mxu0 %v4396
  %4420 = vmatprep.subr.bf16.mxu0 0
  %4421 = vmatpush1.bf16.msra.mxu0 %v4395
  %4422 = vmatprep.subr.bf16.mxu0 0
  %4423 = vmatpush1.bf16.msra.mxu0 %v4394
  %4424 = vmatprep.subr.bf16.mxu0 0
  %4425 = vmatpush2.bf16.msra.mxu0 0
  %4426 = vmatprep.subr.bf16.mxu0 0
  %4427 = vmatpush2.bf16.msra.mxu0 0
  %4428 = vmatprep.subr.bf16.mxu0 0
  %4429 = vmatpush2.bf16.msra.mxu0 0
  %4430 = vmatprep.subr.bf16.mxu0 0
  %4431 = vmatpush2.bf16.msra.mxu0 0
  %4432 = vmatprep.subr.bf16.mxu0 0
  %4433 = vmatpush2.bf16.msra.mxu0 0
  %4434 = vmatprep.subr.bf16.mxu0 0
  %4435 = vmatpush2.bf16.msra.mxu0 0
  %4436 = vmatprep.subr.bf16.mxu0 0
  %4437 = vmatpush2.bf16.msra.mxu0 0
  %4438 = vmatprep.subr.bf16.mxu0 0
  %4439 = vmatpush2.bf16.msra.mxu0 0
  %4440 = vmatprep.mubr.bf16.mxu0 0
  %4441 = vmatmul.mubr.bf16.gmra.mxu0 %v4400
  %v4442 = vpop.f32.mrf.mxu0
  %v4443 = vadd.f32 %v4381, %v4442
  %v4444 = vpop.f32.mrf.mxu0
  %v4445 = vpop.f32.mrf.mxu0
  %v4446 = vadd.f32 %v4381, %v4445
  %v4447 = vpop.f32.mrf.mxu0
  %4448 = vmatprep.mubr.bf16.mxu0 0
  %4449 = vmatmul.mubr.bf16.gmra.mxu0 %v4402
  %v4450 = vpop.f32.mrf.mxu0
  %v4451 = vadd.f32 %v4381, %v4450
  %v4452 = vpop.f32.mrf.mxu0
  %v4453 = vpop.f32.mrf.mxu0
  %v4454 = vadd.f32 %v4381, %v4453
  %v4455 = vpop.f32.mrf.mxu0
  %4456 = vmatprep.mubr.bf16.mxu0 0
  %4457 = vmatmul.mubr.bf16.gmra.mxu0 %v4404
  %v4458 = vpop.f32.mrf.mxu0
  %v4459 = vadd.f32 %v4381, %v4458
  %v4460 = vpop.f32.mrf.mxu0
  %v4461 = vpop.f32.mrf.mxu0
  %v4462 = vadd.f32 %v4381, %v4461
  %v4463 = vpop.f32.mrf.mxu0
  %4464 = vmatprep.mubr.bf16.mxu0 0
  %4465 = vmatmul.mubr.bf16.gmra.mxu0 %v4406
  %v4466 = vpop.f32.mrf.mxu0
  %v4467 = vadd.f32 %v4381, %v4466
  %v4468 = vpop.f32.mrf.mxu0
  %v4469 = vpop.f32.mrf.mxu0
  %v4470 = vadd.f32 %v4381, %v4469
  %v4471 = vpop.f32.mrf.mxu0
  %4472 = vdwg.mxu0
  %v4473 = vsel %vm1270, %v4443, 0.0
  %v4474 = vsel %vm1270, %v4446, 0.0
  %v4475 = vadd.f32 %v4473, %v4474
  %v4476 = vsel %vm1270, %v4451, 0.0
  %v4477 = vadd.f32 %v4475, %v4476
  %v4478 = vsel %vm1270, %v4454, 0.0
  %v4479 = vadd.f32 %v4477, %v4478
  %v4480 = vsel %vm1270, %v4459, 0.0
  %v4481 = vadd.f32 %v4479, %v4480
  %v4482 = vsel %vm1270, %v4462, 0.0
  %v4483 = vadd.f32 %v4481, %v4482
  %v4484 = vsel %vm1270, %v4467, 0.0
  %v4485 = vadd.f32 %v4483, %v4484
  %v4486 = vsel %vm1270, %v4470, 0.0
  %v4487 = vadd.f32 %v4485, %v4486
  %v4488 = vrot.slane %v4487, 4
  %v4489 = vadd.f32 %v4487, %v4488
  %v4490 = vrot.slane %v4489, 2
  %v4491 = vadd.f32 %v4489, %v4490
  %v4492 = vrot.slane %v4491, 1
  %v4493 = vadd.f32 %v4491, %v4492
  %v4494 = vmul.f32 %v4443, %v4443
  %v4495 = vmul.f32 %v4446, %v4446
  %v4496 = vmul.f32 %v4451, %v4451
  %v4497 = vmul.f32 %v4454, %v4454
  %v4498 = vmul.f32 %v4459, %v4459
  %v4499 = vmul.f32 %v4462, %v4462
  %v4500 = vmul.f32 %v4467, %v4467
  %v4501 = vmul.f32 %v4470, %v4470
  %v4502 = vsel %vm1270, %v4494, 0.0
  %v4503 = vsel %vm1270, %v4495, 0.0
  %v4504 = vadd.f32 %v4502, %v4503
  %v4505 = vsel %vm1270, %v4496, 0.0
  %v4506 = vadd.f32 %v4504, %v4505
  %v4507 = vsel %vm1270, %v4497, 0.0
  %v4508 = vadd.f32 %v4506, %v4507
  %v4509 = vsel %vm1270, %v4498, 0.0
  %v4510 = vadd.f32 %v4508, %v4509
  %v4511 = vsel %vm1270, %v4499, 0.0
  %v4512 = vadd.f32 %v4510, %v4511
  %v4513 = vsel %vm1270, %v4500, 0.0
  %v4514 = vadd.f32 %v4512, %v4513
  %v4515 = vsel %vm1270, %v4501, 0.0
  %v4516 = vadd.f32 %v4514, %v4515
  %v4517 = vrot.slane %v4516, 4
  %v4518 = vadd.f32 %v4516, %v4517
  %v4519 = vrot.slane %v4518, 2
  %v4520 = vadd.f32 %v4518, %v4519
  %v4521 = vrot.slane %v4520, 1
  %v4522 = vadd.f32 %v4520, %v4521
  %v4523 = vmul.f32 %v4493, 0.015625
  %v4524 = vmul.f32 %v4522, 0.015625
  %v4525 = vmul.f32 %v4523, %v4523
  %v4526 = vsub.f32 %v4524, %v4525
  %v4527 = vmax.f32 %v4526, 0.0
  %v4528 = vadd.f32 %v4527, 1e-05
  %v4529 = vrsqrt.pop %v4528
  %v4530 = vld [vmem:[%s55 + $0x1] sm:$0x1]
  %v4531 = vmul.f32 %v4530, %v4529
  %v4532 = vld [vmem:[%s55 + $0x2] sm:$0x1]
  %v4533 = vmul.f32 %v4523, %v4531
  %v4534 = vsub.f32 %v4532, %v4533
  %v4535 = vlaneseq
  %v4536 = vshrl.u32 %v4535, 7
  %v4537 = vsub.s32 0, %v4536
  %v4538 = vrot.slane %v4531, %v4537
  %v4539 = vmul.f32 %v4443, %v4538
  %v4540 = vmul.f32 %v4446, %v4538
  %v4541 = vmul.f32 %v4451, %v4538
  %v4542 = vmul.f32 %v4454, %v4538
  %v4543 = vmul.f32 %v4459, %v4538
  %v4544 = vmul.f32 %v4462, %v4538
  %v4545 = vmul.f32 %v4467, %v4538
  %v4546 = vmul.f32 %v4470, %v4538
  %v4547 = vlaneseq
  %v4548 = vshrl.u32 %v4547, 7
  %v4549 = vsub.s32 0, %v4548
  %v4550 = vrot.slane %v4534, %v4549
  %v4551 = vadd.f32 %v4539, %v4550
  %v4552 = vadd.f32 %v4540, %v4550
  %v4553 = vadd.f32 %v4541, %v4550
  %v4554 = vadd.f32 %v4542, %v4550
  %v4555 = vadd.f32 %v4543, %v4550
  %v4556 = vadd.f32 %v4544, %v4550
  %v4557 = vadd.f32 %v4545, %v4550
  %v4558 = vadd.f32 %v4546, %v4550
  %v4559 = vmax.f32 %v4551, 0.0
  %v4560 = vmax.f32 %v4552, 0.0
  %v4561 = vmax.f32 %v4553, 0.0
  %v4562 = vmax.f32 %v4554, 0.0
  %v4563 = vmax.f32 %v4555, 0.0
  %v4564 = vmax.f32 %v4556, 0.0
  %v4565 = vmax.f32 %v4557, 0.0
  %v4566 = vmax.f32 %v4558, 0.0
  %v4567 = vpack.c.bf16 %v4560, %v4559
  %v4568 = vpack.c.bf16 %v4562, %v4561
  %v4569 = vpack.c.bf16 %v4564, %v4563
  %v4570 = vpack.c.bf16 %v4566, %v4565
  %4571 = vmatprep.subr.bf16.mxu0 0
  %4572 = vmatpush1.bf16.msra.mxu0 0
  %4573 = vmatprep.subr.bf16.mxu0 0
  %4574 = vmatpush1.bf16.msra.mxu0 0
  %4575 = vmatprep.subr.bf16.mxu0 0
  %4576 = vmatpush1.bf16.msra.mxu0 0
  %4577 = vmatprep.subr.bf16.mxu0 0
  %4578 = vmatpush1.bf16.msra.mxu0 0
  %4579 = vmatprep.subr.bf16.mxu0 0
  %4580 = vmatpush1.bf16.msra.mxu0 %v4570
  %4581 = vmatprep.subr.bf16.mxu0 0
  %4582 = vmatpush1.bf16.msra.mxu0 %v4569
  %4583 = vmatprep.subr.bf16.mxu0 0
  %4584 = vmatpush1.bf16.msra.mxu0 %v4568
  %4585 = vmatprep.subr.bf16.mxu0 0
  %4586 = vmatpush1.bf16.msra.mxu0 %v4567
  %4587 = vmatprep.subr.bf16.mxu0 0
  %4588 = vmatpush2.bf16.msra.mxu0 0
  %4589 = vmatprep.subr.bf16.mxu0 0
  %4590 = vmatpush2.bf16.msra.mxu0 0
  %4591 = vmatprep.subr.bf16.mxu0 0
  %4592 = vmatpush2.bf16.msra.mxu0 0
  %4593 = vmatprep.subr.bf16.mxu0 0
  %4594 = vmatpush2.bf16.msra.mxu0 0
  %4595 = vmatprep.subr.bf16.mxu0 0
  %4596 = vmatpush2.bf16.msra.mxu0 0
  %4597 = vmatprep.subr.bf16.mxu0 0
  %4598 = vmatpush2.bf16.msra.mxu0 0
  %4599 = vmatprep.subr.bf16.mxu0 0
  %4600 = vmatpush2.bf16.msra.mxu0 0
  %4601 = vmatprep.subr.bf16.mxu0 0
  %4602 = vmatpush2.bf16.msra.mxu0 0
  %4603 = vmatprep.mubr.bf16.mxu0 0
  %4604 = vmatmul.mubr.bf16.gmra.mxu0 %v4130
  %v4605 = vpop.f32.mrf.mxu0
  %v4606 = vadd.f32 0.0, %v4605
  %v4607 = vpop.f32.mrf.mxu0
  %v4608 = vpop.f32.mrf.mxu0
  %v4609 = vadd.f32 0.0, %v4608
  %v4610 = vpop.f32.mrf.mxu0
  %4611 = vmatprep.mubr.bf16.mxu0 0
  %4612 = vmatmul.mubr.bf16.gmra.mxu0 %v4133
  %v4613 = vpop.f32.mrf.mxu0
  %v4614 = vadd.f32 0.0, %v4613
  %v4615 = vpop.f32.mrf.mxu0
  %v4616 = vpop.f32.mrf.mxu0
  %v4617 = vadd.f32 0.0, %v4616
  %v4618 = vpop.f32.mrf.mxu0
  %4619 = vmatprep.mubr.bf16.mxu0 0
  %4620 = vmatmul.mubr.bf16.gmra.mxu0 %v4136
  %v4621 = vpop.f32.mrf.mxu0
  %v4622 = vadd.f32 0.0, %v4621
  %v4623 = vpop.f32.mrf.mxu0
  %v4624 = vpop.f32.mrf.mxu0
  %v4625 = vadd.f32 0.0, %v4624
  %v4626 = vpop.f32.mrf.mxu0
  %4627 = vmatprep.mubr.bf16.mxu0 0
  %4628 = vmatmul.mubr.bf16.gmra.mxu0 %v4139
  %v4629 = vpop.f32.mrf.mxu0
  %v4630 = vadd.f32 0.0, %v4629
  %v4631 = vpop.f32.mrf.mxu0
  %v4632 = vpop.f32.mrf.mxu0
  %v4633 = vadd.f32 0.0, %v4632
  %v4634 = vpop.f32.mrf.mxu0
  %4635 = vdwg.mxu0
  %v4636 = vpack.c.bf16 %v4609, %v4606
  %v4637 = vpack.c.bf16 %v4617, %v4614
  %v4638 = vpack.c.bf16 %v4625, %v4622
  %v4639 = vpack.c.bf16 %v4633, %v4630
  %4640 = vmatprep.subr.bf16.mxu0 0
  %4641 = vmatpush1.bf16.msra.mxu0 0
  %4642 = vmatprep.subr.bf16.mxu0 0
  %4643 = vmatpush1.bf16.msra.mxu0 0
  %4644 = vmatprep.subr.bf16.mxu0 0
  %4645 = vmatpush1.bf16.msra.mxu0 0
  %4646 = vmatprep.subr.bf16.mxu0 0
  %4647 = vmatpush1.bf16.msra.mxu0 0
  %4648 = vmatprep.subr.bf16.mxu0 0
  %4649 = vmatpush1.bf16.msra.mxu0 %v4639
  %4650 = vmatprep.subr.bf16.mxu0 0
  %4651 = vmatpush1.bf16.msra.mxu0 %v4638
  %4652 = vmatprep.subr.bf16.mxu0 0
  %4653 = vmatpush1.bf16.msra.mxu0 %v4637
  %4654 = vmatprep.subr.bf16.mxu0 0
  %4655 = vmatpush1.bf16.msra.mxu0 %v4636
  %4656 = vmatprep.subr.bf16.mxu0 0
  %4657 = vmatpush2.bf16.msra.mxu0 0
  %4658 = vmatprep.subr.bf16.mxu0 0
  %4659 = vmatpush2.bf16.msra.mxu0 0
  %4660 = vmatprep.subr.bf16.mxu0 0
  %4661 = vmatpush2.bf16.msra.mxu0 0
  %4662 = vmatprep.subr.bf16.mxu0 0
  %4663 = vmatpush2.bf16.msra.mxu0 0
  %4664 = vmatprep.subr.bf16.mxu0 0
  %4665 = vmatpush2.bf16.msra.mxu0 0
  %4666 = vmatprep.subr.bf16.mxu0 0
  %4667 = vmatpush2.bf16.msra.mxu0 0
  %4668 = vmatprep.subr.bf16.mxu0 0
  %4669 = vmatpush2.bf16.msra.mxu0 0
  %4670 = vmatprep.subr.bf16.mxu0 0
  %4671 = vmatpush2.bf16.msra.mxu0 0
  %4672 = vmatprep.mubr.bf16.mxu0 0
  %4673 = vmatmul.mubr.bf16.gmra.mxu0 %v4231
  %v4674 = vpop.f32.mrf.mxu0
  %v4675 = vadd.f32 0.0, %v4674
  %v4676 = vpop.f32.mrf.mxu0
  %v4677 = vpop.f32.mrf.mxu0
  %v4678 = vadd.f32 0.0, %v4677
  %v4679 = vpop.f32.mrf.mxu0
  %4680 = vmatprep.mubr.bf16.mxu0 0
  %4681 = vmatmul.mubr.bf16.gmra.mxu0 %v4234
  %v4682 = vpop.f32.mrf.mxu0
  %v4683 = vadd.f32 0.0, %v4682
  %v4684 = vpop.f32.mrf.mxu0
  %v4685 = vpop.f32.mrf.mxu0
  %v4686 = vadd.f32 0.0, %v4685
  %v4687 = vpop.f32.mrf.mxu0
  %4688 = vmatprep.mubr.bf16.mxu0 0
  %4689 = vmatmul.mubr.bf16.gmra.mxu0 %v4237
  %v4690 = vpop.f32.mrf.mxu0
  %v4691 = vadd.f32 0.0, %v4690
  %v4692 = vpop.f32.mrf.mxu0
  %v4693 = vpop.f32.mrf.mxu0
  %v4694 = vadd.f32 0.0, %v4693
  %v4695 = vpop.f32.mrf.mxu0
  %4696 = vmatprep.mubr.bf16.mxu0 0
  %4697 = vmatmul.mubr.bf16.gmra.mxu0 %v4240
  %v4698 = vpop.f32.mrf.mxu0
  %v4699 = vadd.f32 0.0, %v4698
  %v4700 = vpop.f32.mrf.mxu0
  %v4701 = vpop.f32.mrf.mxu0
  %v4702 = vadd.f32 0.0, %v4701
  %v4703 = vpop.f32.mrf.mxu0
  %4704 = vdwg.mxu0
  %v4705 = vunpack.c.l.bf16 %v4567
  %v4706 = vunpack.c.h.bf16 %v4567
  %v4707 = vunpack.c.l.bf16 %v4568
  %v4708 = vunpack.c.h.bf16 %v4568
  %v4709 = vunpack.c.l.bf16 %v4569
  %v4710 = vunpack.c.h.bf16 %v4569
  %v4711 = vunpack.c.l.bf16 %v4570
  %v4712 = vunpack.c.h.bf16 %v4570
  %v4713 = vsub.f32 %v4675, %v4705
  %v4714 = vsub.f32 %v4678, %v4706
  %v4715 = vsub.f32 %v4683, %v4707
  %v4716 = vsub.f32 %v4686, %v4708
  %v4717 = vsub.f32 %v4691, %v4709
  %v4718 = vsub.f32 %v4694, %v4710
  %v4719 = vsub.f32 %v4699, %v4711
  %v4720 = vsub.f32 %v4702, %v4712
  %v4721 = vpack.c.bf16 %v4714, %v4713
  %v4722 = vpack.c.bf16 %v4716, %v4715
  %v4723 = vpack.c.bf16 %v4718, %v4717
  %v4724 = vpack.c.bf16 %v4720, %v4719
  %4729 = vrot.lane.b32.xlu0 %v4636, 24
  %v4730 = vpop.permute.xlu0 %4729
  %4731 = vrot.lane.b32.xlu0 %v4637, 24
  %v4732 = vpop.permute.xlu0 %4731
  %4733 = vrot.lane.b32.xlu0 %v4638, 24
  %v4734 = vpop.permute.xlu0 %4733
  %4735 = vrot.lane.b32.xlu0 %v4639, 24
  %v4736 = vpop.permute.xlu0 %4735
  %4741 = vrot.lane.b32.xlu0 %v4721, 48
  %v4742 = vpop.permute.xlu0 %4741
  %4743 = vrot.lane.b32.xlu0 %v4722, 48
  %v4744 = vpop.permute.xlu0 %4743
  %4745 = vrot.lane.b32.xlu0 %v4723, 48
  %v4746 = vpop.permute.xlu0 %4745
  %4747 = vrot.lane.b32.xlu0 %v4724, 48
  %v4748 = vpop.permute.xlu0 %4747
  %v4751 = vsel %vm1270, %v4567, %v4730
  %v4754 = vsel %vm1270, %v4568, %v4732
  %v4757 = vsel %vm1270, %v4569, %v4734
  %v4760 = vsel %vm1270, %v4570, %v4736
  %v4762 = vsel %vm3503, %v4751, %v4742
  %v4764 = vsel %vm3503, %v4754, %v4744
  %v4766 = vsel %vm3503, %v4757, %v4746
  %v4768 = vsel %vm3503, %v4760, %v4748
  %v4769 = vld [vmem:[%s31] sm:$0xf]
  %v4770 = vld [vmem:[%s31 + $0x4] sm:$0xf]
  %v4771 = vld [vmem:[%s31 + $0x8] sm:$0xf]
  %v4772 = vld [vmem:[%s31 + $0xc] sm:$0xf]
  %v4773 = vld [vmem:[%s31 + $0x10] sm:$0xf]
  %v4774 = vld [vmem:[%s31 + $0x14] sm:$0xf]
  %v4775 = vld [vmem:[%s31 + $0x18] sm:$0xf]
  %v4776 = vld [vmem:[%s31 + $0x1c] sm:$0xf]
  %v4777 = vld [vmem:[%s31 + $0x20] sm:$0xf]
  %v4778 = vld [vmem:[%s57] sm:$0x1]
  %v4779 = vlaneseq
  %v4780 = vshrl.u32 %v4779, 7
  %v4781 = vsub.s32 0, %v4780
  %v4782 = vrot.slane %v4778, %v4781
  %v4792 = vunpack.c.l.b16 %v4769
  %v4793 = vunpack.c.l.b16 %v4770
  %v4794 = vunpack.c.l.b16 %v4771
  %v4795 = vunpack.c.l.b16 %v4772
  %v4796 = vunpack.c.l.b16 %v4773
  %v4797 = vunpack.c.l.b16 %v4774
  %v4798 = vunpack.c.l.b16 %v4775
  %v4799 = vunpack.c.l.b16 %v4776
  %v4800 = vunpack.c.l.b16 %v4777
  %v4801 = vpack.c.b16 %v4793, %v4792
  %v4802 = vpack.c.b16 %v4795, %v4794
  %v4803 = vpack.c.b16 %v4797, %v4796
  %v4804 = vpack.c.b16 %v4799, %v4798
  %v4805 = vpack.c.b16 %v4800, %v4800
  %vm4810 = vcmask 588800
  %v4811 = vsel %vm4810, %v4762, 0
  %v4813 = vsel %vm4810, %v4764, 0
  %v4815 = vsel %vm4810, %v4766, 0
  %v4817 = vsel %vm4810, %v4768, 0
  %v4820 = vsel %vm1303, %v4805, 0
  %4822 = vmatprep.subr.bf16.mxu0 0
  %4823 = vmatpush1.bf16.msra.mxu0 0
  %4824 = vmatprep.subr.bf16.mxu0 0
  %4825 = vmatpush1.bf16.msra.mxu0 0
  %4826 = vmatprep.subr.bf16.mxu0 0
  %4827 = vmatpush1.bf16.msra.mxu0 0
  %4828 = vmatprep.subr.bf16.mxu0 0
  %4829 = vmatpush1.bf16.msra.mxu0 %v4820
  %4830 = vmatprep.subr.bf16.mxu0 0
  %4831 = vmatpush1.bf16.msra.mxu0 %v4804
  %4832 = vmatprep.subr.bf16.mxu0 0
  %4833 = vmatpush1.bf16.msra.mxu0 %v4803
  %4834 = vmatprep.subr.bf16.mxu0 0
  %4835 = vmatpush1.bf16.msra.mxu0 %v4802
  %4836 = vmatprep.subr.bf16.mxu0 0
  %4837 = vmatpush1.bf16.msra.mxu0 %v4801
  %4838 = vmatprep.subr.bf16.mxu0 0
  %4839 = vmatpush2.bf16.msra.mxu0 0
  %4840 = vmatprep.subr.bf16.mxu0 0
  %4841 = vmatpush2.bf16.msra.mxu0 0
  %4842 = vmatprep.subr.bf16.mxu0 0
  %4843 = vmatpush2.bf16.msra.mxu0 0
  %4844 = vmatprep.subr.bf16.mxu0 0
  %4845 = vmatpush2.bf16.msra.mxu0 0
  %4846 = vmatprep.subr.bf16.mxu0 0
  %4847 = vmatpush2.bf16.msra.mxu0 0
  %4848 = vmatprep.subr.bf16.mxu0 0
  %4849 = vmatpush2.bf16.msra.mxu0 0
  %4850 = vmatprep.subr.bf16.mxu0 0
  %4851 = vmatpush2.bf16.msra.mxu0 0
  %4852 = vmatprep.subr.bf16.mxu0 0
  %4853 = vmatpush2.bf16.msra.mxu0 0
  %4854 = vmatprep.mubr.bf16.mxu0 0
  %4855 = vmatmul.mubr.bf16.gmra.mxu0 %v4811
  %v4856 = vpop.f32.mrf.mxu0
  %v4857 = vadd.f32 %v4782, %v4856
  %v4858 = vpop.f32.mrf.mxu0
  %v4859 = vpop.f32.mrf.mxu0
  %v4860 = vadd.f32 %v4782, %v4859
  %v4861 = vpop.f32.mrf.mxu0
  %4862 = vmatprep.mubr.bf16.mxu0 0
  %4863 = vmatmul.mubr.bf16.gmra.mxu0 %v4813
  %v4864 = vpop.f32.mrf.mxu0
  %v4865 = vadd.f32 %v4782, %v4864
  %v4866 = vpop.f32.mrf.mxu0
  %v4867 = vpop.f32.mrf.mxu0
  %v4868 = vadd.f32 %v4782, %v4867
  %v4869 = vpop.f32.mrf.mxu0
  %4870 = vmatprep.mubr.bf16.mxu0 0
  %4871 = vmatmul.mubr.bf16.gmra.mxu0 %v4815
  %v4872 = vpop.f32.mrf.mxu0
  %v4873 = vadd.f32 %v4782, %v4872
  %v4874 = vpop.f32.mrf.mxu0
  %v4875 = vpop.f32.mrf.mxu0
  %v4876 = vadd.f32 %v4782, %v4875
  %v4877 = vpop.f32.mrf.mxu0
  %4878 = vmatprep.mubr.bf16.mxu0 0
  %4879 = vmatmul.mubr.bf16.gmra.mxu0 %v4817
  %v4880 = vpop.f32.mrf.mxu0
  %v4881 = vadd.f32 %v4782, %v4880
  %v4882 = vpop.f32.mrf.mxu0
  %v4883 = vpop.f32.mrf.mxu0
  %v4884 = vadd.f32 %v4782, %v4883
  %v4885 = vpop.f32.mrf.mxu0
  %4886 = vdwg.mxu0
  %v4887 = vsel %vm3441, %v4857, 0.0
  %v4888 = vsel %vm3441, %v4860, 0.0
  %v4889 = vadd.f32 %v4887, %v4888
  %v4890 = vsel %vm3441, %v4865, 0.0
  %v4891 = vadd.f32 %v4889, %v4890
  %v4892 = vsel %vm3441, %v4868, 0.0
  %v4893 = vadd.f32 %v4891, %v4892
  %v4894 = vsel %vm3441, %v4873, 0.0
  %v4895 = vadd.f32 %v4893, %v4894
  %v4896 = vsel %vm3441, %v4876, 0.0
  %v4897 = vadd.f32 %v4895, %v4896
  %v4898 = vsel %vm3441, %v4881, 0.0
  %v4899 = vadd.f32 %v4897, %v4898
  %v4900 = vsel %vm3441, %v4884, 0.0
  %v4901 = vadd.f32 %v4899, %v4900
  %v4902 = vrot.slane %v4901, 4
  %v4903 = vadd.f32 %v4901, %v4902
  %v4904 = vrot.slane %v4903, 2
  %v4905 = vadd.f32 %v4903, %v4904
  %v4906 = vrot.slane %v4905, 1
  %v4907 = vadd.f32 %v4905, %v4906
  %v4908 = vmul.f32 %v4857, %v4857
  %v4909 = vmul.f32 %v4860, %v4860
  %v4910 = vmul.f32 %v4865, %v4865
  %v4911 = vmul.f32 %v4868, %v4868
  %v4912 = vmul.f32 %v4873, %v4873
  %v4913 = vmul.f32 %v4876, %v4876
  %v4914 = vmul.f32 %v4881, %v4881
  %v4915 = vmul.f32 %v4884, %v4884
  %v4916 = vsel %vm3441, %v4908, 0.0
  %v4917 = vsel %vm3441, %v4909, 0.0
  %v4918 = vadd.f32 %v4916, %v4917
  %v4919 = vsel %vm3441, %v4910, 0.0
  %v4920 = vadd.f32 %v4918, %v4919
  %v4921 = vsel %vm3441, %v4911, 0.0
  %v4922 = vadd.f32 %v4920, %v4921
  %v4923 = vsel %vm3441, %v4912, 0.0
  %v4924 = vadd.f32 %v4922, %v4923
  %v4925 = vsel %vm3441, %v4913, 0.0
  %v4926 = vadd.f32 %v4924, %v4925
  %v4927 = vsel %vm3441, %v4914, 0.0
  %v4928 = vadd.f32 %v4926, %v4927
  %v4929 = vsel %vm3441, %v4915, 0.0
  %v4930 = vadd.f32 %v4928, %v4929
  %v4931 = vrot.slane %v4930, 4
  %v4932 = vadd.f32 %v4930, %v4931
  %v4933 = vrot.slane %v4932, 2
  %v4934 = vadd.f32 %v4932, %v4933
  %v4935 = vrot.slane %v4934, 1
  %v4936 = vadd.f32 %v4934, %v4935
  %v4937 = vmul.f32 %v4907, 0.015625
  %v4938 = vmul.f32 %v4936, 0.015625
  %v4939 = vmul.f32 %v4937, %v4937
  %v4940 = vsub.f32 %v4938, %v4939
  %v4941 = vmax.f32 %v4940, 0.0
  %v4942 = vadd.f32 %v4941, 1e-05
  %v4943 = vrsqrt.pop %v4942
  %v4944 = vld [vmem:[%s57 + $0x1] sm:$0x1]
  %v4945 = vmul.f32 %v4944, %v4943
  %v4946 = vld [vmem:[%s57 + $0x2] sm:$0x1]
  %v4947 = vmul.f32 %v4937, %v4945
  %v4948 = vsub.f32 %v4946, %v4947
  %v4949 = vlaneseq
  %v4950 = vshrl.u32 %v4949, 7
  %v4951 = vsub.s32 0, %v4950
  %v4952 = vrot.slane %v4945, %v4951
  %v4953 = vmul.f32 %v4857, %v4952
  %v4954 = vmul.f32 %v4860, %v4952
  %v4955 = vmul.f32 %v4865, %v4952
  %v4956 = vmul.f32 %v4868, %v4952
  %v4957 = vmul.f32 %v4873, %v4952
  %v4958 = vmul.f32 %v4876, %v4952
  %v4959 = vmul.f32 %v4881, %v4952
  %v4960 = vmul.f32 %v4884, %v4952
  %v4961 = vlaneseq
  %v4962 = vshrl.u32 %v4961, 7
  %v4963 = vsub.s32 0, %v4962
  %v4964 = vrot.slane %v4948, %v4963
  %v4965 = vadd.f32 %v4953, %v4964
  %v4966 = vadd.f32 %v4954, %v4964
  %v4967 = vadd.f32 %v4955, %v4964
  %v4968 = vadd.f32 %v4956, %v4964
  %v4969 = vadd.f32 %v4957, %v4964
  %v4970 = vadd.f32 %v4958, %v4964
  %v4971 = vadd.f32 %v4959, %v4964
  %v4972 = vadd.f32 %v4960, %v4964
  %v4973 = vmax.f32 %v4965, 0.0
  %v4974 = vmax.f32 %v4966, 0.0
  %v4975 = vmax.f32 %v4967, 0.0
  %v4976 = vmax.f32 %v4968, 0.0
  %v4977 = vmax.f32 %v4969, 0.0
  %v4978 = vmax.f32 %v4970, 0.0
  %v4979 = vmax.f32 %v4971, 0.0
  %v4980 = vmax.f32 %v4972, 0.0
  %v4981 = vpack.c.bf16 %v4974, %v4973
  %v4982 = vpack.c.bf16 %v4976, %v4975
  %v4983 = vpack.c.bf16 %v4978, %v4977
  %v4984 = vpack.c.bf16 %v4980, %v4979
  %4985 = vmatprep.subr.bf16.mxu0 0
  %4986 = vmatpush1.bf16.msra.mxu0 0
  %4987 = vmatprep.subr.bf16.mxu0 0
  %4988 = vmatpush1.bf16.msra.mxu0 0
  %4989 = vmatprep.subr.bf16.mxu0 0
  %4990 = vmatpush1.bf16.msra.mxu0 0
  %4991 = vmatprep.subr.bf16.mxu0 0
  %4992 = vmatpush1.bf16.msra.mxu0 0
  %4993 = vmatprep.subr.bf16.mxu0 0
  %4994 = vmatpush1.bf16.msra.mxu0 %v4984
  %4995 = vmatprep.subr.bf16.mxu0 0
  %4996 = vmatpush1.bf16.msra.mxu0 %v4983
  %4997 = vmatprep.subr.bf16.mxu0 0
  %4998 = vmatpush1.bf16.msra.mxu0 %v4982
  %4999 = vmatprep.subr.bf16.mxu0 0
  %5000 = vmatpush1.bf16.msra.mxu0 %v4981
  %5001 = vmatprep.subr.bf16.mxu0 0
  %5002 = vmatpush2.bf16.msra.mxu0 0
  %5003 = vmatprep.subr.bf16.mxu0 0
  %5004 = vmatpush2.bf16.msra.mxu0 0
  %5005 = vmatprep.subr.bf16.mxu0 0
  %5006 = vmatpush2.bf16.msra.mxu0 0
  %5007 = vmatprep.subr.bf16.mxu0 0
  %5008 = vmatpush2.bf16.msra.mxu0 0
  %5009 = vmatprep.subr.bf16.mxu0 0
  %5010 = vmatpush2.bf16.msra.mxu0 0
  %5011 = vmatprep.subr.bf16.mxu0 0
  %5012 = vmatpush2.bf16.msra.mxu0 0
  %5013 = vmatprep.subr.bf16.mxu0 0
  %5014 = vmatpush2.bf16.msra.mxu0 0
  %5015 = vmatprep.subr.bf16.mxu0 0
  %5016 = vmatpush2.bf16.msra.mxu0 0
  %5017 = vmatprep.mubr.bf16.mxu0 0
  %5018 = vmatmul.mubr.bf16.gmra.mxu0 %v4130
  %v5019 = vpop.f32.mrf.mxu0
  %v5020 = vadd.f32 0.0, %v5019
  %v5021 = vpop.f32.mrf.mxu0
  %v5022 = vpop.f32.mrf.mxu0
  %v5023 = vadd.f32 0.0, %v5022
  %v5024 = vpop.f32.mrf.mxu0
  %5025 = vmatprep.mubr.bf16.mxu0 0
  %5026 = vmatmul.mubr.bf16.gmra.mxu0 %v4133
  %v5027 = vpop.f32.mrf.mxu0
  %v5028 = vadd.f32 0.0, %v5027
  %v5029 = vpop.f32.mrf.mxu0
  %v5030 = vpop.f32.mrf.mxu0
  %v5031 = vadd.f32 0.0, %v5030
  %v5032 = vpop.f32.mrf.mxu0
  %5033 = vmatprep.mubr.bf16.mxu0 0
  %5034 = vmatmul.mubr.bf16.gmra.mxu0 %v4136
  %v5035 = vpop.f32.mrf.mxu0
  %v5036 = vadd.f32 0.0, %v5035
  %v5037 = vpop.f32.mrf.mxu0
  %v5038 = vpop.f32.mrf.mxu0
  %v5039 = vadd.f32 0.0, %v5038
  %v5040 = vpop.f32.mrf.mxu0
  %5041 = vmatprep.mubr.bf16.mxu0 0
  %5042 = vmatmul.mubr.bf16.gmra.mxu0 %v4139
  %v5043 = vpop.f32.mrf.mxu0
  %v5044 = vadd.f32 0.0, %v5043
  %v5045 = vpop.f32.mrf.mxu0
  %v5046 = vpop.f32.mrf.mxu0
  %v5047 = vadd.f32 0.0, %v5046
  %v5048 = vpop.f32.mrf.mxu0
  %5049 = vdwg.mxu0
  %v5050 = vpack.c.bf16 %v5023, %v5020
  %v5051 = vpack.c.bf16 %v5031, %v5028
  %v5052 = vpack.c.bf16 %v5039, %v5036
  %v5053 = vpack.c.bf16 %v5047, %v5044
  %5054 = vmatprep.subr.bf16.mxu0 0
  %5055 = vmatpush1.bf16.msra.mxu0 0
  %5056 = vmatprep.subr.bf16.mxu0 0
  %5057 = vmatpush1.bf16.msra.mxu0 0
  %5058 = vmatprep.subr.bf16.mxu0 0
  %5059 = vmatpush1.bf16.msra.mxu0 0
  %5060 = vmatprep.subr.bf16.mxu0 0
  %5061 = vmatpush1.bf16.msra.mxu0 0
  %5062 = vmatprep.subr.bf16.mxu0 0
  %5063 = vmatpush1.bf16.msra.mxu0 %v5053
  %5064 = vmatprep.subr.bf16.mxu0 0
  %5065 = vmatpush1.bf16.msra.mxu0 %v5052
  %5066 = vmatprep.subr.bf16.mxu0 0
  %5067 = vmatpush1.bf16.msra.mxu0 %v5051
  %5068 = vmatprep.subr.bf16.mxu0 0
  %5069 = vmatpush1.bf16.msra.mxu0 %v5050
  %5070 = vmatprep.subr.bf16.mxu0 0
  %5071 = vmatpush2.bf16.msra.mxu0 0
  %5072 = vmatprep.subr.bf16.mxu0 0
  %5073 = vmatpush2.bf16.msra.mxu0 0
  %5074 = vmatprep.subr.bf16.mxu0 0
  %5075 = vmatpush2.bf16.msra.mxu0 0
  %5076 = vmatprep.subr.bf16.mxu0 0
  %5077 = vmatpush2.bf16.msra.mxu0 0
  %5078 = vmatprep.subr.bf16.mxu0 0
  %5079 = vmatpush2.bf16.msra.mxu0 0
  %5080 = vmatprep.subr.bf16.mxu0 0
  %5081 = vmatpush2.bf16.msra.mxu0 0
  %5082 = vmatprep.subr.bf16.mxu0 0
  %5083 = vmatpush2.bf16.msra.mxu0 0
  %5084 = vmatprep.subr.bf16.mxu0 0
  %5085 = vmatpush2.bf16.msra.mxu0 0
  %5086 = vmatprep.mubr.bf16.mxu0 0
  %5087 = vmatmul.mubr.bf16.gmra.mxu0 %v4231
  %v5088 = vpop.f32.mrf.mxu0
  %v5089 = vadd.f32 0.0, %v5088
  %v5090 = vpop.f32.mrf.mxu0
  %v5091 = vpop.f32.mrf.mxu0
  %v5092 = vadd.f32 0.0, %v5091
  %v5093 = vpop.f32.mrf.mxu0
  %5094 = vmatprep.mubr.bf16.mxu0 0
  %5095 = vmatmul.mubr.bf16.gmra.mxu0 %v4234
  %v5096 = vpop.f32.mrf.mxu0
  %v5097 = vadd.f32 0.0, %v5096
  %v5098 = vpop.f32.mrf.mxu0
  %v5099 = vpop.f32.mrf.mxu0
  %v5100 = vadd.f32 0.0, %v5099
  %v5101 = vpop.f32.mrf.mxu0
  %5102 = vmatprep.mubr.bf16.mxu0 0
  %5103 = vmatmul.mubr.bf16.gmra.mxu0 %v4237
  %v5104 = vpop.f32.mrf.mxu0
  %v5105 = vadd.f32 0.0, %v5104
  %v5106 = vpop.f32.mrf.mxu0
  %v5107 = vpop.f32.mrf.mxu0
  %v5108 = vadd.f32 0.0, %v5107
  %v5109 = vpop.f32.mrf.mxu0
  %5110 = vmatprep.mubr.bf16.mxu0 0
  %5111 = vmatmul.mubr.bf16.gmra.mxu0 %v4240
  %v5112 = vpop.f32.mrf.mxu0
  %v5113 = vadd.f32 0.0, %v5112
  %v5114 = vpop.f32.mrf.mxu0
  %v5115 = vpop.f32.mrf.mxu0
  %v5116 = vadd.f32 0.0, %v5115
  %v5117 = vpop.f32.mrf.mxu0
  %5118 = vdwg.mxu0
  %v5119 = vunpack.c.l.bf16 %v4981
  %v5120 = vunpack.c.h.bf16 %v4981
  %v5121 = vunpack.c.l.bf16 %v4982
  %v5122 = vunpack.c.h.bf16 %v4982
  %v5123 = vunpack.c.l.bf16 %v4983
  %v5124 = vunpack.c.h.bf16 %v4983
  %v5125 = vunpack.c.l.bf16 %v4984
  %v5126 = vunpack.c.h.bf16 %v4984
  %v5127 = vsub.f32 %v5089, %v5119
  %v5128 = vsub.f32 %v5092, %v5120
  %v5129 = vsub.f32 %v5097, %v5121
  %v5130 = vsub.f32 %v5100, %v5122
  %v5131 = vsub.f32 %v5105, %v5123
  %v5132 = vsub.f32 %v5108, %v5124
  %v5133 = vsub.f32 %v5113, %v5125
  %v5134 = vsub.f32 %v5116, %v5126
  %v5135 = vpack.c.bf16 %v5128, %v5127
  %v5136 = vpack.c.bf16 %v5130, %v5129
  %v5137 = vpack.c.bf16 %v5132, %v5131
  %v5138 = vpack.c.bf16 %v5134, %v5133
  %5143 = vrot.lane.b32.xlu0 %v5050, 32
  %v5144 = vpop.permute.xlu0 %5143
  %5145 = vrot.lane.b32.xlu0 %v5051, 32
  %v5146 = vpop.permute.xlu0 %5145
  %5147 = vrot.lane.b32.xlu0 %v5052, 32
  %v5148 = vpop.permute.xlu0 %5147
  %5149 = vrot.lane.b32.xlu0 %v5053, 32
  %v5150 = vpop.permute.xlu0 %5149
  %5155 = vrot.lane.b32.xlu0 %v5135, 64
  %v5156 = vpop.permute.xlu0 %5155
  %5157 = vrot.lane.b32.xlu0 %v5136, 64
  %v5158 = vpop.permute.xlu0 %5157
  %5159 = vrot.lane.b32.xlu0 %v5137, 64
  %v5160 = vpop.permute.xlu0 %5159
  %5161 = vrot.lane.b32.xlu0 %v5138, 64
  %v5162 = vpop.permute.xlu0 %5161
  %v5165 = vsel %vm3441, %v4981, %v5144
  %v5168 = vsel %vm3441, %v4982, %v5146
  %v5171 = vsel %vm3441, %v4983, %v5148
  %v5174 = vsel %vm3441, %v4984, %v5150
  %v5176 = vsel %vm4128, %v5165, %v5156
  %v5178 = vsel %vm4128, %v5168, %v5158
  %v5180 = vsel %vm4128, %v5171, %v5160
  %v5182 = vsel %vm4128, %v5174, %v5162
  %v5183 = vld [vmem:[%s33] sm:$0xf]
  %v5184 = vld [vmem:[%s33 + $0x4] sm:$0xf]
  %v5185 = vld [vmem:[%s33 + $0x8] sm:$0xf]
  %v5186 = vld [vmem:[%s33 + $0xc] sm:$0xf]
  %v5187 = vld [vmem:[%s33 + $0x10] sm:$0xf]
  %v5188 = vld [vmem:[%s33 + $0x14] sm:$0xf]
  %v5189 = vld [vmem:[%s33 + $0x18] sm:$0xf]
  %v5190 = vld [vmem:[%s33 + $0x1c] sm:$0xf]
  %v5191 = vld [vmem:[%s33 + $0x20] sm:$0xf]
  %v5192 = vld [vmem:[%s33 + $0x24] sm:$0xf]
  %v5193 = vld [vmem:[%s33 + $0x28] sm:$0xf]
  %v5194 = vld [vmem:[%s33 + $0x2c] sm:$0xf]
  %v5195 = vld [vmem:[%s59] sm:$0x1]
  %v5196 = vlaneseq
  %v5197 = vshrl.u32 %v5196, 7
  %v5198 = vsub.s32 0, %v5197
  %v5199 = vrot.slane %v5195, %v5198
  %v5212 = vunpack.c.l.b16 %v5183
  %v5213 = vunpack.c.l.b16 %v5184
  %v5214 = vunpack.c.l.b16 %v5185
  %v5215 = vunpack.c.l.b16 %v5186
  %v5216 = vunpack.c.l.b16 %v5187
  %v5217 = vunpack.c.l.b16 %v5188
  %v5218 = vunpack.c.l.b16 %v5189
  %v5219 = vunpack.c.l.b16 %v5190
  %v5220 = vunpack.c.l.b16 %v5191
  %v5221 = vunpack.c.l.b16 %v5192
  %v5222 = vunpack.c.l.b16 %v5193
  %v5223 = vunpack.c.l.b16 %v5194
  %v5224 = vpack.c.b16 %v5213, %v5212
  %v5225 = vpack.c.b16 %v5215, %v5214
  %v5226 = vpack.c.b16 %v5217, %v5216
  %v5227 = vpack.c.b16 %v5219, %v5218
  %v5228 = vpack.c.b16 %v5221, %v5220
  %v5229 = vpack.c.b16 %v5223, %v5222
  %vm5236 = vcmask 785408
  %v5237 = vsel %vm5236, %v5176, 0
  %v5239 = vsel %vm5236, %v5178, 0
  %v5241 = vsel %vm5236, %v5180, 0
  %v5243 = vsel %vm5236, %v5182, 0
  %5245 = vmatprep.subr.bf16.mxu0 0
  %5246 = vmatpush1.bf16.msra.mxu0 0
  %5247 = vmatprep.subr.bf16.mxu0 0
  %5248 = vmatpush1.bf16.msra.mxu0 0
  %5249 = vmatprep.subr.bf16.mxu0 0
  %5250 = vmatpush1.bf16.msra.mxu0 %v5229
  %5251 = vmatprep.subr.bf16.mxu0 0
  %5252 = vmatpush1.bf16.msra.mxu0 %v5228
  %5253 = vmatprep.subr.bf16.mxu0 0
  %5254 = vmatpush1.bf16.msra.mxu0 %v5227
  %5255 = vmatprep.subr.bf16.mxu0 0
  %5256 = vmatpush1.bf16.msra.mxu0 %v5226
  %5257 = vmatprep.subr.bf16.mxu0 0
  %5258 = vmatpush1.bf16.msra.mxu0 %v5225
  %5259 = vmatprep.subr.bf16.mxu0 0
  %5260 = vmatpush1.bf16.msra.mxu0 %v5224
  %5261 = vmatprep.subr.bf16.mxu0 0
  %5262 = vmatpush2.bf16.msra.mxu0 0
  %5263 = vmatprep.subr.bf16.mxu0 0
  %5264 = vmatpush2.bf16.msra.mxu0 0
  %5265 = vmatprep.subr.bf16.mxu0 0
  %5266 = vmatpush2.bf16.msra.mxu0 0
  %5267 = vmatprep.subr.bf16.mxu0 0
  %5268 = vmatpush2.bf16.msra.mxu0 0
  %5269 = vmatprep.subr.bf16.mxu0 0
  %5270 = vmatpush2.bf16.msra.mxu0 0
  %5271 = vmatprep.subr.bf16.mxu0 0
  %5272 = vmatpush2.bf16.msra.mxu0 0
  %5273 = vmatprep.subr.bf16.mxu0 0
  %5274 = vmatpush2.bf16.msra.mxu0 0
  %5275 = vmatprep.subr.bf16.mxu0 0
  %5276 = vmatpush2.bf16.msra.mxu0 0
  %5277 = vmatprep.mubr.bf16.mxu0 0
  %5278 = vmatmul.mubr.bf16.gmra.mxu0 %v5237
  %v5279 = vpop.f32.mrf.mxu0
  %v5280 = vadd.f32 %v5199, %v5279
  %v5281 = vpop.f32.mrf.mxu0
  %v5282 = vpop.f32.mrf.mxu0
  %v5283 = vadd.f32 %v5199, %v5282
  %v5284 = vpop.f32.mrf.mxu0
  %5285 = vmatprep.mubr.bf16.mxu0 0
  %5286 = vmatmul.mubr.bf16.gmra.mxu0 %v5239
  %v5287 = vpop.f32.mrf.mxu0
  %v5288 = vadd.f32 %v5199, %v5287
  %v5289 = vpop.f32.mrf.mxu0
  %v5290 = vpop.f32.mrf.mxu0
  %v5291 = vadd.f32 %v5199, %v5290
  %v5292 = vpop.f32.mrf.mxu0
  %5293 = vmatprep.mubr.bf16.mxu0 0
  %5294 = vmatmul.mubr.bf16.gmra.mxu0 %v5241
  %v5295 = vpop.f32.mrf.mxu0
  %v5296 = vadd.f32 %v5199, %v5295
  %v5297 = vpop.f32.mrf.mxu0
  %v5298 = vpop.f32.mrf.mxu0
  %v5299 = vadd.f32 %v5199, %v5298
  %v5300 = vpop.f32.mrf.mxu0
  %5301 = vmatprep.mubr.bf16.mxu0 0
  %5302 = vmatmul.mubr.bf16.gmra.mxu0 %v5243
  %v5303 = vpop.f32.mrf.mxu0
  %v5304 = vadd.f32 %v5199, %v5303
  %v5305 = vpop.f32.mrf.mxu0
  %v5306 = vpop.f32.mrf.mxu0
  %v5307 = vadd.f32 %v5199, %v5306
  %v5308 = vpop.f32.mrf.mxu0
  %5309 = vdwg.mxu0
  %v5310 = vsel %vm3441, %v5280, 0.0
  %v5311 = vsel %vm3441, %v5283, 0.0
  %v5312 = vadd.f32 %v5310, %v5311
  %v5313 = vsel %vm3441, %v5288, 0.0
  %v5314 = vadd.f32 %v5312, %v5313
  %v5315 = vsel %vm3441, %v5291, 0.0
  %v5316 = vadd.f32 %v5314, %v5315
  %v5317 = vsel %vm3441, %v5296, 0.0
  %v5318 = vadd.f32 %v5316, %v5317
  %v5319 = vsel %vm3441, %v5299, 0.0
  %v5320 = vadd.f32 %v5318, %v5319
  %v5321 = vsel %vm3441, %v5304, 0.0
  %v5322 = vadd.f32 %v5320, %v5321
  %v5323 = vsel %vm3441, %v5307, 0.0
  %v5324 = vadd.f32 %v5322, %v5323
  %v5325 = vrot.slane %v5324, 4
  %v5326 = vadd.f32 %v5324, %v5325
  %v5327 = vrot.slane %v5326, 2
  %v5328 = vadd.f32 %v5326, %v5327
  %v5329 = vrot.slane %v5328, 1
  %v5330 = vadd.f32 %v5328, %v5329
  %v5331 = vmul.f32 %v5280, %v5280
  %v5332 = vmul.f32 %v5283, %v5283
  %v5333 = vmul.f32 %v5288, %v5288
  %v5334 = vmul.f32 %v5291, %v5291
  %v5335 = vmul.f32 %v5296, %v5296
  %v5336 = vmul.f32 %v5299, %v5299
  %v5337 = vmul.f32 %v5304, %v5304
  %v5338 = vmul.f32 %v5307, %v5307
  %v5339 = vsel %vm3441, %v5331, 0.0
  %v5340 = vsel %vm3441, %v5332, 0.0
  %v5341 = vadd.f32 %v5339, %v5340
  %v5342 = vsel %vm3441, %v5333, 0.0
  %v5343 = vadd.f32 %v5341, %v5342
  %v5344 = vsel %vm3441, %v5334, 0.0
  %v5345 = vadd.f32 %v5343, %v5344
  %v5346 = vsel %vm3441, %v5335, 0.0
  %v5347 = vadd.f32 %v5345, %v5346
  %v5348 = vsel %vm3441, %v5336, 0.0
  %v5349 = vadd.f32 %v5347, %v5348
  %v5350 = vsel %vm3441, %v5337, 0.0
  %v5351 = vadd.f32 %v5349, %v5350
  %v5352 = vsel %vm3441, %v5338, 0.0
  %v5353 = vadd.f32 %v5351, %v5352
  %v5354 = vrot.slane %v5353, 4
  %v5355 = vadd.f32 %v5353, %v5354
  %v5356 = vrot.slane %v5355, 2
  %v5357 = vadd.f32 %v5355, %v5356
  %v5358 = vrot.slane %v5357, 1
  %v5359 = vadd.f32 %v5357, %v5358
  %v5360 = vmul.f32 %v5330, 0.015625
  %v5361 = vmul.f32 %v5359, 0.015625
  %v5362 = vmul.f32 %v5360, %v5360
  %v5363 = vsub.f32 %v5361, %v5362
  %v5364 = vmax.f32 %v5363, 0.0
  %v5365 = vadd.f32 %v5364, 1e-05
  %v5366 = vrsqrt.pop %v5365
  %v5367 = vld [vmem:[%s59 + $0x1] sm:$0x1]
  %v5368 = vmul.f32 %v5367, %v5366
  %v5369 = vld [vmem:[%s59 + $0x2] sm:$0x1]
  %v5370 = vmul.f32 %v5360, %v5368
  %v5371 = vsub.f32 %v5369, %v5370
  %v5372 = vlaneseq
  %v5373 = vshrl.u32 %v5372, 7
  %v5374 = vsub.s32 0, %v5373
  %v5375 = vrot.slane %v5368, %v5374
  %v5376 = vmul.f32 %v5280, %v5375
  %v5377 = vmul.f32 %v5283, %v5375
  %v5378 = vmul.f32 %v5288, %v5375
  %v5379 = vmul.f32 %v5291, %v5375
  %v5380 = vmul.f32 %v5296, %v5375
  %v5381 = vmul.f32 %v5299, %v5375
  %v5382 = vmul.f32 %v5304, %v5375
  %v5383 = vmul.f32 %v5307, %v5375
  %v5384 = vlaneseq
  %v5385 = vshrl.u32 %v5384, 7
  %v5386 = vsub.s32 0, %v5385
  %v5387 = vrot.slane %v5371, %v5386
  %v5388 = vadd.f32 %v5376, %v5387
  %v5389 = vadd.f32 %v5377, %v5387
  %v5390 = vadd.f32 %v5378, %v5387
  %v5391 = vadd.f32 %v5379, %v5387
  %v5392 = vadd.f32 %v5380, %v5387
  %v5393 = vadd.f32 %v5381, %v5387
  %v5394 = vadd.f32 %v5382, %v5387
  %v5395 = vadd.f32 %v5383, %v5387
  %v5396 = vmax.f32 %v5388, 0.0
  %v5397 = vmax.f32 %v5389, 0.0
  %v5398 = vmax.f32 %v5390, 0.0
  %v5399 = vmax.f32 %v5391, 0.0
  %v5400 = vmax.f32 %v5392, 0.0
  %v5401 = vmax.f32 %v5393, 0.0
  %v5402 = vmax.f32 %v5394, 0.0
  %v5403 = vmax.f32 %v5395, 0.0
  %v5404 = vpack.c.bf16 %v5397, %v5396
  %v5405 = vpack.c.bf16 %v5399, %v5398
  %v5406 = vpack.c.bf16 %v5401, %v5400
  %v5407 = vpack.c.bf16 %v5403, %v5402
  %v5410 = vunpack.c.l.b16 %v247
  %v5411 = vunpack.c.l.b16 %v248
  %v5412 = vpack.c.b16 %v5411, %v5410
  %v5414 = vsel %vm4128, %v5412, 0
  %5416 = vmatprep.subr.bf16.mxu0 0
  %5417 = vmatpush1.bf16.msra.mxu0 0
  %5418 = vmatprep.subr.bf16.mxu0 0
  %5419 = vmatpush1.bf16.msra.mxu0 0
  %5420 = vmatprep.subr.bf16.mxu0 0
  %5421 = vmatpush1.bf16.msra.mxu0 0
  %5422 = vmatprep.subr.bf16.mxu0 0
  %5423 = vmatpush1.bf16.msra.mxu0 0
  %5424 = vmatprep.subr.bf16.mxu0 0
  %5425 = vmatpush1.bf16.msra.mxu0 %v5407
  %5426 = vmatprep.subr.bf16.mxu0 0
  %5427 = vmatpush1.bf16.msra.mxu0 %v5406
  %5428 = vmatprep.subr.bf16.mxu0 0
  %5429 = vmatpush1.bf16.msra.mxu0 %v5405
  %5430 = vmatprep.subr.bf16.mxu0 0
  %5431 = vmatpush1.bf16.msra.mxu0 %v5404
  %5432 = vmatprep.subr.bf16.mxu0 0
  %5433 = vmatpush2.bf16.msra.mxu0 0
  %5434 = vmatprep.subr.bf16.mxu0 0
  %5435 = vmatpush2.bf16.msra.mxu0 0
  %5436 = vmatprep.subr.bf16.mxu0 0
  %5437 = vmatpush2.bf16.msra.mxu0 0
  %5438 = vmatprep.subr.bf16.mxu0 0
  %5439 = vmatpush2.bf16.msra.mxu0 0
  %5440 = vmatprep.subr.bf16.mxu0 0
  %5441 = vmatpush2.bf16.msra.mxu0 0
  %5442 = vmatprep.subr.bf16.mxu0 0
  %5443 = vmatpush2.bf16.msra.mxu0 0
  %5444 = vmatprep.subr.bf16.mxu0 0
  %5445 = vmatpush2.bf16.msra.mxu0 0
  %5446 = vmatprep.subr.bf16.mxu0 0
  %5447 = vmatpush2.bf16.msra.mxu0 0
  %5448 = vmatprep.mubr.bf16.mxu0 0
  %5449 = vmatmul.mubr.bf16.gmra.mxu0 %v5414
  %v5450 = vpop.f32.mrf.mxu0
  %v5451 = vadd.f32 0.0, %v5450
  %v5452 = vpop.f32.mrf.mxu0
  %v5453 = vpop.f32.mrf.mxu0
  %v5454 = vadd.f32 0.0, %v5453
  %v5455 = vpop.f32.mrf.mxu0
  %5456 = vdwg.mxu0
  %v5457 = vpack.c.bf16 %v5454, %v5451
  %v5460 = vunpack.c.l.b16 %v195
  %v5461 = vunpack.c.l.b16 %v196
  %v5462 = vpack.c.b16 %v5461, %v5460
  %v5464 = vsel %vm1220, %v5462, 0
  %5466 = vmatprep.subr.bf16.mxu0 0
  %5467 = vmatpush1.bf16.msra.mxu0 0
  %5468 = vmatprep.subr.bf16.mxu0 0
  %5469 = vmatpush1.bf16.msra.mxu0 0
  %5470 = vmatprep.subr.bf16.mxu0 0
  %5471 = vmatpush1.bf16.msra.mxu0 0
  %5472 = vmatprep.subr.bf16.mxu0 0
  %5473 = vmatpush1.bf16.msra.mxu0 0
  %5474 = vmatprep.subr.bf16.mxu0 0
  %5475 = vmatpush1.bf16.msra.mxu0 0
  %5476 = vmatprep.subr.bf16.mxu0 0
  %5477 = vmatpush1.bf16.msra.mxu0 0
  %5478 = vmatprep.subr.bf16.mxu0 0
  %5479 = vmatpush1.bf16.msra.mxu0 0
  %5480 = vmatprep.subr.bf16.mxu0 0
  %5481 = vmatpush1.bf16.msra.mxu0 %v5457
  %5482 = vmatprep.subr.bf16.mxu0 0
  %5483 = vmatpush2.bf16.msra.mxu0 0
  %5484 = vmatprep.subr.bf16.mxu0 0
  %5485 = vmatpush2.bf16.msra.mxu0 0
  %5486 = vmatprep.subr.bf16.mxu0 0
  %5487 = vmatpush2.bf16.msra.mxu0 0
  %5488 = vmatprep.subr.bf16.mxu0 0
  %5489 = vmatpush2.bf16.msra.mxu0 0
  %5490 = vmatprep.subr.bf16.mxu0 0
  %5491 = vmatpush2.bf16.msra.mxu0 0
  %5492 = vmatprep.subr.bf16.mxu0 0
  %5493 = vmatpush2.bf16.msra.mxu0 0
  %5494 = vmatprep.subr.bf16.mxu0 0
  %5495 = vmatpush2.bf16.msra.mxu0 0
  %5496 = vmatprep.subr.bf16.mxu0 0
  %5497 = vmatpush2.bf16.msra.mxu0 0
  %5498 = vmatprep.mubr.bf16.mxu0 0
  %5499 = vmatmul.mubr.bf16.gmra.mxu0 %v5464
  %v5500 = vpop.f32.mrf.mxu0
  %v5501 = vadd.f32 0.0, %v5500
  %v5502 = vpop.f32.mrf.mxu0
  %v5503 = vpop.f32.mrf.mxu0
  %v5504 = vadd.f32 0.0, %v5503
  %v5505 = vpop.f32.mrf.mxu0
  %5506 = vdwg.mxu0
  %v5507 = vpack.c.bf16 %v5504, %v5501
  %v5510 = vunpack.c.l.b16 %v237
  %v5511 = vunpack.c.l.b16 %v238
  %v5512 = vpack.c.b16 %v5511, %v5510
  %v5514 = vsel %vm1220, %v5512, 0
  %5516 = vmatprep.subr.bf16.mxu0 0
  %5517 = vmatpush1.bf16.msra.mxu0 0
  %5518 = vmatprep.subr.bf16.mxu0 0
  %5519 = vmatpush1.bf16.msra.mxu0 0
  %5520 = vmatprep.subr.bf16.mxu0 0
  %5521 = vmatpush1.bf16.msra.mxu0 0
  %5522 = vmatprep.subr.bf16.mxu0 0
  %5523 = vmatpush1.bf16.msra.mxu0 0
  %5524 = vmatprep.subr.bf16.mxu0 0
  %5525 = vmatpush1.bf16.msra.mxu0 0
  %5526 = vmatprep.subr.bf16.mxu0 0
  %5527 = vmatpush1.bf16.msra.mxu0 0
  %5528 = vmatprep.subr.bf16.mxu0 0
  %5529 = vmatpush1.bf16.msra.mxu0 0
  %5530 = vmatprep.subr.bf16.mxu0 0
  %5531 = vmatpush1.bf16.msra.mxu0 %v5507
  %5532 = vmatprep.subr.bf16.mxu0 0
  %5533 = vmatpush2.bf16.msra.mxu0 0
  %5534 = vmatprep.subr.bf16.mxu0 0
  %5535 = vmatpush2.bf16.msra.mxu0 0
  %5536 = vmatprep.subr.bf16.mxu0 0
  %5537 = vmatpush2.bf16.msra.mxu0 0
  %5538 = vmatprep.subr.bf16.mxu0 0
  %5539 = vmatpush2.bf16.msra.mxu0 0
  %5540 = vmatprep.subr.bf16.mxu0 0
  %5541 = vmatpush2.bf16.msra.mxu0 0
  %5542 = vmatprep.subr.bf16.mxu0 0
  %5543 = vmatpush2.bf16.msra.mxu0 0
  %5544 = vmatprep.subr.bf16.mxu0 0
  %5545 = vmatpush2.bf16.msra.mxu0 0
  %5546 = vmatprep.subr.bf16.mxu0 0
  %5547 = vmatpush2.bf16.msra.mxu0 0
  %5548 = vmatprep.mubr.bf16.mxu0 0
  %5549 = vmatmul.mubr.bf16.gmra.mxu0 %v5514
  %v5550 = vpop.f32.mrf.mxu0
  %v5551 = vadd.f32 0.0, %v5550
  %v5552 = vpop.f32.mrf.mxu0
  %v5553 = vpop.f32.mrf.mxu0
  %v5554 = vadd.f32 0.0, %v5553
  %v5555 = vpop.f32.mrf.mxu0
  %5556 = vdwg.mxu0
  %v5557 = vunpack.c.l.bf16 %v5457
  %v5558 = vunpack.c.h.bf16 %v5457
  %v5559 = vsub.f32 %v5551, %v5557
  %v5560 = vsub.f32 %v5554, %v5558
  %v5561 = vpack.c.bf16 %v5560, %v5559
  %5563 = vrot.lane.b32.xlu0 %v5507, 32
  %v5564 = vpop.permute.xlu0 %5563
  %5566 = vrot.lane.b32.xlu0 %v5561, 64
  %v5567 = vpop.permute.xlu0 %5566
  %v5570 = vsel %vm3441, %v5457, %v5564
  %v5572 = vsel %vm4128, %v5570, %v5567
  %v5573 = vld [vmem:[%s35] sm:$0xf]
  %v5574 = vld [vmem:[%s35 + $0x4] sm:$0xf]
  %v5575 = vld [vmem:[%s35 + $0x8] sm:$0xf]
  %v5576 = vld [vmem:[%s35 + $0xc] sm:$0xf]
  %v5577 = vld [vmem:[%s35 + $0x10] sm:$0xf]
  %v5578 = vld [vmem:[%s35 + $0x14] sm:$0xf]
  %v5579 = vld [vmem:[%s35 + $0x18] sm:$0xf]
  %v5580 = vld [vmem:[%s35 + $0x1c] sm:$0xf]
  %v5581 = vld [vmem:[%s35 + $0x20] sm:$0xf]
  %v5582 = vld [vmem:[%s35 + $0x24] sm:$0xf]
  %v5583 = vld [vmem:[%s35 + $0x28] sm:$0xf]
  %v5584 = vld [vmem:[%s35 + $0x2c] sm:$0xf]
  %v5585 = vld [vmem:[%s61] sm:$0x1]
  %v5586 = vlaneseq
  %v5587 = vshrl.u32 %v5586, 7
  %v5588 = vsub.s32 0, %v5587
  %v5589 = vrot.slane %v5585, %v5588
  %v5602 = vunpack.c.l.b16 %v5573
  %v5603 = vunpack.c.l.b16 %v5574
  %v5604 = vunpack.c.l.b16 %v5575
  %v5605 = vunpack.c.l.b16 %v5576
  %v5606 = vunpack.c.l.b16 %v5577
  %v5607 = vunpack.c.l.b16 %v5578
  %v5608 = vunpack.c.l.b16 %v5579
  %v5609 = vunpack.c.l.b16 %v5580
  %v5610 = vunpack.c.l.b16 %v5581
  %v5611 = vunpack.c.l.b16 %v5582
  %v5612 = vunpack.c.l.b16 %v5583
  %v5613 = vunpack.c.l.b16 %v5584
  %v5614 = vpack.c.b16 %v5603, %v5602
  %v5615 = vpack.c.b16 %v5605, %v5604
  %v5616 = vpack.c.b16 %v5607, %v5606
  %v5617 = vpack.c.b16 %v5609, %v5608
  %v5618 = vpack.c.b16 %v5611, %v5610
  %v5619 = vpack.c.b16 %v5613, %v5612
  %v5626 = vsel %vm5236, %v5572, 0
  %5628 = vmatprep.subr.bf16.mxu0 0
  %5629 = vmatpush1.bf16.msra.mxu0 0
  %5630 = vmatprep.subr.bf16.mxu0 0
  %5631 = vmatpush1.bf16.msra.mxu0 0
  %5632 = vmatprep.subr.bf16.mxu0 0
  %5633 = vmatpush1.bf16.msra.mxu0 %v5619
  %5634 = vmatprep.subr.bf16.mxu0 0
  %5635 = vmatpush1.bf16.msra.mxu0 %v5618
  %5636 = vmatprep.subr.bf16.mxu0 0
  %5637 = vmatpush1.bf16.msra.mxu0 %v5617
  %5638 = vmatprep.subr.bf16.mxu0 0
  %5639 = vmatpush1.bf16.msra.mxu0 %v5616
  %5640 = vmatprep.subr.bf16.mxu0 0
  %5641 = vmatpush1.bf16.msra.mxu0 %v5615
  %5642 = vmatprep.subr.bf16.mxu0 0
  %5643 = vmatpush1.bf16.msra.mxu0 %v5614
  %5644 = vmatprep.subr.bf16.mxu0 0
  %5645 = vmatpush2.bf16.msra.mxu0 0
  %5646 = vmatprep.subr.bf16.mxu0 0
  %5647 = vmatpush2.bf16.msra.mxu0 0
  %5648 = vmatprep.subr.bf16.mxu0 0
  %5649 = vmatpush2.bf16.msra.mxu0 0
  %5650 = vmatprep.subr.bf16.mxu0 0
  %5651 = vmatpush2.bf16.msra.mxu0 0
  %5652 = vmatprep.subr.bf16.mxu0 0
  %5653 = vmatpush2.bf16.msra.mxu0 0
  %5654 = vmatprep.subr.bf16.mxu0 0
  %5655 = vmatpush2.bf16.msra.mxu0 0
  %5656 = vmatprep.subr.bf16.mxu0 0
  %5657 = vmatpush2.bf16.msra.mxu0 0
  %5658 = vmatprep.subr.bf16.mxu0 0
  %5659 = vmatpush2.bf16.msra.mxu0 0
  %5660 = vmatprep.mubr.bf16.mxu0 0
  %5661 = vmatmul.mubr.bf16.gmra.mxu0 %v5626
  %v5662 = vpop.f32.mrf.mxu0
  %v5663 = vadd.f32 %v5589, %v5662
  %v5664 = vpop.f32.mrf.mxu0
  %v5665 = vpop.f32.mrf.mxu0
  %v5666 = vadd.f32 %v5589, %v5665
  %v5667 = vpop.f32.mrf.mxu0
  %5668 = vdwg.mxu0
  %v5669 = vsel %vm4128, %v5663, 0.0
  %v5670 = vsel %vm4128, %v5666, 0.0
  %v5671 = vadd.f32 %v5669, %v5670
  %v5672 = vrot.slane %v5671, 4
  %v5673 = vadd.f32 %v5671, %v5672
  %v5674 = vrot.slane %v5673, 2
  %v5675 = vadd.f32 %v5673, %v5674
  %v5676 = vrot.slane %v5675, 1
  %v5677 = vadd.f32 %v5675, %v5676
  %v5678 = vmul.f32 %v5663, %v5663
  %v5679 = vmul.f32 %v5666, %v5666
  %v5680 = vsel %vm4128, %v5678, 0.0
  %v5681 = vsel %vm4128, %v5679, 0.0
  %v5682 = vadd.f32 %v5680, %v5681
  %v5683 = vrot.slane %v5682, 4
  %v5684 = vadd.f32 %v5682, %v5683
  %v5685 = vrot.slane %v5684, 2
  %v5686 = vadd.f32 %v5684, %v5685
  %v5687 = vrot.slane %v5686, 1
  %v5688 = vadd.f32 %v5686, %v5687
  %v5689 = vmul.f32 %v5677, 0.0625
  %v5690 = vmul.f32 %v5688, 0.0625
  %v5691 = vmul.f32 %v5689, %v5689
  %v5692 = vsub.f32 %v5690, %v5691
  %v5693 = vmax.f32 %v5692, 0.0
  %v5694 = vadd.f32 %v5693, 1e-05
  %v5695 = vrsqrt.pop %v5694
  %v5696 = vld [vmem:[%s61 + $0x1] sm:$0x1]
  %v5697 = vmul.f32 %v5696, %v5695
  %v5698 = vld [vmem:[%s61 + $0x2] sm:$0x1]
  %v5699 = vmul.f32 %v5689, %v5697
  %v5700 = vsub.f32 %v5698, %v5699
  %v5701 = vlaneseq
  %v5702 = vshrl.u32 %v5701, 7
  %v5703 = vsub.s32 0, %v5702
  %v5704 = vrot.slane %v5697, %v5703
  %v5705 = vmul.f32 %v5663, %v5704
  %v5706 = vmul.f32 %v5666, %v5704
  %v5707 = vlaneseq
  %v5708 = vshrl.u32 %v5707, 7
  %v5709 = vsub.s32 0, %v5708
  %v5710 = vrot.slane %v5700, %v5709
  %v5711 = vadd.f32 %v5705, %v5710
  %v5712 = vadd.f32 %v5706, %v5710
  %v5713 = vmax.f32 %v5711, 0.0
  %v5714 = vmax.f32 %v5712, 0.0
  %v5715 = vpack.c.bf16 %v5714, %v5713
  %5716 = vmatprep.subr.bf16.mxu0 0
  %5717 = vmatpush1.bf16.msra.mxu0 0
  %5718 = vmatprep.subr.bf16.mxu0 0
  %5719 = vmatpush1.bf16.msra.mxu0 0
  %5720 = vmatprep.subr.bf16.mxu0 0
  %5721 = vmatpush1.bf16.msra.mxu0 0
  %5722 = vmatprep.subr.bf16.mxu0 0
  %5723 = vmatpush1.bf16.msra.mxu0 0
  %5724 = vmatprep.subr.bf16.mxu0 0
  %5725 = vmatpush1.bf16.msra.mxu0 0
  %5726 = vmatprep.subr.bf16.mxu0 0
  %5727 = vmatpush1.bf16.msra.mxu0 0
  %5728 = vmatprep.subr.bf16.mxu0 0
  %5729 = vmatpush1.bf16.msra.mxu0 0
  %5730 = vmatprep.subr.bf16.mxu0 0
  %5731 = vmatpush1.bf16.msra.mxu0 %v5715
  %5732 = vmatprep.subr.bf16.mxu0 0
  %5733 = vmatpush2.bf16.msra.mxu0 0
  %5734 = vmatprep.subr.bf16.mxu0 0
  %5735 = vmatpush2.bf16.msra.mxu0 0
  %5736 = vmatprep.subr.bf16.mxu0 0
  %5737 = vmatpush2.bf16.msra.mxu0 0
  %5738 = vmatprep.subr.bf16.mxu0 0
  %5739 = vmatpush2.bf16.msra.mxu0 0
  %5740 = vmatprep.subr.bf16.mxu0 0
  %5741 = vmatpush2.bf16.msra.mxu0 0
  %5742 = vmatprep.subr.bf16.mxu0 0
  %5743 = vmatpush2.bf16.msra.mxu0 0
  %5744 = vmatprep.subr.bf16.mxu0 0
  %5745 = vmatpush2.bf16.msra.mxu0 0
  %5746 = vmatprep.subr.bf16.mxu0 0
  %5747 = vmatpush2.bf16.msra.mxu0 0
  %5748 = vmatprep.mubr.bf16.mxu0 0
  %5749 = vmatmul.mubr.bf16.gmra.mxu0 %v5464
  %v5750 = vpop.f32.mrf.mxu0
  %v5751 = vadd.f32 0.0, %v5750
  %v5752 = vpop.f32.mrf.mxu0
  %v5753 = vpop.f32.mrf.mxu0
  %v5754 = vadd.f32 0.0, %v5753
  %v5755 = vpop.f32.mrf.mxu0
  %5756 = vdwg.mxu0
  %v5757 = vpack.c.bf16 %v5754, %v5751
  %5758 = vmatprep.subr.bf16.mxu0 0
  %5759 = vmatpush1.bf16.msra.mxu0 0
  %5760 = vmatprep.subr.bf16.mxu0 0
  %5761 = vmatpush1.bf16.msra.mxu0 0
  %5762 = vmatprep.subr.bf16.mxu0 0
  %5763 = vmatpush1.bf16.msra.mxu0 0
  %5764 = vmatprep.subr.bf16.mxu0 0
  %5765 = vmatpush1.bf16.msra.mxu0 0
  %5766 = vmatprep.subr.bf16.mxu0 0
  %5767 = vmatpush1.bf16.msra.mxu0 0
  %5768 = vmatprep.subr.bf16.mxu0 0
  %5769 = vmatpush1.bf16.msra.mxu0 0
  %5770 = vmatprep.subr.bf16.mxu0 0
  %5771 = vmatpush1.bf16.msra.mxu0 0
  %5772 = vmatprep.subr.bf16.mxu0 0
  %5773 = vmatpush1.bf16.msra.mxu0 %v5757
  %5774 = vmatprep.subr.bf16.mxu0 0
  %5775 = vmatpush2.bf16.msra.mxu0 0
  %5776 = vmatprep.subr.bf16.mxu0 0
  %5777 = vmatpush2.bf16.msra.mxu0 0
  %5778 = vmatprep.subr.bf16.mxu0 0
  %5779 = vmatpush2.bf16.msra.mxu0 0
  %5780 = vmatprep.subr.bf16.mxu0 0
  %5781 = vmatpush2.bf16.msra.mxu0 0
  %5782 = vmatprep.subr.bf16.mxu0 0
  %5783 = vmatpush2.bf16.msra.mxu0 0
  %5784 = vmatprep.subr.bf16.mxu0 0
  %5785 = vmatpush2.bf16.msra.mxu0 0
  %5786 = vmatprep.subr.bf16.mxu0 0
  %5787 = vmatpush2.bf16.msra.mxu0 0
  %5788 = vmatprep.subr.bf16.mxu0 0
  %5789 = vmatpush2.bf16.msra.mxu0 0
  %5790 = vmatprep.mubr.bf16.mxu0 0
  %5791 = vmatmul.mubr.bf16.gmra.mxu0 %v5514
  %v5792 = vpop.f32.mrf.mxu0
  %v5793 = vadd.f32 0.0, %v5792
  %v5794 = vpop.f32.mrf.mxu0
  %v5795 = vpop.f32.mrf.mxu0
  %v5796 = vadd.f32 0.0, %v5795
  %v5797 = vpop.f32.mrf.mxu0
  %5798 = vdwg.mxu0
  %v5799 = vunpack.c.l.bf16 %v5715
  %v5800 = vunpack.c.h.bf16 %v5715
  %v5801 = vsub.f32 %v5793, %v5799
  %v5802 = vsub.f32 %v5796, %v5800
  %v5803 = vpack.c.bf16 %v5802, %v5801
  %5805 = vrot.lane.b32.xlu0 %v5757, 64
  %v5806 = vpop.permute.xlu0 %5805
  %v5809 = vsel %vm4128, %v5715, %v5806
  %v5811 = vld [vmem:[%s37] sm:$0xf]
  %v5812 = vld [vmem:[%s37 + $0x4] sm:$0xf]
  %v5813 = vld [vmem:[%s37 + $0x8] sm:$0xf]
  %v5814 = vld [vmem:[%s37 + $0xc] sm:$0xf]
  %v5815 = vld [vmem:[%s37 + $0x10] sm:$0xf]
  %v5816 = vld [vmem:[%s37 + $0x14] sm:$0xf]
  %v5817 = vld [vmem:[%s37 + $0x18] sm:$0xf]
  %v5818 = vld [vmem:[%s37 + $0x1c] sm:$0xf]
  %v5819 = vld [vmem:[%s37 + $0x20] sm:$0xf]
  %v5820 = vld [vmem:[%s37 + $0x24] sm:$0xf]
  %v5821 = vld [vmem:[%s37 + $0x28] sm:$0xf]
  %v5822 = vld [vmem:[%s37 + $0x2c] sm:$0xf]
  %v5823 = vld [vmem:[%s37 + $0x30] sm:$0xf]
  %v5824 = vld [vmem:[%s37 + $0x34] sm:$0xf]
  %v5825 = vld [vmem:[%s37 + $0x38] sm:$0xf]
  %v5826 = vld [vmem:[%s37 + $0x3c] sm:$0xf]
  %v5827 = vld [vmem:[%s37 + $0x40] sm:$0xf]
  %v5828 = vld [vmem:[%s37 + $0x44] sm:$0xf]
  %v5829 = vld [vmem:[%s37 + $0x48] sm:$0xf]
  %v5830 = vld [vmem:[%s37 + $0x4c] sm:$0xf]
  %v5831 = vld [vmem:[%s37 + $0x50] sm:$0xf]
  %v5832 = vld [vmem:[%s37 + $0x54] sm:$0xf]
  %v5833 = vld [vmem:[%s37 + $0x58] sm:$0xf]
  %v5834 = vld [vmem:[%s37 + $0x5c] sm:$0xf]
  %v5835 = vld [vmem:[%s63] sm:$0x1]
  %v5836 = vlaneseq
  %v5837 = vshrl.u32 %v5836, 7
  %v5838 = vsub.s32 0, %v5837
  %v5839 = vrot.slane %v5835, %v5838
  %v5864 = vunpack.c.l.b16 %v5811
  %v5865 = vunpack.c.l.b16 %v5812
  %v5866 = vunpack.c.l.b16 %v5813
  %v5867 = vunpack.c.l.b16 %v5814
  %v5868 = vunpack.c.l.b16 %v5815
  %v5869 = vunpack.c.l.b16 %v5816
  %v5870 = vunpack.c.l.b16 %v5817
  %v5871 = vunpack.c.l.b16 %v5818
  %v5872 = vunpack.c.l.b16 %v5819
  %v5873 = vunpack.c.l.b16 %v5820
  %v5874 = vunpack.c.l.b16 %v5821
  %v5875 = vunpack.c.l.b16 %v5822
  %v5876 = vunpack.c.l.b16 %v5823
  %v5877 = vunpack.c.l.b16 %v5824
  %v5878 = vunpack.c.l.b16 %v5825
  %v5879 = vunpack.c.l.b16 %v5826
  %v5880 = vunpack.c.l.b16 %v5827
  %v5881 = vunpack.c.l.b16 %v5828
  %v5882 = vunpack.c.l.b16 %v5829
  %v5883 = vunpack.c.l.b16 %v5830
  %v5884 = vunpack.c.l.b16 %v5831
  %v5885 = vunpack.c.l.b16 %v5832
  %v5886 = vunpack.c.l.b16 %v5833
  %v5887 = vunpack.c.l.b16 %v5834
  %v5888 = vpack.c.b16 %v5865, %v5864
  %v5889 = vpack.c.b16 %v5867, %v5866
  %v5890 = vpack.c.b16 %v5869, %v5868
  %v5891 = vpack.c.b16 %v5871, %v5870
  %v5892 = vpack.c.b16 %v5873, %v5872
  %v5893 = vpack.c.b16 %v5875, %v5874
  %v5894 = vpack.c.b16 %v5877, %v5876
  %v5895 = vpack.c.b16 %v5879, %v5878
  %v5896 = vpack.c.b16 %v5881, %v5880
  %v5897 = vpack.c.b16 %v5883, %v5882
  %v5898 = vpack.c.b16 %v5885, %v5884
  %v5899 = vpack.c.b16 %v5887, %v5886
  %v5913 = vsel %vm4128, %v5803, 0
  %5915 = vmatprep.subr.bf16.mxu0 0
  %5916 = vmatpush1.bf16.msra.mxu0 %v5895
  %5917 = vmatprep.subr.bf16.mxu0 0
  %5918 = vmatpush1.bf16.msra.mxu0 %v5894
  %5919 = vmatprep.subr.bf16.mxu0 0
  %5920 = vmatpush1.bf16.msra.mxu0 %v5893
  %5921 = vmatprep.subr.bf16.mxu0 0
  %5922 = vmatpush1.bf16.msra.mxu0 %v5892
  %5923 = vmatprep.subr.bf16.mxu0 0
  %5924 = vmatpush1.bf16.msra.mxu0 %v5891
  %5925 = vmatprep.subr.bf16.mxu0 0
  %5926 = vmatpush1.bf16.msra.mxu0 %v5890
  %5927 = vmatprep.subr.bf16.mxu0 0
  %5928 = vmatpush1.bf16.msra.mxu0 %v5889
  %5929 = vmatprep.subr.bf16.mxu0 0
  %5930 = vmatpush1.bf16.msra.mxu0 %v5888
  %5931 = vmatprep.subr.bf16.mxu0 0
  %5932 = vmatpush2.bf16.msra.mxu0 0
  %5933 = vmatprep.subr.bf16.mxu0 0
  %5934 = vmatpush2.bf16.msra.mxu0 0
  %5935 = vmatprep.subr.bf16.mxu0 0
  %5936 = vmatpush2.bf16.msra.mxu0 0
  %5937 = vmatprep.subr.bf16.mxu0 0
  %5938 = vmatpush2.bf16.msra.mxu0 0
  %5939 = vmatprep.subr.bf16.mxu0 0
  %5940 = vmatpush2.bf16.msra.mxu0 %v5899
  %5941 = vmatprep.subr.bf16.mxu0 0
  %5942 = vmatpush2.bf16.msra.mxu0 %v5898
  %5943 = vmatprep.subr.bf16.mxu0 0
  %5944 = vmatpush2.bf16.msra.mxu0 %v5897
  %5945 = vmatprep.subr.bf16.mxu0 0
  %5946 = vmatpush2.bf16.msra.mxu0 %v5896
  %5947 = vmatprep.mubr.bf16.mxu0 %v5913
  %5948 = vmatmul.mubr.bf16.gmra.mxu0 %v5809
  %v5949 = vpop.f32.mrf.mxu0
  %v5950 = vadd.f32 %v5839, %v5949
  %v5951 = vpop.f32.mrf.mxu0
  %v5952 = vpop.f32.mrf.mxu0
  %v5953 = vadd.f32 %v5839, %v5952
  %v5954 = vpop.f32.mrf.mxu0
  %5955 = vdwg.mxu0
  %v5956 = vsel %vm3441, %v5950, 0.0
  %v5957 = vsel %vm3441, %v5953, 0.0
  %v5958 = vadd.f32 %v5956, %v5957
  %v5959 = vrot.slane %v5958, 4
  %v5960 = vadd.f32 %v5958, %v5959
  %v5961 = vrot.slane %v5960, 2
  %v5962 = vadd.f32 %v5960, %v5961
  %v5963 = vrot.slane %v5962, 1
  %v5964 = vadd.f32 %v5962, %v5963
  %v5965 = vmul.f32 %v5950, %v5950
  %v5966 = vmul.f32 %v5953, %v5953
  %v5967 = vsel %vm3441, %v5965, 0.0
  %v5968 = vsel %vm3441, %v5966, 0.0
  %v5969 = vadd.f32 %v5967, %v5968
  %v5970 = vrot.slane %v5969, 4
  %v5971 = vadd.f32 %v5969, %v5970
  %v5972 = vrot.slane %v5971, 2
  %v5973 = vadd.f32 %v5971, %v5972
  %v5974 = vrot.slane %v5973, 1
  %v5975 = vadd.f32 %v5973, %v5974
  %v5976 = vmul.f32 %v5964, 0.0625
  %v5977 = vmul.f32 %v5975, 0.0625
  %v5978 = vmul.f32 %v5976, %v5976
  %v5979 = vsub.f32 %v5977, %v5978
  %v5980 = vmax.f32 %v5979, 0.0
  %v5981 = vadd.f32 %v5980, 1e-05
  %v5982 = vrsqrt.pop %v5981
  %v5983 = vld [vmem:[%s63 + $0x1] sm:$0x1]
  %v5984 = vmul.f32 %v5983, %v5982
  %v5985 = vld [vmem:[%s63 + $0x2] sm:$0x1]
  %v5986 = vmul.f32 %v5976, %v5984
  %v5987 = vsub.f32 %v5985, %v5986
  %v5988 = vlaneseq
  %v5989 = vshrl.u32 %v5988, 7
  %v5990 = vsub.s32 0, %v5989
  %v5991 = vrot.slane %v5984, %v5990
  %v5992 = vmul.f32 %v5950, %v5991
  %v5993 = vmul.f32 %v5953, %v5991
  %v5994 = vlaneseq
  %v5995 = vshrl.u32 %v5994, 7
  %v5996 = vsub.s32 0, %v5995
  %v5997 = vrot.slane %v5987, %v5996
  %v5998 = vadd.f32 %v5992, %v5997
  %v5999 = vadd.f32 %v5993, %v5997
  %v6000 = vmax.f32 %v5998, 0.0
  %v6001 = vmax.f32 %v5999, 0.0
  %v6002 = vpack.c.bf16 %v6001, %v6000
  %v6011 = vunpack.c.l.b16 %v281
  %v6012 = vunpack.c.l.b16 %v282
  %v6013 = vunpack.c.l.b16 %v283
  %v6014 = vunpack.c.l.b16 %v284
  %v6015 = vunpack.c.l.b16 %v285
  %v6016 = vunpack.c.l.b16 %v286
  %v6017 = vunpack.c.l.b16 %v287
  %v6018 = vunpack.c.l.b16 %v288
  %v6019 = vpack.c.b16 %v6012, %v6011
  %v6020 = vpack.c.b16 %v6014, %v6013
  %v6021 = vpack.c.b16 %v6016, %v6015
  %v6022 = vpack.c.b16 %v6018, %v6017
  %v6024 = vsel %vm1220, %v6019, 0
  %v6027 = vsel %vm1220, %v6020, 0
  %v6030 = vsel %vm1220, %v6021, 0
  %v6033 = vsel %vm1220, %v6022, 0
  %6035 = vmatprep.subr.bf16.mxu0 0
  %6036 = vmatpush1.bf16.msra.mxu0 0
  %6037 = vmatprep.subr.bf16.mxu0 0
  %6038 = vmatpush1.bf16.msra.mxu0 0
  %6039 = vmatprep.subr.bf16.mxu0 0
  %6040 = vmatpush1.bf16.msra.mxu0 0
  %6041 = vmatprep.subr.bf16.mxu0 0
  %6042 = vmatpush1.bf16.msra.mxu0 0
  %6043 = vmatprep.subr.bf16.mxu0 0
  %6044 = vmatpush1.bf16.msra.mxu0 0
  %6045 = vmatprep.subr.bf16.mxu0 0
  %6046 = vmatpush1.bf16.msra.mxu0 0
  %6047 = vmatprep.subr.bf16.mxu0 0
  %6048 = vmatpush1.bf16.msra.mxu0 0
  %6049 = vmatprep.subr.bf16.mxu0 0
  %6050 = vmatpush1.bf16.msra.mxu0 %v6002
  %6051 = vmatprep.subr.bf16.mxu0 0
  %6052 = vmatpush2.bf16.msra.mxu0 0
  %6053 = vmatprep.subr.bf16.mxu0 0
  %6054 = vmatpush2.bf16.msra.mxu0 0
  %6055 = vmatprep.subr.bf16.mxu0 0
  %6056 = vmatpush2.bf16.msra.mxu0 0
  %6057 = vmatprep.subr.bf16.mxu0 0
  %6058 = vmatpush2.bf16.msra.mxu0 0
  %6059 = vmatprep.subr.bf16.mxu0 0
  %6060 = vmatpush2.bf16.msra.mxu0 0
  %6061 = vmatprep.subr.bf16.mxu0 0
  %6062 = vmatpush2.bf16.msra.mxu0 0
  %6063 = vmatprep.subr.bf16.mxu0 0
  %6064 = vmatpush2.bf16.msra.mxu0 0
  %6065 = vmatprep.subr.bf16.mxu0 0
  %6066 = vmatpush2.bf16.msra.mxu0 0
  %6067 = vmatprep.mubr.bf16.mxu0 0
  %6068 = vmatmul.mubr.bf16.gmra.mxu0 %v6024
  %v6069 = vpop.f32.mrf.mxu0
  %v6070 = vadd.f32 0.0, %v6069
  %v6071 = vpop.f32.mrf.mxu0
  %v6072 = vpop.f32.mrf.mxu0
  %v6073 = vadd.f32 0.0, %v6072
  %v6074 = vpop.f32.mrf.mxu0
  %6075 = vmatprep.mubr.bf16.mxu0 0
  %6076 = vmatmul.mubr.bf16.gmra.mxu0 %v6027
  %v6077 = vpop.f32.mrf.mxu0
  %v6078 = vadd.f32 0.0, %v6077
  %v6079 = vpop.f32.mrf.mxu0
  %v6080 = vpop.f32.mrf.mxu0
  %v6081 = vadd.f32 0.0, %v6080
  %v6082 = vpop.f32.mrf.mxu0
  %6083 = vmatprep.mubr.bf16.mxu0 0
  %6084 = vmatmul.mubr.bf16.gmra.mxu0 %v6030
  %v6085 = vpop.f32.mrf.mxu0
  %v6086 = vadd.f32 0.0, %v6085
  %v6087 = vpop.f32.mrf.mxu0
  %v6088 = vpop.f32.mrf.mxu0
  %v6089 = vadd.f32 0.0, %v6088
  %v6090 = vpop.f32.mrf.mxu0
  %6091 = vmatprep.mubr.bf16.mxu0 0
  %6092 = vmatmul.mubr.bf16.gmra.mxu0 %v6033
  %v6093 = vpop.f32.mrf.mxu0
  %v6094 = vadd.f32 0.0, %v6093
  %v6095 = vpop.f32.mrf.mxu0
  %v6096 = vpop.f32.mrf.mxu0
  %v6097 = vadd.f32 0.0, %v6096
  %v6098 = vpop.f32.mrf.mxu0
  %6099 = vdwg.mxu0
  %6108 = vrot.lane.b32.xlu0 %v5396, 32
  %v6109 = vpop.permute.xlu0 %6108
  %6110 = vrot.lane.b32.xlu0 %v5397, 32
  %v6111 = vpop.permute.xlu0 %6110
  %6112 = vrot.lane.b32.xlu0 %v5398, 32
  %v6113 = vpop.permute.xlu0 %6112
  %6114 = vrot.lane.b32.xlu0 %v5399, 32
  %v6115 = vpop.permute.xlu0 %6114
  %6116 = vrot.lane.b32.xlu0 %v5400, 32
  %v6117 = vpop.permute.xlu0 %6116
  %6118 = vrot.lane.b32.xlu0 %v5401, 32
  %v6119 = vpop.permute.xlu0 %6118
  %6120 = vrot.lane.b32.xlu0 %v5402, 32
  %v6121 = vpop.permute.xlu0 %6120
  %6122 = vrot.lane.b32.xlu0 %v5403, 32
  %v6123 = vpop.permute.xlu0 %6122
  %v6132 = vsel %vm3441, %v6070, %v6109
  %v6133 = vsel %vm3441, %v6073, %v6111
  %v6134 = vsel %vm3441, %v6078, %v6113
  %v6135 = vsel %vm3441, %v6081, %v6115
  %v6136 = vsel %vm3441, %v6086, %v6117
  %v6137 = vsel %vm3441, %v6089, %v6119
  %v6138 = vsel %vm3441, %v6094, %v6121
  %v6139 = vsel %vm3441, %v6097, %v6123
  %v6140 = vpack.c.bf16 %v6133, %v6132
  %v6141 = vpack.c.bf16 %v6135, %v6134
  %v6142 = vpack.c.bf16 %v6137, %v6136
  %v6143 = vpack.c.bf16 %v6139, %v6138
  %6144 = vmatprep.subr.bf16.mxu0 0
  %6145 = vmatpush1.bf16.msra.mxu0 0
  %6146 = vmatprep.subr.bf16.mxu0 0
  %6147 = vmatpush1.bf16.msra.mxu0 0
  %6148 = vmatprep.subr.bf16.mxu0 0
  %6149 = vmatpush1.bf16.msra.mxu0 0
  %6150 = vmatprep.subr.bf16.mxu0 0
  %6151 = vmatpush1.bf16.msra.mxu0 0
  %6152 = vmatprep.subr.bf16.mxu0 0
  %6153 = vmatpush1.bf16.msra.mxu0 %v6143
  %6154 = vmatprep.subr.bf16.mxu0 0
  %6155 = vmatpush1.bf16.msra.mxu0 %v6142
  %6156 = vmatprep.subr.bf16.mxu0 0
  %6157 = vmatpush1.bf16.msra.mxu0 %v6141
  %6158 = vmatprep.subr.bf16.mxu0 0
  %6159 = vmatpush1.bf16.msra.mxu0 %v6140
  %6160 = vmatprep.subr.bf16.mxu0 0
  %6161 = vmatpush2.bf16.msra.mxu0 0
  %6162 = vmatprep.subr.bf16.mxu0 0
  %6163 = vmatpush2.bf16.msra.mxu0 0
  %6164 = vmatprep.subr.bf16.mxu0 0
  %6165 = vmatpush2.bf16.msra.mxu0 0
  %6166 = vmatprep.subr.bf16.mxu0 0
  %6167 = vmatpush2.bf16.msra.mxu0 0
  %6168 = vmatprep.subr.bf16.mxu0 0
  %6169 = vmatpush2.bf16.msra.mxu0 0
  %6170 = vmatprep.subr.bf16.mxu0 0
  %6171 = vmatpush2.bf16.msra.mxu0 0
  %6172 = vmatprep.subr.bf16.mxu0 0
  %6173 = vmatpush2.bf16.msra.mxu0 0
  %6174 = vmatprep.subr.bf16.mxu0 0
  %6175 = vmatpush2.bf16.msra.mxu0 0
  %6176 = vmatprep.mubr.bf16.mxu0 0
  %6177 = vmatmul.mubr.bf16.gmra.mxu0 %v4130
  %v6178 = vpop.f32.mrf.mxu0
  %v6179 = vadd.f32 0.0, %v6178
  %v6180 = vpop.f32.mrf.mxu0
  %v6181 = vpop.f32.mrf.mxu0
  %v6182 = vadd.f32 0.0, %v6181
  %v6183 = vpop.f32.mrf.mxu0
  %6184 = vmatprep.mubr.bf16.mxu0 0
  %6185 = vmatmul.mubr.bf16.gmra.mxu0 %v4133
  %v6186 = vpop.f32.mrf.mxu0
  %v6187 = vadd.f32 0.0, %v6186
  %v6188 = vpop.f32.mrf.mxu0
  %v6189 = vpop.f32.mrf.mxu0
  %v6190 = vadd.f32 0.0, %v6189
  %v6191 = vpop.f32.mrf.mxu0
  %6192 = vmatprep.mubr.bf16.mxu0 0
  %6193 = vmatmul.mubr.bf16.gmra.mxu0 %v4136
  %v6194 = vpop.f32.mrf.mxu0
  %v6195 = vadd.f32 0.0, %v6194
  %v6196 = vpop.f32.mrf.mxu0
  %v6197 = vpop.f32.mrf.mxu0
  %v6198 = vadd.f32 0.0, %v6197
  %v6199 = vpop.f32.mrf.mxu0
  %6200 = vmatprep.mubr.bf16.mxu0 0
  %6201 = vmatmul.mubr.bf16.gmra.mxu0 %v4139
  %v6202 = vpop.f32.mrf.mxu0
  %v6203 = vadd.f32 0.0, %v6202
  %v6204 = vpop.f32.mrf.mxu0
  %v6205 = vpop.f32.mrf.mxu0
  %v6206 = vadd.f32 0.0, %v6205
  %v6207 = vpop.f32.mrf.mxu0
  %6208 = vdwg.mxu0
  %v6209 = vpack.c.bf16 %v6182, %v6179
  %v6210 = vpack.c.bf16 %v6190, %v6187
  %v6211 = vpack.c.bf16 %v6198, %v6195
  %v6212 = vpack.c.bf16 %v6206, %v6203
  %6213 = vmatprep.subr.bf16.mxu0 0
  %6214 = vmatpush1.bf16.msra.mxu0 0
  %6215 = vmatprep.subr.bf16.mxu0 0
  %6216 = vmatpush1.bf16.msra.mxu0 0
  %6217 = vmatprep.subr.bf16.mxu0 0
  %6218 = vmatpush1.bf16.msra.mxu0 0
  %6219 = vmatprep.subr.bf16.mxu0 0
  %6220 = vmatpush1.bf16.msra.mxu0 0
  %6221 = vmatprep.subr.bf16.mxu0 0
  %6222 = vmatpush1.bf16.msra.mxu0 %v6212
  %6223 = vmatprep.subr.bf16.mxu0 0
  %6224 = vmatpush1.bf16.msra.mxu0 %v6211
  %6225 = vmatprep.subr.bf16.mxu0 0
  %6226 = vmatpush1.bf16.msra.mxu0 %v6210
  %6227 = vmatprep.subr.bf16.mxu0 0
  %6228 = vmatpush1.bf16.msra.mxu0 %v6209
  %6229 = vmatprep.subr.bf16.mxu0 0
  %6230 = vmatpush2.bf16.msra.mxu0 0
  %6231 = vmatprep.subr.bf16.mxu0 0
  %6232 = vmatpush2.bf16.msra.mxu0 0
  %6233 = vmatprep.subr.bf16.mxu0 0
  %6234 = vmatpush2.bf16.msra.mxu0 0
  %6235 = vmatprep.subr.bf16.mxu0 0
  %6236 = vmatpush2.bf16.msra.mxu0 0
  %6237 = vmatprep.subr.bf16.mxu0 0
  %6238 = vmatpush2.bf16.msra.mxu0 0
  %6239 = vmatprep.subr.bf16.mxu0 0
  %6240 = vmatpush2.bf16.msra.mxu0 0
  %6241 = vmatprep.subr.bf16.mxu0 0
  %6242 = vmatpush2.bf16.msra.mxu0 0
  %6243 = vmatprep.subr.bf16.mxu0 0
  %6244 = vmatpush2.bf16.msra.mxu0 0
  %6245 = vmatprep.mubr.bf16.mxu0 0
  %6246 = vmatmul.mubr.bf16.gmra.mxu0 %v4231
  %v6247 = vpop.f32.mrf.mxu0
  %v6248 = vadd.f32 0.0, %v6247
  %v6249 = vpop.f32.mrf.mxu0
  %v6250 = vpop.f32.mrf.mxu0
  %v6251 = vadd.f32 0.0, %v6250
  %v6252 = vpop.f32.mrf.mxu0
  %6253 = vmatprep.mubr.bf16.mxu0 0
  %6254 = vmatmul.mubr.bf16.gmra.mxu0 %v4234
  %v6255 = vpop.f32.mrf.mxu0
  %v6256 = vadd.f32 0.0, %v6255
  %v6257 = vpop.f32.mrf.mxu0
  %v6258 = vpop.f32.mrf.mxu0
  %v6259 = vadd.f32 0.0, %v6258
  %v6260 = vpop.f32.mrf.mxu0
  %6261 = vmatprep.mubr.bf16.mxu0 0
  %6262 = vmatmul.mubr.bf16.gmra.mxu0 %v4237
  %v6263 = vpop.f32.mrf.mxu0
  %v6264 = vadd.f32 0.0, %v6263
  %v6265 = vpop.f32.mrf.mxu0
  %v6266 = vpop.f32.mrf.mxu0
  %v6267 = vadd.f32 0.0, %v6266
  %v6268 = vpop.f32.mrf.mxu0
  %6269 = vmatprep.mubr.bf16.mxu0 0
  %6270 = vmatmul.mubr.bf16.gmra.mxu0 %v4240
  %v6271 = vpop.f32.mrf.mxu0
  %v6272 = vadd.f32 0.0, %v6271
  %v6273 = vpop.f32.mrf.mxu0
  %v6274 = vpop.f32.mrf.mxu0
  %v6275 = vadd.f32 0.0, %v6274
  %v6276 = vpop.f32.mrf.mxu0
  %6277 = vdwg.mxu0
  %v6278 = vunpack.c.l.bf16 %v6140
  %v6279 = vunpack.c.h.bf16 %v6140
  %v6280 = vunpack.c.l.bf16 %v6141
  %v6281 = vunpack.c.h.bf16 %v6141
  %v6282 = vunpack.c.l.bf16 %v6142
  %v6283 = vunpack.c.h.bf16 %v6142
  %v6284 = vunpack.c.l.bf16 %v6143
  %v6285 = vunpack.c.h.bf16 %v6143
  %v6286 = vsub.f32 %v6248, %v6278
  %v6287 = vsub.f32 %v6251, %v6279
  %v6288 = vsub.f32 %v6256, %v6280
  %v6289 = vsub.f32 %v6259, %v6281
  %v6290 = vsub.f32 %v6264, %v6282
  %v6291 = vsub.f32 %v6267, %v6283
  %v6292 = vsub.f32 %v6272, %v6284
  %v6293 = vsub.f32 %v6275, %v6285
  %v6294 = vpack.c.bf16 %v6287, %v6286
  %v6295 = vpack.c.bf16 %v6289, %v6288
  %v6296 = vpack.c.bf16 %v6291, %v6290
  %v6297 = vpack.c.bf16 %v6293, %v6292
  %6302 = vrot.lane.b32.xlu0 %v6209, 64
  %v6303 = vpop.permute.xlu0 %6302
  %6304 = vrot.lane.b32.xlu0 %v6210, 64
  %v6305 = vpop.permute.xlu0 %6304
  %6306 = vrot.lane.b32.xlu0 %v6211, 64
  %v6307 = vpop.permute.xlu0 %6306
  %6308 = vrot.lane.b32.xlu0 %v6212, 64
  %v6309 = vpop.permute.xlu0 %6308
  %v6312 = vsel %vm4128, %v6140, %v6303
  %v6316 = vsel %vm4128, %v6141, %v6305
  %v6320 = vsel %vm4128, %v6142, %v6307
  %v6324 = vsel %vm4128, %v6143, %v6309
  %v6326 = vld [vmem:[%s39] sm:$0xf]
  %v6327 = vld [vmem:[%s39 + $0x4] sm:$0xf]
  %v6328 = vld [vmem:[%s39 + $0x8] sm:$0xf]
  %v6329 = vld [vmem:[%s39 + $0xc] sm:$0xf]
  %v6330 = vld [vmem:[%s39 + $0x10] sm:$0xf]
  %v6331 = vld [vmem:[%s39 + $0x14] sm:$0xf]
  %v6332 = vld [vmem:[%s39 + $0x18] sm:$0xf]
  %v6333 = vld [vmem:[%s39 + $0x1c] sm:$0xf]
  %v6334 = vld [vmem:[%s39 + $0x20] sm:$0xf]
  %v6335 = vld [vmem:[%s39 + $0x24] sm:$0xf]
  %v6336 = vld [vmem:[%s39 + $0x28] sm:$0xf]
  %v6337 = vld [vmem:[%s39 + $0x2c] sm:$0xf]
  %v6338 = vld [vmem:[%s39 + $0x30] sm:$0xf]
  %v6339 = vld [vmem:[%s39 + $0x34] sm:$0xf]
  %v6340 = vld [vmem:[%s39 + $0x38] sm:$0xf]
  %v6341 = vld [vmem:[%s39 + $0x3c] sm:$0xf]
  %v6342 = vld [vmem:[%s39 + $0x40] sm:$0xf]
  %v6343 = vld [vmem:[%s39 + $0x44] sm:$0xf]
  %v6344 = vld [vmem:[%s39 + $0x48] sm:$0xf]
  %v6345 = vld [vmem:[%s39 + $0x4c] sm:$0xf]
  %v6346 = vld [vmem:[%s39 + $0x50] sm:$0xf]
  %v6347 = vld [vmem:[%s39 + $0x54] sm:$0xf]
  %v6348 = vld [vmem:[%s39 + $0x58] sm:$0xf]
  %v6349 = vld [vmem:[%s39 + $0x5c] sm:$0xf]
  %v6350 = vld [vmem:[%s65] sm:$0x1]
  %v6351 = vlaneseq
  %v6352 = vshrl.u32 %v6351, 7
  %v6353 = vsub.s32 0, %v6352
  %v6354 = vrot.slane %v6350, %v6353
  %v6379 = vunpack.c.l.b16 %v6326
  %v6380 = vunpack.c.l.b16 %v6327
  %v6381 = vunpack.c.l.b16 %v6328
  %v6382 = vunpack.c.l.b16 %v6329
  %v6383 = vunpack.c.l.b16 %v6330
  %v6384 = vunpack.c.l.b16 %v6331
  %v6385 = vunpack.c.l.b16 %v6332
  %v6386 = vunpack.c.l.b16 %v6333
  %v6387 = vunpack.c.l.b16 %v6334
  %v6388 = vunpack.c.l.b16 %v6335
  %v6389 = vunpack.c.l.b16 %v6336
  %v6390 = vunpack.c.l.b16 %v6337
  %v6391 = vunpack.c.l.b16 %v6338
  %v6392 = vunpack.c.l.b16 %v6339
  %v6393 = vunpack.c.l.b16 %v6340
  %v6394 = vunpack.c.l.b16 %v6341
  %v6395 = vunpack.c.l.b16 %v6342
  %v6396 = vunpack.c.l.b16 %v6343
  %v6397 = vunpack.c.l.b16 %v6344
  %v6398 = vunpack.c.l.b16 %v6345
  %v6399 = vunpack.c.l.b16 %v6346
  %v6400 = vunpack.c.l.b16 %v6347
  %v6401 = vunpack.c.l.b16 %v6348
  %v6402 = vunpack.c.l.b16 %v6349
  %v6403 = vpack.c.b16 %v6380, %v6379
  %v6404 = vpack.c.b16 %v6382, %v6381
  %v6405 = vpack.c.b16 %v6384, %v6383
  %v6406 = vpack.c.b16 %v6386, %v6385
  %v6407 = vpack.c.b16 %v6388, %v6387
  %v6408 = vpack.c.b16 %v6390, %v6389
  %v6409 = vpack.c.b16 %v6392, %v6391
  %v6410 = vpack.c.b16 %v6394, %v6393
  %v6411 = vpack.c.b16 %v6396, %v6395
  %v6412 = vpack.c.b16 %v6398, %v6397
  %v6413 = vpack.c.b16 %v6400, %v6399
  %v6414 = vpack.c.b16 %v6402, %v6401
  %v6428 = vsel %vm4128, %v6294, 0
  %v6431 = vsel %vm4128, %v6295, 0
  %v6434 = vsel %vm4128, %v6296, 0
  %v6437 = vsel %vm4128, %v6297, 0
  %6439 = vmatprep.subr.bf16.mxu0 0
  %6440 = vmatpush1.bf16.msra.mxu0 %v6410
  %6441 = vmatprep.subr.bf16.mxu0 0
  %6442 = vmatpush1.bf16.msra.mxu0 %v6409
  %6443 = vmatprep.subr.bf16.mxu0 0
  %6444 = vmatpush1.bf16.msra.mxu0 %v6408
  %6445 = vmatprep.subr.bf16.mxu0 0
  %6446 = vmatpush1.bf16.msra.mxu0 %v6407
  %6447 = vmatprep.subr.bf16.mxu0 0
  %6448 = vmatpush1.bf16.msra.mxu0 %v6406
  %6449 = vmatprep.subr.bf16.mxu0 0
  %6450 = vmatpush1.bf16.msra.mxu0 %v6405
  %6451 = vmatprep.subr.bf16.mxu0 0
  %6452 = vmatpush1.bf16.msra.mxu0 %v6404
  %6453 = vmatprep.subr.bf16.mxu0 0
  %6454 = vmatpush1.bf16.msra.mxu0 %v6403
  %6455 = vmatprep.subr.bf16.mxu0 0
  %6456 = vmatpush2.bf16.msra.mxu0 0
  %6457 = vmatprep.subr.bf16.mxu0 0
  %6458 = vmatpush2.bf16.msra.mxu0 0
  %6459 = vmatprep.subr.bf16.mxu0 0
  %6460 = vmatpush2.bf16.msra.mxu0 0
  %6461 = vmatprep.subr.bf16.mxu0 0
  %6462 = vmatpush2.bf16.msra.mxu0 0
  %6463 = vmatprep.subr.bf16.mxu0 0
  %6464 = vmatpush2.bf16.msra.mxu0 %v6414
  %6465 = vmatprep.subr.bf16.mxu0 0
  %6466 = vmatpush2.bf16.msra.mxu0 %v6413
  %6467 = vmatprep.subr.bf16.mxu0 0
  %6468 = vmatpush2.bf16.msra.mxu0 %v6412
  %6469 = vmatprep.subr.bf16.mxu0 0
  %6470 = vmatpush2.bf16.msra.mxu0 %v6411
  %6471 = vmatprep.mubr.bf16.mxu0 %v6428
  %6472 = vmatmul.mubr.bf16.gmra.mxu0 %v6312
  %v6473 = vpop.f32.mrf.mxu0
  %v6474 = vadd.f32 %v6354, %v6473
  %v6475 = vpop.f32.mrf.mxu0
  %v6476 = vpop.f32.mrf.mxu0
  %v6477 = vadd.f32 %v6354, %v6476
  %v6478 = vpop.f32.mrf.mxu0
  %6479 = vmatprep.mubr.bf16.mxu0 %v6431
  %6480 = vmatmul.mubr.bf16.gmra.mxu0 %v6316
  %v6481 = vpop.f32.mrf.mxu0
  %v6482 = vadd.f32 %v6354, %v6481
  %v6483 = vpop.f32.mrf.mxu0
  %v6484 = vpop.f32.mrf.mxu0
  %v6485 = vadd.f32 %v6354, %v6484
  %v6486 = vpop.f32.mrf.mxu0
  %6487 = vmatprep.mubr.bf16.mxu0 %v6434
  %6488 = vmatmul.mubr.bf16.gmra.mxu0 %v6320
  %v6489 = vpop.f32.mrf.mxu0
  %v6490 = vadd.f32 %v6354, %v6489
  %v6491 = vpop.f32.mrf.mxu0
  %v6492 = vpop.f32.mrf.mxu0
  %v6493 = vadd.f32 %v6354, %v6492
  %v6494 = vpop.f32.mrf.mxu0
  %6495 = vmatprep.mubr.bf16.mxu0 %v6437
  %6496 = vmatmul.mubr.bf16.gmra.mxu0 %v6324
  %v6497 = vpop.f32.mrf.mxu0
  %v6498 = vadd.f32 %v6354, %v6497
  %v6499 = vpop.f32.mrf.mxu0
  %v6500 = vpop.f32.mrf.mxu0
  %v6501 = vadd.f32 %v6354, %v6500
  %v6502 = vpop.f32.mrf.mxu0
  %6503 = vdwg.mxu0
  %v6504 = vsel %vm3441, %v6474, 0.0
  %v6505 = vsel %vm3441, %v6477, 0.0
  %v6506 = vadd.f32 %v6504, %v6505
  %v6507 = vsel %vm3441, %v6482, 0.0
  %v6508 = vadd.f32 %v6506, %v6507
  %v6509 = vsel %vm3441, %v6485, 0.0
  %v6510 = vadd.f32 %v6508, %v6509
  %v6511 = vsel %vm3441, %v6490, 0.0
  %v6512 = vadd.f32 %v6510, %v6511
  %v6513 = vsel %vm3441, %v6493, 0.0
  %v6514 = vadd.f32 %v6512, %v6513
  %v6515 = vsel %vm3441, %v6498, 0.0
  %v6516 = vadd.f32 %v6514, %v6515
  %v6517 = vsel %vm3441, %v6501, 0.0
  %v6518 = vadd.f32 %v6516, %v6517
  %v6519 = vrot.slane %v6518, 4
  %v6520 = vadd.f32 %v6518, %v6519
  %v6521 = vrot.slane %v6520, 2
  %v6522 = vadd.f32 %v6520, %v6521
  %v6523 = vrot.slane %v6522, 1
  %v6524 = vadd.f32 %v6522, %v6523
  %v6525 = vmul.f32 %v6474, %v6474
  %v6526 = vmul.f32 %v6477, %v6477
  %v6527 = vmul.f32 %v6482, %v6482
  %v6528 = vmul.f32 %v6485, %v6485
  %v6529 = vmul.f32 %v6490, %v6490
  %v6530 = vmul.f32 %v6493, %v6493
  %v6531 = vmul.f32 %v6498, %v6498
  %v6532 = vmul.f32 %v6501, %v6501
  %v6533 = vsel %vm3441, %v6525, 0.0
  %v6534 = vsel %vm3441, %v6526, 0.0
  %v6535 = vadd.f32 %v6533, %v6534
  %v6536 = vsel %vm3441, %v6527, 0.0
  %v6537 = vadd.f32 %v6535, %v6536
  %v6538 = vsel %vm3441, %v6528, 0.0
  %v6539 = vadd.f32 %v6537, %v6538
  %v6540 = vsel %vm3441, %v6529, 0.0
  %v6541 = vadd.f32 %v6539, %v6540
  %v6542 = vsel %vm3441, %v6530, 0.0
  %v6543 = vadd.f32 %v6541, %v6542
  %v6544 = vsel %vm3441, %v6531, 0.0
  %v6545 = vadd.f32 %v6543, %v6544
  %v6546 = vsel %vm3441, %v6532, 0.0
  %v6547 = vadd.f32 %v6545, %v6546
  %v6548 = vrot.slane %v6547, 4
  %v6549 = vadd.f32 %v6547, %v6548
  %v6550 = vrot.slane %v6549, 2
  %v6551 = vadd.f32 %v6549, %v6550
  %v6552 = vrot.slane %v6551, 1
  %v6553 = vadd.f32 %v6551, %v6552
  %v6554 = vmul.f32 %v6524, 0.015625
  %v6555 = vmul.f32 %v6553, 0.015625
  %v6556 = vmul.f32 %v6554, %v6554
  %v6557 = vsub.f32 %v6555, %v6556
  %v6558 = vmax.f32 %v6557, 0.0
  %v6559 = vadd.f32 %v6558, 1e-05
  %v6560 = vrsqrt.pop %v6559
  %v6561 = vld [vmem:[%s65 + $0x1] sm:$0x1]
  %v6562 = vmul.f32 %v6561, %v6560
  %v6563 = vld [vmem:[%s65 + $0x2] sm:$0x1]
  %v6564 = vmul.f32 %v6554, %v6562
  %v6565 = vsub.f32 %v6563, %v6564
  %v6566 = vlaneseq
  %v6567 = vshrl.u32 %v6566, 7
  %v6568 = vsub.s32 0, %v6567
  %v6569 = vrot.slane %v6562, %v6568
  %v6570 = vmul.f32 %v6474, %v6569
  %v6571 = vmul.f32 %v6477, %v6569
  %v6572 = vmul.f32 %v6482, %v6569
  %v6573 = vmul.f32 %v6485, %v6569
  %v6574 = vmul.f32 %v6490, %v6569
  %v6575 = vmul.f32 %v6493, %v6569
  %v6576 = vmul.f32 %v6498, %v6569
  %v6577 = vmul.f32 %v6501, %v6569
  %v6578 = vlaneseq
  %v6579 = vshrl.u32 %v6578, 7
  %v6580 = vsub.s32 0, %v6579
  %v6581 = vrot.slane %v6565, %v6580
  %v6582 = vadd.f32 %v6570, %v6581
  %v6583 = vadd.f32 %v6571, %v6581
  %v6584 = vadd.f32 %v6572, %v6581
  %v6585 = vadd.f32 %v6573, %v6581
  %v6586 = vadd.f32 %v6574, %v6581
  %v6587 = vadd.f32 %v6575, %v6581
  %v6588 = vadd.f32 %v6576, %v6581
  %v6589 = vadd.f32 %v6577, %v6581
  %v6590 = vmax.f32 %v6582, 0.0
  %v6591 = vmax.f32 %v6583, 0.0
  %v6592 = vmax.f32 %v6584, 0.0
  %v6593 = vmax.f32 %v6585, 0.0
  %v6594 = vmax.f32 %v6586, 0.0
  %v6595 = vmax.f32 %v6587, 0.0
  %v6596 = vmax.f32 %v6588, 0.0
  %v6597 = vmax.f32 %v6589, 0.0
  %v6598 = vpack.c.bf16 %v6591, %v6590
  %v6599 = vpack.c.bf16 %v6593, %v6592
  %v6600 = vpack.c.bf16 %v6595, %v6594
  %v6601 = vpack.c.bf16 %v6597, %v6596
  %6602 = vmatprep.subr.bf16.mxu0 0
  %6603 = vmatpush1.bf16.msra.mxu0 0
  %6604 = vmatprep.subr.bf16.mxu0 0
  %6605 = vmatpush1.bf16.msra.mxu0 0
  %6606 = vmatprep.subr.bf16.mxu0 0
  %6607 = vmatpush1.bf16.msra.mxu0 0
  %6608 = vmatprep.subr.bf16.mxu0 0
  %6609 = vmatpush1.bf16.msra.mxu0 0
  %6610 = vmatprep.subr.bf16.mxu0 0
  %6611 = vmatpush1.bf16.msra.mxu0 %v6601
  %6612 = vmatprep.subr.bf16.mxu0 0
  %6613 = vmatpush1.bf16.msra.mxu0 %v6600
  %6614 = vmatprep.subr.bf16.mxu0 0
  %6615 = vmatpush1.bf16.msra.mxu0 %v6599
  %6616 = vmatprep.subr.bf16.mxu0 0
  %6617 = vmatpush1.bf16.msra.mxu0 %v6598
  %6618 = vmatprep.subr.bf16.mxu0 0
  %6619 = vmatpush2.bf16.msra.mxu0 0
  %6620 = vmatprep.subr.bf16.mxu0 0
  %6621 = vmatpush2.bf16.msra.mxu0 0
  %6622 = vmatprep.subr.bf16.mxu0 0
  %6623 = vmatpush2.bf16.msra.mxu0 0
  %6624 = vmatprep.subr.bf16.mxu0 0
  %6625 = vmatpush2.bf16.msra.mxu0 0
  %6626 = vmatprep.subr.bf16.mxu0 0
  %6627 = vmatpush2.bf16.msra.mxu0 0
  %6628 = vmatprep.subr.bf16.mxu0 0
  %6629 = vmatpush2.bf16.msra.mxu0 0
  %6630 = vmatprep.subr.bf16.mxu0 0
  %6631 = vmatpush2.bf16.msra.mxu0 0
  %6632 = vmatprep.subr.bf16.mxu0 0
  %6633 = vmatpush2.bf16.msra.mxu0 0
  %6634 = vmatprep.mubr.bf16.mxu0 0
  %6635 = vmatmul.mubr.bf16.gmra.mxu0 %v4130
  %v6636 = vpop.f32.mrf.mxu0
  %v6637 = vadd.f32 0.0, %v6636
  %v6638 = vpop.f32.mrf.mxu0
  %v6639 = vpop.f32.mrf.mxu0
  %v6640 = vadd.f32 0.0, %v6639
  %v6641 = vpop.f32.mrf.mxu0
  %6642 = vmatprep.mubr.bf16.mxu0 0
  %6643 = vmatmul.mubr.bf16.gmra.mxu0 %v4133
  %v6644 = vpop.f32.mrf.mxu0
  %v6645 = vadd.f32 0.0, %v6644
  %v6646 = vpop.f32.mrf.mxu0
  %v6647 = vpop.f32.mrf.mxu0
  %v6648 = vadd.f32 0.0, %v6647
  %v6649 = vpop.f32.mrf.mxu0
  %6650 = vmatprep.mubr.bf16.mxu0 0
  %6651 = vmatmul.mubr.bf16.gmra.mxu0 %v4136
  %v6652 = vpop.f32.mrf.mxu0
  %v6653 = vadd.f32 0.0, %v6652
  %v6654 = vpop.f32.mrf.mxu0
  %v6655 = vpop.f32.mrf.mxu0
  %v6656 = vadd.f32 0.0, %v6655
  %v6657 = vpop.f32.mrf.mxu0
  %6658 = vmatprep.mubr.bf16.mxu0 0
  %6659 = vmatmul.mubr.bf16.gmra.mxu0 %v4139
  %v6660 = vpop.f32.mrf.mxu0
  %v6661 = vadd.f32 0.0, %v6660
  %v6662 = vpop.f32.mrf.mxu0
  %v6663 = vpop.f32.mrf.mxu0
  %v6664 = vadd.f32 0.0, %v6663
  %v6665 = vpop.f32.mrf.mxu0
  %6666 = vdwg.mxu0
  %v6667 = vpack.c.bf16 %v6640, %v6637
  %v6668 = vpack.c.bf16 %v6648, %v6645
  %v6669 = vpack.c.bf16 %v6656, %v6653
  %v6670 = vpack.c.bf16 %v6664, %v6661
  %6671 = vmatprep.subr.bf16.mxu0 0
  %6672 = vmatpush1.bf16.msra.mxu0 0
  %6673 = vmatprep.subr.bf16.mxu0 0
  %6674 = vmatpush1.bf16.msra.mxu0 0
  %6675 = vmatprep.subr.bf16.mxu0 0
  %6676 = vmatpush1.bf16.msra.mxu0 0
  %6677 = vmatprep.subr.bf16.mxu0 0
  %6678 = vmatpush1.bf16.msra.mxu0 0
  %6679 = vmatprep.subr.bf16.mxu0 0
  %6680 = vmatpush1.bf16.msra.mxu0 %v6670
  %6681 = vmatprep.subr.bf16.mxu0 0
  %6682 = vmatpush1.bf16.msra.mxu0 %v6669
  %6683 = vmatprep.subr.bf16.mxu0 0
  %6684 = vmatpush1.bf16.msra.mxu0 %v6668
  %6685 = vmatprep.subr.bf16.mxu0 0
  %6686 = vmatpush1.bf16.msra.mxu0 %v6667
  %6687 = vmatprep.subr.bf16.mxu0 0
  %6688 = vmatpush2.bf16.msra.mxu0 0
  %6689 = vmatprep.subr.bf16.mxu0 0
  %6690 = vmatpush2.bf16.msra.mxu0 0
  %6691 = vmatprep.subr.bf16.mxu0 0
  %6692 = vmatpush2.bf16.msra.mxu0 0
  %6693 = vmatprep.subr.bf16.mxu0 0
  %6694 = vmatpush2.bf16.msra.mxu0 0
  %6695 = vmatprep.subr.bf16.mxu0 0
  %6696 = vmatpush2.bf16.msra.mxu0 0
  %6697 = vmatprep.subr.bf16.mxu0 0
  %6698 = vmatpush2.bf16.msra.mxu0 0
  %6699 = vmatprep.subr.bf16.mxu0 0
  %6700 = vmatpush2.bf16.msra.mxu0 0
  %6701 = vmatprep.subr.bf16.mxu0 0
  %6702 = vmatpush2.bf16.msra.mxu0 0
  %6703 = vmatprep.mubr.bf16.mxu0 0
  %6704 = vmatmul.mubr.bf16.gmra.mxu0 %v4231
  %v6705 = vpop.f32.mrf.mxu0
  %v6706 = vadd.f32 0.0, %v6705
  %v6707 = vpop.f32.mrf.mxu0
  %v6708 = vpop.f32.mrf.mxu0
  %v6709 = vadd.f32 0.0, %v6708
  %v6710 = vpop.f32.mrf.mxu0
  %6711 = vmatprep.mubr.bf16.mxu0 0
  %6712 = vmatmul.mubr.bf16.gmra.mxu0 %v4234
  %v6713 = vpop.f32.mrf.mxu0
  %v6714 = vadd.f32 0.0, %v6713
  %v6715 = vpop.f32.mrf.mxu0
  %v6716 = vpop.f32.mrf.mxu0
  %v6717 = vadd.f32 0.0, %v6716
  %v6718 = vpop.f32.mrf.mxu0
  %6719 = vmatprep.mubr.bf16.mxu0 0
  %6720 = vmatmul.mubr.bf16.gmra.mxu0 %v4237
  %v6721 = vpop.f32.mrf.mxu0
  %v6722 = vadd.f32 0.0, %v6721
  %v6723 = vpop.f32.mrf.mxu0
  %v6724 = vpop.f32.mrf.mxu0
  %v6725 = vadd.f32 0.0, %v6724
  %v6726 = vpop.f32.mrf.mxu0
  %6727 = vmatprep.mubr.bf16.mxu0 0
  %6728 = vmatmul.mubr.bf16.gmra.mxu0 %v4240
  %v6729 = vpop.f32.mrf.mxu0
  %v6730 = vadd.f32 0.0, %v6729
  %v6731 = vpop.f32.mrf.mxu0
  %v6732 = vpop.f32.mrf.mxu0
  %v6733 = vadd.f32 0.0, %v6732
  %v6734 = vpop.f32.mrf.mxu0
  %6735 = vdwg.mxu0
  %v6736 = vunpack.c.l.bf16 %v6598
  %v6737 = vunpack.c.h.bf16 %v6598
  %v6738 = vunpack.c.l.bf16 %v6599
  %v6739 = vunpack.c.h.bf16 %v6599
  %v6740 = vunpack.c.l.bf16 %v6600
  %v6741 = vunpack.c.h.bf16 %v6600
  %v6742 = vunpack.c.l.bf16 %v6601
  %v6743 = vunpack.c.h.bf16 %v6601
  %v6744 = vsub.f32 %v6706, %v6736
  %v6745 = vsub.f32 %v6709, %v6737
  %v6746 = vsub.f32 %v6714, %v6738
  %v6747 = vsub.f32 %v6717, %v6739
  %v6748 = vsub.f32 %v6722, %v6740
  %v6749 = vsub.f32 %v6725, %v6741
  %v6750 = vsub.f32 %v6730, %v6742
  %v6751 = vsub.f32 %v6733, %v6743
  %v6752 = vpack.c.bf16 %v6745, %v6744
  %v6753 = vpack.c.bf16 %v6747, %v6746
  %v6754 = vpack.c.bf16 %v6749, %v6748
  %v6755 = vpack.c.bf16 %v6751, %v6750
  %6760 = vrot.lane.b32.xlu0 %v6667, 32
  %v6761 = vpop.permute.xlu0 %6760
  %6762 = vrot.lane.b32.xlu0 %v6668, 32
  %v6763 = vpop.permute.xlu0 %6762
  %6764 = vrot.lane.b32.xlu0 %v6669, 32
  %v6765 = vpop.permute.xlu0 %6764
  %6766 = vrot.lane.b32.xlu0 %v6670, 32
  %v6767 = vpop.permute.xlu0 %6766
  %6772 = vrot.lane.b32.xlu0 %v6752, 64
  %v6773 = vpop.permute.xlu0 %6772
  %6774 = vrot.lane.b32.xlu0 %v6753, 64
  %v6775 = vpop.permute.xlu0 %6774
  %6776 = vrot.lane.b32.xlu0 %v6754, 64
  %v6777 = vpop.permute.xlu0 %6776
  %6778 = vrot.lane.b32.xlu0 %v6755, 64
  %v6779 = vpop.permute.xlu0 %6778
  %v6782 = vsel %vm3441, %v6598, %v6761
  %v6785 = vsel %vm3441, %v6599, %v6763
  %v6788 = vsel %vm3441, %v6600, %v6765
  %v6791 = vsel %vm3441, %v6601, %v6767
  %v6793 = vsel %vm4128, %v6782, %v6773
  %v6795 = vsel %vm4128, %v6785, %v6775
  %v6797 = vsel %vm4128, %v6788, %v6777
  %v6799 = vsel %vm4128, %v6791, %v6779
  %v6800 = vld [vmem:[%s41] sm:$0xf]
  %v6801 = vld [vmem:[%s41 + $0x4] sm:$0xf]
  %v6802 = vld [vmem:[%s41 + $0x8] sm:$0xf]
  %v6803 = vld [vmem:[%s41 + $0xc] sm:$0xf]
  %v6804 = vld [vmem:[%s41 + $0x10] sm:$0xf]
  %v6805 = vld [vmem:[%s41 + $0x14] sm:$0xf]
  %v6806 = vld [vmem:[%s41 + $0x18] sm:$0xf]
  %v6807 = vld [vmem:[%s41 + $0x1c] sm:$0xf]
  %v6808 = vld [vmem:[%s41 + $0x20] sm:$0xf]
  %v6809 = vld [vmem:[%s41 + $0x24] sm:$0xf]
  %v6810 = vld [vmem:[%s41 + $0x28] sm:$0xf]
  %v6811 = vld [vmem:[%s41 + $0x2c] sm:$0xf]
  %v6812 = vld [vmem:[%s67] sm:$0x1]
  %v6813 = vlaneseq
  %v6814 = vshrl.u32 %v6813, 7
  %v6815 = vsub.s32 0, %v6814
  %v6816 = vrot.slane %v6812, %v6815
  %v6829 = vunpack.c.l.b16 %v6800
  %v6830 = vunpack.c.l.b16 %v6801
  %v6831 = vunpack.c.l.b16 %v6802
  %v6832 = vunpack.c.l.b16 %v6803
  %v6833 = vunpack.c.l.b16 %v6804
  %v6834 = vunpack.c.l.b16 %v6805
  %v6835 = vunpack.c.l.b16 %v6806
  %v6836 = vunpack.c.l.b16 %v6807
  %v6837 = vunpack.c.l.b16 %v6808
  %v6838 = vunpack.c.l.b16 %v6809
  %v6839 = vunpack.c.l.b16 %v6810
  %v6840 = vunpack.c.l.b16 %v6811
  %v6841 = vpack.c.b16 %v6830, %v6829
  %v6842 = vpack.c.b16 %v6832, %v6831
  %v6843 = vpack.c.b16 %v6834, %v6833
  %v6844 = vpack.c.b16 %v6836, %v6835
  %v6845 = vpack.c.b16 %v6838, %v6837
  %v6846 = vpack.c.b16 %v6840, %v6839
  %v6853 = vsel %vm5236, %v6793, 0
  %v6855 = vsel %vm5236, %v6795, 0
  %v6857 = vsel %vm5236, %v6797, 0
  %v6859 = vsel %vm5236, %v6799, 0
  %6861 = vmatprep.subr.bf16.mxu0 0
  %6862 = vmatpush1.bf16.msra.mxu0 0
  %6863 = vmatprep.subr.bf16.mxu0 0
  %6864 = vmatpush1.bf16.msra.mxu0 0
  %6865 = vmatprep.subr.bf16.mxu0 0
  %6866 = vmatpush1.bf16.msra.mxu0 %v6846
  %6867 = vmatprep.subr.bf16.mxu0 0
  %6868 = vmatpush1.bf16.msra.mxu0 %v6845
  %6869 = vmatprep.subr.bf16.mxu0 0
  %6870 = vmatpush1.bf16.msra.mxu0 %v6844
  %6871 = vmatprep.subr.bf16.mxu0 0
  %6872 = vmatpush1.bf16.msra.mxu0 %v6843
  %6873 = vmatprep.subr.bf16.mxu0 0
  %6874 = vmatpush1.bf16.msra.mxu0 %v6842
  %6875 = vmatprep.subr.bf16.mxu0 0
  %6876 = vmatpush1.bf16.msra.mxu0 %v6841
  %6877 = vmatprep.subr.bf16.mxu0 0
  %6878 = vmatpush2.bf16.msra.mxu0 0
  %6879 = vmatprep.subr.bf16.mxu0 0
  %6880 = vmatpush2.bf16.msra.mxu0 0
  %6881 = vmatprep.subr.bf16.mxu0 0
  %6882 = vmatpush2.bf16.msra.mxu0 0
  %6883 = vmatprep.subr.bf16.mxu0 0
  %6884 = vmatpush2.bf16.msra.mxu0 0
  %6885 = vmatprep.subr.bf16.mxu0 0
  %6886 = vmatpush2.bf16.msra.mxu0 0
  %6887 = vmatprep.subr.bf16.mxu0 0
  %6888 = vmatpush2.bf16.msra.mxu0 0
  %6889 = vmatprep.subr.bf16.mxu0 0
  %6890 = vmatpush2.bf16.msra.mxu0 0
  %6891 = vmatprep.subr.bf16.mxu0 0
  %6892 = vmatpush2.bf16.msra.mxu0 0
  %6893 = vmatprep.mubr.bf16.mxu0 0
  %6894 = vmatmul.mubr.bf16.gmra.mxu0 %v6853
  %v6895 = vpop.f32.mrf.mxu0
  %v6896 = vadd.f32 %v6816, %v6895
  %v6897 = vpop.f32.mrf.mxu0
  %v6898 = vpop.f32.mrf.mxu0
  %v6899 = vadd.f32 %v6816, %v6898
  %v6900 = vpop.f32.mrf.mxu0
  %6901 = vmatprep.mubr.bf16.mxu0 0
  %6902 = vmatmul.mubr.bf16.gmra.mxu0 %v6855
  %v6903 = vpop.f32.mrf.mxu0
  %v6904 = vadd.f32 %v6816, %v6903
  %v6905 = vpop.f32.mrf.mxu0
  %v6906 = vpop.f32.mrf.mxu0
  %v6907 = vadd.f32 %v6816, %v6906
  %v6908 = vpop.f32.mrf.mxu0
  %6909 = vmatprep.mubr.bf16.mxu0 0
  %6910 = vmatmul.mubr.bf16.gmra.mxu0 %v6857
  %v6911 = vpop.f32.mrf.mxu0
  %v6912 = vadd.f32 %v6816, %v6911
  %v6913 = vpop.f32.mrf.mxu0
  %v6914 = vpop.f32.mrf.mxu0
  %v6915 = vadd.f32 %v6816, %v6914
  %v6916 = vpop.f32.mrf.mxu0
  %6917 = vmatprep.mubr.bf16.mxu0 0
  %6918 = vmatmul.mubr.bf16.gmra.mxu0 %v6859
  %v6919 = vpop.f32.mrf.mxu0
  %v6920 = vadd.f32 %v6816, %v6919
  %v6921 = vpop.f32.mrf.mxu0
  %v6922 = vpop.f32.mrf.mxu0
  %v6923 = vadd.f32 %v6816, %v6922
  %v6924 = vpop.f32.mrf.mxu0
  %6925 = vdwg.mxu0
  %v6926 = vsel %vm1220, %v6896, 0.0
  %v6927 = vsel %vm1220, %v6899, 0.0
  %v6928 = vadd.f32 %v6926, %v6927
  %v6929 = vsel %vm1220, %v6904, 0.0
  %v6930 = vadd.f32 %v6928, %v6929
  %v6931 = vsel %vm1220, %v6907, 0.0
  %v6932 = vadd.f32 %v6930, %v6931
  %v6933 = vsel %vm1220, %v6912, 0.0
  %v6934 = vadd.f32 %v6932, %v6933
  %v6935 = vsel %vm1220, %v6915, 0.0
  %v6936 = vadd.f32 %v6934, %v6935
  %v6937 = vsel %vm1220, %v6920, 0.0
  %v6938 = vadd.f32 %v6936, %v6937
  %v6939 = vsel %vm1220, %v6923, 0.0
  %v6940 = vadd.f32 %v6938, %v6939
  %v6941 = vrot.slane %v6940, 4
  %v6942 = vadd.f32 %v6940, %v6941
  %v6943 = vrot.slane %v6942, 2
  %v6944 = vadd.f32 %v6942, %v6943
  %v6945 = vrot.slane %v6944, 1
  %v6946 = vadd.f32 %v6944, %v6945
  %v6947 = vmul.f32 %v6896, %v6896
  %v6948 = vmul.f32 %v6899, %v6899
  %v6949 = vmul.f32 %v6904, %v6904
  %v6950 = vmul.f32 %v6907, %v6907
  %v6951 = vmul.f32 %v6912, %v6912
  %v6952 = vmul.f32 %v6915, %v6915
  %v6953 = vmul.f32 %v6920, %v6920
  %v6954 = vmul.f32 %v6923, %v6923
  %v6955 = vsel %vm1220, %v6947, 0.0
  %v6956 = vsel %vm1220, %v6948, 0.0
  %v6957 = vadd.f32 %v6955, %v6956
  %v6958 = vsel %vm1220, %v6949, 0.0
  %v6959 = vadd.f32 %v6957, %v6958
  %v6960 = vsel %vm1220, %v6950, 0.0
  %v6961 = vadd.f32 %v6959, %v6960
  %v6962 = vsel %vm1220, %v6951, 0.0
  %v6963 = vadd.f32 %v6961, %v6962
  %v6964 = vsel %vm1220, %v6952, 0.0
  %v6965 = vadd.f32 %v6963, %v6964
  %v6966 = vsel %vm1220, %v6953, 0.0
  %v6967 = vadd.f32 %v6965, %v6966
  %v6968 = vsel %vm1220, %v6954, 0.0
  %v6969 = vadd.f32 %v6967, %v6968
  %v6970 = vrot.slane %v6969, 4
  %v6971 = vadd.f32 %v6969, %v6970
  %v6972 = vrot.slane %v6971, 2
  %v6973 = vadd.f32 %v6971, %v6972
  %v6974 = vrot.slane %v6973, 1
  %v6975 = vadd.f32 %v6973, %v6974
  %v6976 = vmul.f32 %v6946, 0.015625
  %v6977 = vmul.f32 %v6975, 0.015625
  %v6978 = vmul.f32 %v6976, %v6976
  %v6979 = vsub.f32 %v6977, %v6978
  %v6980 = vmax.f32 %v6979, 0.0
  %v6981 = vadd.f32 %v6980, 1e-05
  %v6982 = vrsqrt.pop %v6981
  %v6983 = vld [vmem:[%s67 + $0x1] sm:$0x1]
  %v6984 = vmul.f32 %v6983, %v6982
  %v6985 = vld [vmem:[%s67 + $0x2] sm:$0x1]
  %v6986 = vmul.f32 %v6976, %v6984
  %v6987 = vsub.f32 %v6985, %v6986
  %v6988 = vlaneseq
  %v6989 = vshrl.u32 %v6988, 7
  %v6990 = vsub.s32 0, %v6989
  %v6991 = vrot.slane %v6984, %v6990
  %v6992 = vmul.f32 %v6896, %v6991
  %v6993 = vmul.f32 %v6899, %v6991
  %v6994 = vmul.f32 %v6904, %v6991
  %v6995 = vmul.f32 %v6907, %v6991
  %v6996 = vmul.f32 %v6912, %v6991
  %v6997 = vmul.f32 %v6915, %v6991
  %v6998 = vmul.f32 %v6920, %v6991
  %v6999 = vmul.f32 %v6923, %v6991
  %v7000 = vlaneseq
  %v7001 = vshrl.u32 %v7000, 7
  %v7002 = vsub.s32 0, %v7001
  %v7003 = vrot.slane %v6987, %v7002
  %v7004 = vadd.f32 %v6992, %v7003
  %v7005 = vadd.f32 %v6993, %v7003
  %v7006 = vadd.f32 %v6994, %v7003
  %v7007 = vadd.f32 %v6995, %v7003
  %v7008 = vadd.f32 %v6996, %v7003
  %v7009 = vadd.f32 %v6997, %v7003
  %v7010 = vadd.f32 %v6998, %v7003
  %v7011 = vadd.f32 %v6999, %v7003
  %v7012 = vmax.f32 %v7004, 0.0
  %v7013 = vmax.f32 %v7005, 0.0
  %v7014 = vmax.f32 %v7006, 0.0
  %v7015 = vmax.f32 %v7007, 0.0
  %v7016 = vmax.f32 %v7008, 0.0
  %v7017 = vmax.f32 %v7009, 0.0
  %v7018 = vmax.f32 %v7010, 0.0
  %v7019 = vmax.f32 %v7011, 0.0
  %v7020 = vpack.c.bf16 %v7013, %v7012
  %v7021 = vpack.c.bf16 %v7015, %v7014
  %v7022 = vpack.c.bf16 %v7017, %v7016
  %v7023 = vpack.c.bf16 %v7019, %v7018
  %v7056 = vunpack.c.l.b16 %v249
  %v7057 = vunpack.c.l.b16 %v250
  %v7058 = vunpack.c.l.b16 %v251
  %v7059 = vunpack.c.l.b16 %v252
  %v7060 = vunpack.c.l.b16 %v253
  %v7061 = vunpack.c.l.b16 %v254
  %v7062 = vunpack.c.l.b16 %v255
  %v7063 = vunpack.c.l.b16 %v256
  %v7064 = vunpack.c.l.b16 %v257
  %v7065 = vunpack.c.l.b16 %v258
  %v7066 = vunpack.c.l.b16 %v259
  %v7067 = vunpack.c.l.b16 %v260
  %v7068 = vunpack.c.l.b16 %v261
  %v7069 = vunpack.c.l.b16 %v262
  %v7070 = vunpack.c.l.b16 %v263
  %v7071 = vunpack.c.l.b16 %v264
  %v7072 = vunpack.c.l.b16 %v265
  %v7073 = vunpack.c.l.b16 %v266
  %v7074 = vunpack.c.l.b16 %v267
  %v7075 = vunpack.c.l.b16 %v268
  %v7076 = vunpack.c.l.b16 %v269
  %v7077 = vunpack.c.l.b16 %v270
  %v7078 = vunpack.c.l.b16 %v271
  %v7079 = vunpack.c.l.b16 %v272
  %v7080 = vunpack.c.l.b16 %v273
  %v7081 = vunpack.c.l.b16 %v274
  %v7082 = vunpack.c.l.b16 %v275
  %v7083 = vunpack.c.l.b16 %v276
  %v7084 = vunpack.c.l.b16 %v277
  %v7085 = vunpack.c.l.b16 %v278
  %v7086 = vunpack.c.l.b16 %v279
  %v7087 = vunpack.c.l.b16 %v280
  %v7088 = vpack.c.b16 %v7057, %v7056
  %v7089 = vpack.c.b16 %v7059, %v7058
  %v7090 = vpack.c.b16 %v7061, %v7060
  %v7091 = vpack.c.b16 %v7063, %v7062
  %v7092 = vpack.c.b16 %v7065, %v7064
  %v7093 = vpack.c.b16 %v7067, %v7066
  %v7094 = vpack.c.b16 %v7069, %v7068
  %v7095 = vpack.c.b16 %v7071, %v7070
  %v7096 = vpack.c.b16 %v7073, %v7072
  %v7097 = vpack.c.b16 %v7075, %v7074
  %v7098 = vpack.c.b16 %v7077, %v7076
  %v7099 = vpack.c.b16 %v7079, %v7078
  %v7100 = vpack.c.b16 %v7081, %v7080
  %v7101 = vpack.c.b16 %v7083, %v7082
  %v7102 = vpack.c.b16 %v7085, %v7084
  %v7103 = vpack.c.b16 %v7087, %v7086
  %v7105 = vsel %vm4128, %v7088, 0
  %v7108 = vsel %vm4128, %v7089, 0
  %v7111 = vsel %vm4128, %v7090, 0
  %v7114 = vsel %vm4128, %v7091, 0
  %v7117 = vsel %vm4128, %v7092, 0
  %v7120 = vsel %vm4128, %v7093, 0
  %v7123 = vsel %vm4128, %v7094, 0
  %v7126 = vsel %vm4128, %v7095, 0
  %v7129 = vsel %vm4128, %v7096, 0
  %v7132 = vsel %vm4128, %v7097, 0
  %v7135 = vsel %vm4128, %v7098, 0
  %v7138 = vsel %vm4128, %v7099, 0
  %v7141 = vsel %vm4128, %v7100, 0
  %v7144 = vsel %vm4128, %v7101, 0
  %v7147 = vsel %vm4128, %v7102, 0
  %v7150 = vsel %vm4128, %v7103, 0
  %7152 = vmatprep.subr.bf16.mxu0 0
  %7153 = vmatpush1.bf16.msra.mxu0 0
  %7154 = vmatprep.subr.bf16.mxu0 0
  %7155 = vmatpush1.bf16.msra.mxu0 0
  %7156 = vmatprep.subr.bf16.mxu0 0
  %7157 = vmatpush1.bf16.msra.mxu0 0
  %7158 = vmatprep.subr.bf16.mxu0 0
  %7159 = vmatpush1.bf16.msra.mxu0 0
  %7160 = vmatprep.subr.bf16.mxu0 0
  %7161 = vmatpush1.bf16.msra.mxu0 %v7023
  %7162 = vmatprep.subr.bf16.mxu0 0
  %7163 = vmatpush1.bf16.msra.mxu0 %v7022
  %7164 = vmatprep.subr.bf16.mxu0 0
  %7165 = vmatpush1.bf16.msra.mxu0 %v7021
  %7166 = vmatprep.subr.bf16.mxu0 0
  %7167 = vmatpush1.bf16.msra.mxu0 %v7020
  %7168 = vmatprep.subr.bf16.mxu0 0
  %7169 = vmatpush2.bf16.msra.mxu0 0
  %7170 = vmatprep.subr.bf16.mxu0 0
  %7171 = vmatpush2.bf16.msra.mxu0 0
  %7172 = vmatprep.subr.bf16.mxu0 0
  %7173 = vmatpush2.bf16.msra.mxu0 0
  %7174 = vmatprep.subr.bf16.mxu0 0
  %7175 = vmatpush2.bf16.msra.mxu0 0
  %7176 = vmatprep.subr.bf16.mxu0 0
  %7177 = vmatpush2.bf16.msra.mxu0 0
  %7178 = vmatprep.subr.bf16.mxu0 0
  %7179 = vmatpush2.bf16.msra.mxu0 0
  %7180 = vmatprep.subr.bf16.mxu0 0
  %7181 = vmatpush2.bf16.msra.mxu0 0
  %7182 = vmatprep.subr.bf16.mxu0 0
  %7183 = vmatpush2.bf16.msra.mxu0 0
  %7184 = vmatprep.mubr.bf16.mxu0 0
  %7185 = vmatmul.mubr.bf16.gmra.mxu0 %v7105
  %v7186 = vpop.f32.mrf.mxu0
  %v7187 = vadd.f32 0.0, %v7186
  %v7188 = vpop.f32.mrf.mxu0
  %v7189 = vpop.f32.mrf.mxu0
  %v7190 = vadd.f32 0.0, %v7189
  %v7191 = vpop.f32.mrf.mxu0
  %7192 = vmatprep.mubr.bf16.mxu0 0
  %7193 = vmatmul.mubr.bf16.gmra.mxu0 %v7108
  %v7194 = vpop.f32.mrf.mxu0
  %v7195 = vadd.f32 0.0, %v7194
  %v7196 = vpop.f32.mrf.mxu0
  %v7197 = vpop.f32.mrf.mxu0
  %v7198 = vadd.f32 0.0, %v7197
  %v7199 = vpop.f32.mrf.mxu0
  %7200 = vmatprep.mubr.bf16.mxu0 0
  %7201 = vmatmul.mubr.bf16.gmra.mxu0 %v7111
  %v7202 = vpop.f32.mrf.mxu0
  %v7203 = vadd.f32 0.0, %v7202
  %v7204 = vpop.f32.mrf.mxu0
  %v7205 = vpop.f32.mrf.mxu0
  %v7206 = vadd.f32 0.0, %v7205
  %v7207 = vpop.f32.mrf.mxu0
  %7208 = vmatprep.mubr.bf16.mxu0 0
  %7209 = vmatmul.mubr.bf16.gmra.mxu0 %v7114
  %v7210 = vpop.f32.mrf.mxu0
  %v7211 = vadd.f32 0.0, %v7210
  %v7212 = vpop.f32.mrf.mxu0
  %v7213 = vpop.f32.mrf.mxu0
  %v7214 = vadd.f32 0.0, %v7213
  %v7215 = vpop.f32.mrf.mxu0
  %7216 = vmatprep.mubr.bf16.mxu0 0
  %7217 = vmatmul.mubr.bf16.gmra.mxu0 %v7117
  %v7218 = vpop.f32.mrf.mxu0
  %v7219 = vadd.f32 0.0, %v7218
  %v7220 = vpop.f32.mrf.mxu0
  %v7221 = vpop.f32.mrf.mxu0
  %v7222 = vadd.f32 0.0, %v7221
  %v7223 = vpop.f32.mrf.mxu0
  %7224 = vmatprep.mubr.bf16.mxu0 0
  %7225 = vmatmul.mubr.bf16.gmra.mxu0 %v7120
  %v7226 = vpop.f32.mrf.mxu0
  %v7227 = vadd.f32 0.0, %v7226
  %v7228 = vpop.f32.mrf.mxu0
  %v7229 = vpop.f32.mrf.mxu0
  %v7230 = vadd.f32 0.0, %v7229
  %v7231 = vpop.f32.mrf.mxu0
  %7232 = vmatprep.mubr.bf16.mxu0 0
  %7233 = vmatmul.mubr.bf16.gmra.mxu0 %v7123
  %v7234 = vpop.f32.mrf.mxu0
  %v7235 = vadd.f32 0.0, %v7234
  %v7236 = vpop.f32.mrf.mxu0
  %v7237 = vpop.f32.mrf.mxu0
  %v7238 = vadd.f32 0.0, %v7237
  %v7239 = vpop.f32.mrf.mxu0
  %7240 = vmatprep.mubr.bf16.mxu0 0
  %7241 = vmatmul.mubr.bf16.gmra.mxu0 %v7126
  %v7242 = vpop.f32.mrf.mxu0
  %v7243 = vadd.f32 0.0, %v7242
  %v7244 = vpop.f32.mrf.mxu0
  %v7245 = vpop.f32.mrf.mxu0
  %v7246 = vadd.f32 0.0, %v7245
  %v7247 = vpop.f32.mrf.mxu0
  %7248 = vmatprep.mubr.bf16.mxu0 0
  %7249 = vmatmul.mubr.bf16.gmra.mxu0 %v7129
  %v7250 = vpop.f32.mrf.mxu0
  %v7251 = vadd.f32 0.0, %v7250
  %v7252 = vpop.f32.mrf.mxu0
  %v7253 = vpop.f32.mrf.mxu0
  %v7254 = vadd.f32 0.0, %v7253
  %v7255 = vpop.f32.mrf.mxu0
  %7256 = vmatprep.mubr.bf16.mxu0 0
  %7257 = vmatmul.mubr.bf16.gmra.mxu0 %v7132
  %v7258 = vpop.f32.mrf.mxu0
  %v7259 = vadd.f32 0.0, %v7258
  %v7260 = vpop.f32.mrf.mxu0
  %v7261 = vpop.f32.mrf.mxu0
  %v7262 = vadd.f32 0.0, %v7261
  %v7263 = vpop.f32.mrf.mxu0
  %7264 = vmatprep.mubr.bf16.mxu0 0
  %7265 = vmatmul.mubr.bf16.gmra.mxu0 %v7135
  %v7266 = vpop.f32.mrf.mxu0
  %v7267 = vadd.f32 0.0, %v7266
  %v7268 = vpop.f32.mrf.mxu0
  %v7269 = vpop.f32.mrf.mxu0
  %v7270 = vadd.f32 0.0, %v7269
  %v7271 = vpop.f32.mrf.mxu0
  %7272 = vmatprep.mubr.bf16.mxu0 0
  %7273 = vmatmul.mubr.bf16.gmra.mxu0 %v7138
  %v7274 = vpop.f32.mrf.mxu0
  %v7275 = vadd.f32 0.0, %v7274
  %v7276 = vpop.f32.mrf.mxu0
  %v7277 = vpop.f32.mrf.mxu0
  %v7278 = vadd.f32 0.0, %v7277
  %v7279 = vpop.f32.mrf.mxu0
  %7280 = vmatprep.mubr.bf16.mxu0 0
  %7281 = vmatmul.mubr.bf16.gmra.mxu0 %v7141
  %v7282 = vpop.f32.mrf.mxu0
  %v7283 = vadd.f32 0.0, %v7282
  %v7284 = vpop.f32.mrf.mxu0
  %v7285 = vpop.f32.mrf.mxu0
  %v7286 = vadd.f32 0.0, %v7285
  %v7287 = vpop.f32.mrf.mxu0
  %7288 = vmatprep.mubr.bf16.mxu0 0
  %7289 = vmatmul.mubr.bf16.gmra.mxu0 %v7144
  %v7290 = vpop.f32.mrf.mxu0
  %v7291 = vadd.f32 0.0, %v7290
  %v7292 = vpop.f32.mrf.mxu0
  %v7293 = vpop.f32.mrf.mxu0
  %v7294 = vadd.f32 0.0, %v7293
  %v7295 = vpop.f32.mrf.mxu0
  %7296 = vmatprep.mubr.bf16.mxu0 0
  %7297 = vmatmul.mubr.bf16.gmra.mxu0 %v7147
  %v7298 = vpop.f32.mrf.mxu0
  %v7299 = vadd.f32 0.0, %v7298
  %v7300 = vpop.f32.mrf.mxu0
  %v7301 = vpop.f32.mrf.mxu0
  %v7302 = vadd.f32 0.0, %v7301
  %v7303 = vpop.f32.mrf.mxu0
  %7304 = vmatprep.mubr.bf16.mxu0 0
  %7305 = vmatmul.mubr.bf16.gmra.mxu0 %v7150
  %v7306 = vpop.f32.mrf.mxu0
  %v7307 = vadd.f32 0.0, %v7306
  %v7308 = vpop.f32.mrf.mxu0
  %v7309 = vpop.f32.mrf.mxu0
  %v7310 = vadd.f32 0.0, %v7309
  %v7311 = vpop.f32.mrf.mxu0
  %7312 = vdwg.mxu0
  %7345 = vrot.lane.b32.xlu0 %v3951, 16
  %v7346 = vpop.permute.xlu0 %7345
  %7347 = vrot.lane.b32.xlu0 %v3952, 16
  %v7348 = vpop.permute.xlu0 %7347
  %7349 = vrot.lane.b32.xlu0 %v3953, 16
  %v7350 = vpop.permute.xlu0 %7349
  %7351 = vrot.lane.b32.xlu0 %v3954, 16
  %v7352 = vpop.permute.xlu0 %7351
  %7353 = vrot.lane.b32.xlu0 %v3955, 16
  %v7354 = vpop.permute.xlu0 %7353
  %7355 = vrot.lane.b32.xlu0 %v3956, 16
  %v7356 = vpop.permute.xlu0 %7355
  %7357 = vrot.lane.b32.xlu0 %v3957, 16
  %v7358 = vpop.permute.xlu0 %7357
  %7359 = vrot.lane.b32.xlu0 %v3958, 16
  %v7360 = vpop.permute.xlu0 %7359
  %7361 = vrot.lane.b32.xlu0 %v3959, 16
  %v7362 = vpop.permute.xlu0 %7361
  %7363 = vrot.lane.b32.xlu0 %v3960, 16
  %v7364 = vpop.permute.xlu0 %7363
  %7365 = vrot.lane.b32.xlu0 %v3961, 16
  %v7366 = vpop.permute.xlu0 %7365
  %7367 = vrot.lane.b32.xlu0 %v3962, 16
  %v7368 = vpop.permute.xlu0 %7367
  %7369 = vrot.lane.b32.xlu0 %v3963, 16
  %v7370 = vpop.permute.xlu0 %7369
  %7371 = vrot.lane.b32.xlu0 %v3964, 16
  %v7372 = vpop.permute.xlu0 %7371
  %7373 = vrot.lane.b32.xlu0 %v3965, 16
  %v7374 = vpop.permute.xlu0 %7373
  %7375 = vrot.lane.b32.xlu0 %v3966, 16
  %v7376 = vpop.permute.xlu0 %7375
  %7377 = vrot.lane.b32.xlu0 %v3967, 16
  %v7378 = vpop.permute.xlu0 %7377
  %7379 = vrot.lane.b32.xlu0 %v3968, 16
  %v7380 = vpop.permute.xlu0 %7379
  %7381 = vrot.lane.b32.xlu0 %v3969, 16
  %v7382 = vpop.permute.xlu0 %7381
  %7383 = vrot.lane.b32.xlu0 %v3970, 16
  %v7384 = vpop.permute.xlu0 %7383
  %7385 = vrot.lane.b32.xlu0 %v3971, 16
  %v7386 = vpop.permute.xlu0 %7385
  %7387 = vrot.lane.b32.xlu0 %v3972, 16
  %v7388 = vpop.permute.xlu0 %7387
  %7389 = vrot.lane.b32.xlu0 %v3973, 16
  %v7390 = vpop.permute.xlu0 %7389
  %7391 = vrot.lane.b32.xlu0 %v3974, 16
  %v7392 = vpop.permute.xlu0 %7391
  %7393 = vrot.lane.b32.xlu0 %v3975, 16
  %v7394 = vpop.permute.xlu0 %7393
  %7395 = vrot.lane.b32.xlu0 %v3976, 16
  %v7396 = vpop.permute.xlu0 %7395
  %7397 = vrot.lane.b32.xlu0 %v3977, 16
  %v7398 = vpop.permute.xlu0 %7397
  %7399 = vrot.lane.b32.xlu0 %v3978, 16
  %v7400 = vpop.permute.xlu0 %7399
  %7401 = vrot.lane.b32.xlu0 %v3979, 16
  %v7402 = vpop.permute.xlu0 %7401
  %7403 = vrot.lane.b32.xlu0 %v3980, 16
  %v7404 = vpop.permute.xlu0 %7403
  %7405 = vrot.lane.b32.xlu0 %v3981, 16
  %v7406 = vpop.permute.xlu0 %7405
  %7407 = vrot.lane.b32.xlu0 %v3982, 16
  %v7408 = vpop.permute.xlu0 %7407
  %v7441 = vsel %vm1220, %v7187, %v7346
  %v7442 = vsel %vm1220, %v7190, %v7348
  %v7443 = vsel %vm1220, %v7195, %v7350
  %v7444 = vsel %vm1220, %v7198, %v7352
  %v7445 = vsel %vm1220, %v7203, %v7354
  %v7446 = vsel %vm1220, %v7206, %v7356
  %v7447 = vsel %vm1220, %v7211, %v7358
  %v7448 = vsel %vm1220, %v7214, %v7360
  %v7449 = vsel %vm1220, %v7219, %v7362
  %v7450 = vsel %vm1220, %v7222, %v7364
  %v7451 = vsel %vm1220, %v7227, %v7366
  %v7452 = vsel %vm1220, %v7230, %v7368
  %v7453 = vsel %vm1220, %v7235, %v7370
  %v7454 = vsel %vm1220, %v7238, %v7372
  %v7455 = vsel %vm1220, %v7243, %v7374
  %v7456 = vsel %vm1220, %v7246, %v7376
  %v7457 = vsel %vm1220, %v7251, %v7378
  %v7458 = vsel %vm1220, %v7254, %v7380
  %v7459 = vsel %vm1220, %v7259, %v7382
  %v7460 = vsel %vm1220, %v7262, %v7384
  %v7461 = vsel %vm1220, %v7267, %v7386
  %v7462 = vsel %vm1220, %v7270, %v7388
  %v7463 = vsel %vm1220, %v7275, %v7390
  %v7464 = vsel %vm1220, %v7278, %v7392
  %v7465 = vsel %vm1220, %v7283, %v7394
  %v7466 = vsel %vm1220, %v7286, %v7396
  %v7467 = vsel %vm1220, %v7291, %v7398
  %v7468 = vsel %vm1220, %v7294, %v7400
  %v7469 = vsel %vm1220, %v7299, %v7402
  %v7470 = vsel %vm1220, %v7302, %v7404
  %v7471 = vsel %vm1220, %v7307, %v7406
  %v7472 = vsel %vm1220, %v7310, %v7408
  %v7473 = vpack.c.bf16 %v7442, %v7441
  %v7474 = vpack.c.bf16 %v7444, %v7443
  %v7475 = vpack.c.bf16 %v7446, %v7445
  %v7476 = vpack.c.bf16 %v7448, %v7447
  %v7477 = vpack.c.bf16 %v7450, %v7449
  %v7478 = vpack.c.bf16 %v7452, %v7451
  %v7479 = vpack.c.bf16 %v7454, %v7453
  %v7480 = vpack.c.bf16 %v7456, %v7455
  %v7481 = vpack.c.bf16 %v7458, %v7457
  %v7482 = vpack.c.bf16 %v7460, %v7459
  %v7483 = vpack.c.bf16 %v7462, %v7461
  %v7484 = vpack.c.bf16 %v7464, %v7463
  %v7485 = vpack.c.bf16 %v7466, %v7465
  %v7486 = vpack.c.bf16 %v7468, %v7467
  %v7487 = vpack.c.bf16 %v7470, %v7469
  %v7488 = vpack.c.bf16 %v7472, %v7471
  %7489 = vmatprep.subr.bf16.mxu0 0
  %7490 = vmatpush1.bf16.msra.mxu0 %v7480
  %7491 = vmatprep.subr.bf16.mxu0 0
  %7492 = vmatpush1.bf16.msra.mxu0 %v7479
  %7493 = vmatprep.subr.bf16.mxu0 0
  %7494 = vmatpush1.bf16.msra.mxu0 %v7478
  %7495 = vmatprep.subr.bf16.mxu0 0
  %7496 = vmatpush1.bf16.msra.mxu0 %v7477
  %7497 = vmatprep.subr.bf16.mxu0 0
  %7498 = vmatpush1.bf16.msra.mxu0 %v7476
  %7499 = vmatprep.subr.bf16.mxu0 0
  %7500 = vmatpush1.bf16.msra.mxu0 %v7475
  %7501 = vmatprep.subr.bf16.mxu0 0
  %7502 = vmatpush1.bf16.msra.mxu0 %v7474
  %7503 = vmatprep.subr.bf16.mxu0 0
  %7504 = vmatpush1.bf16.msra.mxu0 %v7473
  %7505 = vmatprep.subr.bf16.mxu0 0
  %7506 = vmatpush2.bf16.msra.mxu0 %v7488
  %7507 = vmatprep.subr.bf16.mxu0 0
  %7508 = vmatpush2.bf16.msra.mxu0 %v7487
  %7509 = vmatprep.subr.bf16.mxu0 0
  %7510 = vmatpush2.bf16.msra.mxu0 %v7486
  %7511 = vmatprep.subr.bf16.mxu0 0
  %7512 = vmatpush2.bf16.msra.mxu0 %v7485
  %7513 = vmatprep.subr.bf16.mxu0 0
  %7514 = vmatpush2.bf16.msra.mxu0 %v7484
  %7515 = vmatprep.subr.bf16.mxu0 0
  %7516 = vmatpush2.bf16.msra.mxu0 %v7483
  %7517 = vmatprep.subr.bf16.mxu0 0
  %7518 = vmatpush2.bf16.msra.mxu0 %v7482
  %7519 = vmatprep.subr.bf16.mxu0 0
  %7520 = vmatpush2.bf16.msra.mxu0 %v7481
  %7521 = vmatprep.mubr.bf16.mxu0 %v434
  %7522 = vmatmul.mubr.bf16.gmra.mxu0 %v433
  %v7523 = vpop.f32.mrf.mxu0
  %v7524 = vadd.f32 0.0, %v7523
  %v7525 = vpop.f32.mrf.mxu0
  %v7526 = vpop.f32.mrf.mxu0
  %v7527 = vadd.f32 0.0, %v7526
  %v7528 = vpop.f32.mrf.mxu0
  %7529 = vmatprep.mubr.bf16.mxu0 %v436
  %7530 = vmatmul.mubr.bf16.gmra.mxu0 %v435
  %v7531 = vpop.f32.mrf.mxu0
  %v7532 = vadd.f32 0.0, %v7531
  %v7533 = vpop.f32.mrf.mxu0
  %v7534 = vpop.f32.mrf.mxu0
  %v7535 = vadd.f32 0.0, %v7534
  %v7536 = vpop.f32.mrf.mxu0
  %7537 = vmatprep.mubr.bf16.mxu0 %v438
  %7538 = vmatmul.mubr.bf16.gmra.mxu0 %v437
  %v7539 = vpop.f32.mrf.mxu0
  %v7540 = vadd.f32 0.0, %v7539
  %v7541 = vpop.f32.mrf.mxu0
  %v7542 = vpop.f32.mrf.mxu0
  %v7543 = vadd.f32 0.0, %v7542
  %v7544 = vpop.f32.mrf.mxu0
  %7545 = vmatprep.mubr.bf16.mxu0 %v440
  %7546 = vmatmul.mubr.bf16.gmra.mxu0 %v439
  %v7547 = vpop.f32.mrf.mxu0
  %v7548 = vadd.f32 0.0, %v7547
  %v7549 = vpop.f32.mrf.mxu0
  %v7550 = vpop.f32.mrf.mxu0
  %v7551 = vadd.f32 0.0, %v7550
  %v7552 = vpop.f32.mrf.mxu0
  %7553 = vmatprep.mubr.bf16.mxu0 %v442
  %7554 = vmatmul.mubr.bf16.gmra.mxu0 %v441
  %v7555 = vpop.f32.mrf.mxu0
  %v7556 = vadd.f32 0.0, %v7555
  %v7557 = vpop.f32.mrf.mxu0
  %v7558 = vpop.f32.mrf.mxu0
  %v7559 = vadd.f32 0.0, %v7558
  %v7560 = vpop.f32.mrf.mxu0
  %7561 = vmatprep.mubr.bf16.mxu0 %v444
  %7562 = vmatmul.mubr.bf16.gmra.mxu0 %v443
  %v7563 = vpop.f32.mrf.mxu0
  %v7564 = vadd.f32 0.0, %v7563
  %v7565 = vpop.f32.mrf.mxu0
  %v7566 = vpop.f32.mrf.mxu0
  %v7567 = vadd.f32 0.0, %v7566
  %v7568 = vpop.f32.mrf.mxu0
  %7569 = vmatprep.mubr.bf16.mxu0 %v446
  %7570 = vmatmul.mubr.bf16.gmra.mxu0 %v445
  %v7571 = vpop.f32.mrf.mxu0
  %v7572 = vadd.f32 0.0, %v7571
  %v7573 = vpop.f32.mrf.mxu0
  %v7574 = vpop.f32.mrf.mxu0
  %v7575 = vadd.f32 0.0, %v7574
  %v7576 = vpop.f32.mrf.mxu0
  %7577 = vmatprep.mubr.bf16.mxu0 %v448
  %7578 = vmatmul.mubr.bf16.gmra.mxu0 %v447
  %v7579 = vpop.f32.mrf.mxu0
  %v7580 = vadd.f32 0.0, %v7579
  %v7581 = vpop.f32.mrf.mxu0
  %v7582 = vpop.f32.mrf.mxu0
  %v7583 = vadd.f32 0.0, %v7582
  %v7584 = vpop.f32.mrf.mxu0
  %7585 = vmatprep.mubr.bf16.mxu0 %v450
  %7586 = vmatmul.mubr.bf16.gmra.mxu0 %v449
  %v7587 = vpop.f32.mrf.mxu0
  %v7588 = vadd.f32 0.0, %v7587
  %v7589 = vpop.f32.mrf.mxu0
  %v7590 = vpop.f32.mrf.mxu0
  %v7591 = vadd.f32 0.0, %v7590
  %v7592 = vpop.f32.mrf.mxu0
  %7593 = vmatprep.mubr.bf16.mxu0 %v452
  %7594 = vmatmul.mubr.bf16.gmra.mxu0 %v451
  %v7595 = vpop.f32.mrf.mxu0
  %v7596 = vadd.f32 0.0, %v7595
  %v7597 = vpop.f32.mrf.mxu0
  %v7598 = vpop.f32.mrf.mxu0
  %v7599 = vadd.f32 0.0, %v7598
  %v7600 = vpop.f32.mrf.mxu0
  %7601 = vmatprep.mubr.bf16.mxu0 %v454
  %7602 = vmatmul.mubr.bf16.gmra.mxu0 %v453
  %v7603 = vpop.f32.mrf.mxu0
  %v7604 = vadd.f32 0.0, %v7603
  %v7605 = vpop.f32.mrf.mxu0
  %v7606 = vpop.f32.mrf.mxu0
  %v7607 = vadd.f32 0.0, %v7606
  %v7608 = vpop.f32.mrf.mxu0
  %7609 = vmatprep.mubr.bf16.mxu0 %v456
  %7610 = vmatmul.mubr.bf16.gmra.mxu0 %v455
  %v7611 = vpop.f32.mrf.mxu0
  %v7612 = vadd.f32 0.0, %v7611
  %v7613 = vpop.f32.mrf.mxu0
  %v7614 = vpop.f32.mrf.mxu0
  %v7615 = vadd.f32 0.0, %v7614
  %v7616 = vpop.f32.mrf.mxu0
  %7617 = vmatprep.mubr.bf16.mxu0 %v458
  %7618 = vmatmul.mubr.bf16.gmra.mxu0 %v457
  %v7619 = vpop.f32.mrf.mxu0
  %v7620 = vadd.f32 0.0, %v7619
  %v7621 = vpop.f32.mrf.mxu0
  %v7622 = vpop.f32.mrf.mxu0
  %v7623 = vadd.f32 0.0, %v7622
  %v7624 = vpop.f32.mrf.mxu0
  %7625 = vmatprep.mubr.bf16.mxu0 %v460
  %7626 = vmatmul.mubr.bf16.gmra.mxu0 %v459
  %v7627 = vpop.f32.mrf.mxu0
  %v7628 = vadd.f32 0.0, %v7627
  %v7629 = vpop.f32.mrf.mxu0
  %v7630 = vpop.f32.mrf.mxu0
  %v7631 = vadd.f32 0.0, %v7630
  %v7632 = vpop.f32.mrf.mxu0
  %7633 = vmatprep.mubr.bf16.mxu0 %v462
  %7634 = vmatmul.mubr.bf16.gmra.mxu0 %v461
  %v7635 = vpop.f32.mrf.mxu0
  %v7636 = vadd.f32 0.0, %v7635
  %v7637 = vpop.f32.mrf.mxu0
  %v7638 = vpop.f32.mrf.mxu0
  %v7639 = vadd.f32 0.0, %v7638
  %v7640 = vpop.f32.mrf.mxu0
  %7641 = vmatprep.mubr.bf16.mxu0 %v464
  %7642 = vmatmul.mubr.bf16.gmra.mxu0 %v463
  %v7643 = vpop.f32.mrf.mxu0
  %v7644 = vadd.f32 0.0, %v7643
  %v7645 = vpop.f32.mrf.mxu0
  %v7646 = vpop.f32.mrf.mxu0
  %v7647 = vadd.f32 0.0, %v7646
  %v7648 = vpop.f32.mrf.mxu0
  %7649 = vdwg.mxu0
  %v7650 = vpack.c.bf16 %v7527, %v7524
  %v7651 = vpack.c.bf16 %v7535, %v7532
  %v7652 = vpack.c.bf16 %v7543, %v7540
  %v7653 = vpack.c.bf16 %v7551, %v7548
  %v7654 = vpack.c.bf16 %v7559, %v7556
  %v7655 = vpack.c.bf16 %v7567, %v7564
  %v7656 = vpack.c.bf16 %v7575, %v7572
  %v7657 = vpack.c.bf16 %v7583, %v7580
  %v7658 = vpack.c.bf16 %v7591, %v7588
  %v7659 = vpack.c.bf16 %v7599, %v7596
  %v7660 = vpack.c.bf16 %v7607, %v7604
  %v7661 = vpack.c.bf16 %v7615, %v7612
  %v7662 = vpack.c.bf16 %v7623, %v7620
  %v7663 = vpack.c.bf16 %v7631, %v7628
  %v7664 = vpack.c.bf16 %v7639, %v7636
  %v7665 = vpack.c.bf16 %v7647, %v7644
  %7666 = vmatprep.subr.bf16.mxu0 0
  %7667 = vmatpush1.bf16.msra.mxu0 %v7657
  %7668 = vmatprep.subr.bf16.mxu0 0
  %7669 = vmatpush1.bf16.msra.mxu0 %v7656
  %7670 = vmatprep.subr.bf16.mxu0 0
  %7671 = vmatpush1.bf16.msra.mxu0 %v7655
  %7672 = vmatprep.subr.bf16.mxu0 0
  %7673 = vmatpush1.bf16.msra.mxu0 %v7654
  %7674 = vmatprep.subr.bf16.mxu0 0
  %7675 = vmatpush1.bf16.msra.mxu0 %v7653
  %7676 = vmatprep.subr.bf16.mxu0 0
  %7677 = vmatpush1.bf16.msra.mxu0 %v7652
  %7678 = vmatprep.subr.bf16.mxu0 0
  %7679 = vmatpush1.bf16.msra.mxu0 %v7651
  %7680 = vmatprep.subr.bf16.mxu0 0
  %7681 = vmatpush1.bf16.msra.mxu0 %v7650
  %7682 = vmatprep.subr.bf16.mxu0 0
  %7683 = vmatpush2.bf16.msra.mxu0 %v7665
  %7684 = vmatprep.subr.bf16.mxu0 0
  %7685 = vmatpush2.bf16.msra.mxu0 %v7664
  %7686 = vmatprep.subr.bf16.mxu0 0
  %7687 = vmatpush2.bf16.msra.mxu0 %v7663
  %7688 = vmatprep.subr.bf16.mxu0 0
  %7689 = vmatpush2.bf16.msra.mxu0 %v7662
  %7690 = vmatprep.subr.bf16.mxu0 0
  %7691 = vmatpush2.bf16.msra.mxu0 %v7661
  %7692 = vmatprep.subr.bf16.mxu0 0
  %7693 = vmatpush2.bf16.msra.mxu0 %v7660
  %7694 = vmatprep.subr.bf16.mxu0 0
  %7695 = vmatpush2.bf16.msra.mxu0 %v7659
  %7696 = vmatprep.subr.bf16.mxu0 0
  %7697 = vmatpush2.bf16.msra.mxu0 %v7658
  %7698 = vmatprep.mubr.bf16.mxu0 %v771
  %7699 = vmatmul.mubr.bf16.gmra.mxu0 %v770
  %v7700 = vpop.f32.mrf.mxu0
  %v7701 = vadd.f32 0.0, %v7700
  %v7702 = vpop.f32.mrf.mxu0
  %v7703 = vpop.f32.mrf.mxu0
  %v7704 = vadd.f32 0.0, %v7703
  %v7705 = vpop.f32.mrf.mxu0
  %7706 = vmatprep.mubr.bf16.mxu0 %v773
  %7707 = vmatmul.mubr.bf16.gmra.mxu0 %v772
  %v7708 = vpop.f32.mrf.mxu0
  %v7709 = vadd.f32 0.0, %v7708
  %v7710 = vpop.f32.mrf.mxu0
  %v7711 = vpop.f32.mrf.mxu0
  %v7712 = vadd.f32 0.0, %v7711
  %v7713 = vpop.f32.mrf.mxu0
  %7714 = vmatprep.mubr.bf16.mxu0 %v775
  %7715 = vmatmul.mubr.bf16.gmra.mxu0 %v774
  %v7716 = vpop.f32.mrf.mxu0
  %v7717 = vadd.f32 0.0, %v7716
  %v7718 = vpop.f32.mrf.mxu0
  %v7719 = vpop.f32.mrf.mxu0
  %v7720 = vadd.f32 0.0, %v7719
  %v7721 = vpop.f32.mrf.mxu0
  %7722 = vmatprep.mubr.bf16.mxu0 %v777
  %7723 = vmatmul.mubr.bf16.gmra.mxu0 %v776
  %v7724 = vpop.f32.mrf.mxu0
  %v7725 = vadd.f32 0.0, %v7724
  %v7726 = vpop.f32.mrf.mxu0
  %v7727 = vpop.f32.mrf.mxu0
  %v7728 = vadd.f32 0.0, %v7727
  %v7729 = vpop.f32.mrf.mxu0
  %7730 = vmatprep.mubr.bf16.mxu0 %v779
  %7731 = vmatmul.mubr.bf16.gmra.mxu0 %v778
  %v7732 = vpop.f32.mrf.mxu0
  %v7733 = vadd.f32 0.0, %v7732
  %v7734 = vpop.f32.mrf.mxu0
  %v7735 = vpop.f32.mrf.mxu0
  %v7736 = vadd.f32 0.0, %v7735
  %v7737 = vpop.f32.mrf.mxu0
  %7738 = vmatprep.mubr.bf16.mxu0 %v781
  %7739 = vmatmul.mubr.bf16.gmra.mxu0 %v780
  %v7740 = vpop.f32.mrf.mxu0
  %v7741 = vadd.f32 0.0, %v7740
  %v7742 = vpop.f32.mrf.mxu0
  %v7743 = vpop.f32.mrf.mxu0
  %v7744 = vadd.f32 0.0, %v7743
  %v7745 = vpop.f32.mrf.mxu0
  %7746 = vmatprep.mubr.bf16.mxu0 %v783
  %7747 = vmatmul.mubr.bf16.gmra.mxu0 %v782
  %v7748 = vpop.f32.mrf.mxu0
  %v7749 = vadd.f32 0.0, %v7748
  %v7750 = vpop.f32.mrf.mxu0
  %v7751 = vpop.f32.mrf.mxu0
  %v7752 = vadd.f32 0.0, %v7751
  %v7753 = vpop.f32.mrf.mxu0
  %7754 = vmatprep.mubr.bf16.mxu0 %v785
  %7755 = vmatmul.mubr.bf16.gmra.mxu0 %v784
  %v7756 = vpop.f32.mrf.mxu0
  %v7757 = vadd.f32 0.0, %v7756
  %v7758 = vpop.f32.mrf.mxu0
  %v7759 = vpop.f32.mrf.mxu0
  %v7760 = vadd.f32 0.0, %v7759
  %v7761 = vpop.f32.mrf.mxu0
  %7762 = vmatprep.mubr.bf16.mxu0 %v787
  %7763 = vmatmul.mubr.bf16.gmra.mxu0 %v786
  %v7764 = vpop.f32.mrf.mxu0
  %v7765 = vadd.f32 0.0, %v7764
  %v7766 = vpop.f32.mrf.mxu0
  %v7767 = vpop.f32.mrf.mxu0
  %v7768 = vadd.f32 0.0, %v7767
  %v7769 = vpop.f32.mrf.mxu0
  %7770 = vmatprep.mubr.bf16.mxu0 %v789
  %7771 = vmatmul.mubr.bf16.gmra.mxu0 %v788
  %v7772 = vpop.f32.mrf.mxu0
  %v7773 = vadd.f32 0.0, %v7772
  %v7774 = vpop.f32.mrf.mxu0
  %v7775 = vpop.f32.mrf.mxu0
  %v7776 = vadd.f32 0.0, %v7775
  %v7777 = vpop.f32.mrf.mxu0
  %7778 = vmatprep.mubr.bf16.mxu0 %v791
  %7779 = vmatmul.mubr.bf16.gmra.mxu0 %v790
  %v7780 = vpop.f32.mrf.mxu0
  %v7781 = vadd.f32 0.0, %v7780
  %v7782 = vpop.f32.mrf.mxu0
  %v7783 = vpop.f32.mrf.mxu0
  %v7784 = vadd.f32 0.0, %v7783
  %v7785 = vpop.f32.mrf.mxu0
  %7786 = vmatprep.mubr.bf16.mxu0 %v793
  %7787 = vmatmul.mubr.bf16.gmra.mxu0 %v792
  %v7788 = vpop.f32.mrf.mxu0
  %v7789 = vadd.f32 0.0, %v7788
  %v7790 = vpop.f32.mrf.mxu0
  %v7791 = vpop.f32.mrf.mxu0
  %v7792 = vadd.f32 0.0, %v7791
  %v7793 = vpop.f32.mrf.mxu0
  %7794 = vmatprep.mubr.bf16.mxu0 %v795
  %7795 = vmatmul.mubr.bf16.gmra.mxu0 %v794
  %v7796 = vpop.f32.mrf.mxu0
  %v7797 = vadd.f32 0.0, %v7796
  %v7798 = vpop.f32.mrf.mxu0
  %v7799 = vpop.f32.mrf.mxu0
  %v7800 = vadd.f32 0.0, %v7799
  %v7801 = vpop.f32.mrf.mxu0
  %7802 = vmatprep.mubr.bf16.mxu0 %v797
  %7803 = vmatmul.mubr.bf16.gmra.mxu0 %v796
  %v7804 = vpop.f32.mrf.mxu0
  %v7805 = vadd.f32 0.0, %v7804
  %v7806 = vpop.f32.mrf.mxu0
  %v7807 = vpop.f32.mrf.mxu0
  %v7808 = vadd.f32 0.0, %v7807
  %v7809 = vpop.f32.mrf.mxu0
  %7810 = vmatprep.mubr.bf16.mxu0 %v799
  %7811 = vmatmul.mubr.bf16.gmra.mxu0 %v798
  %v7812 = vpop.f32.mrf.mxu0
  %v7813 = vadd.f32 0.0, %v7812
  %v7814 = vpop.f32.mrf.mxu0
  %v7815 = vpop.f32.mrf.mxu0
  %v7816 = vadd.f32 0.0, %v7815
  %v7817 = vpop.f32.mrf.mxu0
  %7818 = vmatprep.mubr.bf16.mxu0 %v801
  %7819 = vmatmul.mubr.bf16.gmra.mxu0 %v800
  %v7820 = vpop.f32.mrf.mxu0
  %v7821 = vadd.f32 0.0, %v7820
  %v7822 = vpop.f32.mrf.mxu0
  %v7823 = vpop.f32.mrf.mxu0
  %v7824 = vadd.f32 0.0, %v7823
  %v7825 = vpop.f32.mrf.mxu0
  %7826 = vdwg.mxu0
  %v7827 = vunpack.c.l.bf16 %v7473
  %v7828 = vunpack.c.h.bf16 %v7473
  %v7829 = vunpack.c.l.bf16 %v7474
  %v7830 = vunpack.c.h.bf16 %v7474
  %v7831 = vunpack.c.l.bf16 %v7475
  %v7832 = vunpack.c.h.bf16 %v7475
  %v7833 = vunpack.c.l.bf16 %v7476
  %v7834 = vunpack.c.h.bf16 %v7476
  %v7835 = vunpack.c.l.bf16 %v7477
  %v7836 = vunpack.c.h.bf16 %v7477
  %v7837 = vunpack.c.l.bf16 %v7478
  %v7838 = vunpack.c.h.bf16 %v7478
  %v7839 = vunpack.c.l.bf16 %v7479
  %v7840 = vunpack.c.h.bf16 %v7479
  %v7841 = vunpack.c.l.bf16 %v7480
  %v7842 = vunpack.c.h.bf16 %v7480
  %v7843 = vunpack.c.l.bf16 %v7481
  %v7844 = vunpack.c.h.bf16 %v7481
  %v7845 = vunpack.c.l.bf16 %v7482
  %v7846 = vunpack.c.h.bf16 %v7482
  %v7847 = vunpack.c.l.bf16 %v7483
  %v7848 = vunpack.c.h.bf16 %v7483
  %v7849 = vunpack.c.l.bf16 %v7484
  %v7850 = vunpack.c.h.bf16 %v7484
  %v7851 = vunpack.c.l.bf16 %v7485
  %v7852 = vunpack.c.h.bf16 %v7485
  %v7853 = vunpack.c.l.bf16 %v7486
  %v7854 = vunpack.c.h.bf16 %v7486
  %v7855 = vunpack.c.l.bf16 %v7487
  %v7856 = vunpack.c.h.bf16 %v7487
  %v7857 = vunpack.c.l.bf16 %v7488
  %v7858 = vunpack.c.h.bf16 %v7488
  %v7859 = vsub.f32 %v7701, %v7827
  %v7860 = vsub.f32 %v7704, %v7828
  %v7861 = vsub.f32 %v7709, %v7829
  %v7862 = vsub.f32 %v7712, %v7830
  %v7863 = vsub.f32 %v7717, %v7831
  %v7864 = vsub.f32 %v7720, %v7832
  %v7865 = vsub.f32 %v7725, %v7833
  %v7866 = vsub.f32 %v7728, %v7834
  %v7867 = vsub.f32 %v7733, %v7835
  %v7868 = vsub.f32 %v7736, %v7836
  %v7869 = vsub.f32 %v7741, %v7837
  %v7870 = vsub.f32 %v7744, %v7838
  %v7871 = vsub.f32 %v7749, %v7839
  %v7872 = vsub.f32 %v7752, %v7840
  %v7873 = vsub.f32 %v7757, %v7841
  %v7874 = vsub.f32 %v7760, %v7842
  %v7875 = vsub.f32 %v7765, %v7843
  %v7876 = vsub.f32 %v7768, %v7844
  %v7877 = vsub.f32 %v7773, %v7845
  %v7878 = vsub.f32 %v7776, %v7846
  %v7879 = vsub.f32 %v7781, %v7847
  %v7880 = vsub.f32 %v7784, %v7848
  %v7881 = vsub.f32 %v7789, %v7849
  %v7882 = vsub.f32 %v7792, %v7850
  %v7883 = vsub.f32 %v7797, %v7851
  %v7884 = vsub.f32 %v7800, %v7852
  %v7885 = vsub.f32 %v7805, %v7853
  %v7886 = vsub.f32 %v7808, %v7854
  %v7887 = vsub.f32 %v7813, %v7855
  %v7888 = vsub.f32 %v7816, %v7856
  %v7889 = vsub.f32 %v7821, %v7857
  %v7890 = vsub.f32 %v7824, %v7858
  %v7891 = vpack.c.bf16 %v7860, %v7859
  %v7892 = vpack.c.bf16 %v7862, %v7861
  %v7893 = vpack.c.bf16 %v7864, %v7863
  %v7894 = vpack.c.bf16 %v7866, %v7865
  %v7895 = vpack.c.bf16 %v7868, %v7867
  %v7896 = vpack.c.bf16 %v7870, %v7869
  %v7897 = vpack.c.bf16 %v7872, %v7871
  %v7898 = vpack.c.bf16 %v7874, %v7873
  %v7899 = vpack.c.bf16 %v7876, %v7875
  %v7900 = vpack.c.bf16 %v7878, %v7877
  %v7901 = vpack.c.bf16 %v7880, %v7879
  %v7902 = vpack.c.bf16 %v7882, %v7881
  %v7903 = vpack.c.bf16 %v7884, %v7883
  %v7904 = vpack.c.bf16 %v7886, %v7885
  %v7905 = vpack.c.bf16 %v7888, %v7887
  %v7906 = vpack.c.bf16 %v7890, %v7889
  %7923 = vrot.lane.b32.xlu0 %v7650, 32
  %v7924 = vpop.permute.xlu0 %7923
  %7925 = vrot.lane.b32.xlu0 %v7651, 32
  %v7926 = vpop.permute.xlu0 %7925
  %7927 = vrot.lane.b32.xlu0 %v7652, 32
  %v7928 = vpop.permute.xlu0 %7927
  %7929 = vrot.lane.b32.xlu0 %v7653, 32
  %v7930 = vpop.permute.xlu0 %7929
  %7931 = vrot.lane.b32.xlu0 %v7654, 32
  %v7932 = vpop.permute.xlu0 %7931
  %7933 = vrot.lane.b32.xlu0 %v7655, 32
  %v7934 = vpop.permute.xlu0 %7933
  %7935 = vrot.lane.b32.xlu0 %v7656, 32
  %v7936 = vpop.permute.xlu0 %7935
  %7937 = vrot.lane.b32.xlu0 %v7657, 32
  %v7938 = vpop.permute.xlu0 %7937
  %7939 = vrot.lane.b32.xlu0 %v7658, 32
  %v7940 = vpop.permute.xlu0 %7939
  %7941 = vrot.lane.b32.xlu0 %v7659, 32
  %v7942 = vpop.permute.xlu0 %7941
  %7943 = vrot.lane.b32.xlu0 %v7660, 32
  %v7944 = vpop.permute.xlu0 %7943
  %7945 = vrot.lane.b32.xlu0 %v7661, 32
  %v7946 = vpop.permute.xlu0 %7945
  %7947 = vrot.lane.b32.xlu0 %v7662, 32
  %v7948 = vpop.permute.xlu0 %7947
  %7949 = vrot.lane.b32.xlu0 %v7663, 32
  %v7950 = vpop.permute.xlu0 %7949
  %7951 = vrot.lane.b32.xlu0 %v7664, 32
  %v7952 = vpop.permute.xlu0 %7951
  %7953 = vrot.lane.b32.xlu0 %v7665, 32
  %v7954 = vpop.permute.xlu0 %7953
  %7971 = vrot.lane.b32.xlu0 %v7891, 64
  %v7972 = vpop.permute.xlu0 %7971
  %7973 = vrot.lane.b32.xlu0 %v7892, 64
  %v7974 = vpop.permute.xlu0 %7973
  %7975 = vrot.lane.b32.xlu0 %v7893, 64
  %v7976 = vpop.permute.xlu0 %7975
  %7977 = vrot.lane.b32.xlu0 %v7894, 64
  %v7978 = vpop.permute.xlu0 %7977
  %7979 = vrot.lane.b32.xlu0 %v7895, 64
  %v7980 = vpop.permute.xlu0 %7979
  %7981 = vrot.lane.b32.xlu0 %v7896, 64
  %v7982 = vpop.permute.xlu0 %7981
  %7983 = vrot.lane.b32.xlu0 %v7897, 64
  %v7984 = vpop.permute.xlu0 %7983
  %7985 = vrot.lane.b32.xlu0 %v7898, 64
  %v7986 = vpop.permute.xlu0 %7985
  %7987 = vrot.lane.b32.xlu0 %v7899, 64
  %v7988 = vpop.permute.xlu0 %7987
  %7989 = vrot.lane.b32.xlu0 %v7900, 64
  %v7990 = vpop.permute.xlu0 %7989
  %7991 = vrot.lane.b32.xlu0 %v7901, 64
  %v7992 = vpop.permute.xlu0 %7991
  %7993 = vrot.lane.b32.xlu0 %v7902, 64
  %v7994 = vpop.permute.xlu0 %7993
  %7995 = vrot.lane.b32.xlu0 %v7903, 64
  %v7996 = vpop.permute.xlu0 %7995
  %7997 = vrot.lane.b32.xlu0 %v7904, 64
  %v7998 = vpop.permute.xlu0 %7997
  %7999 = vrot.lane.b32.xlu0 %v7905, 64
  %v8000 = vpop.permute.xlu0 %7999
  %8001 = vrot.lane.b32.xlu0 %v7906, 64
  %v8002 = vpop.permute.xlu0 %8001
  %v8005 = vsel %vm3441, %v7473, %v7924
  %v8008 = vsel %vm3441, %v7474, %v7926
  %v8011 = vsel %vm3441, %v7475, %v7928
  %v8014 = vsel %vm3441, %v7476, %v7930
  %v8017 = vsel %vm3441, %v7477, %v7932
  %v8020 = vsel %vm3441, %v7478, %v7934
  %v8023 = vsel %vm3441, %v7479, %v7936
  %v8026 = vsel %vm3441, %v7480, %v7938
  %v8029 = vsel %vm3441, %v7481, %v7940
  %v8032 = vsel %vm3441, %v7482, %v7942
  %v8035 = vsel %vm3441, %v7483, %v7944
  %v8038 = vsel %vm3441, %v7484, %v7946
  %v8041 = vsel %vm3441, %v7485, %v7948
  %v8044 = vsel %vm3441, %v7486, %v7950
  %v8047 = vsel %vm3441, %v7487, %v7952
  %v8050 = vsel %vm3441, %v7488, %v7954
  %v8052 = vsel %vm4128, %v8005, %v7972
  %v8054 = vsel %vm4128, %v8008, %v7974
  %v8056 = vsel %vm4128, %v8011, %v7976
  %v8058 = vsel %vm4128, %v8014, %v7978
  %v8060 = vsel %vm4128, %v8017, %v7980
  %v8062 = vsel %vm4128, %v8020, %v7982
  %v8064 = vsel %vm4128, %v8023, %v7984
  %v8066 = vsel %vm4128, %v8026, %v7986
  %v8068 = vsel %vm4128, %v8029, %v7988
  %v8070 = vsel %vm4128, %v8032, %v7990
  %v8072 = vsel %vm4128, %v8035, %v7992
  %v8074 = vsel %vm4128, %v8038, %v7994
  %v8076 = vsel %vm4128, %v8041, %v7996
  %v8078 = vsel %vm4128, %v8044, %v7998
  %v8080 = vsel %vm4128, %v8047, %v8000
  %v8082 = vsel %vm4128, %v8050, %v8002
  %v8083 = vld [vmem:[%s43] sm:$0xf]
  %v8084 = vld [vmem:[%s43 + $0x4] sm:$0xf]
  %v8085 = vld [vmem:[%s43 + $0x8] sm:$0xf]
  %v8086 = vld [vmem:[%s43 + $0xc] sm:$0xf]
  %v8087 = vld [vmem:[%s43 + $0x10] sm:$0xf]
  %v8088 = vld [vmem:[%s43 + $0x14] sm:$0xf]
  %v8089 = vld [vmem:[%s43 + $0x18] sm:$0xf]
  %v8090 = vld [vmem:[%s43 + $0x1c] sm:$0xf]
  %v8091 = vld [vmem:[%s43 + $0x20] sm:$0xf]
  %v8092 = vld [vmem:[%s43 + $0x24] sm:$0xf]
  %v8093 = vld [vmem:[%s43 + $0x28] sm:$0xf]
  %v8094 = vld [vmem:[%s43 + $0x2c] sm:$0xf]
  %v8095 = vld [vmem:[%s69] sm:$0x1]
  %v8096 = vlaneseq
  %v8097 = vshrl.u32 %v8096, 7
  %v8098 = vsub.s32 0, %v8097
  %v8099 = vrot.slane %v8095, %v8098
  %v8112 = vunpack.c.l.b16 %v8083
  %v8113 = vunpack.c.l.b16 %v8084
  %v8114 = vunpack.c.l.b16 %v8085
  %v8115 = vunpack.c.l.b16 %v8086
  %v8116 = vunpack.c.l.b16 %v8087
  %v8117 = vunpack.c.l.b16 %v8088
  %v8118 = vunpack.c.l.b16 %v8089
  %v8119 = vunpack.c.l.b16 %v8090
  %v8120 = vunpack.c.l.b16 %v8091
  %v8121 = vunpack.c.l.b16 %v8092
  %v8122 = vunpack.c.l.b16 %v8093
  %v8123 = vunpack.c.l.b16 %v8094
  %v8124 = vpack.c.b16 %v8113, %v8112
  %v8125 = vpack.c.b16 %v8115, %v8114
  %v8126 = vpack.c.b16 %v8117, %v8116
  %v8127 = vpack.c.b16 %v8119, %v8118
  %v8128 = vpack.c.b16 %v8121, %v8120
  %v8129 = vpack.c.b16 %v8123, %v8122
  %v8136 = vsel %vm5236, %v8052, 0
  %v8138 = vsel %vm5236, %v8054, 0
  %v8140 = vsel %vm5236, %v8056, 0
  %v8142 = vsel %vm5236, %v8058, 0
  %v8144 = vsel %vm5236, %v8060, 0
  %v8146 = vsel %vm5236, %v8062, 0
  %v8148 = vsel %vm5236, %v8064, 0
  %v8150 = vsel %vm5236, %v8066, 0
  %v8152 = vsel %vm5236, %v8068, 0
  %v8154 = vsel %vm5236, %v8070, 0
  %v8156 = vsel %vm5236, %v8072, 0
  %v8158 = vsel %vm5236, %v8074, 0
  %v8160 = vsel %vm5236, %v8076, 0
  %v8162 = vsel %vm5236, %v8078, 0
  %v8164 = vsel %vm5236, %v8080, 0
  %v8166 = vsel %vm5236, %v8082, 0
  %8168 = vmatprep.subr.bf16.mxu0 0
  %8169 = vmatpush1.bf16.msra.mxu0 0
  %8170 = vmatprep.subr.bf16.mxu0 0
  %8171 = vmatpush1.bf16.msra.mxu0 0
  %8172 = vmatprep.subr.bf16.mxu0 0
  %8173 = vmatpush1.bf16.msra.mxu0 %v8129
  %8174 = vmatprep.subr.bf16.mxu0 0
  %8175 = vmatpush1.bf16.msra.mxu0 %v8128
  %8176 = vmatprep.subr.bf16.mxu0 0
  %8177 = vmatpush1.bf16.msra.mxu0 %v8127
  %8178 = vmatprep.subr.bf16.mxu0 0
  %8179 = vmatpush1.bf16.msra.mxu0 %v8126
  %8180 = vmatprep.subr.bf16.mxu0 0
  %8181 = vmatpush1.bf16.msra.mxu0 %v8125
  %8182 = vmatprep.subr.bf16.mxu0 0
  %8183 = vmatpush1.bf16.msra.mxu0 %v8124
  %8184 = vmatprep.subr.bf16.mxu0 0
  %8185 = vmatpush2.bf16.msra.mxu0 0
  %8186 = vmatprep.subr.bf16.mxu0 0
  %8187 = vmatpush2.bf16.msra.mxu0 0
  %8188 = vmatprep.subr.bf16.mxu0 0
  %8189 = vmatpush2.bf16.msra.mxu0 0
  %8190 = vmatprep.subr.bf16.mxu0 0
  %8191 = vmatpush2.bf16.msra.mxu0 0
  %8192 = vmatprep.subr.bf16.mxu0 0
  %8193 = vmatpush2.bf16.msra.mxu0 0
  %8194 = vmatprep.subr.bf16.mxu0 0
  %8195 = vmatpush2.bf16.msra.mxu0 0
  %8196 = vmatprep.subr.bf16.mxu0 0
  %8197 = vmatpush2.bf16.msra.mxu0 0
  %8198 = vmatprep.subr.bf16.mxu0 0
  %8199 = vmatpush2.bf16.msra.mxu0 0
  %8200 = vmatprep.mubr.bf16.mxu0 0
  %8201 = vmatmul.mubr.bf16.gmra.mxu0 %v8136
  %v8202 = vpop.f32.mrf.mxu0
  %v8203 = vadd.f32 %v8099, %v8202
  %v8204 = vpop.f32.mrf.mxu0
  %v8205 = vpop.f32.mrf.mxu0
  %v8206 = vadd.f32 %v8099, %v8205
  %v8207 = vpop.f32.mrf.mxu0
  %8208 = vmatprep.mubr.bf16.mxu0 0
  %8209 = vmatmul.mubr.bf16.gmra.mxu0 %v8138
  %v8210 = vpop.f32.mrf.mxu0
  %v8211 = vadd.f32 %v8099, %v8210
  %v8212 = vpop.f32.mrf.mxu0
  %v8213 = vpop.f32.mrf.mxu0
  %v8214 = vadd.f32 %v8099, %v8213
  %v8215 = vpop.f32.mrf.mxu0
  %8216 = vmatprep.mubr.bf16.mxu0 0
  %8217 = vmatmul.mubr.bf16.gmra.mxu0 %v8140
  %v8218 = vpop.f32.mrf.mxu0
  %v8219 = vadd.f32 %v8099, %v8218
  %v8220 = vpop.f32.mrf.mxu0
  %v8221 = vpop.f32.mrf.mxu0
  %v8222 = vadd.f32 %v8099, %v8221
  %v8223 = vpop.f32.mrf.mxu0
  %8224 = vmatprep.mubr.bf16.mxu0 0
  %8225 = vmatmul.mubr.bf16.gmra.mxu0 %v8142
  %v8226 = vpop.f32.mrf.mxu0
  %v8227 = vadd.f32 %v8099, %v8226
  %v8228 = vpop.f32.mrf.mxu0
  %v8229 = vpop.f32.mrf.mxu0
  %v8230 = vadd.f32 %v8099, %v8229
  %v8231 = vpop.f32.mrf.mxu0
  %8232 = vmatprep.mubr.bf16.mxu0 0
  %8233 = vmatmul.mubr.bf16.gmra.mxu0 %v8144
  %v8234 = vpop.f32.mrf.mxu0
  %v8235 = vadd.f32 %v8099, %v8234
  %v8236 = vpop.f32.mrf.mxu0
  %v8237 = vpop.f32.mrf.mxu0
  %v8238 = vadd.f32 %v8099, %v8237
  %v8239 = vpop.f32.mrf.mxu0
  %8240 = vmatprep.mubr.bf16.mxu0 0
  %8241 = vmatmul.mubr.bf16.gmra.mxu0 %v8146
  %v8242 = vpop.f32.mrf.mxu0
  %v8243 = vadd.f32 %v8099, %v8242
  %v8244 = vpop.f32.mrf.mxu0
  %v8245 = vpop.f32.mrf.mxu0
  %v8246 = vadd.f32 %v8099, %v8245
  %v8247 = vpop.f32.mrf.mxu0
  %8248 = vmatprep.mubr.bf16.mxu0 0
  %8249 = vmatmul.mubr.bf16.gmra.mxu0 %v8148
  %v8250 = vpop.f32.mrf.mxu0
  %v8251 = vadd.f32 %v8099, %v8250
  %v8252 = vpop.f32.mrf.mxu0
  %v8253 = vpop.f32.mrf.mxu0
  %v8254 = vadd.f32 %v8099, %v8253
  %v8255 = vpop.f32.mrf.mxu0
  %8256 = vmatprep.mubr.bf16.mxu0 0
  %8257 = vmatmul.mubr.bf16.gmra.mxu0 %v8150
  %v8258 = vpop.f32.mrf.mxu0
  %v8259 = vadd.f32 %v8099, %v8258
  %v8260 = vpop.f32.mrf.mxu0
  %v8261 = vpop.f32.mrf.mxu0
  %v8262 = vadd.f32 %v8099, %v8261
  %v8263 = vpop.f32.mrf.mxu0
  %8264 = vmatprep.mubr.bf16.mxu0 0
  %8265 = vmatmul.mubr.bf16.gmra.mxu0 %v8152
  %v8266 = vpop.f32.mrf.mxu0
  %v8267 = vadd.f32 %v8099, %v8266
  %v8268 = vpop.f32.mrf.mxu0
  %v8269 = vpop.f32.mrf.mxu0
  %v8270 = vadd.f32 %v8099, %v8269
  %v8271 = vpop.f32.mrf.mxu0
  %8272 = vmatprep.mubr.bf16.mxu0 0
  %8273 = vmatmul.mubr.bf16.gmra.mxu0 %v8154
  %v8274 = vpop.f32.mrf.mxu0
  %v8275 = vadd.f32 %v8099, %v8274
  %v8276 = vpop.f32.mrf.mxu0
  %v8277 = vpop.f32.mrf.mxu0
  %v8278 = vadd.f32 %v8099, %v8277
  %v8279 = vpop.f32.mrf.mxu0
  %8280 = vmatprep.mubr.bf16.mxu0 0
  %8281 = vmatmul.mubr.bf16.gmra.mxu0 %v8156
  %v8282 = vpop.f32.mrf.mxu0
  %v8283 = vadd.f32 %v8099, %v8282
  %v8284 = vpop.f32.mrf.mxu0
  %v8285 = vpop.f32.mrf.mxu0
  %v8286 = vadd.f32 %v8099, %v8285
  %v8287 = vpop.f32.mrf.mxu0
  %8288 = vmatprep.mubr.bf16.mxu0 0
  %8289 = vmatmul.mubr.bf16.gmra.mxu0 %v8158
  %v8290 = vpop.f32.mrf.mxu0
  %v8291 = vadd.f32 %v8099, %v8290
  %v8292 = vpop.f32.mrf.mxu0
  %v8293 = vpop.f32.mrf.mxu0
  %v8294 = vadd.f32 %v8099, %v8293
  %v8295 = vpop.f32.mrf.mxu0
  %8296 = vmatprep.mubr.bf16.mxu0 0
  %8297 = vmatmul.mubr.bf16.gmra.mxu0 %v8160
  %v8298 = vpop.f32.mrf.mxu0
  %v8299 = vadd.f32 %v8099, %v8298
  %v8300 = vpop.f32.mrf.mxu0
  %v8301 = vpop.f32.mrf.mxu0
  %v8302 = vadd.f32 %v8099, %v8301
  %v8303 = vpop.f32.mrf.mxu0
  %8304 = vmatprep.mubr.bf16.mxu0 0
  %8305 = vmatmul.mubr.bf16.gmra.mxu0 %v8162
  %v8306 = vpop.f32.mrf.mxu0
  %v8307 = vadd.f32 %v8099, %v8306
  %v8308 = vpop.f32.mrf.mxu0
  %v8309 = vpop.f32.mrf.mxu0
  %v8310 = vadd.f32 %v8099, %v8309
  %v8311 = vpop.f32.mrf.mxu0
  %8312 = vmatprep.mubr.bf16.mxu0 0
  %8313 = vmatmul.mubr.bf16.gmra.mxu0 %v8164
  %v8314 = vpop.f32.mrf.mxu0
  %v8315 = vadd.f32 %v8099, %v8314
  %v8316 = vpop.f32.mrf.mxu0
  %v8317 = vpop.f32.mrf.mxu0
  %v8318 = vadd.f32 %v8099, %v8317
  %v8319 = vpop.f32.mrf.mxu0
  %8320 = vmatprep.mubr.bf16.mxu0 0
  %8321 = vmatmul.mubr.bf16.gmra.mxu0 %v8166
  %v8322 = vpop.f32.mrf.mxu0
  %v8323 = vadd.f32 %v8099, %v8322
  %v8324 = vpop.f32.mrf.mxu0
  %v8325 = vpop.f32.mrf.mxu0
  %v8326 = vadd.f32 %v8099, %v8325
  %v8327 = vpop.f32.mrf.mxu0
  %8328 = vdwg.mxu0
  %v8329 = vsel %vm1220, %v8203, 0.0
  %v8330 = vsel %vm1220, %v8206, 0.0
  %v8331 = vadd.f32 %v8329, %v8330
  %v8332 = vsel %vm1220, %v8211, 0.0
  %v8333 = vadd.f32 %v8331, %v8332
  %v8334 = vsel %vm1220, %v8214, 0.0
  %v8335 = vadd.f32 %v8333, %v8334
  %v8336 = vsel %vm1220, %v8219, 0.0
  %v8337 = vadd.f32 %v8335, %v8336
  %v8338 = vsel %vm1220, %v8222, 0.0
  %v8339 = vadd.f32 %v8337, %v8338
  %v8340 = vsel %vm1220, %v8227, 0.0
  %v8341 = vadd.f32 %v8339, %v8340
  %v8342 = vsel %vm1220, %v8230, 0.0
  %v8343 = vadd.f32 %v8341, %v8342
  %v8344 = vsel %vm1220, %v8235, 0.0
  %v8345 = vadd.f32 %v8343, %v8344
  %v8346 = vsel %vm1220, %v8238, 0.0
  %v8347 = vadd.f32 %v8345, %v8346
  %v8348 = vsel %vm1220, %v8243, 0.0
  %v8349 = vadd.f32 %v8347, %v8348
  %v8350 = vsel %vm1220, %v8246, 0.0
  %v8351 = vadd.f32 %v8349, %v8350
  %v8352 = vsel %vm1220, %v8251, 0.0
  %v8353 = vadd.f32 %v8351, %v8352
  %v8354 = vsel %vm1220, %v8254, 0.0
  %v8355 = vadd.f32 %v8353, %v8354
  %v8356 = vsel %vm1220, %v8259, 0.0
  %v8357 = vadd.f32 %v8355, %v8356
  %v8358 = vsel %vm1220, %v8262, 0.0
  %v8359 = vadd.f32 %v8357, %v8358
  %v8360 = vsel %vm1220, %v8267, 0.0
  %v8361 = vadd.f32 %v8359, %v8360
  %v8362 = vsel %vm1220, %v8270, 0.0
  %v8363 = vadd.f32 %v8361, %v8362
  %v8364 = vsel %vm1220, %v8275, 0.0
  %v8365 = vadd.f32 %v8363, %v8364
  %v8366 = vsel %vm1220, %v8278, 0.0
  %v8367 = vadd.f32 %v8365, %v8366
  %v8368 = vsel %vm1220, %v8283, 0.0
  %v8369 = vadd.f32 %v8367, %v8368
  %v8370 = vsel %vm1220, %v8286, 0.0
  %v8371 = vadd.f32 %v8369, %v8370
  %v8372 = vsel %vm1220, %v8291, 0.0
  %v8373 = vadd.f32 %v8371, %v8372
  %v8374 = vsel %vm1220, %v8294, 0.0
  %v8375 = vadd.f32 %v8373, %v8374
  %v8376 = vsel %vm1220, %v8299, 0.0
  %v8377 = vadd.f32 %v8375, %v8376
  %v8378 = vsel %vm1220, %v8302, 0.0
  %v8379 = vadd.f32 %v8377, %v8378
  %v8380 = vsel %vm1220, %v8307, 0.0
  %v8381 = vadd.f32 %v8379, %v8380
  %v8382 = vsel %vm1220, %v8310, 0.0
  %v8383 = vadd.f32 %v8381, %v8382
  %v8384 = vsel %vm1220, %v8315, 0.0
  %v8385 = vadd.f32 %v8383, %v8384
  %v8386 = vsel %vm1220, %v8318, 0.0
  %v8387 = vadd.f32 %v8385, %v8386
  %v8388 = vsel %vm1220, %v8323, 0.0
  %v8389 = vadd.f32 %v8387, %v8388
  %v8390 = vsel %vm1220, %v8326, 0.0
  %v8391 = vadd.f32 %v8389, %v8390
  %v8392 = vrot.slane %v8391, 4
  %v8393 = vadd.f32 %v8391, %v8392
  %v8394 = vrot.slane %v8393, 2
  %v8395 = vadd.f32 %v8393, %v8394
  %v8396 = vrot.slane %v8395, 1
  %v8397 = vadd.f32 %v8395, %v8396
  %v8398 = vmul.f32 %v8203, %v8203
  %v8399 = vmul.f32 %v8206, %v8206
  %v8400 = vmul.f32 %v8211, %v8211
  %v8401 = vmul.f32 %v8214, %v8214
  %v8402 = vmul.f32 %v8219, %v8219
  %v8403 = vmul.f32 %v8222, %v8222
  %v8404 = vmul.f32 %v8227, %v8227
  %v8405 = vmul.f32 %v8230, %v8230
  %v8406 = vmul.f32 %v8235, %v8235
  %v8407 = vmul.f32 %v8238, %v8238
  %v8408 = vmul.f32 %v8243, %v8243
  %v8409 = vmul.f32 %v8246, %v8246
  %v8410 = vmul.f32 %v8251, %v8251
  %v8411 = vmul.f32 %v8254, %v8254
  %v8412 = vmul.f32 %v8259, %v8259
  %v8413 = vmul.f32 %v8262, %v8262
  %v8414 = vmul.f32 %v8267, %v8267
  %v8415 = vmul.f32 %v8270, %v8270
  %v8416 = vmul.f32 %v8275, %v8275
  %v8417 = vmul.f32 %v8278, %v8278
  %v8418 = vmul.f32 %v8283, %v8283
  %v8419 = vmul.f32 %v8286, %v8286
  %v8420 = vmul.f32 %v8291, %v8291
  %v8421 = vmul.f32 %v8294, %v8294
  %v8422 = vmul.f32 %v8299, %v8299
  %v8423 = vmul.f32 %v8302, %v8302
  %v8424 = vmul.f32 %v8307, %v8307
  %v8425 = vmul.f32 %v8310, %v8310
  %v8426 = vmul.f32 %v8315, %v8315
  %v8427 = vmul.f32 %v8318, %v8318
  %v8428 = vmul.f32 %v8323, %v8323
  %v8429 = vmul.f32 %v8326, %v8326
  %v8430 = vsel %vm1220, %v8398, 0.0
  %v8431 = vsel %vm1220, %v8399, 0.0
  %v8432 = vadd.f32 %v8430, %v8431
  %v8433 = vsel %vm1220, %v8400, 0.0
  %v8434 = vadd.f32 %v8432, %v8433
  %v8435 = vsel %vm1220, %v8401, 0.0
  %v8436 = vadd.f32 %v8434, %v8435
  %v8437 = vsel %vm1220, %v8402, 0.0
  %v8438 = vadd.f32 %v8436, %v8437
  %v8439 = vsel %vm1220, %v8403, 0.0
  %v8440 = vadd.f32 %v8438, %v8439
  %v8441 = vsel %vm1220, %v8404, 0.0
  %v8442 = vadd.f32 %v8440, %v8441
  %v8443 = vsel %vm1220, %v8405, 0.0
  %v8444 = vadd.f32 %v8442, %v8443
  %v8445 = vsel %vm1220, %v8406, 0.0
  %v8446 = vadd.f32 %v8444, %v8445
  %v8447 = vsel %vm1220, %v8407, 0.0
  %v8448 = vadd.f32 %v8446, %v8447
  %v8449 = vsel %vm1220, %v8408, 0.0
  %v8450 = vadd.f32 %v8448, %v8449
  %v8451 = vsel %vm1220, %v8409, 0.0
  %v8452 = vadd.f32 %v8450, %v8451
  %v8453 = vsel %vm1220, %v8410, 0.0
  %v8454 = vadd.f32 %v8452, %v8453
  %v8455 = vsel %vm1220, %v8411, 0.0
  %v8456 = vadd.f32 %v8454, %v8455
  %v8457 = vsel %vm1220, %v8412, 0.0
  %v8458 = vadd.f32 %v8456, %v8457
  %v8459 = vsel %vm1220, %v8413, 0.0
  %v8460 = vadd.f32 %v8458, %v8459
  %v8461 = vsel %vm1220, %v8414, 0.0
  %v8462 = vadd.f32 %v8460, %v8461
  %v8463 = vsel %vm1220, %v8415, 0.0
  %v8464 = vadd.f32 %v8462, %v8463
  %v8465 = vsel %vm1220, %v8416, 0.0
  %v8466 = vadd.f32 %v8464, %v8465
  %v8467 = vsel %vm1220, %v8417, 0.0
  %v8468 = vadd.f32 %v8466, %v8467
  %v8469 = vsel %vm1220, %v8418, 0.0
  %v8470 = vadd.f32 %v8468, %v8469
  %v8471 = vsel %vm1220, %v8419, 0.0
  %v8472 = vadd.f32 %v8470, %v8471
  %v8473 = vsel %vm1220, %v8420, 0.0
  %v8474 = vadd.f32 %v8472, %v8473
  %v8475 = vsel %vm1220, %v8421, 0.0
  %v8476 = vadd.f32 %v8474, %v8475
  %v8477 = vsel %vm1220, %v8422, 0.0
  %v8478 = vadd.f32 %v8476, %v8477
  %v8479 = vsel %vm1220, %v8423, 0.0
  %v8480 = vadd.f32 %v8478, %v8479
  %v8481 = vsel %vm1220, %v8424, 0.0
  %v8482 = vadd.f32 %v8480, %v8481
  %v8483 = vsel %vm1220, %v8425, 0.0
  %v8484 = vadd.f32 %v8482, %v8483
  %v8485 = vsel %vm1220, %v8426, 0.0
  %v8486 = vadd.f32 %v8484, %v8485
  %v8487 = vsel %vm1220, %v8427, 0.0
  %v8488 = vadd.f32 %v8486, %v8487
  %v8489 = vsel %vm1220, %v8428, 0.0
  %v8490 = vadd.f32 %v8488, %v8489
  %v8491 = vsel %vm1220, %v8429, 0.0
  %v8492 = vadd.f32 %v8490, %v8491
  %v8493 = vrot.slane %v8492, 4
  %v8494 = vadd.f32 %v8492, %v8493
  %v8495 = vrot.slane %v8494, 2
  %v8496 = vadd.f32 %v8494, %v8495
  %v8497 = vrot.slane %v8496, 1
  %v8498 = vadd.f32 %v8496, %v8497
  %v8499 = vmul.f32 %v8397, 0.00390625
  %v8500 = vmul.f32 %v8498, 0.00390625
  %v8501 = vmul.f32 %v8499, %v8499
  %v8502 = vsub.f32 %v8500, %v8501
  %v8503 = vmax.f32 %v8502, 0.0
  %v8504 = vadd.f32 %v8503, 1e-05
  %v8505 = vrsqrt.pop %v8504
  %v8506 = vld [vmem:[%s69 + $0x1] sm:$0x1]
  %v8507 = vmul.f32 %v8506, %v8505
  %v8508 = vld [vmem:[%s69 + $0x2] sm:$0x1]
  %v8509 = vmul.f32 %v8499, %v8507
  %v8510 = vsub.f32 %v8508, %v8509
  %v8511 = vlaneseq
  %v8512 = vshrl.u32 %v8511, 7
  %v8513 = vsub.s32 0, %v8512
  %v8514 = vrot.slane %v8507, %v8513
  %v8515 = vmul.f32 %v8203, %v8514
  %v8516 = vmul.f32 %v8206, %v8514
  %v8517 = vmul.f32 %v8211, %v8514
  %v8518 = vmul.f32 %v8214, %v8514
  %v8519 = vmul.f32 %v8219, %v8514
  %v8520 = vmul.f32 %v8222, %v8514
  %v8521 = vmul.f32 %v8227, %v8514
  %v8522 = vmul.f32 %v8230, %v8514
  %v8523 = vmul.f32 %v8235, %v8514
  %v8524 = vmul.f32 %v8238, %v8514
  %v8525 = vmul.f32 %v8243, %v8514
  %v8526 = vmul.f32 %v8246, %v8514
  %v8527 = vmul.f32 %v8251, %v8514
  %v8528 = vmul.f32 %v8254, %v8514
  %v8529 = vmul.f32 %v8259, %v8514
  %v8530 = vmul.f32 %v8262, %v8514
  %v8531 = vmul.f32 %v8267, %v8514
  %v8532 = vmul.f32 %v8270, %v8514
  %v8533 = vmul.f32 %v8275, %v8514
  %v8534 = vmul.f32 %v8278, %v8514
  %v8535 = vmul.f32 %v8283, %v8514
  %v8536 = vmul.f32 %v8286, %v8514
  %v8537 = vmul.f32 %v8291, %v8514
  %v8538 = vmul.f32 %v8294, %v8514
  %v8539 = vmul.f32 %v8299, %v8514
  %v8540 = vmul.f32 %v8302, %v8514
  %v8541 = vmul.f32 %v8307, %v8514
  %v8542 = vmul.f32 %v8310, %v8514
  %v8543 = vmul.f32 %v8315, %v8514
  %v8544 = vmul.f32 %v8318, %v8514
  %v8545 = vmul.f32 %v8323, %v8514
  %v8546 = vmul.f32 %v8326, %v8514
  %v8547 = vlaneseq
  %v8548 = vshrl.u32 %v8547, 7
  %v8549 = vsub.s32 0, %v8548
  %v8550 = vrot.slane %v8510, %v8549
  %v8551 = vadd.f32 %v8515, %v8550
  %v8552 = vadd.f32 %v8516, %v8550
  %v8553 = vadd.f32 %v8517, %v8550
  %v8554 = vadd.f32 %v8518, %v8550
  %v8555 = vadd.f32 %v8519, %v8550
  %v8556 = vadd.f32 %v8520, %v8550
  %v8557 = vadd.f32 %v8521, %v8550
  %v8558 = vadd.f32 %v8522, %v8550
  %v8559 = vadd.f32 %v8523, %v8550
  %v8560 = vadd.f32 %v8524, %v8550
  %v8561 = vadd.f32 %v8525, %v8550
  %v8562 = vadd.f32 %v8526, %v8550
  %v8563 = vadd.f32 %v8527, %v8550
  %v8564 = vadd.f32 %v8528, %v8550
  %v8565 = vadd.f32 %v8529, %v8550
  %v8566 = vadd.f32 %v8530, %v8550
  %v8567 = vadd.f32 %v8531, %v8550
  %v8568 = vadd.f32 %v8532, %v8550
  %v8569 = vadd.f32 %v8533, %v8550
  %v8570 = vadd.f32 %v8534, %v8550
  %v8571 = vadd.f32 %v8535, %v8550
  %v8572 = vadd.f32 %v8536, %v8550
  %v8573 = vadd.f32 %v8537, %v8550
  %v8574 = vadd.f32 %v8538, %v8550
  %v8575 = vadd.f32 %v8539, %v8550
  %v8576 = vadd.f32 %v8540, %v8550
  %v8577 = vadd.f32 %v8541, %v8550
  %v8578 = vadd.f32 %v8542, %v8550
  %v8579 = vadd.f32 %v8543, %v8550
  %v8580 = vadd.f32 %v8544, %v8550
  %v8581 = vadd.f32 %v8545, %v8550
  %v8582 = vadd.f32 %v8546, %v8550
  %v8583 = vmax.f32 %v8551, 0.0
  %v8584 = vmax.f32 %v8552, 0.0
  %v8585 = vmax.f32 %v8553, 0.0
  %v8586 = vmax.f32 %v8554, 0.0
  %v8587 = vmax.f32 %v8555, 0.0
  %v8588 = vmax.f32 %v8556, 0.0
  %v8589 = vmax.f32 %v8557, 0.0
  %v8590 = vmax.f32 %v8558, 0.0
  %v8591 = vmax.f32 %v8559, 0.0
  %v8592 = vmax.f32 %v8560, 0.0
  %v8593 = vmax.f32 %v8561, 0.0
  %v8594 = vmax.f32 %v8562, 0.0
  %v8595 = vmax.f32 %v8563, 0.0
  %v8596 = vmax.f32 %v8564, 0.0
  %v8597 = vmax.f32 %v8565, 0.0
  %v8598 = vmax.f32 %v8566, 0.0
  %v8599 = vmax.f32 %v8567, 0.0
  %v8600 = vmax.f32 %v8568, 0.0
  %v8601 = vmax.f32 %v8569, 0.0
  %v8602 = vmax.f32 %v8570, 0.0
  %v8603 = vmax.f32 %v8571, 0.0
  %v8604 = vmax.f32 %v8572, 0.0
  %v8605 = vmax.f32 %v8573, 0.0
  %v8606 = vmax.f32 %v8574, 0.0
  %v8607 = vmax.f32 %v8575, 0.0
  %v8608 = vmax.f32 %v8576, 0.0
  %v8609 = vmax.f32 %v8577, 0.0
  %v8610 = vmax.f32 %v8578, 0.0
  %v8611 = vmax.f32 %v8579, 0.0
  %v8612 = vmax.f32 %v8580, 0.0
  %v8613 = vmax.f32 %v8581, 0.0
  %v8614 = vmax.f32 %v8582, 0.0
  %v8615 = vpack.c.bf16 %v8584, %v8583
  %v8616 = vpack.c.bf16 %v8586, %v8585
  %v8617 = vpack.c.bf16 %v8588, %v8587
  %v8618 = vpack.c.bf16 %v8590, %v8589
  %v8619 = vpack.c.bf16 %v8592, %v8591
  %v8620 = vpack.c.bf16 %v8594, %v8593
  %v8621 = vpack.c.bf16 %v8596, %v8595
  %v8622 = vpack.c.bf16 %v8598, %v8597
  %v8623 = vpack.c.bf16 %v8600, %v8599
  %v8624 = vpack.c.bf16 %v8602, %v8601
  %v8625 = vpack.c.bf16 %v8604, %v8603
  %v8626 = vpack.c.bf16 %v8606, %v8605
  %v8627 = vpack.c.bf16 %v8608, %v8607
  %v8628 = vpack.c.bf16 %v8610, %v8609
  %v8629 = vpack.c.bf16 %v8612, %v8611
  %v8630 = vpack.c.bf16 %v8614, %v8613
  %8631 = vmatprep.subr.bf16.mxu0 0
  %8632 = vmatpush1.bf16.msra.mxu0 %v8622
  %8633 = vmatprep.subr.bf16.mxu0 0
  %8634 = vmatpush1.bf16.msra.mxu0 %v8621
  %8635 = vmatprep.subr.bf16.mxu0 0
  %8636 = vmatpush1.bf16.msra.mxu0 %v8620
  %8637 = vmatprep.subr.bf16.mxu0 0
  %8638 = vmatpush1.bf16.msra.mxu0 %v8619
  %8639 = vmatprep.subr.bf16.mxu0 0
  %8640 = vmatpush1.bf16.msra.mxu0 %v8618
  %8641 = vmatprep.subr.bf16.mxu0 0
  %8642 = vmatpush1.bf16.msra.mxu0 %v8617
  %8643 = vmatprep.subr.bf16.mxu0 0
  %8644 = vmatpush1.bf16.msra.mxu0 %v8616
  %8645 = vmatprep.subr.bf16.mxu0 0
  %8646 = vmatpush1.bf16.msra.mxu0 %v8615
  %8647 = vmatprep.subr.bf16.mxu0 0
  %8648 = vmatpush2.bf16.msra.mxu0 %v8630
  %8649 = vmatprep.subr.bf16.mxu0 0
  %8650 = vmatpush2.bf16.msra.mxu0 %v8629
  %8651 = vmatprep.subr.bf16.mxu0 0
  %8652 = vmatpush2.bf16.msra.mxu0 %v8628
  %8653 = vmatprep.subr.bf16.mxu0 0
  %8654 = vmatpush2.bf16.msra.mxu0 %v8627
  %8655 = vmatprep.subr.bf16.mxu0 0
  %8656 = vmatpush2.bf16.msra.mxu0 %v8626
  %8657 = vmatprep.subr.bf16.mxu0 0
  %8658 = vmatpush2.bf16.msra.mxu0 %v8625
  %8659 = vmatprep.subr.bf16.mxu0 0
  %8660 = vmatpush2.bf16.msra.mxu0 %v8624
  %8661 = vmatprep.subr.bf16.mxu0 0
  %8662 = vmatpush2.bf16.msra.mxu0 %v8623
  %8663 = vmatprep.mubr.bf16.mxu0 %v434
  %8664 = vmatmul.mubr.bf16.gmra.mxu0 %v433
  %v8665 = vpop.f32.mrf.mxu0
  %v8666 = vadd.f32 0.0, %v8665
  %v8667 = vpop.f32.mrf.mxu0
  %v8668 = vpop.f32.mrf.mxu0
  %v8669 = vadd.f32 0.0, %v8668
  %v8670 = vpop.f32.mrf.mxu0
  %8671 = vmatprep.mubr.bf16.mxu0 %v436
  %8672 = vmatmul.mubr.bf16.gmra.mxu0 %v435
  %v8673 = vpop.f32.mrf.mxu0
  %v8674 = vadd.f32 0.0, %v8673
  %v8675 = vpop.f32.mrf.mxu0
  %v8676 = vpop.f32.mrf.mxu0
  %v8677 = vadd.f32 0.0, %v8676
  %v8678 = vpop.f32.mrf.mxu0
  %8679 = vmatprep.mubr.bf16.mxu0 %v438
  %8680 = vmatmul.mubr.bf16.gmra.mxu0 %v437
  %v8681 = vpop.f32.mrf.mxu0
  %v8682 = vadd.f32 0.0, %v8681
  %v8683 = vpop.f32.mrf.mxu0
  %v8684 = vpop.f32.mrf.mxu0
  %v8685 = vadd.f32 0.0, %v8684
  %v8686 = vpop.f32.mrf.mxu0
  %8687 = vmatprep.mubr.bf16.mxu0 %v440
  %8688 = vmatmul.mubr.bf16.gmra.mxu0 %v439
  %v8689 = vpop.f32.mrf.mxu0
  %v8690 = vadd.f32 0.0, %v8689
  %v8691 = vpop.f32.mrf.mxu0
  %v8692 = vpop.f32.mrf.mxu0
  %v8693 = vadd.f32 0.0, %v8692
  %v8694 = vpop.f32.mrf.mxu0
  %8695 = vmatprep.mubr.bf16.mxu0 %v442
  %8696 = vmatmul.mubr.bf16.gmra.mxu0 %v441
  %v8697 = vpop.f32.mrf.mxu0
  %v8698 = vadd.f32 0.0, %v8697
  %v8699 = vpop.f32.mrf.mxu0
  %v8700 = vpop.f32.mrf.mxu0
  %v8701 = vadd.f32 0.0, %v8700
  %v8702 = vpop.f32.mrf.mxu0
  %8703 = vmatprep.mubr.bf16.mxu0 %v444
  %8704 = vmatmul.mubr.bf16.gmra.mxu0 %v443
  %v8705 = vpop.f32.mrf.mxu0
  %v8706 = vadd.f32 0.0, %v8705
  %v8707 = vpop.f32.mrf.mxu0
  %v8708 = vpop.f32.mrf.mxu0
  %v8709 = vadd.f32 0.0, %v8708
  %v8710 = vpop.f32.mrf.mxu0
  %8711 = vmatprep.mubr.bf16.mxu0 %v446
  %8712 = vmatmul.mubr.bf16.gmra.mxu0 %v445
  %v8713 = vpop.f32.mrf.mxu0
  %v8714 = vadd.f32 0.0, %v8713
  %v8715 = vpop.f32.mrf.mxu0
  %v8716 = vpop.f32.mrf.mxu0
  %v8717 = vadd.f32 0.0, %v8716
  %v8718 = vpop.f32.mrf.mxu0
  %8719 = vmatprep.mubr.bf16.mxu0 %v448
  %8720 = vmatmul.mubr.bf16.gmra.mxu0 %v447
  %v8721 = vpop.f32.mrf.mxu0
  %v8722 = vadd.f32 0.0, %v8721
  %v8723 = vpop.f32.mrf.mxu0
  %v8724 = vpop.f32.mrf.mxu0
  %v8725 = vadd.f32 0.0, %v8724
  %v8726 = vpop.f32.mrf.mxu0
  %8727 = vmatprep.mubr.bf16.mxu0 %v450
  %8728 = vmatmul.mubr.bf16.gmra.mxu0 %v449
  %v8729 = vpop.f32.mrf.mxu0
  %v8730 = vadd.f32 0.0, %v8729
  %v8731 = vpop.f32.mrf.mxu0
  %v8732 = vpop.f32.mrf.mxu0
  %v8733 = vadd.f32 0.0, %v8732
  %v8734 = vpop.f32.mrf.mxu0
  %8735 = vmatprep.mubr.bf16.mxu0 %v452
  %8736 = vmatmul.mubr.bf16.gmra.mxu0 %v451
  %v8737 = vpop.f32.mrf.mxu0
  %v8738 = vadd.f32 0.0, %v8737
  %v8739 = vpop.f32.mrf.mxu0
  %v8740 = vpop.f32.mrf.mxu0
  %v8741 = vadd.f32 0.0, %v8740
  %v8742 = vpop.f32.mrf.mxu0
  %8743 = vmatprep.mubr.bf16.mxu0 %v454
  %8744 = vmatmul.mubr.bf16.gmra.mxu0 %v453
  %v8745 = vpop.f32.mrf.mxu0
  %v8746 = vadd.f32 0.0, %v8745
  %v8747 = vpop.f32.mrf.mxu0
  %v8748 = vpop.f32.mrf.mxu0
  %v8749 = vadd.f32 0.0, %v8748
  %v8750 = vpop.f32.mrf.mxu0
  %8751 = vmatprep.mubr.bf16.mxu0 %v456
  %8752 = vmatmul.mubr.bf16.gmra.mxu0 %v455
  %v8753 = vpop.f32.mrf.mxu0
  %v8754 = vadd.f32 0.0, %v8753
  %v8755 = vpop.f32.mrf.mxu0
  %v8756 = vpop.f32.mrf.mxu0
  %v8757 = vadd.f32 0.0, %v8756
  %v8758 = vpop.f32.mrf.mxu0
  %8759 = vmatprep.mubr.bf16.mxu0 %v458
  %8760 = vmatmul.mubr.bf16.gmra.mxu0 %v457
  %v8761 = vpop.f32.mrf.mxu0
  %v8762 = vadd.f32 0.0, %v8761
  %v8763 = vpop.f32.mrf.mxu0
  %v8764 = vpop.f32.mrf.mxu0
  %v8765 = vadd.f32 0.0, %v8764
  %v8766 = vpop.f32.mrf.mxu0
  %8767 = vmatprep.mubr.bf16.mxu0 %v460
  %8768 = vmatmul.mubr.bf16.gmra.mxu0 %v459
  %v8769 = vpop.f32.mrf.mxu0
  %v8770 = vadd.f32 0.0, %v8769
  %v8771 = vpop.f32.mrf.mxu0
  %v8772 = vpop.f32.mrf.mxu0
  %v8773 = vadd.f32 0.0, %v8772
  %v8774 = vpop.f32.mrf.mxu0
  %8775 = vmatprep.mubr.bf16.mxu0 %v462
  %8776 = vmatmul.mubr.bf16.gmra.mxu0 %v461
  %v8777 = vpop.f32.mrf.mxu0
  %v8778 = vadd.f32 0.0, %v8777
  %v8779 = vpop.f32.mrf.mxu0
  %v8780 = vpop.f32.mrf.mxu0
  %v8781 = vadd.f32 0.0, %v8780
  %v8782 = vpop.f32.mrf.mxu0
  %8783 = vmatprep.mubr.bf16.mxu0 %v464
  %8784 = vmatmul.mubr.bf16.gmra.mxu0 %v463
  %v8785 = vpop.f32.mrf.mxu0
  %v8786 = vadd.f32 0.0, %v8785
  %v8787 = vpop.f32.mrf.mxu0
  %v8788 = vpop.f32.mrf.mxu0
  %v8789 = vadd.f32 0.0, %v8788
  %v8790 = vpop.f32.mrf.mxu0
  %8791 = vdwg.mxu0
  %v8792 = vpack.c.bf16 %v8669, %v8666
  %v8793 = vpack.c.bf16 %v8677, %v8674
  %v8794 = vpack.c.bf16 %v8685, %v8682
  %v8795 = vpack.c.bf16 %v8693, %v8690
  %v8796 = vpack.c.bf16 %v8701, %v8698
  %v8797 = vpack.c.bf16 %v8709, %v8706
  %v8798 = vpack.c.bf16 %v8717, %v8714
  %v8799 = vpack.c.bf16 %v8725, %v8722
  %v8800 = vpack.c.bf16 %v8733, %v8730
  %v8801 = vpack.c.bf16 %v8741, %v8738
  %v8802 = vpack.c.bf16 %v8749, %v8746
  %v8803 = vpack.c.bf16 %v8757, %v8754
  %v8804 = vpack.c.bf16 %v8765, %v8762
  %v8805 = vpack.c.bf16 %v8773, %v8770
  %v8806 = vpack.c.bf16 %v8781, %v8778
  %v8807 = vpack.c.bf16 %v8789, %v8786
  %8808 = vmatprep.subr.bf16.mxu0 0
  %8809 = vmatpush1.bf16.msra.mxu0 %v8799
  %8810 = vmatprep.subr.bf16.mxu0 0
  %8811 = vmatpush1.bf16.msra.mxu0 %v8798
  %8812 = vmatprep.subr.bf16.mxu0 0
  %8813 = vmatpush1.bf16.msra.mxu0 %v8797
  %8814 = vmatprep.subr.bf16.mxu0 0
  %8815 = vmatpush1.bf16.msra.mxu0 %v8796
  %8816 = vmatprep.subr.bf16.mxu0 0
  %8817 = vmatpush1.bf16.msra.mxu0 %v8795
  %8818 = vmatprep.subr.bf16.mxu0 0
  %8819 = vmatpush1.bf16.msra.mxu0 %v8794
  %8820 = vmatprep.subr.bf16.mxu0 0
  %8821 = vmatpush1.bf16.msra.mxu0 %v8793
  %8822 = vmatprep.subr.bf16.mxu0 0
  %8823 = vmatpush1.bf16.msra.mxu0 %v8792
  %8824 = vmatprep.subr.bf16.mxu0 0
  %8825 = vmatpush2.bf16.msra.mxu0 %v8807
  %8826 = vmatprep.subr.bf16.mxu0 0
  %8827 = vmatpush2.bf16.msra.mxu0 %v8806
  %8828 = vmatprep.subr.bf16.mxu0 0
  %8829 = vmatpush2.bf16.msra.mxu0 %v8805
  %8830 = vmatprep.subr.bf16.mxu0 0
  %8831 = vmatpush2.bf16.msra.mxu0 %v8804
  %8832 = vmatprep.subr.bf16.mxu0 0
  %8833 = vmatpush2.bf16.msra.mxu0 %v8803
  %8834 = vmatprep.subr.bf16.mxu0 0
  %8835 = vmatpush2.bf16.msra.mxu0 %v8802
  %8836 = vmatprep.subr.bf16.mxu0 0
  %8837 = vmatpush2.bf16.msra.mxu0 %v8801
  %8838 = vmatprep.subr.bf16.mxu0 0
  %8839 = vmatpush2.bf16.msra.mxu0 %v8800
  %8840 = vmatprep.mubr.bf16.mxu0 %v771
  %8841 = vmatmul.mubr.bf16.gmra.mxu0 %v770
  %v8842 = vpop.f32.mrf.mxu0
  %v8843 = vadd.f32 0.0, %v8842
  %v8844 = vpop.f32.mrf.mxu0
  %v8845 = vpop.f32.mrf.mxu0
  %v8846 = vadd.f32 0.0, %v8845
  %v8847 = vpop.f32.mrf.mxu0
  %8848 = vmatprep.mubr.bf16.mxu0 %v773
  %8849 = vmatmul.mubr.bf16.gmra.mxu0 %v772
  %v8850 = vpop.f32.mrf.mxu0
  %v8851 = vadd.f32 0.0, %v8850
  %v8852 = vpop.f32.mrf.mxu0
  %v8853 = vpop.f32.mrf.mxu0
  %v8854 = vadd.f32 0.0, %v8853
  %v8855 = vpop.f32.mrf.mxu0
  %8856 = vmatprep.mubr.bf16.mxu0 %v775
  %8857 = vmatmul.mubr.bf16.gmra.mxu0 %v774
  %v8858 = vpop.f32.mrf.mxu0
  %v8859 = vadd.f32 0.0, %v8858
  %v8860 = vpop.f32.mrf.mxu0
  %v8861 = vpop.f32.mrf.mxu0
  %v8862 = vadd.f32 0.0, %v8861
  %v8863 = vpop.f32.mrf.mxu0
  %8864 = vmatprep.mubr.bf16.mxu0 %v777
  %8865 = vmatmul.mubr.bf16.gmra.mxu0 %v776
  %v8866 = vpop.f32.mrf.mxu0
  %v8867 = vadd.f32 0.0, %v8866
  %v8868 = vpop.f32.mrf.mxu0
  %v8869 = vpop.f32.mrf.mxu0
  %v8870 = vadd.f32 0.0, %v8869
  %v8871 = vpop.f32.mrf.mxu0
  %8872 = vmatprep.mubr.bf16.mxu0 %v779
  %8873 = vmatmul.mubr.bf16.gmra.mxu0 %v778
  %v8874 = vpop.f32.mrf.mxu0
  %v8875 = vadd.f32 0.0, %v8874
  %v8876 = vpop.f32.mrf.mxu0
  %v8877 = vpop.f32.mrf.mxu0
  %v8878 = vadd.f32 0.0, %v8877
  %v8879 = vpop.f32.mrf.mxu0
  %8880 = vmatprep.mubr.bf16.mxu0 %v781
  %8881 = vmatmul.mubr.bf16.gmra.mxu0 %v780
  %v8882 = vpop.f32.mrf.mxu0
  %v8883 = vadd.f32 0.0, %v8882
  %v8884 = vpop.f32.mrf.mxu0
  %v8885 = vpop.f32.mrf.mxu0
  %v8886 = vadd.f32 0.0, %v8885
  %v8887 = vpop.f32.mrf.mxu0
  %8888 = vmatprep.mubr.bf16.mxu0 %v783
  %8889 = vmatmul.mubr.bf16.gmra.mxu0 %v782
  %v8890 = vpop.f32.mrf.mxu0
  %v8891 = vadd.f32 0.0, %v8890
  %v8892 = vpop.f32.mrf.mxu0
  %v8893 = vpop.f32.mrf.mxu0
  %v8894 = vadd.f32 0.0, %v8893
  %v8895 = vpop.f32.mrf.mxu0
  %8896 = vmatprep.mubr.bf16.mxu0 %v785
  %8897 = vmatmul.mubr.bf16.gmra.mxu0 %v784
  %v8898 = vpop.f32.mrf.mxu0
  %v8899 = vadd.f32 0.0, %v8898
  %v8900 = vpop.f32.mrf.mxu0
  %v8901 = vpop.f32.mrf.mxu0
  %v8902 = vadd.f32 0.0, %v8901
  %v8903 = vpop.f32.mrf.mxu0
  %8904 = vmatprep.mubr.bf16.mxu0 %v787
  %8905 = vmatmul.mubr.bf16.gmra.mxu0 %v786
  %v8906 = vpop.f32.mrf.mxu0
  %v8907 = vadd.f32 0.0, %v8906
  %v8908 = vpop.f32.mrf.mxu0
  %v8909 = vpop.f32.mrf.mxu0
  %v8910 = vadd.f32 0.0, %v8909
  %v8911 = vpop.f32.mrf.mxu0
  %8912 = vmatprep.mubr.bf16.mxu0 %v789
  %8913 = vmatmul.mubr.bf16.gmra.mxu0 %v788
  %v8914 = vpop.f32.mrf.mxu0
  %v8915 = vadd.f32 0.0, %v8914
  %v8916 = vpop.f32.mrf.mxu0
  %v8917 = vpop.f32.mrf.mxu0
  %v8918 = vadd.f32 0.0, %v8917
  %v8919 = vpop.f32.mrf.mxu0
  %8920 = vmatprep.mubr.bf16.mxu0 %v791
  %8921 = vmatmul.mubr.bf16.gmra.mxu0 %v790
  %v8922 = vpop.f32.mrf.mxu0
  %v8923 = vadd.f32 0.0, %v8922
  %v8924 = vpop.f32.mrf.mxu0
  %v8925 = vpop.f32.mrf.mxu0
  %v8926 = vadd.f32 0.0, %v8925
  %v8927 = vpop.f32.mrf.mxu0
  %8928 = vmatprep.mubr.bf16.mxu0 %v793
  %8929 = vmatmul.mubr.bf16.gmra.mxu0 %v792
  %v8930 = vpop.f32.mrf.mxu0
  %v8931 = vadd.f32 0.0, %v8930
  %v8932 = vpop.f32.mrf.mxu0
  %v8933 = vpop.f32.mrf.mxu0
  %v8934 = vadd.f32 0.0, %v8933
  %v8935 = vpop.f32.mrf.mxu0
  %8936 = vmatprep.mubr.bf16.mxu0 %v795
  %8937 = vmatmul.mubr.bf16.gmra.mxu0 %v794
  %v8938 = vpop.f32.mrf.mxu0
  %v8939 = vadd.f32 0.0, %v8938
  %v8940 = vpop.f32.mrf.mxu0
  %v8941 = vpop.f32.mrf.mxu0
  %v8942 = vadd.f32 0.0, %v8941
  %v8943 = vpop.f32.mrf.mxu0
  %8944 = vmatprep.mubr.bf16.mxu0 %v797
  %8945 = vmatmul.mubr.bf16.gmra.mxu0 %v796
  %v8946 = vpop.f32.mrf.mxu0
  %v8947 = vadd.f32 0.0, %v8946
  %v8948 = vpop.f32.mrf.mxu0
  %v8949 = vpop.f32.mrf.mxu0
  %v8950 = vadd.f32 0.0, %v8949
  %v8951 = vpop.f32.mrf.mxu0
  %8952 = vmatprep.mubr.bf16.mxu0 %v799
  %8953 = vmatmul.mubr.bf16.gmra.mxu0 %v798
  %v8954 = vpop.f32.mrf.mxu0
  %v8955 = vadd.f32 0.0, %v8954
  %v8956 = vpop.f32.mrf.mxu0
  %v8957 = vpop.f32.mrf.mxu0
  %v8958 = vadd.f32 0.0, %v8957
  %v8959 = vpop.f32.mrf.mxu0
  %8960 = vmatprep.mubr.bf16.mxu0 %v801
  %8961 = vmatmul.mubr.bf16.gmra.mxu0 %v800
  %v8962 = vpop.f32.mrf.mxu0
  %v8963 = vadd.f32 0.0, %v8962
  %v8964 = vpop.f32.mrf.mxu0
  %v8965 = vpop.f32.mrf.mxu0
  %v8966 = vadd.f32 0.0, %v8965
  %v8967 = vpop.f32.mrf.mxu0
  %8968 = vdwg.mxu0
  %v8969 = vunpack.c.l.bf16 %v8615
  %v8970 = vunpack.c.h.bf16 %v8615
  %v8971 = vunpack.c.l.bf16 %v8616
  %v8972 = vunpack.c.h.bf16 %v8616
  %v8973 = vunpack.c.l.bf16 %v8617
  %v8974 = vunpack.c.h.bf16 %v8617
  %v8975 = vunpack.c.l.bf16 %v8618
  %v8976 = vunpack.c.h.bf16 %v8618
  %v8977 = vunpack.c.l.bf16 %v8619
  %v8978 = vunpack.c.h.bf16 %v8619
  %v8979 = vunpack.c.l.bf16 %v8620
  %v8980 = vunpack.c.h.bf16 %v8620
  %v8981 = vunpack.c.l.bf16 %v8621
  %v8982 = vunpack.c.h.bf16 %v8621
  %v8983 = vunpack.c.l.bf16 %v8622
  %v8984 = vunpack.c.h.bf16 %v8622
  %v8985 = vunpack.c.l.bf16 %v8623
  %v8986 = vunpack.c.h.bf16 %v8623
  %v8987 = vunpack.c.l.bf16 %v8624
  %v8988 = vunpack.c.h.bf16 %v8624
  %v8989 = vunpack.c.l.bf16 %v8625
  %v8990 = vunpack.c.h.bf16 %v8625
  %v8991 = vunpack.c.l.bf16 %v8626
  %v8992 = vunpack.c.h.bf16 %v8626
  %v8993 = vunpack.c.l.bf16 %v8627
  %v8994 = vunpack.c.h.bf16 %v8627
  %v8995 = vunpack.c.l.bf16 %v8628
  %v8996 = vunpack.c.h.bf16 %v8628
  %v8997 = vunpack.c.l.bf16 %v8629
  %v8998 = vunpack.c.h.bf16 %v8629
  %v8999 = vunpack.c.l.bf16 %v8630
  %v9000 = vunpack.c.h.bf16 %v8630
  %v9001 = vsub.f32 %v8843, %v8969
  %v9002 = vsub.f32 %v8846, %v8970
  %v9003 = vsub.f32 %v8851, %v8971
  %v9004 = vsub.f32 %v8854, %v8972
  %v9005 = vsub.f32 %v8859, %v8973
  %v9006 = vsub.f32 %v8862, %v8974
  %v9007 = vsub.f32 %v8867, %v8975
  %v9008 = vsub.f32 %v8870, %v8976
  %v9009 = vsub.f32 %v8875, %v8977
  %v9010 = vsub.f32 %v8878, %v8978
  %v9011 = vsub.f32 %v8883, %v8979
  %v9012 = vsub.f32 %v8886, %v8980
  %v9013 = vsub.f32 %v8891, %v8981
  %v9014 = vsub.f32 %v8894, %v8982
  %v9015 = vsub.f32 %v8899, %v8983
  %v9016 = vsub.f32 %v8902, %v8984
  %v9017 = vsub.f32 %v8907, %v8985
  %v9018 = vsub.f32 %v8910, %v8986
  %v9019 = vsub.f32 %v8915, %v8987
  %v9020 = vsub.f32 %v8918, %v8988
  %v9021 = vsub.f32 %v8923, %v8989
  %v9022 = vsub.f32 %v8926, %v8990
  %v9023 = vsub.f32 %v8931, %v8991
  %v9024 = vsub.f32 %v8934, %v8992
  %v9025 = vsub.f32 %v8939, %v8993
  %v9026 = vsub.f32 %v8942, %v8994
  %v9027 = vsub.f32 %v8947, %v8995
  %v9028 = vsub.f32 %v8950, %v8996
  %v9029 = vsub.f32 %v8955, %v8997
  %v9030 = vsub.f32 %v8958, %v8998
  %v9031 = vsub.f32 %v8963, %v8999
  %v9032 = vsub.f32 %v8966, %v9000
  %v9033 = vpack.c.bf16 %v9002, %v9001
  %v9034 = vpack.c.bf16 %v9004, %v9003
  %v9035 = vpack.c.bf16 %v9006, %v9005
  %v9036 = vpack.c.bf16 %v9008, %v9007
  %v9037 = vpack.c.bf16 %v9010, %v9009
  %v9038 = vpack.c.bf16 %v9012, %v9011
  %v9039 = vpack.c.bf16 %v9014, %v9013
  %v9040 = vpack.c.bf16 %v9016, %v9015
  %v9041 = vpack.c.bf16 %v9018, %v9017
  %v9042 = vpack.c.bf16 %v9020, %v9019
  %v9043 = vpack.c.bf16 %v9022, %v9021
  %v9044 = vpack.c.bf16 %v9024, %v9023
  %v9045 = vpack.c.bf16 %v9026, %v9025
  %v9046 = vpack.c.bf16 %v9028, %v9027
  %v9047 = vpack.c.bf16 %v9030, %v9029
  %v9048 = vpack.c.bf16 %v9032, %v9031
  %9065 = vrot.lane.b32.xlu0 %v8792, 16
  %v9066 = vpop.permute.xlu0 %9065
  %9067 = vrot.lane.b32.xlu0 %v8793, 16
  %v9068 = vpop.permute.xlu0 %9067
  %9069 = vrot.lane.b32.xlu0 %v8794, 16
  %v9070 = vpop.permute.xlu0 %9069
  %9071 = vrot.lane.b32.xlu0 %v8795, 16
  %v9072 = vpop.permute.xlu0 %9071
  %9073 = vrot.lane.b32.xlu0 %v8796, 16
  %v9074 = vpop.permute.xlu0 %9073
  %9075 = vrot.lane.b32.xlu0 %v8797, 16
  %v9076 = vpop.permute.xlu0 %9075
  %9077 = vrot.lane.b32.xlu0 %v8798, 16
  %v9078 = vpop.permute.xlu0 %9077
  %9079 = vrot.lane.b32.xlu0 %v8799, 16
  %v9080 = vpop.permute.xlu0 %9079
  %9081 = vrot.lane.b32.xlu0 %v8800, 16
  %v9082 = vpop.permute.xlu0 %9081
  %9083 = vrot.lane.b32.xlu0 %v8801, 16
  %v9084 = vpop.permute.xlu0 %9083
  %9085 = vrot.lane.b32.xlu0 %v8802, 16
  %v9086 = vpop.permute.xlu0 %9085
  %9087 = vrot.lane.b32.xlu0 %v8803, 16
  %v9088 = vpop.permute.xlu0 %9087
  %9089 = vrot.lane.b32.xlu0 %v8804, 16
  %v9090 = vpop.permute.xlu0 %9089
  %9091 = vrot.lane.b32.xlu0 %v8805, 16
  %v9092 = vpop.permute.xlu0 %9091
  %9093 = vrot.lane.b32.xlu0 %v8806, 16
  %v9094 = vpop.permute.xlu0 %9093
  %9095 = vrot.lane.b32.xlu0 %v8807, 16
  %v9096 = vpop.permute.xlu0 %9095
  %9113 = vrot.lane.b32.xlu0 %v9033, 32
  %v9114 = vpop.permute.xlu0 %9113
  %9115 = vrot.lane.b32.xlu0 %v9034, 32
  %v9116 = vpop.permute.xlu0 %9115
  %9117 = vrot.lane.b32.xlu0 %v9035, 32
  %v9118 = vpop.permute.xlu0 %9117
  %9119 = vrot.lane.b32.xlu0 %v9036, 32
  %v9120 = vpop.permute.xlu0 %9119
  %9121 = vrot.lane.b32.xlu0 %v9037, 32
  %v9122 = vpop.permute.xlu0 %9121
  %9123 = vrot.lane.b32.xlu0 %v9038, 32
  %v9124 = vpop.permute.xlu0 %9123
  %9125 = vrot.lane.b32.xlu0 %v9039, 32
  %v9126 = vpop.permute.xlu0 %9125
  %9127 = vrot.lane.b32.xlu0 %v9040, 32
  %v9128 = vpop.permute.xlu0 %9127
  %9129 = vrot.lane.b32.xlu0 %v9041, 32
  %v9130 = vpop.permute.xlu0 %9129
  %9131 = vrot.lane.b32.xlu0 %v9042, 32
  %v9132 = vpop.permute.xlu0 %9131
  %9133 = vrot.lane.b32.xlu0 %v9043, 32
  %v9134 = vpop.permute.xlu0 %9133
  %9135 = vrot.lane.b32.xlu0 %v9044, 32
  %v9136 = vpop.permute.xlu0 %9135
  %9137 = vrot.lane.b32.xlu0 %v9045, 32
  %v9138 = vpop.permute.xlu0 %9137
  %9139 = vrot.lane.b32.xlu0 %v9046, 32
  %v9140 = vpop.permute.xlu0 %9139
  %9141 = vrot.lane.b32.xlu0 %v9047, 32
  %v9142 = vpop.permute.xlu0 %9141
  %9143 = vrot.lane.b32.xlu0 %v9048, 32
  %v9144 = vpop.permute.xlu0 %9143
  %v9147 = vsel %vm1220, %v8615, %v9066
  %v9150 = vsel %vm1220, %v8616, %v9068
  %v9153 = vsel %vm1220, %v8617, %v9070
  %v9156 = vsel %vm1220, %v8618, %v9072
  %v9159 = vsel %vm1220, %v8619, %v9074
  %v9162 = vsel %vm1220, %v8620, %v9076
  %v9165 = vsel %vm1220, %v8621, %v9078
  %v9168 = vsel %vm1220, %v8622, %v9080
  %v9171 = vsel %vm1220, %v8623, %v9082
  %v9174 = vsel %vm1220, %v8624, %v9084
  %v9177 = vsel %vm1220, %v8625, %v9086
  %v9180 = vsel %vm1220, %v8626, %v9088
  %v9183 = vsel %vm1220, %v8627, %v9090
  %v9186 = vsel %vm1220, %v8628, %v9092
  %v9189 = vsel %vm1220, %v8629, %v9094
  %v9192 = vsel %vm1220, %v8630, %v9096
  %v9194 = vsel %vm3441, %v9147, %v9114
  %v9196 = vsel %vm3441, %v9150, %v9116
  %v9198 = vsel %vm3441, %v9153, %v9118
  %v9200 = vsel %vm3441, %v9156, %v9120
  %v9202 = vsel %vm3441, %v9159, %v9122
  %v9204 = vsel %vm3441, %v9162, %v9124
  %v9206 = vsel %vm3441, %v9165, %v9126
  %v9208 = vsel %vm3441, %v9168, %v9128
  %v9210 = vsel %vm3441, %v9171, %v9130
  %v9212 = vsel %vm3441, %v9174, %v9132
  %v9214 = vsel %vm3441, %v9177, %v9134
  %v9216 = vsel %vm3441, %v9180, %v9136
  %v9218 = vsel %vm3441, %v9183, %v9138
  %v9220 = vsel %vm3441, %v9186, %v9140
  %v9222 = vsel %vm3441, %v9189, %v9142
  %v9224 = vsel %vm3441, %v9192, %v9144
  %v9225 = vld [vmem:[%s45] sm:$0xf]
  %v9226 = vld [vmem:[%s45 + $0x4] sm:$0xf]
  %v9227 = vld [vmem:[%s45 + $0x8] sm:$0xf]
  %v9228 = vld [vmem:[%s45 + $0xc] sm:$0xf]
  %v9229 = vld [vmem:[%s45 + $0x10] sm:$0xf]
  %v9230 = vld [vmem:[%s45 + $0x14] sm:$0xf]
  %v9231 = vld [vmem:[%s71] sm:$0x1]
  %v9232 = vlaneseq
  %v9233 = vshrl.u32 %v9232, 7
  %v9234 = vsub.s32 0, %v9233
  %v9235 = vrot.slane %v9231, %v9234
  %v9242 = vunpack.c.l.b16 %v9225
  %v9243 = vunpack.c.l.b16 %v9226
  %v9244 = vunpack.c.l.b16 %v9227
  %v9245 = vunpack.c.l.b16 %v9228
  %v9246 = vunpack.c.l.b16 %v9229
  %v9247 = vunpack.c.l.b16 %v9230
  %v9248 = vpack.c.b16 %v9243, %v9242
  %v9249 = vpack.c.b16 %v9245, %v9244
  %v9250 = vpack.c.b16 %v9247, %v9246
  %v9254 = vsel %vm3503, %v9194, 0
  %v9256 = vsel %vm3503, %v9196, 0
  %v9258 = vsel %vm3503, %v9198, 0
  %v9260 = vsel %vm3503, %v9200, 0
  %v9262 = vsel %vm3503, %v9202, 0
  %v9264 = vsel %vm3503, %v9204, 0
  %v9266 = vsel %vm3503, %v9206, 0
  %v9268 = vsel %vm3503, %v9208, 0
  %v9270 = vsel %vm3503, %v9210, 0
  %v9272 = vsel %vm3503, %v9212, 0
  %v9274 = vsel %vm3503, %v9214, 0
  %v9276 = vsel %vm3503, %v9216, 0
  %v9278 = vsel %vm3503, %v9218, 0
  %v9280 = vsel %vm3503, %v9220, 0
  %v9282 = vsel %vm3503, %v9222, 0
  %v9284 = vsel %vm3503, %v9224, 0
  %9286 = vmatprep.subr.bf16.mxu0 0
  %9287 = vmatpush1.bf16.msra.mxu0 0
  %9288 = vmatprep.subr.bf16.mxu0 0
  %9289 = vmatpush1.bf16.msra.mxu0 0
  %9290 = vmatprep.subr.bf16.mxu0 0
  %9291 = vmatpush1.bf16.msra.mxu0 0
  %9292 = vmatprep.subr.bf16.mxu0 0
  %9293 = vmatpush1.bf16.msra.mxu0 0
  %9294 = vmatprep.subr.bf16.mxu0 0
  %9295 = vmatpush1.bf16.msra.mxu0 0
  %9296 = vmatprep.subr.bf16.mxu0 0
  %9297 = vmatpush1.bf16.msra.mxu0 %v9250
  %9298 = vmatprep.subr.bf16.mxu0 0
  %9299 = vmatpush1.bf16.msra.mxu0 %v9249
  %9300 = vmatprep.subr.bf16.mxu0 0
  %9301 = vmatpush1.bf16.msra.mxu0 %v9248
  %9302 = vmatprep.subr.bf16.mxu0 0
  %9303 = vmatpush2.bf16.msra.mxu0 0
  %9304 = vmatprep.subr.bf16.mxu0 0
  %9305 = vmatpush2.bf16.msra.mxu0 0
  %9306 = vmatprep.subr.bf16.mxu0 0
  %9307 = vmatpush2.bf16.msra.mxu0 0
  %9308 = vmatprep.subr.bf16.mxu0 0
  %9309 = vmatpush2.bf16.msra.mxu0 0
  %9310 = vmatprep.subr.bf16.mxu0 0
  %9311 = vmatpush2.bf16.msra.mxu0 0
  %9312 = vmatprep.subr.bf16.mxu0 0
  %9313 = vmatpush2.bf16.msra.mxu0 0
  %9314 = vmatprep.subr.bf16.mxu0 0
  %9315 = vmatpush2.bf16.msra.mxu0 0
  %9316 = vmatprep.subr.bf16.mxu0 0
  %9317 = vmatpush2.bf16.msra.mxu0 0
  %9318 = vmatprep.mubr.bf16.mxu0 0
  %9319 = vmatmul.mubr.bf16.gmra.mxu0 %v9254
  %v9320 = vpop.f32.mrf.mxu0
  %v9321 = vadd.f32 %v9235, %v9320
  %v9322 = vpop.f32.mrf.mxu0
  %v9323 = vpop.f32.mrf.mxu0
  %v9324 = vadd.f32 %v9235, %v9323
  %v9325 = vpop.f32.mrf.mxu0
  %9326 = vmatprep.mubr.bf16.mxu0 0
  %9327 = vmatmul.mubr.bf16.gmra.mxu0 %v9256
  %v9328 = vpop.f32.mrf.mxu0
  %v9329 = vadd.f32 %v9235, %v9328
  %v9330 = vpop.f32.mrf.mxu0
  %v9331 = vpop.f32.mrf.mxu0
  %v9332 = vadd.f32 %v9235, %v9331
  %v9333 = vpop.f32.mrf.mxu0
  %9334 = vmatprep.mubr.bf16.mxu0 0
  %9335 = vmatmul.mubr.bf16.gmra.mxu0 %v9258
  %v9336 = vpop.f32.mrf.mxu0
  %v9337 = vadd.f32 %v9235, %v9336
  %v9338 = vpop.f32.mrf.mxu0
  %v9339 = vpop.f32.mrf.mxu0
  %v9340 = vadd.f32 %v9235, %v9339
  %v9341 = vpop.f32.mrf.mxu0
  %9342 = vmatprep.mubr.bf16.mxu0 0
  %9343 = vmatmul.mubr.bf16.gmra.mxu0 %v9260
  %v9344 = vpop.f32.mrf.mxu0
  %v9345 = vadd.f32 %v9235, %v9344
  %v9346 = vpop.f32.mrf.mxu0
  %v9347 = vpop.f32.mrf.mxu0
  %v9348 = vadd.f32 %v9235, %v9347
  %v9349 = vpop.f32.mrf.mxu0
  %9350 = vmatprep.mubr.bf16.mxu0 0
  %9351 = vmatmul.mubr.bf16.gmra.mxu0 %v9262
  %v9352 = vpop.f32.mrf.mxu0
  %v9353 = vadd.f32 %v9235, %v9352
  %v9354 = vpop.f32.mrf.mxu0
  %v9355 = vpop.f32.mrf.mxu0
  %v9356 = vadd.f32 %v9235, %v9355
  %v9357 = vpop.f32.mrf.mxu0
  %9358 = vmatprep.mubr.bf16.mxu0 0
  %9359 = vmatmul.mubr.bf16.gmra.mxu0 %v9264
  %v9360 = vpop.f32.mrf.mxu0
  %v9361 = vadd.f32 %v9235, %v9360
  %v9362 = vpop.f32.mrf.mxu0
  %v9363 = vpop.f32.mrf.mxu0
  %v9364 = vadd.f32 %v9235, %v9363
  %v9365 = vpop.f32.mrf.mxu0
  %9366 = vmatprep.mubr.bf16.mxu0 0
  %9367 = vmatmul.mubr.bf16.gmra.mxu0 %v9266
  %v9368 = vpop.f32.mrf.mxu0
  %v9369 = vadd.f32 %v9235, %v9368
  %v9370 = vpop.f32.mrf.mxu0
  %v9371 = vpop.f32.mrf.mxu0
  %v9372 = vadd.f32 %v9235, %v9371
  %v9373 = vpop.f32.mrf.mxu0
  %9374 = vmatprep.mubr.bf16.mxu0 0
  %9375 = vmatmul.mubr.bf16.gmra.mxu0 %v9268
  %v9376 = vpop.f32.mrf.mxu0
  %v9377 = vadd.f32 %v9235, %v9376
  %v9378 = vpop.f32.mrf.mxu0
  %v9379 = vpop.f32.mrf.mxu0
  %v9380 = vadd.f32 %v9235, %v9379
  %v9381 = vpop.f32.mrf.mxu0
  %9382 = vmatprep.mubr.bf16.mxu0 0
  %9383 = vmatmul.mubr.bf16.gmra.mxu0 %v9270
  %v9384 = vpop.f32.mrf.mxu0
  %v9385 = vadd.f32 %v9235, %v9384
  %v9386 = vpop.f32.mrf.mxu0
  %v9387 = vpop.f32.mrf.mxu0
  %v9388 = vadd.f32 %v9235, %v9387
  %v9389 = vpop.f32.mrf.mxu0
  %9390 = vmatprep.mubr.bf16.mxu0 0
  %9391 = vmatmul.mubr.bf16.gmra.mxu0 %v9272
  %v9392 = vpop.f32.mrf.mxu0
  %v9393 = vadd.f32 %v9235, %v9392
  %v9394 = vpop.f32.mrf.mxu0
  %v9395 = vpop.f32.mrf.mxu0
  %v9396 = vadd.f32 %v9235, %v9395
  %v9397 = vpop.f32.mrf.mxu0
  %9398 = vmatprep.mubr.bf16.mxu0 0
  %9399 = vmatmul.mubr.bf16.gmra.mxu0 %v9274
  %v9400 = vpop.f32.mrf.mxu0
  %v9401 = vadd.f32 %v9235, %v9400
  %v9402 = vpop.f32.mrf.mxu0
  %v9403 = vpop.f32.mrf.mxu0
  %v9404 = vadd.f32 %v9235, %v9403
  %v9405 = vpop.f32.mrf.mxu0
  %9406 = vmatprep.mubr.bf16.mxu0 0
  %9407 = vmatmul.mubr.bf16.gmra.mxu0 %v9276
  %v9408 = vpop.f32.mrf.mxu0
  %v9409 = vadd.f32 %v9235, %v9408
  %v9410 = vpop.f32.mrf.mxu0
  %v9411 = vpop.f32.mrf.mxu0
  %v9412 = vadd.f32 %v9235, %v9411
  %v9413 = vpop.f32.mrf.mxu0
  %9414 = vmatprep.mubr.bf16.mxu0 0
  %9415 = vmatmul.mubr.bf16.gmra.mxu0 %v9278
  %v9416 = vpop.f32.mrf.mxu0
  %v9417 = vadd.f32 %v9235, %v9416
  %v9418 = vpop.f32.mrf.mxu0
  %v9419 = vpop.f32.mrf.mxu0
  %v9420 = vadd.f32 %v9235, %v9419
  %v9421 = vpop.f32.mrf.mxu0
  %9422 = vmatprep.mubr.bf16.mxu0 0
  %9423 = vmatmul.mubr.bf16.gmra.mxu0 %v9280
  %v9424 = vpop.f32.mrf.mxu0
  %v9425 = vadd.f32 %v9235, %v9424
  %v9426 = vpop.f32.mrf.mxu0
  %v9427 = vpop.f32.mrf.mxu0
  %v9428 = vadd.f32 %v9235, %v9427
  %v9429 = vpop.f32.mrf.mxu0
  %9430 = vmatprep.mubr.bf16.mxu0 0
  %9431 = vmatmul.mubr.bf16.gmra.mxu0 %v9282
  %v9432 = vpop.f32.mrf.mxu0
  %v9433 = vadd.f32 %v9235, %v9432
  %v9434 = vpop.f32.mrf.mxu0
  %v9435 = vpop.f32.mrf.mxu0
  %v9436 = vadd.f32 %v9235, %v9435
  %v9437 = vpop.f32.mrf.mxu0
  %9438 = vmatprep.mubr.bf16.mxu0 0
  %9439 = vmatmul.mubr.bf16.gmra.mxu0 %v9284
  %v9440 = vpop.f32.mrf.mxu0
  %v9441 = vadd.f32 %v9235, %v9440
  %v9442 = vpop.f32.mrf.mxu0
  %v9443 = vpop.f32.mrf.mxu0
  %v9444 = vadd.f32 %v9235, %v9443
  %v9445 = vpop.f32.mrf.mxu0
  %9446 = vdwg.mxu0
  %v9447 = vsel %vm1171, %v9321, 0.0
  %v9448 = vsel %vm1171, %v9324, 0.0
  %v9449 = vadd.f32 %v9447, %v9448
  %v9450 = vsel %vm1171, %v9329, 0.0
  %v9451 = vadd.f32 %v9449, %v9450
  %v9452 = vsel %vm1171, %v9332, 0.0
  %v9453 = vadd.f32 %v9451, %v9452
  %v9454 = vsel %vm1171, %v9337, 0.0
  %v9455 = vadd.f32 %v9453, %v9454
  %v9456 = vsel %vm1171, %v9340, 0.0
  %v9457 = vadd.f32 %v9455, %v9456
  %v9458 = vsel %vm1171, %v9345, 0.0
  %v9459 = vadd.f32 %v9457, %v9458
  %v9460 = vsel %vm1171, %v9348, 0.0
  %v9461 = vadd.f32 %v9459, %v9460
  %v9462 = vsel %vm1171, %v9353, 0.0
  %v9463 = vadd.f32 %v9461, %v9462
  %v9464 = vsel %vm1171, %v9356, 0.0
  %v9465 = vadd.f32 %v9463, %v9464
  %v9466 = vsel %vm1171, %v9361, 0.0
  %v9467 = vadd.f32 %v9465, %v9466
  %v9468 = vsel %vm1171, %v9364, 0.0
  %v9469 = vadd.f32 %v9467, %v9468
  %v9470 = vsel %vm1171, %v9369, 0.0
  %v9471 = vadd.f32 %v9469, %v9470
  %v9472 = vsel %vm1171, %v9372, 0.0
  %v9473 = vadd.f32 %v9471, %v9472
  %v9474 = vsel %vm1171, %v9377, 0.0
  %v9475 = vadd.f32 %v9473, %v9474
  %v9476 = vsel %vm1171, %v9380, 0.0
  %v9477 = vadd.f32 %v9475, %v9476
  %v9478 = vsel %vm1171, %v9385, 0.0
  %v9479 = vadd.f32 %v9477, %v9478
  %v9480 = vsel %vm1171, %v9388, 0.0
  %v9481 = vadd.f32 %v9479, %v9480
  %v9482 = vsel %vm1171, %v9393, 0.0
  %v9483 = vadd.f32 %v9481, %v9482
  %v9484 = vsel %vm1171, %v9396, 0.0
  %v9485 = vadd.f32 %v9483, %v9484
  %v9486 = vsel %vm1171, %v9401, 0.0
  %v9487 = vadd.f32 %v9485, %v9486
  %v9488 = vsel %vm1171, %v9404, 0.0
  %v9489 = vadd.f32 %v9487, %v9488
  %v9490 = vsel %vm1171, %v9409, 0.0
  %v9491 = vadd.f32 %v9489, %v9490
  %v9492 = vsel %vm1171, %v9412, 0.0
  %v9493 = vadd.f32 %v9491, %v9492
  %v9494 = vsel %vm1171, %v9417, 0.0
  %v9495 = vadd.f32 %v9493, %v9494
  %v9496 = vsel %vm1171, %v9420, 0.0
  %v9497 = vadd.f32 %v9495, %v9496
  %v9498 = vsel %vm1171, %v9425, 0.0
  %v9499 = vadd.f32 %v9497, %v9498
  %v9500 = vsel %vm1171, %v9428, 0.0
  %v9501 = vadd.f32 %v9499, %v9500
  %v9502 = vsel %vm1171, %v9433, 0.0
  %v9503 = vadd.f32 %v9501, %v9502
  %v9504 = vsel %vm1171, %v9436, 0.0
  %v9505 = vadd.f32 %v9503, %v9504
  %v9506 = vsel %vm1171, %v9441, 0.0
  %v9507 = vadd.f32 %v9505, %v9506
  %v9508 = vsel %vm1171, %v9444, 0.0
  %v9509 = vadd.f32 %v9507, %v9508
  %v9510 = vrot.slane %v9509, 4
  %v9511 = vadd.f32 %v9509, %v9510
  %v9512 = vrot.slane %v9511, 2
  %v9513 = vadd.f32 %v9511, %v9512
  %v9514 = vrot.slane %v9513, 1
  %v9515 = vadd.f32 %v9513, %v9514
  %v9516 = vmul.f32 %v9321, %v9321
  %v9517 = vmul.f32 %v9324, %v9324
  %v9518 = vmul.f32 %v9329, %v9329
  %v9519 = vmul.f32 %v9332, %v9332
  %v9520 = vmul.f32 %v9337, %v9337
  %v9521 = vmul.f32 %v9340, %v9340
  %v9522 = vmul.f32 %v9345, %v9345
  %v9523 = vmul.f32 %v9348, %v9348
  %v9524 = vmul.f32 %v9353, %v9353
  %v9525 = vmul.f32 %v9356, %v9356
  %v9526 = vmul.f32 %v9361, %v9361
  %v9527 = vmul.f32 %v9364, %v9364
  %v9528 = vmul.f32 %v9369, %v9369
  %v9529 = vmul.f32 %v9372, %v9372
  %v9530 = vmul.f32 %v9377, %v9377
  %v9531 = vmul.f32 %v9380, %v9380
  %v9532 = vmul.f32 %v9385, %v9385
  %v9533 = vmul.f32 %v9388, %v9388
  %v9534 = vmul.f32 %v9393, %v9393
  %v9535 = vmul.f32 %v9396, %v9396
  %v9536 = vmul.f32 %v9401, %v9401
  %v9537 = vmul.f32 %v9404, %v9404
  %v9538 = vmul.f32 %v9409, %v9409
  %v9539 = vmul.f32 %v9412, %v9412
  %v9540 = vmul.f32 %v9417, %v9417
  %v9541 = vmul.f32 %v9420, %v9420
  %v9542 = vmul.f32 %v9425, %v9425
  %v9543 = vmul.f32 %v9428, %v9428
  %v9544 = vmul.f32 %v9433, %v9433
  %v9545 = vmul.f32 %v9436, %v9436
  %v9546 = vmul.f32 %v9441, %v9441
  %v9547 = vmul.f32 %v9444, %v9444
  %v9548 = vsel %vm1171, %v9516, 0.0
  %v9549 = vsel %vm1171, %v9517, 0.0
  %v9550 = vadd.f32 %v9548, %v9549
  %v9551 = vsel %vm1171, %v9518, 0.0
  %v9552 = vadd.f32 %v9550, %v9551
  %v9553 = vsel %vm1171, %v9519, 0.0
  %v9554 = vadd.f32 %v9552, %v9553
  %v9555 = vsel %vm1171, %v9520, 0.0
  %v9556 = vadd.f32 %v9554, %v9555
  %v9557 = vsel %vm1171, %v9521, 0.0
  %v9558 = vadd.f32 %v9556, %v9557
  %v9559 = vsel %vm1171, %v9522, 0.0
  %v9560 = vadd.f32 %v9558, %v9559
  %v9561 = vsel %vm1171, %v9523, 0.0
  %v9562 = vadd.f32 %v9560, %v9561
  %v9563 = vsel %vm1171, %v9524, 0.0
  %v9564 = vadd.f32 %v9562, %v9563
  %v9565 = vsel %vm1171, %v9525, 0.0
  %v9566 = vadd.f32 %v9564, %v9565
  %v9567 = vsel %vm1171, %v9526, 0.0
  %v9568 = vadd.f32 %v9566, %v9567
  %v9569 = vsel %vm1171, %v9527, 0.0
  %v9570 = vadd.f32 %v9568, %v9569
  %v9571 = vsel %vm1171, %v9528, 0.0
  %v9572 = vadd.f32 %v9570, %v9571
  %v9573 = vsel %vm1171, %v9529, 0.0
  %v9574 = vadd.f32 %v9572, %v9573
  %v9575 = vsel %vm1171, %v9530, 0.0
  %v9576 = vadd.f32 %v9574, %v9575
  %v9577 = vsel %vm1171, %v9531, 0.0
  %v9578 = vadd.f32 %v9576, %v9577
  %v9579 = vsel %vm1171, %v9532, 0.0
  %v9580 = vadd.f32 %v9578, %v9579
  %v9581 = vsel %vm1171, %v9533, 0.0
  %v9582 = vadd.f32 %v9580, %v9581
  %v9583 = vsel %vm1171, %v9534, 0.0
  %v9584 = vadd.f32 %v9582, %v9583
  %v9585 = vsel %vm1171, %v9535, 0.0
  %v9586 = vadd.f32 %v9584, %v9585
  %v9587 = vsel %vm1171, %v9536, 0.0
  %v9588 = vadd.f32 %v9586, %v9587
  %v9589 = vsel %vm1171, %v9537, 0.0
  %v9590 = vadd.f32 %v9588, %v9589
  %v9591 = vsel %vm1171, %v9538, 0.0
  %v9592 = vadd.f32 %v9590, %v9591
  %v9593 = vsel %vm1171, %v9539, 0.0
  %v9594 = vadd.f32 %v9592, %v9593
  %v9595 = vsel %vm1171, %v9540, 0.0
  %v9596 = vadd.f32 %v9594, %v9595
  %v9597 = vsel %vm1171, %v9541, 0.0
  %v9598 = vadd.f32 %v9596, %v9597
  %v9599 = vsel %vm1171, %v9542, 0.0
  %v9600 = vadd.f32 %v9598, %v9599
  %v9601 = vsel %vm1171, %v9543, 0.0
  %v9602 = vadd.f32 %v9600, %v9601
  %v9603 = vsel %vm1171, %v9544, 0.0
  %v9604 = vadd.f32 %v9602, %v9603
  %v9605 = vsel %vm1171, %v9545, 0.0
  %v9606 = vadd.f32 %v9604, %v9605
  %v9607 = vsel %vm1171, %v9546, 0.0
  %v9608 = vadd.f32 %v9606, %v9607
  %v9609 = vsel %vm1171, %v9547, 0.0
  %v9610 = vadd.f32 %v9608, %v9609
  %v9611 = vrot.slane %v9610, 4
  %v9612 = vadd.f32 %v9610, %v9611
  %v9613 = vrot.slane %v9612, 2
  %v9614 = vadd.f32 %v9612, %v9613
  %v9615 = vrot.slane %v9614, 1
  %v9616 = vadd.f32 %v9614, %v9615
  %v9617 = vmul.f32 %v9515, 0.00390625
  %v9618 = vmul.f32 %v9616, 0.00390625
  %v9619 = vmul.f32 %v9617, %v9617
  %v9620 = vsub.f32 %v9618, %v9619
  %v9621 = vmax.f32 %v9620, 0.0
  %v9622 = vadd.f32 %v9621, 1e-05
  %v9623 = vrsqrt.pop %v9622
  %v9624 = vld [vmem:[%s71 + $0x1] sm:$0x1]
  %v9625 = vmul.f32 %v9624, %v9623
  %v9626 = vld [vmem:[%s71 + $0x2] sm:$0x1]
  %v9627 = vmul.f32 %v9617, %v9625
  %v9628 = vsub.f32 %v9626, %v9627
  %v9629 = vlaneseq
  %v9630 = vshrl.u32 %v9629, 7
  %v9631 = vsub.s32 0, %v9630
  %v9632 = vrot.slane %v9625, %v9631
  %v9633 = vmul.f32 %v9321, %v9632
  %v9634 = vmul.f32 %v9324, %v9632
  %v9635 = vmul.f32 %v9329, %v9632
  %v9636 = vmul.f32 %v9332, %v9632
  %v9637 = vmul.f32 %v9337, %v9632
  %v9638 = vmul.f32 %v9340, %v9632
  %v9639 = vmul.f32 %v9345, %v9632
  %v9640 = vmul.f32 %v9348, %v9632
  %v9641 = vmul.f32 %v9353, %v9632
  %v9642 = vmul.f32 %v9356, %v9632
  %v9643 = vmul.f32 %v9361, %v9632
  %v9644 = vmul.f32 %v9364, %v9632
  %v9645 = vmul.f32 %v9369, %v9632
  %v9646 = vmul.f32 %v9372, %v9632
  %v9647 = vmul.f32 %v9377, %v9632
  %v9648 = vmul.f32 %v9380, %v9632
  %v9649 = vmul.f32 %v9385, %v9632
  %v9650 = vmul.f32 %v9388, %v9632
  %v9651 = vmul.f32 %v9393, %v9632
  %v9652 = vmul.f32 %v9396, %v9632
  %v9653 = vmul.f32 %v9401, %v9632
  %v9654 = vmul.f32 %v9404, %v9632
  %v9655 = vmul.f32 %v9409, %v9632
  %v9656 = vmul.f32 %v9412, %v9632
  %v9657 = vmul.f32 %v9417, %v9632
  %v9658 = vmul.f32 %v9420, %v9632
  %v9659 = vmul.f32 %v9425, %v9632
  %v9660 = vmul.f32 %v9428, %v9632
  %v9661 = vmul.f32 %v9433, %v9632
  %v9662 = vmul.f32 %v9436, %v9632
  %v9663 = vmul.f32 %v9441, %v9632
  %v9664 = vmul.f32 %v9444, %v9632
  %v9665 = vlaneseq
  %v9666 = vshrl.u32 %v9665, 7
  %v9667 = vsub.s32 0, %v9666
  %v9668 = vrot.slane %v9628, %v9667
  %v9669 = vadd.f32 %v9633, %v9668
  %v9670 = vadd.f32 %v9634, %v9668
  %v9671 = vadd.f32 %v9635, %v9668
  %v9672 = vadd.f32 %v9636, %v9668
  %v9673 = vadd.f32 %v9637, %v9668
  %v9674 = vadd.f32 %v9638, %v9668
  %v9675 = vadd.f32 %v9639, %v9668
  %v9676 = vadd.f32 %v9640, %v9668
  %v9677 = vadd.f32 %v9641, %v9668
  %v9678 = vadd.f32 %v9642, %v9668
  %v9679 = vadd.f32 %v9643, %v9668
  %v9680 = vadd.f32 %v9644, %v9668
  %v9681 = vadd.f32 %v9645, %v9668
  %v9682 = vadd.f32 %v9646, %v9668
  %v9683 = vadd.f32 %v9647, %v9668
  %v9684 = vadd.f32 %v9648, %v9668
  %v9685 = vadd.f32 %v9649, %v9668
  %v9686 = vadd.f32 %v9650, %v9668
  %v9687 = vadd.f32 %v9651, %v9668
  %v9688 = vadd.f32 %v9652, %v9668
  %v9689 = vadd.f32 %v9653, %v9668
  %v9690 = vadd.f32 %v9654, %v9668
  %v9691 = vadd.f32 %v9655, %v9668
  %v9692 = vadd.f32 %v9656, %v9668
  %v9693 = vadd.f32 %v9657, %v9668
  %v9694 = vadd.f32 %v9658, %v9668
  %v9695 = vadd.f32 %v9659, %v9668
  %v9696 = vadd.f32 %v9660, %v9668
  %v9697 = vadd.f32 %v9661, %v9668
  %v9698 = vadd.f32 %v9662, %v9668
  %v9699 = vadd.f32 %v9663, %v9668
  %v9700 = vadd.f32 %v9664, %v9668
  %v9701 = vmax.f32 %v9669, 0.0
  %v9702 = vmax.f32 %v9670, 0.0
  %v9703 = vmax.f32 %v9671, 0.0
  %v9704 = vmax.f32 %v9672, 0.0
  %v9705 = vmax.f32 %v9673, 0.0
  %v9706 = vmax.f32 %v9674, 0.0
  %v9707 = vmax.f32 %v9675, 0.0
  %v9708 = vmax.f32 %v9676, 0.0
  %v9709 = vmax.f32 %v9677, 0.0
  %v9710 = vmax.f32 %v9678, 0.0
  %v9711 = vmax.f32 %v9679, 0.0
  %v9712 = vmax.f32 %v9680, 0.0
  %v9713 = vmax.f32 %v9681, 0.0
  %v9714 = vmax.f32 %v9682, 0.0
  %v9715 = vmax.f32 %v9683, 0.0
  %v9716 = vmax.f32 %v9684, 0.0
  %v9717 = vmax.f32 %v9685, 0.0
  %v9718 = vmax.f32 %v9686, 0.0
  %v9719 = vmax.f32 %v9687, 0.0
  %v9720 = vmax.f32 %v9688, 0.0
  %v9721 = vmax.f32 %v9689, 0.0
  %v9722 = vmax.f32 %v9690, 0.0
  %v9723 = vmax.f32 %v9691, 0.0
  %v9724 = vmax.f32 %v9692, 0.0
  %v9725 = vmax.f32 %v9693, 0.0
  %v9726 = vmax.f32 %v9694, 0.0
  %v9727 = vmax.f32 %v9695, 0.0
  %v9728 = vmax.f32 %v9696, 0.0
  %v9729 = vmax.f32 %v9697, 0.0
  %v9730 = vmax.f32 %v9698, 0.0
  %v9731 = vmax.f32 %v9699, 0.0
  %v9732 = vmax.f32 %v9700, 0.0
  %v9733 = vpack.c.bf16 %v9702, %v9701
  %v9734 = vpack.c.bf16 %v9704, %v9703
  %v9735 = vpack.c.bf16 %v9706, %v9705
  %v9736 = vpack.c.bf16 %v9708, %v9707
  %v9737 = vpack.c.bf16 %v9710, %v9709
  %v9738 = vpack.c.bf16 %v9712, %v9711
  %v9739 = vpack.c.bf16 %v9714, %v9713
  %v9740 = vpack.c.bf16 %v9716, %v9715
  %v9741 = vpack.c.bf16 %v9718, %v9717
  %v9742 = vpack.c.bf16 %v9720, %v9719
  %v9743 = vpack.c.bf16 %v9722, %v9721
  %v9744 = vpack.c.bf16 %v9724, %v9723
  %v9745 = vpack.c.bf16 %v9726, %v9725
  %v9746 = vpack.c.bf16 %v9728, %v9727
  %v9747 = vpack.c.bf16 %v9730, %v9729
  %v9748 = vpack.c.bf16 %v9732, %v9731
  %9749 = vmatprep.subr.bf16.mxu0 0
  %9750 = vmatpush1.bf16.msra.mxu0 %v9740
  %9751 = vmatprep.subr.bf16.mxu0 0
  %9752 = vmatpush1.bf16.msra.mxu0 %v9739
  %9753 = vmatprep.subr.bf16.mxu0 0
  %9754 = vmatpush1.bf16.msra.mxu0 %v9738
  %9755 = vmatprep.subr.bf16.mxu0 0
  %9756 = vmatpush1.bf16.msra.mxu0 %v9737
  %9757 = vmatprep.subr.bf16.mxu0 0
  %9758 = vmatpush1.bf16.msra.mxu0 %v9736
  %9759 = vmatprep.subr.bf16.mxu0 0
  %9760 = vmatpush1.bf16.msra.mxu0 %v9735
  %9761 = vmatprep.subr.bf16.mxu0 0
  %9762 = vmatpush1.bf16.msra.mxu0 %v9734
  %9763 = vmatprep.subr.bf16.mxu0 0
  %9764 = vmatpush1.bf16.msra.mxu0 %v9733
  %9765 = vmatprep.subr.bf16.mxu0 0
  %9766 = vmatpush2.bf16.msra.mxu0 %v9748
  %9767 = vmatprep.subr.bf16.mxu0 0
  %9768 = vmatpush2.bf16.msra.mxu0 %v9747
  %9769 = vmatprep.subr.bf16.mxu0 0
  %9770 = vmatpush2.bf16.msra.mxu0 %v9746
  %9771 = vmatprep.subr.bf16.mxu0 0
  %9772 = vmatpush2.bf16.msra.mxu0 %v9745
  %9773 = vmatprep.subr.bf16.mxu0 0
  %9774 = vmatpush2.bf16.msra.mxu0 %v9744
  %9775 = vmatprep.subr.bf16.mxu0 0
  %9776 = vmatpush2.bf16.msra.mxu0 %v9743
  %9777 = vmatprep.subr.bf16.mxu0 0
  %9778 = vmatpush2.bf16.msra.mxu0 %v9742
  %9779 = vmatprep.subr.bf16.mxu0 0
  %9780 = vmatpush2.bf16.msra.mxu0 %v9741
  %9781 = vmatprep.mubr.bf16.mxu0 %v434
  %9782 = vmatmul.mubr.bf16.gmra.mxu0 %v433
  %v9783 = vpop.f32.mrf.mxu0
  %v9784 = vadd.f32 0.0, %v9783
  %v9785 = vpop.f32.mrf.mxu0
  %v9786 = vpop.f32.mrf.mxu0
  %v9787 = vadd.f32 0.0, %v9786
  %v9788 = vpop.f32.mrf.mxu0
  %9789 = vmatprep.mubr.bf16.mxu0 %v436
  %9790 = vmatmul.mubr.bf16.gmra.mxu0 %v435
  %v9791 = vpop.f32.mrf.mxu0
  %v9792 = vadd.f32 0.0, %v9791
  %v9793 = vpop.f32.mrf.mxu0
  %v9794 = vpop.f32.mrf.mxu0
  %v9795 = vadd.f32 0.0, %v9794
  %v9796 = vpop.f32.mrf.mxu0
  %9797 = vmatprep.mubr.bf16.mxu0 %v438
  %9798 = vmatmul.mubr.bf16.gmra.mxu0 %v437
  %v9799 = vpop.f32.mrf.mxu0
  %v9800 = vadd.f32 0.0, %v9799
  %v9801 = vpop.f32.mrf.mxu0
  %v9802 = vpop.f32.mrf.mxu0
  %v9803 = vadd.f32 0.0, %v9802
  %v9804 = vpop.f32.mrf.mxu0
  %9805 = vmatprep.mubr.bf16.mxu0 %v440
  %9806 = vmatmul.mubr.bf16.gmra.mxu0 %v439
  %v9807 = vpop.f32.mrf.mxu0
  %v9808 = vadd.f32 0.0, %v9807
  %v9809 = vpop.f32.mrf.mxu0
  %v9810 = vpop.f32.mrf.mxu0
  %v9811 = vadd.f32 0.0, %v9810
  %v9812 = vpop.f32.mrf.mxu0
  %9813 = vmatprep.mubr.bf16.mxu0 %v442
  %9814 = vmatmul.mubr.bf16.gmra.mxu0 %v441
  %v9815 = vpop.f32.mrf.mxu0
  %v9816 = vadd.f32 0.0, %v9815
  %v9817 = vpop.f32.mrf.mxu0
  %v9818 = vpop.f32.mrf.mxu0
  %v9819 = vadd.f32 0.0, %v9818
  %v9820 = vpop.f32.mrf.mxu0
  %9821 = vmatprep.mubr.bf16.mxu0 %v444
  %9822 = vmatmul.mubr.bf16.gmra.mxu0 %v443
  %v9823 = vpop.f32.mrf.mxu0
  %v9824 = vadd.f32 0.0, %v9823
  %v9825 = vpop.f32.mrf.mxu0
  %v9826 = vpop.f32.mrf.mxu0
  %v9827 = vadd.f32 0.0, %v9826
  %v9828 = vpop.f32.mrf.mxu0
  %9829 = vmatprep.mubr.bf16.mxu0 %v446
  %9830 = vmatmul.mubr.bf16.gmra.mxu0 %v445
  %v9831 = vpop.f32.mrf.mxu0
  %v9832 = vadd.f32 0.0, %v9831
  %v9833 = vpop.f32.mrf.mxu0
  %v9834 = vpop.f32.mrf.mxu0
  %v9835 = vadd.f32 0.0, %v9834
  %v9836 = vpop.f32.mrf.mxu0
  %9837 = vmatprep.mubr.bf16.mxu0 %v448
  %9838 = vmatmul.mubr.bf16.gmra.mxu0 %v447
  %v9839 = vpop.f32.mrf.mxu0
  %v9840 = vadd.f32 0.0, %v9839
  %v9841 = vpop.f32.mrf.mxu0
  %v9842 = vpop.f32.mrf.mxu0
  %v9843 = vadd.f32 0.0, %v9842
  %v9844 = vpop.f32.mrf.mxu0
  %9845 = vmatprep.mubr.bf16.mxu0 %v450
  %9846 = vmatmul.mubr.bf16.gmra.mxu0 %v449
  %v9847 = vpop.f32.mrf.mxu0
  %v9848 = vadd.f32 0.0, %v9847
  %v9849 = vpop.f32.mrf.mxu0
  %v9850 = vpop.f32.mrf.mxu0
  %v9851 = vadd.f32 0.0, %v9850
  %v9852 = vpop.f32.mrf.mxu0
  %9853 = vmatprep.mubr.bf16.mxu0 %v452
  %9854 = vmatmul.mubr.bf16.gmra.mxu0 %v451
  %v9855 = vpop.f32.mrf.mxu0
  %v9856 = vadd.f32 0.0, %v9855
  %v9857 = vpop.f32.mrf.mxu0
  %v9858 = vpop.f32.mrf.mxu0
  %v9859 = vadd.f32 0.0, %v9858
  %v9860 = vpop.f32.mrf.mxu0
  %9861 = vmatprep.mubr.bf16.mxu0 %v454
  %9862 = vmatmul.mubr.bf16.gmra.mxu0 %v453
  %v9863 = vpop.f32.mrf.mxu0
  %v9864 = vadd.f32 0.0, %v9863
  %v9865 = vpop.f32.mrf.mxu0
  %v9866 = vpop.f32.mrf.mxu0
  %v9867 = vadd.f32 0.0, %v9866
  %v9868 = vpop.f32.mrf.mxu0
  %9869 = vmatprep.mubr.bf16.mxu0 %v456
  %9870 = vmatmul.mubr.bf16.gmra.mxu0 %v455
  %v9871 = vpop.f32.mrf.mxu0
  %v9872 = vadd.f32 0.0, %v9871
  %v9873 = vpop.f32.mrf.mxu0
  %v9874 = vpop.f32.mrf.mxu0
  %v9875 = vadd.f32 0.0, %v9874
  %v9876 = vpop.f32.mrf.mxu0
  %9877 = vmatprep.mubr.bf16.mxu0 %v458
  %9878 = vmatmul.mubr.bf16.gmra.mxu0 %v457
  %v9879 = vpop.f32.mrf.mxu0
  %v9880 = vadd.f32 0.0, %v9879
  %v9881 = vpop.f32.mrf.mxu0
  %v9882 = vpop.f32.mrf.mxu0
  %v9883 = vadd.f32 0.0, %v9882
  %v9884 = vpop.f32.mrf.mxu0
  %9885 = vmatprep.mubr.bf16.mxu0 %v460
  %9886 = vmatmul.mubr.bf16.gmra.mxu0 %v459
  %v9887 = vpop.f32.mrf.mxu0
  %v9888 = vadd.f32 0.0, %v9887
  %v9889 = vpop.f32.mrf.mxu0
  %v9890 = vpop.f32.mrf.mxu0
  %v9891 = vadd.f32 0.0, %v9890
  %v9892 = vpop.f32.mrf.mxu0
  %9893 = vmatprep.mubr.bf16.mxu0 %v462
  %9894 = vmatmul.mubr.bf16.gmra.mxu0 %v461
  %v9895 = vpop.f32.mrf.mxu0
  %v9896 = vadd.f32 0.0, %v9895
  %v9897 = vpop.f32.mrf.mxu0
  %v9898 = vpop.f32.mrf.mxu0
  %v9899 = vadd.f32 0.0, %v9898
  %v9900 = vpop.f32.mrf.mxu0
  %9901 = vmatprep.mubr.bf16.mxu0 %v464
  %9902 = vmatmul.mubr.bf16.gmra.mxu0 %v463
  %v9903 = vpop.f32.mrf.mxu0
  %v9904 = vadd.f32 0.0, %v9903
  %v9905 = vpop.f32.mrf.mxu0
  %v9906 = vpop.f32.mrf.mxu0
  %v9907 = vadd.f32 0.0, %v9906
  %v9908 = vpop.f32.mrf.mxu0
  %9909 = vdwg.mxu0
  %v9910 = vpack.c.bf16 %v9787, %v9784
  %v9911 = vpack.c.bf16 %v9795, %v9792
  %v9912 = vpack.c.bf16 %v9803, %v9800
  %v9913 = vpack.c.bf16 %v9811, %v9808
  %v9914 = vpack.c.bf16 %v9819, %v9816
  %v9915 = vpack.c.bf16 %v9827, %v9824
  %v9916 = vpack.c.bf16 %v9835, %v9832
  %v9917 = vpack.c.bf16 %v9843, %v9840
  %v9918 = vpack.c.bf16 %v9851, %v9848
  %v9919 = vpack.c.bf16 %v9859, %v9856
  %v9920 = vpack.c.bf16 %v9867, %v9864
  %v9921 = vpack.c.bf16 %v9875, %v9872
  %v9922 = vpack.c.bf16 %v9883, %v9880
  %v9923 = vpack.c.bf16 %v9891, %v9888
  %v9924 = vpack.c.bf16 %v9899, %v9896
  %v9925 = vpack.c.bf16 %v9907, %v9904
  %9926 = vmatprep.subr.bf16.mxu0 0
  %9927 = vmatpush1.bf16.msra.mxu0 %v9917
  %9928 = vmatprep.subr.bf16.mxu0 0
  %9929 = vmatpush1.bf16.msra.mxu0 %v9916
  %9930 = vmatprep.subr.bf16.mxu0 0
  %9931 = vmatpush1.bf16.msra.mxu0 %v9915
  %9932 = vmatprep.subr.bf16.mxu0 0
  %9933 = vmatpush1.bf16.msra.mxu0 %v9914
  %9934 = vmatprep.subr.bf16.mxu0 0
  %9935 = vmatpush1.bf16.msra.mxu0 %v9913
  %9936 = vmatprep.subr.bf16.mxu0 0
  %9937 = vmatpush1.bf16.msra.mxu0 %v9912
  %9938 = vmatprep.subr.bf16.mxu0 0
  %9939 = vmatpush1.bf16.msra.mxu0 %v9911
  %9940 = vmatprep.subr.bf16.mxu0 0
  %9941 = vmatpush1.bf16.msra.mxu0 %v9910
  %9942 = vmatprep.subr.bf16.mxu0 0
  %9943 = vmatpush2.bf16.msra.mxu0 %v9925
  %9944 = vmatprep.subr.bf16.mxu0 0
  %9945 = vmatpush2.bf16.msra.mxu0 %v9924
  %9946 = vmatprep.subr.bf16.mxu0 0
  %9947 = vmatpush2.bf16.msra.mxu0 %v9923
  %9948 = vmatprep.subr.bf16.mxu0 0
  %9949 = vmatpush2.bf16.msra.mxu0 %v9922
  %9950 = vmatprep.subr.bf16.mxu0 0
  %9951 = vmatpush2.bf16.msra.mxu0 %v9921
  %9952 = vmatprep.subr.bf16.mxu0 0
  %9953 = vmatpush2.bf16.msra.mxu0 %v9920
  %9954 = vmatprep.subr.bf16.mxu0 0
  %9955 = vmatpush2.bf16.msra.mxu0 %v9919
  %9956 = vmatprep.subr.bf16.mxu0 0
  %9957 = vmatpush2.bf16.msra.mxu0 %v9918
  %9958 = vmatprep.mubr.bf16.mxu0 %v771
  %9959 = vmatmul.mubr.bf16.gmra.mxu0 %v770
  %v9960 = vpop.f32.mrf.mxu0
  %v9961 = vadd.f32 0.0, %v9960
  %v9962 = vpop.f32.mrf.mxu0
  %v9963 = vpop.f32.mrf.mxu0
  %v9964 = vadd.f32 0.0, %v9963
  %v9965 = vpop.f32.mrf.mxu0
  %9966 = vmatprep.mubr.bf16.mxu0 %v773
  %9967 = vmatmul.mubr.bf16.gmra.mxu0 %v772
  %v9968 = vpop.f32.mrf.mxu0
  %v9969 = vadd.f32 0.0, %v9968
  %v9970 = vpop.f32.mrf.mxu0
  %v9971 = vpop.f32.mrf.mxu0
  %v9972 = vadd.f32 0.0, %v9971
  %v9973 = vpop.f32.mrf.mxu0
  %9974 = vmatprep.mubr.bf16.mxu0 %v775
  %9975 = vmatmul.mubr.bf16.gmra.mxu0 %v774
  %v9976 = vpop.f32.mrf.mxu0
  %v9977 = vadd.f32 0.0, %v9976
  %v9978 = vpop.f32.mrf.mxu0
  %v9979 = vpop.f32.mrf.mxu0
  %v9980 = vadd.f32 0.0, %v9979
  %v9981 = vpop.f32.mrf.mxu0
  %9982 = vmatprep.mubr.bf16.mxu0 %v777
  %9983 = vmatmul.mubr.bf16.gmra.mxu0 %v776
  %v9984 = vpop.f32.mrf.mxu0
  %v9985 = vadd.f32 0.0, %v9984
  %v9986 = vpop.f32.mrf.mxu0
  %v9987 = vpop.f32.mrf.mxu0
  %v9988 = vadd.f32 0.0, %v9987
  %v9989 = vpop.f32.mrf.mxu0
  %9990 = vmatprep.mubr.bf16.mxu0 %v779
  %9991 = vmatmul.mubr.bf16.gmra.mxu0 %v778
  %v9992 = vpop.f32.mrf.mxu0
  %v9993 = vadd.f32 0.0, %v9992
  %v9994 = vpop.f32.mrf.mxu0
  %v9995 = vpop.f32.mrf.mxu0
  %v9996 = vadd.f32 0.0, %v9995
  %v9997 = vpop.f32.mrf.mxu0
  %9998 = vmatprep.mubr.bf16.mxu0 %v781
  %9999 = vmatmul.mubr.bf16.gmra.mxu0 %v780
  %v10000 = vpop.f32.mrf.mxu0
  %v10001 = vadd.f32 0.0, %v10000
  %v10002 = vpop.f32.mrf.mxu0
  %v10003 = vpop.f32.mrf.mxu0
  %v10004 = vadd.f32 0.0, %v10003
  %v10005 = vpop.f32.mrf.mxu0
  %10006 = vmatprep.mubr.bf16.mxu0 %v783
  %10007 = vmatmul.mubr.bf16.gmra.mxu0 %v782
  %v10008 = vpop.f32.mrf.mxu0
  %v10009 = vadd.f32 0.0, %v10008
  %v10010 = vpop.f32.mrf.mxu0
  %v10011 = vpop.f32.mrf.mxu0
  %v10012 = vadd.f32 0.0, %v10011
  %v10013 = vpop.f32.mrf.mxu0
  %10014 = vmatprep.mubr.bf16.mxu0 %v785
  %10015 = vmatmul.mubr.bf16.gmra.mxu0 %v784
  %v10016 = vpop.f32.mrf.mxu0
  %v10017 = vadd.f32 0.0, %v10016
  %v10018 = vpop.f32.mrf.mxu0
  %v10019 = vpop.f32.mrf.mxu0
  %v10020 = vadd.f32 0.0, %v10019
  %v10021 = vpop.f32.mrf.mxu0
  %10022 = vmatprep.mubr.bf16.mxu0 %v787
  %10023 = vmatmul.mubr.bf16.gmra.mxu0 %v786
  %v10024 = vpop.f32.mrf.mxu0
  %v10025 = vadd.f32 0.0, %v10024
  %v10026 = vpop.f32.mrf.mxu0
  %v10027 = vpop.f32.mrf.mxu0
  %v10028 = vadd.f32 0.0, %v10027
  %v10029 = vpop.f32.mrf.mxu0
  %10030 = vmatprep.mubr.bf16.mxu0 %v789
  %10031 = vmatmul.mubr.bf16.gmra.mxu0 %v788
  %v10032 = vpop.f32.mrf.mxu0
  %v10033 = vadd.f32 0.0, %v10032
  %v10034 = vpop.f32.mrf.mxu0
  %v10035 = vpop.f32.mrf.mxu0
  %v10036 = vadd.f32 0.0, %v10035
  %v10037 = vpop.f32.mrf.mxu0
  %10038 = vmatprep.mubr.bf16.mxu0 %v791
  %10039 = vmatmul.mubr.bf16.gmra.mxu0 %v790
  %v10040 = vpop.f32.mrf.mxu0
  %v10041 = vadd.f32 0.0, %v10040
  %v10042 = vpop.f32.mrf.mxu0
  %v10043 = vpop.f32.mrf.mxu0
  %v10044 = vadd.f32 0.0, %v10043
  %v10045 = vpop.f32.mrf.mxu0
  %10046 = vmatprep.mubr.bf16.mxu0 %v793
  %10047 = vmatmul.mubr.bf16.gmra.mxu0 %v792
  %v10048 = vpop.f32.mrf.mxu0
  %v10049 = vadd.f32 0.0, %v10048
  %v10050 = vpop.f32.mrf.mxu0
  %v10051 = vpop.f32.mrf.mxu0
  %v10052 = vadd.f32 0.0, %v10051
  %v10053 = vpop.f32.mrf.mxu0
  %10054 = vmatprep.mubr.bf16.mxu0 %v795
  %10055 = vmatmul.mubr.bf16.gmra.mxu0 %v794
  %v10056 = vpop.f32.mrf.mxu0
  %v10057 = vadd.f32 0.0, %v10056
  %v10058 = vpop.f32.mrf.mxu0
  %v10059 = vpop.f32.mrf.mxu0
  %v10060 = vadd.f32 0.0, %v10059
  %v10061 = vpop.f32.mrf.mxu0
  %10062 = vmatprep.mubr.bf16.mxu0 %v797
  %10063 = vmatmul.mubr.bf16.gmra.mxu0 %v796
  %v10064 = vpop.f32.mrf.mxu0
  %v10065 = vadd.f32 0.0, %v10064
  %v10066 = vpop.f32.mrf.mxu0
  %v10067 = vpop.f32.mrf.mxu0
  %v10068 = vadd.f32 0.0, %v10067
  %v10069 = vpop.f32.mrf.mxu0
  %10070 = vmatprep.mubr.bf16.mxu0 %v799
  %10071 = vmatmul.mubr.bf16.gmra.mxu0 %v798
  %v10072 = vpop.f32.mrf.mxu0
  %v10073 = vadd.f32 0.0, %v10072
  %v10074 = vpop.f32.mrf.mxu0
  %v10075 = vpop.f32.mrf.mxu0
  %v10076 = vadd.f32 0.0, %v10075
  %v10077 = vpop.f32.mrf.mxu0
  %10078 = vmatprep.mubr.bf16.mxu0 %v801
  %10079 = vmatmul.mubr.bf16.gmra.mxu0 %v800
  %v10080 = vpop.f32.mrf.mxu0
  %v10081 = vadd.f32 0.0, %v10080
  %v10082 = vpop.f32.mrf.mxu0
  %v10083 = vpop.f32.mrf.mxu0
  %v10084 = vadd.f32 0.0, %v10083
  %v10085 = vpop.f32.mrf.mxu0
  %10086 = vdwg.mxu0
  %v10087 = vunpack.c.l.bf16 %v9733
  %v10088 = vunpack.c.h.bf16 %v9733
  %v10089 = vunpack.c.l.bf16 %v9734
  %v10090 = vunpack.c.h.bf16 %v9734
  %v10091 = vunpack.c.l.bf16 %v9735
  %v10092 = vunpack.c.h.bf16 %v9735
  %v10093 = vunpack.c.l.bf16 %v9736
  %v10094 = vunpack.c.h.bf16 %v9736
  %v10095 = vunpack.c.l.bf16 %v9737
  %v10096 = vunpack.c.h.bf16 %v9737
  %v10097 = vunpack.c.l.bf16 %v9738
  %v10098 = vunpack.c.h.bf16 %v9738
  %v10099 = vunpack.c.l.bf16 %v9739
  %v10100 = vunpack.c.h.bf16 %v9739
  %v10101 = vunpack.c.l.bf16 %v9740
  %v10102 = vunpack.c.h.bf16 %v9740
  %v10103 = vunpack.c.l.bf16 %v9741
  %v10104 = vunpack.c.h.bf16 %v9741
  %v10105 = vunpack.c.l.bf16 %v9742
  %v10106 = vunpack.c.h.bf16 %v9742
  %v10107 = vunpack.c.l.bf16 %v9743
  %v10108 = vunpack.c.h.bf16 %v9743
  %v10109 = vunpack.c.l.bf16 %v9744
  %v10110 = vunpack.c.h.bf16 %v9744
  %v10111 = vunpack.c.l.bf16 %v9745
  %v10112 = vunpack.c.h.bf16 %v9745
  %v10113 = vunpack.c.l.bf16 %v9746
  %v10114 = vunpack.c.h.bf16 %v9746
  %v10115 = vunpack.c.l.bf16 %v9747
  %v10116 = vunpack.c.h.bf16 %v9747
  %v10117 = vunpack.c.l.bf16 %v9748
  %v10118 = vunpack.c.h.bf16 %v9748
  %v10119 = vsub.f32 %v9961, %v10087
  %v10120 = vsub.f32 %v9964, %v10088
  %v10121 = vsub.f32 %v9969, %v10089
  %v10122 = vsub.f32 %v9972, %v10090
  %v10123 = vsub.f32 %v9977, %v10091
  %v10124 = vsub.f32 %v9980, %v10092
  %v10125 = vsub.f32 %v9985, %v10093
  %v10126 = vsub.f32 %v9988, %v10094
  %v10127 = vsub.f32 %v9993, %v10095
  %v10128 = vsub.f32 %v9996, %v10096
  %v10129 = vsub.f32 %v10001, %v10097
  %v10130 = vsub.f32 %v10004, %v10098
  %v10131 = vsub.f32 %v10009, %v10099
  %v10132 = vsub.f32 %v10012, %v10100
  %v10133 = vsub.f32 %v10017, %v10101
  %v10134 = vsub.f32 %v10020, %v10102
  %v10135 = vsub.f32 %v10025, %v10103
  %v10136 = vsub.f32 %v10028, %v10104
  %v10137 = vsub.f32 %v10033, %v10105
  %v10138 = vsub.f32 %v10036, %v10106
  %v10139 = vsub.f32 %v10041, %v10107
  %v10140 = vsub.f32 %v10044, %v10108
  %v10141 = vsub.f32 %v10049, %v10109
  %v10142 = vsub.f32 %v10052, %v10110
  %v10143 = vsub.f32 %v10057, %v10111
  %v10144 = vsub.f32 %v10060, %v10112
  %v10145 = vsub.f32 %v10065, %v10113
  %v10146 = vsub.f32 %v10068, %v10114
  %v10147 = vsub.f32 %v10073, %v10115
  %v10148 = vsub.f32 %v10076, %v10116
  %v10149 = vsub.f32 %v10081, %v10117
  %v10150 = vsub.f32 %v10084, %v10118
  %v10151 = vpack.c.bf16 %v10120, %v10119
  %v10152 = vpack.c.bf16 %v10122, %v10121
  %v10153 = vpack.c.bf16 %v10124, %v10123
  %v10154 = vpack.c.bf16 %v10126, %v10125
  %v10155 = vpack.c.bf16 %v10128, %v10127
  %v10156 = vpack.c.bf16 %v10130, %v10129
  %v10157 = vpack.c.bf16 %v10132, %v10131
  %v10158 = vpack.c.bf16 %v10134, %v10133
  %v10159 = vpack.c.bf16 %v10136, %v10135
  %v10160 = vpack.c.bf16 %v10138, %v10137
  %v10161 = vpack.c.bf16 %v10140, %v10139
  %v10162 = vpack.c.bf16 %v10142, %v10141
  %v10163 = vpack.c.bf16 %v10144, %v10143
  %v10164 = vpack.c.bf16 %v10146, %v10145
  %v10165 = vpack.c.bf16 %v10148, %v10147
  %v10166 = vpack.c.bf16 %v10150, %v10149
  %10183 = vrot.lane.b32.xlu0 %v9910, 8
  %v10184 = vpop.permute.xlu0 %10183
  %10185 = vrot.lane.b32.xlu0 %v9911, 8
  %v10186 = vpop.permute.xlu0 %10185
  %10187 = vrot.lane.b32.xlu0 %v9912, 8
  %v10188 = vpop.permute.xlu0 %10187
  %10189 = vrot.lane.b32.xlu0 %v9913, 8
  %v10190 = vpop.permute.xlu0 %10189
  %10191 = vrot.lane.b32.xlu0 %v9914, 8
  %v10192 = vpop.permute.xlu0 %10191
  %10193 = vrot.lane.b32.xlu0 %v9915, 8
  %v10194 = vpop.permute.xlu0 %10193
  %10195 = vrot.lane.b32.xlu0 %v9916, 8
  %v10196 = vpop.permute.xlu0 %10195
  %10197 = vrot.lane.b32.xlu0 %v9917, 8
  %v10198 = vpop.permute.xlu0 %10197
  %10199 = vrot.lane.b32.xlu0 %v9918, 8
  %v10200 = vpop.permute.xlu0 %10199
  %10201 = vrot.lane.b32.xlu0 %v9919, 8
  %v10202 = vpop.permute.xlu0 %10201
  %10203 = vrot.lane.b32.xlu0 %v9920, 8
  %v10204 = vpop.permute.xlu0 %10203
  %10205 = vrot.lane.b32.xlu0 %v9921, 8
  %v10206 = vpop.permute.xlu0 %10205
  %10207 = vrot.lane.b32.xlu0 %v9922, 8
  %v10208 = vpop.permute.xlu0 %10207
  %10209 = vrot.lane.b32.xlu0 %v9923, 8
  %v10210 = vpop.permute.xlu0 %10209
  %10211 = vrot.lane.b32.xlu0 %v9924, 8
  %v10212 = vpop.permute.xlu0 %10211
  %10213 = vrot.lane.b32.xlu0 %v9925, 8
  %v10214 = vpop.permute.xlu0 %10213
  %10231 = vrot.lane.b32.xlu0 %v10151, 16
  %v10232 = vpop.permute.xlu0 %10231
  %10233 = vrot.lane.b32.xlu0 %v10152, 16
  %v10234 = vpop.permute.xlu0 %10233
  %10235 = vrot.lane.b32.xlu0 %v10153, 16
  %v10236 = vpop.permute.xlu0 %10235
  %10237 = vrot.lane.b32.xlu0 %v10154, 16
  %v10238 = vpop.permute.xlu0 %10237
  %10239 = vrot.lane.b32.xlu0 %v10155, 16
  %v10240 = vpop.permute.xlu0 %10239
  %10241 = vrot.lane.b32.xlu0 %v10156, 16
  %v10242 = vpop.permute.xlu0 %10241
  %10243 = vrot.lane.b32.xlu0 %v10157, 16
  %v10244 = vpop.permute.xlu0 %10243
  %10245 = vrot.lane.b32.xlu0 %v10158, 16
  %v10246 = vpop.permute.xlu0 %10245
  %10247 = vrot.lane.b32.xlu0 %v10159, 16
  %v10248 = vpop.permute.xlu0 %10247
  %10249 = vrot.lane.b32.xlu0 %v10160, 16
  %v10250 = vpop.permute.xlu0 %10249
  %10251 = vrot.lane.b32.xlu0 %v10161, 16
  %v10252 = vpop.permute.xlu0 %10251
  %10253 = vrot.lane.b32.xlu0 %v10162, 16
  %v10254 = vpop.permute.xlu0 %10253
  %10255 = vrot.lane.b32.xlu0 %v10163, 16
  %v10256 = vpop.permute.xlu0 %10255
  %10257 = vrot.lane.b32.xlu0 %v10164, 16
  %v10258 = vpop.permute.xlu0 %10257
  %10259 = vrot.lane.b32.xlu0 %v10165, 16
  %v10260 = vpop.permute.xlu0 %10259
  %10261 = vrot.lane.b32.xlu0 %v10166, 16
  %v10262 = vpop.permute.xlu0 %10261
  %v10265 = vsel %vm1171, %v9733, %v10184
  %v10268 = vsel %vm1171, %v9734, %v10186
  %v10271 = vsel %vm1171, %v9735, %v10188
  %v10274 = vsel %vm1171, %v9736, %v10190
  %v10277 = vsel %vm1171, %v9737, %v10192
  %v10280 = vsel %vm1171, %v9738, %v10194
  %v10283 = vsel %vm1171, %v9739, %v10196
  %v10286 = vsel %vm1171, %v9740, %v10198
  %v10289 = vsel %vm1171, %v9741, %v10200
  %v10292 = vsel %vm1171, %v9742, %v10202
  %v10295 = vsel %vm1171, %v9743, %v10204
  %v10298 = vsel %vm1171, %v9744, %v10206
  %v10301 = vsel %vm1171, %v9745, %v10208
  %v10304 = vsel %vm1171, %v9746, %v10210
  %v10307 = vsel %vm1171, %v9747, %v10212
  %v10310 = vsel %vm1171, %v9748, %v10214
  %v10312 = vsel %vm1220, %v10265, %v10232
  %v10314 = vsel %vm1220, %v10268, %v10234
  %v10316 = vsel %vm1220, %v10271, %v10236
  %v10318 = vsel %vm1220, %v10274, %v10238
  %v10320 = vsel %vm1220, %v10277, %v10240
  %v10322 = vsel %vm1220, %v10280, %v10242
  %v10324 = vsel %vm1220, %v10283, %v10244
  %v10326 = vsel %vm1220, %v10286, %v10246
  %v10328 = vsel %vm1220, %v10289, %v10248
  %v10330 = vsel %vm1220, %v10292, %v10250
  %v10332 = vsel %vm1220, %v10295, %v10252
  %v10334 = vsel %vm1220, %v10298, %v10254
  %v10336 = vsel %vm1220, %v10301, %v10256
  %v10338 = vsel %vm1220, %v10304, %v10258
  %v10340 = vsel %vm1220, %v10307, %v10260
  %v10342 = vsel %vm1220, %v10310, %v10262
  %v10343 = vld [vmem:[%s47] sm:$0xf]
  %v10344 = vld [vmem:[%s47 + $0x4] sm:$0xf]
  %v10345 = vld [vmem:[%s47 + $0x8] sm:$0xf]
  %v10346 = vld [vmem:[%s73] sm:$0x1]
  %v10347 = vlaneseq
  %v10348 = vshrl.u32 %v10347, 7
  %v10349 = vsub.s32 0, %v10348
  %v10350 = vrot.slane %v10346, %v10349
  %v10354 = vunpack.c.l.b16 %v10343
  %v10355 = vunpack.c.l.b16 %v10344
  %v10356 = vunpack.c.l.b16 %v10345
  %v10357 = vpack.c.b16 %v10355, %v10354
  %v10358 = vpack.c.b16 %v10356, %v10356
  %v10360 = vsel %vm1270, %v10312, 0
  %v10362 = vsel %vm1270, %v10314, 0
  %v10364 = vsel %vm1270, %v10316, 0
  %v10366 = vsel %vm1270, %v10318, 0
  %v10368 = vsel %vm1270, %v10320, 0
  %v10370 = vsel %vm1270, %v10322, 0
  %v10372 = vsel %vm1270, %v10324, 0
  %v10374 = vsel %vm1270, %v10326, 0
  %v10376 = vsel %vm1270, %v10328, 0
  %v10378 = vsel %vm1270, %v10330, 0
  %v10380 = vsel %vm1270, %v10332, 0
  %v10382 = vsel %vm1270, %v10334, 0
  %v10384 = vsel %vm1270, %v10336, 0
  %v10386 = vsel %vm1270, %v10338, 0
  %v10388 = vsel %vm1270, %v10340, 0
  %v10390 = vsel %vm1270, %v10342, 0
  %v10393 = vsel %vm1303, %v10358, 0
  %10395 = vmatprep.subr.bf16.mxu0 0
  %10396 = vmatpush1.bf16.msra.mxu0 0
  %10397 = vmatprep.subr.bf16.mxu0 0
  %10398 = vmatpush1.bf16.msra.mxu0 0
  %10399 = vmatprep.subr.bf16.mxu0 0
  %10400 = vmatpush1.bf16.msra.mxu0 0
  %10401 = vmatprep.subr.bf16.mxu0 0
  %10402 = vmatpush1.bf16.msra.mxu0 0
  %10403 = vmatprep.subr.bf16.mxu0 0
  %10404 = vmatpush1.bf16.msra.mxu0 0
  %10405 = vmatprep.subr.bf16.mxu0 0
  %10406 = vmatpush1.bf16.msra.mxu0 0
  %10407 = vmatprep.subr.bf16.mxu0 0
  %10408 = vmatpush1.bf16.msra.mxu0 %v10393
  %10409 = vmatprep.subr.bf16.mxu0 0
  %10410 = vmatpush1.bf16.msra.mxu0 %v10357
  %10411 = vmatprep.subr.bf16.mxu0 0
  %10412 = vmatpush2.bf16.msra.mxu0 0
  %10413 = vmatprep.subr.bf16.mxu0 0
  %10414 = vmatpush2.bf16.msra.mxu0 0
  %10415 = vmatprep.subr.bf16.mxu0 0
  %10416 = vmatpush2.bf16.msra.mxu0 0
  %10417 = vmatprep.subr.bf16.mxu0 0
  %10418 = vmatpush2.bf16.msra.mxu0 0
  %10419 = vmatprep.subr.bf16.mxu0 0
  %10420 = vmatpush2.bf16.msra.mxu0 0
  %10421 = vmatprep.subr.bf16.mxu0 0
  %10422 = vmatpush2.bf16.msra.mxu0 0
  %10423 = vmatprep.subr.bf16.mxu0 0
  %10424 = vmatpush2.bf16.msra.mxu0 0
  %10425 = vmatprep.subr.bf16.mxu0 0
  %10426 = vmatpush2.bf16.msra.mxu0 0
  %10427 = vmatprep.mubr.bf16.mxu0 0
  %10428 = vmatmul.mubr.bf16.gmra.mxu0 %v10360
  %v10429 = vpop.f32.mrf.mxu0
  %v10430 = vadd.f32 %v10350, %v10429
  %v10431 = vpop.f32.mrf.mxu0
  %v10432 = vpop.f32.mrf.mxu0
  %v10433 = vadd.f32 %v10350, %v10432
  %v10434 = vpop.f32.mrf.mxu0
  %10435 = vmatprep.mubr.bf16.mxu0 0
  %10436 = vmatmul.mubr.bf16.gmra.mxu0 %v10362
  %v10437 = vpop.f32.mrf.mxu0
  %v10438 = vadd.f32 %v10350, %v10437
  %v10439 = vpop.f32.mrf.mxu0
  %v10440 = vpop.f32.mrf.mxu0
  %v10441 = vadd.f32 %v10350, %v10440
  %v10442 = vpop.f32.mrf.mxu0
  %10443 = vmatprep.mubr.bf16.mxu0 0
  %10444 = vmatmul.mubr.bf16.gmra.mxu0 %v10364
  %v10445 = vpop.f32.mrf.mxu0
  %v10446 = vadd.f32 %v10350, %v10445
  %v10447 = vpop.f32.mrf.mxu0
  %v10448 = vpop.f32.mrf.mxu0
  %v10449 = vadd.f32 %v10350, %v10448
  %v10450 = vpop.f32.mrf.mxu0
  %10451 = vmatprep.mubr.bf16.mxu0 0
  %10452 = vmatmul.mubr.bf16.gmra.mxu0 %v10366
  %v10453 = vpop.f32.mrf.mxu0
  %v10454 = vadd.f32 %v10350, %v10453
  %v10455 = vpop.f32.mrf.mxu0
  %v10456 = vpop.f32.mrf.mxu0
  %v10457 = vadd.f32 %v10350, %v10456
  %v10458 = vpop.f32.mrf.mxu0
  %10459 = vmatprep.mubr.bf16.mxu0 0
  %10460 = vmatmul.mubr.bf16.gmra.mxu0 %v10368
  %v10461 = vpop.f32.mrf.mxu0
  %v10462 = vadd.f32 %v10350, %v10461
  %v10463 = vpop.f32.mrf.mxu0
  %v10464 = vpop.f32.mrf.mxu0
  %v10465 = vadd.f32 %v10350, %v10464
  %v10466 = vpop.f32.mrf.mxu0
  %10467 = vmatprep.mubr.bf16.mxu0 0
  %10468 = vmatmul.mubr.bf16.gmra.mxu0 %v10370
  %v10469 = vpop.f32.mrf.mxu0
  %v10470 = vadd.f32 %v10350, %v10469
  %v10471 = vpop.f32.mrf.mxu0
  %v10472 = vpop.f32.mrf.mxu0
  %v10473 = vadd.f32 %v10350, %v10472
  %v10474 = vpop.f32.mrf.mxu0
  %10475 = vmatprep.mubr.bf16.mxu0 0
  %10476 = vmatmul.mubr.bf16.gmra.mxu0 %v10372
  %v10477 = vpop.f32.mrf.mxu0
  %v10478 = vadd.f32 %v10350, %v10477
  %v10479 = vpop.f32.mrf.mxu0
  %v10480 = vpop.f32.mrf.mxu0
  %v10481 = vadd.f32 %v10350, %v10480
  %v10482 = vpop.f32.mrf.mxu0
  %10483 = vmatprep.mubr.bf16.mxu0 0
  %10484 = vmatmul.mubr.bf16.gmra.mxu0 %v10374
  %v10485 = vpop.f32.mrf.mxu0
  %v10486 = vadd.f32 %v10350, %v10485
  %v10487 = vpop.f32.mrf.mxu0
  %v10488 = vpop.f32.mrf.mxu0
  %v10489 = vadd.f32 %v10350, %v10488
  %v10490 = vpop.f32.mrf.mxu0
  %10491 = vmatprep.mubr.bf16.mxu0 0
  %10492 = vmatmul.mubr.bf16.gmra.mxu0 %v10376
  %v10493 = vpop.f32.mrf.mxu0
  %v10494 = vadd.f32 %v10350, %v10493
  %v10495 = vpop.f32.mrf.mxu0
  %v10496 = vpop.f32.mrf.mxu0
  %v10497 = vadd.f32 %v10350, %v10496
  %v10498 = vpop.f32.mrf.mxu0
  %10499 = vmatprep.mubr.bf16.mxu0 0
  %10500 = vmatmul.mubr.bf16.gmra.mxu0 %v10378
  %v10501 = vpop.f32.mrf.mxu0
  %v10502 = vadd.f32 %v10350, %v10501
  %v10503 = vpop.f32.mrf.mxu0
  %v10504 = vpop.f32.mrf.mxu0
  %v10505 = vadd.f32 %v10350, %v10504
  %v10506 = vpop.f32.mrf.mxu0
  %10507 = vmatprep.mubr.bf16.mxu0 0
  %10508 = vmatmul.mubr.bf16.gmra.mxu0 %v10380
  %v10509 = vpop.f32.mrf.mxu0
  %v10510 = vadd.f32 %v10350, %v10509
  %v10511 = vpop.f32.mrf.mxu0
  %v10512 = vpop.f32.mrf.mxu0
  %v10513 = vadd.f32 %v10350, %v10512
  %v10514 = vpop.f32.mrf.mxu0
  %10515 = vmatprep.mubr.bf16.mxu0 0
  %10516 = vmatmul.mubr.bf16.gmra.mxu0 %v10382
  %v10517 = vpop.f32.mrf.mxu0
  %v10518 = vadd.f32 %v10350, %v10517
  %v10519 = vpop.f32.mrf.mxu0
  %v10520 = vpop.f32.mrf.mxu0
  %v10521 = vadd.f32 %v10350, %v10520
  %v10522 = vpop.f32.mrf.mxu0
  %10523 = vmatprep.mubr.bf16.mxu0 0
  %10524 = vmatmul.mubr.bf16.gmra.mxu0 %v10384
  %v10525 = vpop.f32.mrf.mxu0
  %v10526 = vadd.f32 %v10350, %v10525
  %v10527 = vpop.f32.mrf.mxu0
  %v10528 = vpop.f32.mrf.mxu0
  %v10529 = vadd.f32 %v10350, %v10528
  %v10530 = vpop.f32.mrf.mxu0
  %10531 = vmatprep.mubr.bf16.mxu0 0
  %10532 = vmatmul.mubr.bf16.gmra.mxu0 %v10386
  %v10533 = vpop.f32.mrf.mxu0
  %v10534 = vadd.f32 %v10350, %v10533
  %v10535 = vpop.f32.mrf.mxu0
  %v10536 = vpop.f32.mrf.mxu0
  %v10537 = vadd.f32 %v10350, %v10536
  %v10538 = vpop.f32.mrf.mxu0
  %10539 = vmatprep.mubr.bf16.mxu0 0
  %10540 = vmatmul.mubr.bf16.gmra.mxu0 %v10388
  %v10541 = vpop.f32.mrf.mxu0
  %v10542 = vadd.f32 %v10350, %v10541
  %v10543 = vpop.f32.mrf.mxu0
  %v10544 = vpop.f32.mrf.mxu0
  %v10545 = vadd.f32 %v10350, %v10544
  %v10546 = vpop.f32.mrf.mxu0
  %10547 = vmatprep.mubr.bf16.mxu0 0
  %10548 = vmatmul.mubr.bf16.gmra.mxu0 %v10390
  %v10549 = vpop.f32.mrf.mxu0
  %v10550 = vadd.f32 %v10350, %v10549
  %v10551 = vpop.f32.mrf.mxu0
  %v10552 = vpop.f32.mrf.mxu0
  %v10553 = vadd.f32 %v10350, %v10552
  %v10554 = vpop.f32.mrf.mxu0
  %10555 = vdwg.mxu0
  %10556 = vst.msk [vmem:[%s75] sm:$0xff] %vm1171, %v10430
  %10557 = vst.msk [vmem:[%s75 + $0x8] sm:$0xff] %vm1171, %v10433
  %10558 = vst.msk [vmem:[%s75 + $0x10] sm:$0xff] %vm1171, %v10438
  %10559 = vst.msk [vmem:[%s75 + $0x18] sm:$0xff] %vm1171, %v10441
  %10560 = vst.msk [vmem:[%s75 + $0x20] sm:$0xff] %vm1171, %v10446
  %10561 = vst.msk [vmem:[%s75 + $0x28] sm:$0xff] %vm1171, %v10449
  %10562 = vst.msk [vmem:[%s75 + $0x30] sm:$0xff] %vm1171, %v10454
  %10563 = vst.msk [vmem:[%s75 + $0x38] sm:$0xff] %vm1171, %v10457
  %10564 = vst.msk [vmem:[%s75 + $0x40] sm:$0xff] %vm1171, %v10462
  %10565 = vst.msk [vmem:[%s75 + $0x48] sm:$0xff] %vm1171, %v10465
  %10566 = vst.msk [vmem:[%s75 + $0x50] sm:$0xff] %vm1171, %v10470
  %10567 = vst.msk [vmem:[%s75 + $0x58] sm:$0xff] %vm1171, %v10473
  %10568 = vst.msk [vmem:[%s75 + $0x60] sm:$0xff] %vm1171, %v10478
  %10569 = vst.msk [vmem:[%s75 + $0x68] sm:$0xff] %vm1171, %v10481
  %10570 = vst.msk [vmem:[%s75 + $0x70] sm:$0xff] %vm1171, %v10486
  %10571 = vst.msk [vmem:[%s75 + $0x78] sm:$0xff] %vm1171, %v10489
  %10572 = vst.msk [vmem:[%s75 + $0x80] sm:$0xff] %vm1171, %v10494
  %10573 = vst.msk [vmem:[%s75 + $0x88] sm:$0xff] %vm1171, %v10497
  %10574 = vst.msk [vmem:[%s75 + $0x90] sm:$0xff] %vm1171, %v10502
  %10575 = vst.msk [vmem:[%s75 + $0x98] sm:$0xff] %vm1171, %v10505
  %10576 = vst.msk [vmem:[%s75 + $0xa0] sm:$0xff] %vm1171, %v10510
  %10577 = vst.msk [vmem:[%s75 + $0xa8] sm:$0xff] %vm1171, %v10513
  %10578 = vst.msk [vmem:[%s75 + $0xb0] sm:$0xff] %vm1171, %v10518
  %10579 = vst.msk [vmem:[%s75 + $0xb8] sm:$0xff] %vm1171, %v10521
  %10580 = vst.msk [vmem:[%s75 + $0xc0] sm:$0xff] %vm1171, %v10526
  %10581 = vst.msk [vmem:[%s75 + $0xc8] sm:$0xff] %vm1171, %v10529
  %10582 = vst.msk [vmem:[%s75 + $0xd0] sm:$0xff] %vm1171, %v10534
  %10583 = vst.msk [vmem:[%s75 + $0xd8] sm:$0xff] %vm1171, %v10537
  %10584 = vst.msk [vmem:[%s75 + $0xe0] sm:$0xff] %vm1171, %v10542
  %10585 = vst.msk [vmem:[%s75 + $0xe8] sm:$0xff] %vm1171, %v10545
  %10586 = vst.msk [vmem:[%s75 + $0xf0] sm:$0xff] %vm1171, %v10550
  %10587 = vst.msk [vmem:[%s75 + $0xf8] sm:$0xff] %vm1171, %v10553
  // Predicated region
  $region150: #{unet_spherical_forward.1} parent=0 // pred_check
    _
  $region151: #{unet_spherical_forward.1} parent=0 // pred_check_branch
    %10589 = sbr.rel (0) target = $region153
  $region152: #{unet_spherical_forward.1} parent=0 // pred_region
    _
  $region153: #{unet_spherical_forward.1} parent=0 // pred_fallthru
    _
  // Predicated region
  $region154: #{unet_spherical_forward.1} parent=0 // pred_check
    _
  $region155: #{unet_spherical_forward.1} parent=0 // pred_check_branch
    %10591 = sbr.rel (0) target = $region157
  $region156: #{unet_spherical_forward.1} parent=0 // pred_region
    _
  $region157: #{unet_spherical_forward.1} parent=0 // pred_fallthru
    _

</llo_original>
